<compile_context>
chip_gen: v7x
topology: tpu7x:2x2x1
jax: 0.10.0
libtpu: 0.0.40
codegen_flags: <defaults>
</compile_context>

<pallas_src>
import numpy as np
import jax
import jax.numpy as jnp
from jax.experimental import pallas as pl
from jax.experimental.pallas import tpu as pltpu

KS = 5      # kernel size (both Bayar and SRM are 5x5)
CIN = 3     # input channels
COUT = 3    # output channels
PAD = 2     # 'same' padding for a 5x5 stride-1 conv

# ---------------------------------------------------------------------------
# SRM fixed filters: compile-time constants, identical across input channels.
# ---------------------------------------------------------------------------
_F1 = [[0, 0, 0, 0, 0],
       [0, -1, 2, -1, 0],
       [0, 2, -4, 2, 0],
       [0, -1, 2, -1, 0],
       [0, 0, 0, 0, 0]]
_F2 = [[-1, 2, -2, 2, -1],
       [2, -6, 8, -6, 2],
       [-2, 8, -12, 8, -2],
       [2, -6, 8, -6, 2],
       [-1, 2, -2, 2, -1]]
_F3 = [[0, 0, 0, 0, 0],
       [0, 0, 0, 0, 0],
       [0, 1, -2, 1, 0],
       [0, 0, 0, 0, 0],
       [0, 0, 0, 0, 0]]
_SRM_Q = np.array([4.0, 12.0, 2.0], dtype=np.float64)
_SRM_F = np.array([_F1, _F2, _F3], dtype=np.float64) / _SRM_Q.reshape(3, 1, 1)


def make_bayar_weight(key):
    """Mirrors BayarConv2d.__init__ + bayarConstraint() math exactly."""
    k = jax.random.uniform(key, (CIN, COUT, KS * KS - 1), dtype=jnp.float32)
    k = k / jnp.sum(k, axis=-1, keepdims=True)
    ctr = (KS * KS) // 2
    minus1 = -jnp.ones((CIN, COUT, 1), jnp.float32)
    real = jnp.concatenate([k[:, :, :ctr], minus1, k[:, :, ctr:]], axis=2)
    # NOTE: PyTorch does a plain reshape (no transpose); reproduce it exactly.
    return real.reshape(COUT, CIN, KS, KS)


def make_srm_weight():
    """Full (COUT, CIN, 5, 5) SRM filter bank (only used by the reference)."""
    return jnp.asarray(np.broadcast_to(_SRM_F[:, None], (COUT, CIN, KS, KS)),
                       dtype=jnp.float32)


# ---------------------------------------------------------------------------
# Pallas kernel: Bayar conv + SRM conv + hardtanh, B_TILE images per grid step
# ---------------------------------------------------------------------------
def _modal_kernel(x_ref, wb_ref, bayar_ref, srm_ref, pad_ref):
    # x_ref:     (BT, CIN, H, W)        VMEM (unpadded input block)
    # wb_ref:    (COUT*CIN*KS*KS,)      SMEM (Bayar constrained weights, flat)
    # bayar_ref: (BT, COUT, H, W)       VMEM output (no clamp)
    # srm_ref:   (BT, COUT, H, W)       VMEM output (Hardtanh(-2, 2))
    # pad_ref:   (BT, CIN, H+4, W+4)    VMEM scratch (zero halo)
    BT, _, H, W = x_ref.shape

    # ---- in-kernel zero padding: zero the halo buffer, copy the interior ----
    pad_ref[...] = jnp.zeros_like(pad_ref)
    pad_ref[:, :, PAD:PAD + H, PAD:PAD + W] = x_ref[...]

    acc_b = [jnp.zeros((BT, H, W), jnp.float32) for _ in range(COUT)]
    acc_s = [jnp.zeros((BT, H, W), jnp.float32) for _ in range(COUT)]

    for ky in range(KS):
        # One row-strip load per (ky, ic); all kx taps below are register
        # slices of these strips (no repeated overlapping VMEM loads).
        strips = [pad_ref[:, ic, ky:ky + H, :] for ic in range(CIN)]
        # SRM filters are identical over input channels -> act on channel sum.
        strip_sum = strips[0] + strips[1] + strips[2]

        for kx in range(KS):
            patches = [s[:, :, kx:kx + W] for s in strips]

            # Bayar: dense runtime weights; each patch reused for all 3 oc.
            for oc in range(COUT):
                for ic in range(CIN):
                    widx = ((oc * CIN + ic) * KS + ky) * KS + kx
                    acc_b[oc] = acc_b[oc] + wb_ref[widx] * patches[ic]

            # SRM: compile-time constant weights, only the nonzero taps.
            sum_patch = None
            for oc in range(COUT):
                w = float(_SRM_F[oc, ky, kx])
                if w == 0.0:
                    continue
                if sum_patch is None:
                    sum_patch = strip_sum[:, :, kx:kx + W]
                acc_s[oc] = acc_s[oc] + w * sum_patch

    for oc in range(COUT):
        bayar_ref[:, oc] = acc_b[oc]
        srm_ref[:, oc] = jnp.clip(acc_s[oc], -2.0, 2.0)  # Hardtanh(-2,2), SRM only


def _pick_batch_tile(n, h, w, budget_bytes=12 * 1024 * 1024):
    # double-buffered input + two outputs, single-buffered padded scratch
    per_img = 4 * (2 * CIN * h * w
                   + CIN * (h + 2 * PAD) * (w + 2 * PAD)
                   + 2 * 2 * COUT * h * w)
    bt = 1
    for d in range(1, n + 1):
        if n % d == 0 and d * per_img <= budget_bytes:
            bt = d
    return bt


def modalities_extractor(x, bayar_w):
    """x: (N, 3, H, W) float32 -> [bayar_out (N,3,H,W), srm_out (N,3,H,W)]"""
    N, C, H, W = x.shape
    assert C == CIN
    wb = bayar_w.reshape(-1).astype(jnp.float32)

    bt = _pick_batch_tile(N, H, W)
    grid = (N // bt,)

    out_shape = (jax.ShapeDtypeStruct((N, COUT, H, W), jnp.float32),
                 jax.ShapeDtypeStruct((N, COUT, H, W), jnp.float32))

    bayar_out, srm_out = pl.pallas_call(
        _modal_kernel,
        out_shape=out_shape,
        grid=grid,
        in_specs=[
            pl.BlockSpec((bt, CIN, H, W), lambda n: (n, 0, 0, 0)),
            pl.BlockSpec(memory_space=pltpu.MemorySpace.SMEM),
        ],
        out_specs=(
            pl.BlockSpec((bt, COUT, H, W), lambda n: (n, 0, 0, 0)),
            pl.BlockSpec((bt, COUT, H, W), lambda n: (n, 0, 0, 0)),
        ),
        scratch_shapes=[
            pltpu.VMEM((bt, CIN, H + 2 * PAD, W + 2 * PAD), jnp.float32),
        ],
        compiler_params=pltpu.CompilerParams(
            dimension_semantics=("parallel",),
            vmem_limit_bytes=32 * 1024 * 1024),
    )(x.astype(jnp.float32), wb)

    # PyTorch forward returns a list; out_channels==3 so no tiling needed.
    return [bayar_out, srm_out]


# ---------------------------------------------------------------------------
# Pure-JAX reference (for correctness check only)
# ---------------------------------------------------------------------------
def _reference(x, bayar_w):
    dn = ("NCHW", "OIHW", "NCHW")
    bayar = jax.lax.conv_general_dilated(
        x, bayar_w, window_strides=(1, 1),
        padding=[(PAD, PAD), (PAD, PAD)], dimension_numbers=dn)
    srm = jax.lax.conv_general_dilated(
        x, make_srm_weight(), window_strides=(1, 1),
        padding=[(PAD, PAD), (PAD, PAD)], dimension_numbers=dn)
    return bayar, jnp.clip(srm, -2.0, 2.0)


if __name__ == "__main__":
    key = jax.random.PRNGKey(0)
    key_x, key_w = jax.random.split(key)

    x = jax.random.normal(key_x, (2, CIN, 16, 16), dtype=jnp.float32)
    bayar_w = make_bayar_weight(key_w)

    outs = modalities_extractor(x, bayar_w)
    for o in outs:
        jax.block_until_ready(o)

    ref_b, ref_s = _reference(x, bayar_w)
    np.testing.assert_allclose(np.asarray(outs[0]), np.asarray(ref_b),
                               rtol=1e-4, atol=1e-4)
    np.testing.assert_allclose(np.asarray(outs[1]), np.asarray(ref_s),
                               rtol=1e-4, atol=1e-4)

    assert outs[0].shape == (2, COUT, 16, 16)
    assert outs[1].shape == (2, COUT, 16, 16)
    print("KERNEL_OK")
</pallas_src>

<mosaic_0001>
module attributes {stable_mosaic.version = 11 : i64} {
  func.func @_modal_kernel(%arg0: i32, %arg1: memref<2x3x16x16xf32, #tpu.memory_space<vmem>>, %arg2: memref<225xf32, #tpu.memory_space<smem>>, %arg3: memref<2x3x16x16xf32, #tpu.memory_space<vmem>>, %arg4: memref<2x3x16x16xf32, #tpu.memory_space<vmem>>, %arg5: memref<2x3x20x20xf32, #tpu.memory_space<vmem>>) attributes {dimension_semantics = [#tpu.dimension_semantics<parallel>], iteration_bounds = array<i64: 1>, scalar_prefetch = 0 : i64, scratch_operands = 1 : i64, tpu.core_type = #tpu.core_type<tc>, window_params = [{transform_indices = @transform_0, window_bounds = array<i64: 2, 3, 16, 16>}, {transform_indices = @transform_1, window_bounds = array<i64: 225>}, {transform_indices = @transform_2, window_bounds = array<i64: 2, 3, 16, 16>}, {transform_indices = @transform_3, window_bounds = array<i64: 2, 3, 16, 16>}]} {
    %cst = arith.constant 0.000000e+00 : f32
    %0 = vector.broadcast %cst : f32 to vector<2x3x20x20xf32>
    %c0 = arith.constant 0 : index
    %c0_0 = arith.constant 0 : index
    %c0_1 = arith.constant 0 : index
    %c0_2 = arith.constant 0 : index
    %1 = vector.load %arg5[%c0, %c0_0, %c0_1, %c0_2] : memref<2x3x20x20xf32, #tpu.memory_space<vmem>>, vector<2x3x20x20xf32>
    tpu.vector_store %arg5[%c0, %c0_0, %c0_1, %c0_2], %0 {strides = array<i32>} : memref<2x3x20x20xf32, #tpu.memory_space<vmem>>, vector<2x3x20x20xf32>,
    %c0_3 = arith.constant 0 : index
    %c0_4 = arith.constant 0 : index
    %c0_5 = arith.constant 0 : index
    %c0_6 = arith.constant 0 : index
    %2 = vector.load %arg1[%c0_3, %c0_4, %c0_5, %c0_6] : memref<2x3x16x16xf32, #tpu.memory_space<vmem>>, vector<2x3x16x16xf32>
    %c0_7 = arith.constant 0 : index
    %c0_8 = arith.constant 0 : index
    %c2 = arith.constant 2 : index
    %c2_9 = arith.constant 2 : index
    %3 = vector.load %arg5[%c0_7, %c0_8, %c2, %c2_9] : memref<2x3x20x20xf32, #tpu.memory_space<vmem>>, vector<2x3x16x16xf32>
    tpu.vector_store %arg5[%c0_7, %c0_8, %c2, %c2_9], %2 {strides = array<i32>} : memref<2x3x20x20xf32, #tpu.memory_space<vmem>>, vector<2x3x16x16xf32>,
    %cst_10 = arith.constant 0.000000e+00 : f32
    %4 = vector.broadcast %cst_10 : f32 to vector<2x16x16xf32>
    %cst_11 = arith.constant 0.000000e+00 : f32
    %5 = vector.broadcast %cst_11 : f32 to vector<2x16x16xf32>
    %cst_12 = arith.constant 0.000000e+00 : f32
    %6 = vector.broadcast %cst_12 : f32 to vector<2x16x16xf32>
    %cst_13 = arith.constant 0.000000e+00 : f32
    %7 = vector.broadcast %cst_13 : f32 to vector<2x16x16xf32>
    %cst_14 = arith.constant 0.000000e+00 : f32
    %8 = vector.broadcast %cst_14 : f32 to vector<2x16x16xf32>
    %cst_15 = arith.constant 0.000000e+00 : f32
    %9 = vector.broadcast %cst_15 : f32 to vector<2x16x16xf32>
    %c0_16 = arith.constant 0 : index
    %c0_17 = arith.constant 0 : index
    %c0_18 = arith.constant 0 : index
    %c0_19 = arith.constant 0 : index
    %10 = vector.load %arg5[%c0_16, %c0_17, %c0_18, %c0_19] : memref<2x3x20x20xf32, #tpu.memory_space<vmem>>, vector<2x1x16x20xf32>
    %11 = vector.shape_cast %10 : vector<2x1x16x20xf32> to vector<2x16x20xf32>
    %c0_20 = arith.constant 0 : index
    %c1 = arith.constant 1 : index
    %c0_21 = arith.constant 0 : index
    %c0_22 = arith.constant 0 : index
    %12 = vector.load %arg5[%c0_20, %c1, %c0_21, %c0_22] : memref<2x3x20x20xf32, #tpu.memory_space<vmem>>, vector<2x1x16x20xf32>
    %13 = vector.shape_cast %12 : vector<2x1x16x20xf32> to vector<2x16x20xf32>
    %c0_23 = arith.constant 0 : index
    %c2_24 = arith.constant 2 : index
    %c0_25 = arith.constant 0 : index
    %c0_26 = arith.constant 0 : index
    %14 = vector.load %arg5[%c0_23, %c2_24, %c0_25, %c0_26] : memref<2x3x20x20xf32, #tpu.memory_space<vmem>>, vector<2x1x16x20xf32>
    %15 = vector.shape_cast %14 : vector<2x1x16x20xf32> to vector<2x16x20xf32>
    %16 = arith.addf %11, %13 : vector<2x16x20xf32>
    %17 = arith.addf %16, %15 : vector<2x16x20xf32>
    %18 = vector.extract_strided_slice %11 {offsets = [0, 0, 0], sizes = [2, 16, 16], strides = [1, 1, 1]} : vector<2x16x20xf32> to vector<2x16x16xf32>
    %19 = vector.extract_strided_slice %13 {offsets = [0, 0, 0], sizes = [2, 16, 16], strides = [1, 1, 1]} : vector<2x16x20xf32> to vector<2x16x16xf32>
    %20 = vector.extract_strided_slice %15 {offsets = [0, 0, 0], sizes = [2, 16, 16], strides = [1, 1, 1]} : vector<2x16x20xf32> to vector<2x16x16xf32>
    %c0_27 = arith.constant 0 : index
    %21 = memref.load %arg2[%c0_27] : memref<225xf32, #tpu.memory_space<smem>>
    %22 = vector.broadcast %21 : f32 to vector<2x16x16xf32>
    %23 = arith.mulf %22, %18 : vector<2x16x16xf32>
    %24 = arith.addf %4, %23 : vector<2x16x16xf32>
    %c25 = arith.constant 25 : index
    %25 = memref.load %arg2[%c25] : memref<225xf32, #tpu.memory_space<smem>>
    %26 = vector.broadcast %25 : f32 to vector<2x16x16xf32>
    %27 = arith.mulf %26, %19 : vector<2x16x16xf32>
    %28 = arith.addf %24, %27 : vector<2x16x16xf32>
    %c50 = arith.constant 50 : index
    %29 = memref.load %arg2[%c50] : memref<225xf32, #tpu.memory_space<smem>>
    %30 = vector.broadcast %29 : f32 to vector<2x16x16xf32>
    %31 = arith.mulf %30, %20 : vector<2x16x16xf32>
    %32 = arith.addf %28, %31 : vector<2x16x16xf32>
    %c75 = arith.constant 75 : index
    %33 = memref.load %arg2[%c75] : memref<225xf32, #tpu.memory_space<smem>>
    %34 = vector.broadcast %33 : f32 to vector<2x16x16xf32>
    %35 = arith.mulf %34, %18 : vector<2x16x16xf32>
    %36 = arith.addf %5, %35 : vector<2x16x16xf32>
    %c100 = arith.constant 100 : index
    %37 = memref.load %arg2[%c100] : memref<225xf32, #tpu.memory_space<smem>>
    %38 = vector.broadcast %37 : f32 to vector<2x16x16xf32>
    %39 = arith.mulf %38, %19 : vector<2x16x16xf32>
    %40 = arith.addf %36, %39 : vector<2x16x16xf32>
    %c125 = arith.constant 125 : index
    %41 = memref.load %arg2[%c125] : memref<225xf32, #tpu.memory_space<smem>>
    %42 = vector.broadcast %41 : f32 to vector<2x16x16xf32>
    %43 = arith.mulf %42, %20 : vector<2x16x16xf32>
    %44 = arith.addf %40, %43 : vector<2x16x16xf32>
    %c150 = arith.constant 150 : index
    %45 = memref.load %arg2[%c150] : memref<225xf32, #tpu.memory_space<smem>>
    %46 = vector.broadcast %45 : f32 to vector<2x16x16xf32>
    %47 = arith.mulf %46, %18 : vector<2x16x16xf32>
    %48 = arith.addf %6, %47 : vector<2x16x16xf32>
    %c175 = arith.constant 175 : index
    %49 = memref.load %arg2[%c175] : memref<225xf32, #tpu.memory_space<smem>>
    %50 = vector.broadcast %49 : f32 to vector<2x16x16xf32>
    %51 = arith.mulf %50, %19 : vector<2x16x16xf32>
    %52 = arith.addf %48, %51 : vector<2x16x16xf32>
    %c200 = arith.constant 200 : index
    %53 = memref.load %arg2[%c200] : memref<225xf32, #tpu.memory_space<smem>>
    %54 = vector.broadcast %53 : f32 to vector<2x16x16xf32>
    %55 = arith.mulf %54, %20 : vector<2x16x16xf32>
    %56 = arith.addf %52, %55 : vector<2x16x16xf32>
    %57 = vector.extract_strided_slice %17 {offsets = [0, 0, 0], sizes = [2, 16, 16], strides = [1, 1, 1]} : vector<2x16x20xf32> to vector<2x16x16xf32>
    %cst_28 = arith.constant -0.0833333358 : f32
    %58 = vector.broadcast %cst_28 : f32 to vector<2x16x16xf32>
    %59 = arith.mulf %58, %57 : vector<2x16x16xf32>
    %60 = arith.addf %8, %59 : vector<2x16x16xf32>
    %61 = vector.extract_strided_slice %11 {offsets = [0, 0, 1], sizes = [2, 16, 16], strides = [1, 1, 1]} : vector<2x16x20xf32> to vector<2x16x16xf32>
    %62 = vector.extract_strided_slice %13 {offsets = [0, 0, 1], sizes = [2, 16, 16], strides = [1, 1, 1]} : vector<2x16x20xf32> to vector<2x16x16xf32>
    %63 = vector.extract_strided_slice %15 {offsets = [0, 0, 1], sizes = [2, 16, 16], strides = [1, 1, 1]} : vector<2x16x20xf32> to vector<2x16x16xf32>
    %c1_29 = arith.constant 1 : index
    %64 = memref.load %arg2[%c1_29] : memref<225xf32, #tpu.memory_space<smem>>
    %65 = vector.broadcast %64 : f32 to vector<2x16x16xf32>
    %66 = arith.mulf %65, %61 : vector<2x16x16xf32>
    %67 = arith.addf %32, %66 : vector<2x16x16xf32>
    %c26 = arith.constant 26 : index
    %68 = memref.load %arg2[%c26] : memref<225xf32, #tpu.memory_space<smem>>
    %69 = vector.broadcast %68 : f32 to vector<2x16x16xf32>
    %70 = arith.mulf %69, %62 : vector<2x16x16xf32>
    %71 = arith.addf %67, %70 : vector<2x16x16xf32>
    %c51 = arith.constant 51 : index
    %72 = memref.load %arg2[%c51] : memref<225xf32, #tpu.memory_space<smem>>
    %73 = vector.broadcast %72 : f32 to vector<2x16x16xf32>
    %74 = arith.mulf %73, %63 : vector<2x16x16xf32>
    %75 = arith.addf %71, %74 : vector<2x16x16xf32>
    %c76 = arith.constant 76 : index
    %76 = memref.load %arg2[%c76] : memref<225xf32, #tpu.memory_space<smem>>
    %77 = vector.broadcast %76 : f32 to vector<2x16x16xf32>
    %78 = arith.mulf %77, %61 : vector<2x16x16xf32>
    %79 = arith.addf %44, %78 : vector<2x16x16xf32>
    %c101 = arith.constant 101 : index
    %80 = memref.load %arg2[%c101] : memref<225xf32, #tpu.memory_space<smem>>
    %81 = vector.broadcast %80 : f32 to vector<2x16x16xf32>
    %82 = arith.mulf %81, %62 : vector<2x16x16xf32>
    %83 = arith.addf %79, %82 : vector<2x16x16xf32>
    %c126 = arith.constant 126 : index
    %84 = memref.load %arg2[%c126] : memref<225xf32, #tpu.memory_space<smem>>
    %85 = vector.broadcast %84 : f32 to vector<2x16x16xf32>
    %86 = arith.mulf %85, %63 : vector<2x16x16xf32>
    %87 = arith.addf %83, %86 : vector<2x16x16xf32>
    %c151 = arith.constant 151 : index
    %88 = memref.load %arg2[%c151] : memref<225xf32, #tpu.memory_space<smem>>
    %89 = vector.broadcast %88 : f32 to vector<2x16x16xf32>
    %90 = arith.mulf %89, %61 : vector<2x16x16xf32>
    %91 = arith.addf %56, %90 : vector<2x16x16xf32>
    %c176 = arith.constant 176 : index
    %92 = memref.load %arg2[%c176] : memref<225xf32, #tpu.memory_space<smem>>
    %93 = vector.broadcast %92 : f32 to vector<2x16x16xf32>
    %94 = arith.mulf %93, %62 : vector<2x16x16xf32>
    %95 = arith.addf %91, %94 : vector<2x16x16xf32>
    %c201 = arith.constant 201 : index
    %96 = memref.load %arg2[%c201] : memref<225xf32, #tpu.memory_space<smem>>
    %97 = vector.broadcast %96 : f32 to vector<2x16x16xf32>
    %98 = arith.mulf %97, %63 : vector<2x16x16xf32>
    %99 = arith.addf %95, %98 : vector<2x16x16xf32>
    %100 = vector.extract_strided_slice %17 {offsets = [0, 0, 1], sizes = [2, 16, 16], strides = [1, 1, 1]} : vector<2x16x20xf32> to vector<2x16x16xf32>
    %cst_30 = arith.constant 0.166666672 : f32
    %101 = vector.broadcast %cst_30 : f32 to vector<2x16x16xf32>
    %102 = arith.mulf %101, %100 : vector<2x16x16xf32>
    %103 = arith.addf %60, %102 : vector<2x16x16xf32>
    %104 = vector.extract_strided_slice %11 {offsets = [0, 0, 2], sizes = [2, 16, 16], strides = [1, 1, 1]} : vector<2x16x20xf32> to vector<2x16x16xf32>
    %105 = vector.extract_strided_slice %13 {offsets = [0, 0, 2], sizes = [2, 16, 16], strides = [1, 1, 1]} : vector<2x16x20xf32> to vector<2x16x16xf32>
    %106 = vector.extract_strided_slice %15 {offsets = [0, 0, 2], sizes = [2, 16, 16], strides = [1, 1, 1]} : vector<2x16x20xf32> to vector<2x16x16xf32>
    %c2_31 = arith.constant 2 : index
    %107 = memref.load %arg2[%c2_31] : memref<225xf32, #tpu.memory_space<smem>>
    %108 = vector.broadcast %107 : f32 to vector<2x16x16xf32>
    %109 = arith.mulf %108, %104 : vector<2x16x16xf32>
    %110 = arith.addf %75, %109 : vector<2x16x16xf32>
    %c27 = arith.constant 27 : index
    %111 = memref.load %arg2[%c27] : memref<225xf32, #tpu.memory_space<smem>>
    %112 = vector.broadcast %111 : f32 to vector<2x16x16xf32>
    %113 = arith.mulf %112, %105 : vector<2x16x16xf32>
    %114 = arith.addf %110, %113 : vector<2x16x16xf32>
    %c52 = arith.constant 52 : index
    %115 = memref.load %arg2[%c52] : memref<225xf32, #tpu.memory_space<smem>>
    %116 = vector.broadcast %115 : f32 to vector<2x16x16xf32>
    %117 = arith.mulf %116, %106 : vector<2x16x16xf32>
    %118 = arith.addf %114, %117 : vector<2x16x16xf32>
    %c77 = arith.constant 77 : index
    %119 = memref.load %arg2[%c77] : memref<225xf32, #tpu.memory_space<smem>>
    %120 = vector.broadcast %119 : f32 to vector<2x16x16xf32>
    %121 = arith.mulf %120, %104 : vector<2x16x16xf32>
    %122 = arith.addf %87, %121 : vector<2x16x16xf32>
    %c102 = arith.constant 102 : index
    %123 = memref.load %arg2[%c102] : memref<225xf32, #tpu.memory_space<smem>>
    %124 = vector.broadcast %123 : f32 to vector<2x16x16xf32>
    %125 = arith.mulf %124, %105 : vector<2x16x16xf32>
    %126 = arith.addf %122, %125 : vector<2x16x16xf32>
    %c127 = arith.constant 127 : index
    %127 = memref.load %arg2[%c127] : memref<225xf32, #tpu.memory_space<smem>>
    %128 = vector.broadcast %127 : f32 to vector<2x16x16xf32>
    %129 = arith.mulf %128, %106 : vector<2x16x16xf32>
    %130 = arith.addf %126, %129 : vector<2x16x16xf32>
    %c152 = arith.constant 152 : index
    %131 = memref.load %arg2[%c152] : memref<225xf32, #tpu.memory_space<smem>>
    %132 = vector.broadcast %131 : f32 to vector<2x16x16xf32>
    %133 = arith.mulf %132, %104 : vector<2x16x16xf32>
    %134 = arith.addf %99, %133 : vector<2x16x16xf32>
    %c177 = arith.constant 177 : index
    %135 = memref.load %arg2[%c177] : memref<225xf32, #tpu.memory_space<smem>>
    %136 = vector.broadcast %135 : f32 to vector<2x16x16xf32>
    %137 = arith.mulf %136, %105 : vector<2x16x16xf32>
    %138 = arith.addf %134, %137 : vector<2x16x16xf32>
    %c202 = arith.constant 202 : index
    %139 = memref.load %arg2[%c202] : memref<225xf32, #tpu.memory_space<smem>>
    %140 = vector.broadcast %139 : f32 to vector<2x16x16xf32>
    %141 = arith.mulf %140, %106 : vector<2x16x16xf32>
    %142 = arith.addf %138, %141 : vector<2x16x16xf32>
    %143 = vector.extract_strided_slice %17 {offsets = [0, 0, 2], sizes = [2, 16, 16], strides = [1, 1, 1]} : vector<2x16x20xf32> to vector<2x16x16xf32>
    %cst_32 = arith.constant -0.166666672 : f32
    %144 = vector.broadcast %cst_32 : f32 to vector<2x16x16xf32>
    %145 = arith.mulf %144, %143 : vector<2x16x16xf32>
    %146 = arith.addf %103, %145 : vector<2x16x16xf32>
    %147 = vector.extract_strided_slice %11 {offsets = [0, 0, 3], sizes = [2, 16, 16], strides = [1, 1, 1]} : vector<2x16x20xf32> to vector<2x16x16xf32>
    %148 = vector.extract_strided_slice %13 {offsets = [0, 0, 3], sizes = [2, 16, 16], strides = [1, 1, 1]} : vector<2x16x20xf32> to vector<2x16x16xf32>
    %149 = vector.extract_strided_slice %15 {offsets = [0, 0, 3], sizes = [2, 16, 16], strides = [1, 1, 1]} : vector<2x16x20xf32> to vector<2x16x16xf32>
    %c3 = arith.constant 3 : index
    %150 = memref.load %arg2[%c3] : memref<225xf32, #tpu.memory_space<smem>>
    %151 = vector.broadcast %150 : f32 to vector<2x16x16xf32>
    %152 = arith.mulf %151, %147 : vector<2x16x16xf32>
    %153 = arith.addf %118, %152 : vector<2x16x16xf32>
    %c28 = arith.constant 28 : index
    %154 = memref.load %arg2[%c28] : memref<225xf32, #tpu.memory_space<smem>>
    %155 = vector.broadcast %154 : f32 to vector<2x16x16xf32>
    %156 = arith.mulf %155, %148 : vector<2x16x16xf32>
    %157 = arith.addf %153, %156 : vector<2x16x16xf32>
    %c53 = arith.constant 53 : index
    %158 = memref.load %arg2[%c53] : memref<225xf32, #tpu.memory_space<smem>>
    %159 = vector.broadcast %158 : f32 to vector<2x16x16xf32>
    %160 = arith.mulf %159, %149 : vector<2x16x16xf32>
    %161 = arith.addf %157, %160 : vector<2x16x16xf32>
    %c78 = arith.constant 78 : index
    %162 = memref.load %arg2[%c78] : memref<225xf32, #tpu.memory_space<smem>>
    %163 = vector.broadcast %162 : f32 to vector<2x16x16xf32>
    %164 = arith.mulf %163, %147 : vector<2x16x16xf32>
    %165 = arith.addf %130, %164 : vector<2x16x16xf32>
    %c103 = arith.constant 103 : index
    %166 = memref.load %arg2[%c103] : memref<225xf32, #tpu.memory_space<smem>>
    %167 = vector.broadcast %166 : f32 to vector<2x16x16xf32>
    %168 = arith.mulf %167, %148 : vector<2x16x16xf32>
    %169 = arith.addf %165, %168 : vector<2x16x16xf32>
    %c128 = arith.constant 128 : index
    %170 = memref.load %arg2[%c128] : memref<225xf32, #tpu.memory_space<smem>>
    %171 = vector.broadcast %170 : f32 to vector<2x16x16xf32>
    %172 = arith.mulf %171, %149 : vector<2x16x16xf32>
    %173 = arith.addf %169, %172 : vector<2x16x16xf32>
    %c153 = arith.constant 153 : index
    %174 = memref.load %arg2[%c153] : memref<225xf32, #tpu.memory_space<smem>>
    %175 = vector.broadcast %174 : f32 to vector<2x16x16xf32>
    %176 = arith.mulf %175, %147 : vector<2x16x16xf32>
    %177 = arith.addf %142, %176 : vector<2x16x16xf32>
    %c178 = arith.constant 178 : index
    %178 = memref.load %arg2[%c178] : memref<225xf32, #tpu.memory_space<smem>>
    %179 = vector.broadcast %178 : f32 to vector<2x16x16xf32>
    %180 = arith.mulf %179, %148 : vector<2x16x16xf32>
    %181 = arith.addf %177, %180 : vector<2x16x16xf32>
    %c203 = arith.constant 203 : index
    %182 = memref.load %arg2[%c203] : memref<225xf32, #tpu.memory_space<smem>>
    %183 = vector.broadcast %182 : f32 to vector<2x16x16xf32>
    %184 = arith.mulf %183, %149 : vector<2x16x16xf32>
    %185 = arith.addf %181, %184 : vector<2x16x16xf32>
    %186 = vector.extract_strided_slice %17 {offsets = [0, 0, 3], sizes = [2, 16, 16], strides = [1, 1, 1]} : vector<2x16x20xf32> to vector<2x16x16xf32>
    %cst_33 = arith.constant 0.166666672 : f32
    %187 = vector.broadcast %cst_33 : f32 to vector<2x16x16xf32>
    %188 = arith.mulf %187, %186 : vector<2x16x16xf32>
    %189 = arith.addf %146, %188 : vector<2x16x16xf32>
    %190 = vector.extract_strided_slice %11 {offsets = [0, 0, 4], sizes = [2, 16, 16], strides = [1, 1, 1]} : vector<2x16x20xf32> to vector<2x16x16xf32>
    %191 = vector.extract_strided_slice %13 {offsets = [0, 0, 4], sizes = [2, 16, 16], strides = [1, 1, 1]} : vector<2x16x20xf32> to vector<2x16x16xf32>
    %192 = vector.extract_strided_slice %15 {offsets = [0, 0, 4], sizes = [2, 16, 16], strides = [1, 1, 1]} : vector<2x16x20xf32> to vector<2x16x16xf32>
    %c4 = arith.constant 4 : index
    %193 = memref.load %arg2[%c4] : memref<225xf32, #tpu.memory_space<smem>>
    %194 = vector.broadcast %193 : f32 to vector<2x16x16xf32>
    %195 = arith.mulf %194, %190 : vector<2x16x16xf32>
    %196 = arith.addf %161, %195 : vector<2x16x16xf32>
    %c29 = arith.constant 29 : index
    %197 = memref.load %arg2[%c29] : memref<225xf32, #tpu.memory_space<smem>>
    %198 = vector.broadcast %197 : f32 to vector<2x16x16xf32>
    %199 = arith.mulf %198, %191 : vector<2x16x16xf32>
    %200 = arith.addf %196, %199 : vector<2x16x16xf32>
    %c54 = arith.constant 54 : index
    %201 = memref.load %arg2[%c54] : memref<225xf32, #tpu.memory_space<smem>>
    %202 = vector.broadcast %201 : f32 to vector<2x16x16xf32>
    %203 = arith.mulf %202, %192 : vector<2x16x16xf32>
    %204 = arith.addf %200, %203 : vector<2x16x16xf32>
    %c79 = arith.constant 79 : index
    %205 = memref.load %arg2[%c79] : memref<225xf32, #tpu.memory_space<smem>>
    %206 = vector.broadcast %205 : f32 to vector<2x16x16xf32>
    %207 = arith.mulf %206, %190 : vector<2x16x16xf32>
    %208 = arith.addf %173, %207 : vector<2x16x16xf32>
    %c104 = arith.constant 104 : index
    %209 = memref.load %arg2[%c104] : memref<225xf32, #tpu.memory_space<smem>>
    %210 = vector.broadcast %209 : f32 to vector<2x16x16xf32>
    %211 = arith.mulf %210, %191 : vector<2x16x16xf32>
    %212 = arith.addf %208, %211 : vector<2x16x16xf32>
    %c129 = arith.constant 129 : index
    %213 = memref.load %arg2[%c129] : memref<225xf32, #tpu.memory_space<smem>>
    %214 = vector.broadcast %213 : f32 to vector<2x16x16xf32>
    %215 = arith.mulf %214, %192 : vector<2x16x16xf32>
    %216 = arith.addf %212, %215 : vector<2x16x16xf32>
    %c154 = arith.constant 154 : index
    %217 = memref.load %arg2[%c154] : memref<225xf32, #tpu.memory_space<smem>>
    %218 = vector.broadcast %217 : f32 to vector<2x16x16xf32>
    %219 = arith.mulf %218, %190 : vector<2x16x16xf32>
    %220 = arith.addf %185, %219 : vector<2x16x16xf32>
    %c179 = arith.constant 179 : index
    %221 = memref.load %arg2[%c179] : memref<225xf32, #tpu.memory_space<smem>>
    %222 = vector.broadcast %221 : f32 to vector<2x16x16xf32>
    %223 = arith.mulf %222, %191 : vector<2x16x16xf32>
    %224 = arith.addf %220, %223 : vector<2x16x16xf32>
    %c204 = arith.constant 204 : index
    %225 = memref.load %arg2[%c204] : memref<225xf32, #tpu.memory_space<smem>>
    %226 = vector.broadcast %225 : f32 to vector<2x16x16xf32>
    %227 = arith.mulf %226, %192 : vector<2x16x16xf32>
    %228 = arith.addf %224, %227 : vector<2x16x16xf32>
    %229 = vector.extract_strided_slice %17 {offsets = [0, 0, 4], sizes = [2, 16, 16], strides = [1, 1, 1]} : vector<2x16x20xf32> to vector<2x16x16xf32>
    %cst_34 = arith.constant -0.0833333358 : f32
    %230 = vector.broadcast %cst_34 : f32 to vector<2x16x16xf32>
    %231 = arith.mulf %230, %229 : vector<2x16x16xf32>
    %232 = arith.addf %189, %231 : vector<2x16x16xf32>
    %c0_35 = arith.constant 0 : index
    %c0_36 = arith.constant 0 : index
    %c1_37 = arith.constant 1 : index
    %c0_38 = arith.constant 0 : index
    %233 = vector.load %arg5[%c0_35, %c0_36, %c1_37, %c0_38] : memref<2x3x20x20xf32, #tpu.memory_space<vmem>>, vector<2x1x16x20xf32>
    %234 = vector.shape_cast %233 : vector<2x1x16x20xf32> to vector<2x16x20xf32>
    %c0_39 = arith.constant 0 : index
    %c1_40 = arith.constant 1 : index
    %c1_41 = arith.constant 1 : index
    %c0_42 = arith.constant 0 : index
    %235 = vector.load %arg5[%c0_39, %c1_40, %c1_41, %c0_42] : memref<2x3x20x20xf32, #tpu.memory_space<vmem>>, vector<2x1x16x20xf32>
    %236 = vector.shape_cast %235 : vector<2x1x16x20xf32> to vector<2x16x20xf32>
    %c0_43 = arith.constant 0 : index
    %c2_44 = arith.constant 2 : index
    %c1_45 = arith.constant 1 : index
    %c0_46 = arith.constant 0 : index
    %237 = vector.load %arg5[%c0_43, %c2_44, %c1_45, %c0_46] : memref<2x3x20x20xf32, #tpu.memory_space<vmem>>, vector<2x1x16x20xf32>
    %238 = vector.shape_cast %237 : vector<2x1x16x20xf32> to vector<2x16x20xf32>
    %239 = arith.addf %234, %236 : vector<2x16x20xf32>
    %240 = arith.addf %239, %238 : vector<2x16x20xf32>
    %241 = vector.extract_strided_slice %234 {offsets = [0, 0, 0], sizes = [2, 16, 16], strides = [1, 1, 1]} : vector<2x16x20xf32> to vector<2x16x16xf32>
    %242 = vector.extract_strided_slice %236 {offsets = [0, 0, 0], sizes = [2, 16, 16], strides = [1, 1, 1]} : vector<2x16x20xf32> to vector<2x16x16xf32>
    %243 = vector.extract_strided_slice %238 {offsets = [0, 0, 0], sizes = [2, 16, 16], strides = [1, 1, 1]} : vector<2x16x20xf32> to vector<2x16x16xf32>
    %c5 = arith.constant 5 : index
    %244 = memref.load %arg2[%c5] : memref<225xf32, #tpu.memory_space<smem>>
    %245 = vector.broadcast %244 : f32 to vector<2x16x16xf32>
    %246 = arith.mulf %245, %241 : vector<2x16x16xf32>
    %247 = arith.addf %204, %246 : vector<2x16x16xf32>
    %c30 = arith.constant 30 : index
    %248 = memref.load %arg2[%c30] : memref<225xf32, #tpu.memory_space<smem>>
    %249 = vector.broadcast %248 : f32 to vector<2x16x16xf32>
    %250 = arith.mulf %249, %242 : vector<2x16x16xf32>
    %251 = arith.addf %247, %250 : vector<2x16x16xf32>
    %c55 = arith.constant 55 : index
    %252 = memref.load %arg2[%c55] : memref<225xf32, #tpu.memory_space<smem>>
    %253 = vector.broadcast %252 : f32 to vector<2x16x16xf32>
    %254 = arith.mulf %253, %243 : vector<2x16x16xf32>
    %255 = arith.addf %251, %254 : vector<2x16x16xf32>
    %c80 = arith.constant 80 : index
    %256 = memref.load %arg2[%c80] : memref<225xf32, #tpu.memory_space<smem>>
    %257 = vector.broadcast %256 : f32 to vector<2x16x16xf32>
    %258 = arith.mulf %257, %241 : vector<2x16x16xf32>
    %259 = arith.addf %216, %258 : vector<2x16x16xf32>
    %c105 = arith.constant 105 : index
    %260 = memref.load %arg2[%c105] : memref<225xf32, #tpu.memory_space<smem>>
    %261 = vector.broadcast %260 : f32 to vector<2x16x16xf32>
    %262 = arith.mulf %261, %242 : vector<2x16x16xf32>
    %263 = arith.addf %259, %262 : vector<2x16x16xf32>
    %c130 = arith.constant 130 : index
    %264 = memref.load %arg2[%c130] : memref<225xf32, #tpu.memory_space<smem>>
    %265 = vector.broadcast %264 : f32 to vector<2x16x16xf32>
    %266 = arith.mulf %265, %243 : vector<2x16x16xf32>
    %267 = arith.addf %263, %266 : vector<2x16x16xf32>
    %c155 = arith.constant 155 : index
    %268 = memref.load %arg2[%c155] : memref<225xf32, #tpu.memory_space<smem>>
    %269 = vector.broadcast %268 : f32 to vector<2x16x16xf32>
    %270 = arith.mulf %269, %241 : vector<2x16x16xf32>
    %271 = arith.addf %228, %270 : vector<2x16x16xf32>
    %c180 = arith.constant 180 : index
    %272 = memref.load %arg2[%c180] : memref<225xf32, #tpu.memory_space<smem>>
    %273 = vector.broadcast %272 : f32 to vector<2x16x16xf32>
    %274 = arith.mulf %273, %242 : vector<2x16x16xf32>
    %275 = arith.addf %271, %274 : vector<2x16x16xf32>
    %c205 = arith.constant 205 : index
    %276 = memref.load %arg2[%c205] : memref<225xf32, #tpu.memory_space<smem>>
    %277 = vector.broadcast %276 : f32 to vector<2x16x16xf32>
    %278 = arith.mulf %277, %243 : vector<2x16x16xf32>
    %279 = arith.addf %275, %278 : vector<2x16x16xf32>
    %280 = vector.extract_strided_slice %240 {offsets = [0, 0, 0], sizes = [2, 16, 16], strides = [1, 1, 1]} : vector<2x16x20xf32> to vector<2x16x16xf32>
    %cst_47 = arith.constant 0.166666672 : f32
    %281 = vector.broadcast %cst_47 : f32 to vector<2x16x16xf32>
    %282 = arith.mulf %281, %280 : vector<2x16x16xf32>
    %283 = arith.addf %232, %282 : vector<2x16x16xf32>
    %284 = vector.extract_strided_slice %234 {offsets = [0, 0, 1], sizes = [2, 16, 16], strides = [1, 1, 1]} : vector<2x16x20xf32> to vector<2x16x16xf32>
    %285 = vector.extract_strided_slice %236 {offsets = [0, 0, 1], sizes = [2, 16, 16], strides = [1, 1, 1]} : vector<2x16x20xf32> to vector<2x16x16xf32>
    %286 = vector.extract_strided_slice %238 {offsets = [0, 0, 1], sizes = [2, 16, 16], strides = [1, 1, 1]} : vector<2x16x20xf32> to vector<2x16x16xf32>
    %c6 = arith.constant 6 : index
    %287 = memref.load %arg2[%c6] : memref<225xf32, #tpu.memory_space<smem>>
    %288 = vector.broadcast %287 : f32 to vector<2x16x16xf32>
    %289 = arith.mulf %288, %284 : vector<2x16x16xf32>
    %290 = arith.addf %255, %289 : vector<2x16x16xf32>
    %c31 = arith.constant 31 : index
    %291 = memref.load %arg2[%c31] : memref<225xf32, #tpu.memory_space<smem>>
    %292 = vector.broadcast %291 : f32 to vector<2x16x16xf32>
    %293 = arith.mulf %292, %285 : vector<2x16x16xf32>
    %294 = arith.addf %290, %293 : vector<2x16x16xf32>
    %c56 = arith.constant 56 : index
    %295 = memref.load %arg2[%c56] : memref<225xf32, #tpu.memory_space<smem>>
    %296 = vector.broadcast %295 : f32 to vector<2x16x16xf32>
    %297 = arith.mulf %296, %286 : vector<2x16x16xf32>
    %298 = arith.addf %294, %297 : vector<2x16x16xf32>
    %c81 = arith.constant 81 : index
    %299 = memref.load %arg2[%c81] : memref<225xf32, #tpu.memory_space<smem>>
    %300 = vector.broadcast %299 : f32 to vector<2x16x16xf32>
    %301 = arith.mulf %300, %284 : vector<2x16x16xf32>
    %302 = arith.addf %267, %301 : vector<2x16x16xf32>
    %c106 = arith.constant 106 : index
    %303 = memref.load %arg2[%c106] : memref<225xf32, #tpu.memory_space<smem>>
    %304 = vector.broadcast %303 : f32 to vector<2x16x16xf32>
    %305 = arith.mulf %304, %285 : vector<2x16x16xf32>
    %306 = arith.addf %302, %305 : vector<2x16x16xf32>
    %c131 = arith.constant 131 : index
    %307 = memref.load %arg2[%c131] : memref<225xf32, #tpu.memory_space<smem>>
    %308 = vector.broadcast %307 : f32 to vector<2x16x16xf32>
    %309 = arith.mulf %308, %286 : vector<2x16x16xf32>
    %310 = arith.addf %306, %309 : vector<2x16x16xf32>
    %c156 = arith.constant 156 : index
    %311 = memref.load %arg2[%c156] : memref<225xf32, #tpu.memory_space<smem>>
    %312 = vector.broadcast %311 : f32 to vector<2x16x16xf32>
    %313 = arith.mulf %312, %284 : vector<2x16x16xf32>
    %314 = arith.addf %279, %313 : vector<2x16x16xf32>
    %c181 = arith.constant 181 : index
    %315 = memref.load %arg2[%c181] : memref<225xf32, #tpu.memory_space<smem>>
    %316 = vector.broadcast %315 : f32 to vector<2x16x16xf32>
    %317 = arith.mulf %316, %285 : vector<2x16x16xf32>
    %318 = arith.addf %314, %317 : vector<2x16x16xf32>
    %c206 = arith.constant 206 : index
    %319 = memref.load %arg2[%c206] : memref<225xf32, #tpu.memory_space<smem>>
    %320 = vector.broadcast %319 : f32 to vector<2x16x16xf32>
    %321 = arith.mulf %320, %286 : vector<2x16x16xf32>
    %322 = arith.addf %318, %321 : vector<2x16x16xf32>
    %323 = vector.extract_strided_slice %240 {offsets = [0, 0, 1], sizes = [2, 16, 16], strides = [1, 1, 1]} : vector<2x16x20xf32> to vector<2x16x16xf32>
    %cst_48 = arith.constant -2.500000e-01 : f32
    %324 = vector.broadcast %cst_48 : f32 to vector<2x16x16xf32>
    %325 = arith.mulf %324, %323 : vector<2x16x16xf32>
    %326 = arith.addf %7, %325 : vector<2x16x16xf32>
    %cst_49 = arith.constant -5.000000e-01 : f32
    %327 = vector.broadcast %cst_49 : f32 to vector<2x16x16xf32>
    %328 = arith.mulf %327, %323 : vector<2x16x16xf32>
    %329 = arith.addf %283, %328 : vector<2x16x16xf32>
    %330 = vector.extract_strided_slice %234 {offsets = [0, 0, 2], sizes = [2, 16, 16], strides = [1, 1, 1]} : vector<2x16x20xf32> to vector<2x16x16xf32>
    %331 = vector.extract_strided_slice %236 {offsets = [0, 0, 2], sizes = [2, 16, 16], strides = [1, 1, 1]} : vector<2x16x20xf32> to vector<2x16x16xf32>
    %332 = vector.extract_strided_slice %238 {offsets = [0, 0, 2], sizes = [2, 16, 16], strides = [1, 1, 1]} : vector<2x16x20xf32> to vector<2x16x16xf32>
    %c7 = arith.constant 7 : index
    %333 = memref.load %arg2[%c7] : memref<225xf32, #tpu.memory_space<smem>>
    %334 = vector.broadcast %333 : f32 to vector<2x16x16xf32>
    %335 = arith.mulf %334, %330 : vector<2x16x16xf32>
    %336 = arith.addf %298, %335 : vector<2x16x16xf32>
    %c32 = arith.constant 32 : index
    %337 = memref.load %arg2[%c32] : memref<225xf32, #tpu.memory_space<smem>>
    %338 = vector.broadcast %337 : f32 to vector<2x16x16xf32>
    %339 = arith.mulf %338, %331 : vector<2x16x16xf32>
    %340 = arith.addf %336, %339 : vector<2x16x16xf32>
    %c57 = arith.constant 57 : index
    %341 = memref.load %arg2[%c57] : memref<225xf32, #tpu.memory_space<smem>>
    %342 = vector.broadcast %341 : f32 to vector<2x16x16xf32>
    %343 = arith.mulf %342, %332 : vector<2x16x16xf32>
    %344 = arith.addf %340, %343 : vector<2x16x16xf32>
    %c82 = arith.constant 82 : index
    %345 = memref.load %arg2[%c82] : memref<225xf32, #tpu.memory_space<smem>>
    %346 = vector.broadcast %345 : f32 to vector<2x16x16xf32>
    %347 = arith.mulf %346, %330 : vector<2x16x16xf32>
    %348 = arith.addf %310, %347 : vector<2x16x16xf32>
    %c107 = arith.constant 107 : index
    %349 = memref.load %arg2[%c107] : memref<225xf32, #tpu.memory_space<smem>>
    %350 = vector.broadcast %349 : f32 to vector<2x16x16xf32>
    %351 = arith.mulf %350, %331 : vector<2x16x16xf32>
    %352 = arith.addf %348, %351 : vector<2x16x16xf32>
    %c132 = arith.constant 132 : index
    %353 = memref.load %arg2[%c132] : memref<225xf32, #tpu.memory_space<smem>>
    %354 = vector.broadcast %353 : f32 to vector<2x16x16xf32>
    %355 = arith.mulf %354, %332 : vector<2x16x16xf32>
    %356 = arith.addf %352, %355 : vector<2x16x16xf32>
    %c157 = arith.constant 157 : index
    %357 = memref.load %arg2[%c157] : memref<225xf32, #tpu.memory_space<smem>>
    %358 = vector.broadcast %357 : f32 to vector<2x16x16xf32>
    %359 = arith.mulf %358, %330 : vector<2x16x16xf32>
    %360 = arith.addf %322, %359 : vector<2x16x16xf32>
    %c182 = arith.constant 182 : index
    %361 = memref.load %arg2[%c182] : memref<225xf32, #tpu.memory_space<smem>>
    %362 = vector.broadcast %361 : f32 to vector<2x16x16xf32>
    %363 = arith.mulf %362, %331 : vector<2x16x16xf32>
    %364 = arith.addf %360, %363 : vector<2x16x16xf32>
    %c207 = arith.constant 207 : index
    %365 = memref.load %arg2[%c207] : memref<225xf32, #tpu.memory_space<smem>>
    %366 = vector.broadcast %365 : f32 to vector<2x16x16xf32>
    %367 = arith.mulf %366, %332 : vector<2x16x16xf32>
    %368 = arith.addf %364, %367 : vector<2x16x16xf32>
    %369 = vector.extract_strided_slice %240 {offsets = [0, 0, 2], sizes = [2, 16, 16], strides = [1, 1, 1]} : vector<2x16x20xf32> to vector<2x16x16xf32>
    %cst_50 = arith.constant 5.000000e-01 : f32
    %370 = vector.broadcast %cst_50 : f32 to vector<2x16x16xf32>
    %371 = arith.mulf %370, %369 : vector<2x16x16xf32>
    %372 = arith.addf %326, %371 : vector<2x16x16xf32>
    %cst_51 = arith.constant 0.666666686 : f32
    %373 = vector.broadcast %cst_51 : f32 to vector<2x16x16xf32>
    %374 = arith.mulf %373, %369 : vector<2x16x16xf32>
    %375 = arith.addf %329, %374 : vector<2x16x16xf32>
    %376 = vector.extract_strided_slice %234 {offsets = [0, 0, 3], sizes = [2, 16, 16], strides = [1, 1, 1]} : vector<2x16x20xf32> to vector<2x16x16xf32>
    %377 = vector.extract_strided_slice %236 {offsets = [0, 0, 3], sizes = [2, 16, 16], strides = [1, 1, 1]} : vector<2x16x20xf32> to vector<2x16x16xf32>
    %378 = vector.extract_strided_slice %238 {offsets = [0, 0, 3], sizes = [2, 16, 16], strides = [1, 1, 1]} : vector<2x16x20xf32> to vector<2x16x16xf32>
    %c8 = arith.constant 8 : index
    %379 = memref.load %arg2[%c8] : memref<225xf32, #tpu.memory_space<smem>>
    %380 = vector.broadcast %379 : f32 to vector<2x16x16xf32>
    %381 = arith.mulf %380, %376 : vector<2x16x16xf32>
    %382 = arith.addf %344, %381 : vector<2x16x16xf32>
    %c33 = arith.constant 33 : index
    %383 = memref.load %arg2[%c33] : memref<225xf32, #tpu.memory_space<smem>>
    %384 = vector.broadcast %383 : f32 to vector<2x16x16xf32>
    %385 = arith.mulf %384, %377 : vector<2x16x16xf32>
    %386 = arith.addf %382, %385 : vector<2x16x16xf32>
    %c58 = arith.constant 58 : index
    %387 = memref.load %arg2[%c58] : memref<225xf32, #tpu.memory_space<smem>>
    %388 = vector.broadcast %387 : f32 to vector<2x16x16xf32>
    %389 = arith.mulf %388, %378 : vector<2x16x16xf32>
    %390 = arith.addf %386, %389 : vector<2x16x16xf32>
    %c83 = arith.constant 83 : index
    %391 = memref.load %arg2[%c83] : memref<225xf32, #tpu.memory_space<smem>>
    %392 = vector.broadcast %391 : f32 to vector<2x16x16xf32>
    %393 = arith.mulf %392, %376 : vector<2x16x16xf32>
    %394 = arith.addf %356, %393 : vector<2x16x16xf32>
    %c108 = arith.constant 108 : index
    %395 = memref.load %arg2[%c108] : memref<225xf32, #tpu.memory_space<smem>>
    %396 = vector.broadcast %395 : f32 to vector<2x16x16xf32>
    %397 = arith.mulf %396, %377 : vector<2x16x16xf32>
    %398 = arith.addf %394, %397 : vector<2x16x16xf32>
    %c133 = arith.constant 133 : index
    %399 = memref.load %arg2[%c133] : memref<225xf32, #tpu.memory_space<smem>>
    %400 = vector.broadcast %399 : f32 to vector<2x16x16xf32>
    %401 = arith.mulf %400, %378 : vector<2x16x16xf32>
    %402 = arith.addf %398, %401 : vector<2x16x16xf32>
    %c158 = arith.constant 158 : index
    %403 = memref.load %arg2[%c158] : memref<225xf32, #tpu.memory_space<smem>>
    %404 = vector.broadcast %403 : f32 to vector<2x16x16xf32>
    %405 = arith.mulf %404, %376 : vector<2x16x16xf32>
    %406 = arith.addf %368, %405 : vector<2x16x16xf32>
    %c183 = arith.constant 183 : index
    %407 = memref.load %arg2[%c183] : memref<225xf32, #tpu.memory_space<smem>>
    %408 = vector.broadcast %407 : f32 to vector<2x16x16xf32>
    %409 = arith.mulf %408, %377 : vector<2x16x16xf32>
    %410 = arith.addf %406, %409 : vector<2x16x16xf32>
    %c208 = arith.constant 208 : index
    %411 = memref.load %arg2[%c208] : memref<225xf32, #tpu.memory_space<smem>>
    %412 = vector.broadcast %411 : f32 to vector<2x16x16xf32>
    %413 = arith.mulf %412, %378 : vector<2x16x16xf32>
    %414 = arith.addf %410, %413 : vector<2x16x16xf32>
    %415 = vector.extract_strided_slice %240 {offsets = [0, 0, 3], sizes = [2, 16, 16], strides = [1, 1, 1]} : vector<2x16x20xf32> to vector<2x16x16xf32>
    %cst_52 = arith.constant -2.500000e-01 : f32
    %416 = vector.broadcast %cst_52 : f32 to vector<2x16x16xf32>
    %417 = arith.mulf %416, %415 : vector<2x16x16xf32>
    %418 = arith.addf %372, %417 : vector<2x16x16xf32>
    %cst_53 = arith.constant -5.000000e-01 : f32
    %419 = vector.broadcast %cst_53 : f32 to vector<2x16x16xf32>
    %420 = arith.mulf %419, %415 : vector<2x16x16xf32>
    %421 = arith.addf %375, %420 : vector<2x16x16xf32>
    %422 = vector.extract_strided_slice %234 {offsets = [0, 0, 4], sizes = [2, 16, 16], strides = [1, 1, 1]} : vector<2x16x20xf32> to vector<2x16x16xf32>
    %423 = vector.extract_strided_slice %236 {offsets = [0, 0, 4], sizes = [2, 16, 16], strides = [1, 1, 1]} : vector<2x16x20xf32> to vector<2x16x16xf32>
    %424 = vector.extract_strided_slice %238 {offsets = [0, 0, 4], sizes = [2, 16, 16], strides = [1, 1, 1]} : vector<2x16x20xf32> to vector<2x16x16xf32>
    %c9 = arith.constant 9 : index
    %425 = memref.load %arg2[%c9] : memref<225xf32, #tpu.memory_space<smem>>
    %426 = vector.broadcast %425 : f32 to vector<2x16x16xf32>
    %427 = arith.mulf %426, %422 : vector<2x16x16xf32>
    %428 = arith.addf %390, %427 : vector<2x16x16xf32>
    %c34 = arith.constant 34 : index
    %429 = memref.load %arg2[%c34] : memref<225xf32, #tpu.memory_space<smem>>
    %430 = vector.broadcast %429 : f32 to vector<2x16x16xf32>
    %431 = arith.mulf %430, %423 : vector<2x16x16xf32>
    %432 = arith.addf %428, %431 : vector<2x16x16xf32>
    %c59 = arith.constant 59 : index
    %433 = memref.load %arg2[%c59] : memref<225xf32, #tpu.memory_space<smem>>
    %434 = vector.broadcast %433 : f32 to vector<2x16x16xf32>
    %435 = arith.mulf %434, %424 : vector<2x16x16xf32>
    %436 = arith.addf %432, %435 : vector<2x16x16xf32>
    %c84 = arith.constant 84 : index
    %437 = memref.load %arg2[%c84] : memref<225xf32, #tpu.memory_space<smem>>
    %438 = vector.broadcast %437 : f32 to vector<2x16x16xf32>
    %439 = arith.mulf %438, %422 : vector<2x16x16xf32>
    %440 = arith.addf %402, %439 : vector<2x16x16xf32>
    %c109 = arith.constant 109 : index
    %441 = memref.load %arg2[%c109] : memref<225xf32, #tpu.memory_space<smem>>
    %442 = vector.broadcast %441 : f32 to vector<2x16x16xf32>
    %443 = arith.mulf %442, %423 : vector<2x16x16xf32>
    %444 = arith.addf %440, %443 : vector<2x16x16xf32>
    %c134 = arith.constant 134 : index
    %445 = memref.load %arg2[%c134] : memref<225xf32, #tpu.memory_space<smem>>
    %446 = vector.broadcast %445 : f32 to vector<2x16x16xf32>
    %447 = arith.mulf %446, %424 : vector<2x16x16xf32>
    %448 = arith.addf %444, %447 : vector<2x16x16xf32>
    %c159 = arith.constant 159 : index
    %449 = memref.load %arg2[%c159] : memref<225xf32, #tpu.memory_space<smem>>
    %450 = vector.broadcast %449 : f32 to vector<2x16x16xf32>
    %451 = arith.mulf %450, %422 : vector<2x16x16xf32>
    %452 = arith.addf %414, %451 : vector<2x16x16xf32>
    %c184 = arith.constant 184 : index
    %453 = memref.load %arg2[%c184] : memref<225xf32, #tpu.memory_space<smem>>
    %454 = vector.broadcast %453 : f32 to vector<2x16x16xf32>
    %455 = arith.mulf %454, %423 : vector<2x16x16xf32>
    %456 = arith.addf %452, %455 : vector<2x16x16xf32>
    %c209 = arith.constant 209 : index
    %457 = memref.load %arg2[%c209] : memref<225xf32, #tpu.memory_space<smem>>
    %458 = vector.broadcast %457 : f32 to vector<2x16x16xf32>
    %459 = arith.mulf %458, %424 : vector<2x16x16xf32>
    %460 = arith.addf %456, %459 : vector<2x16x16xf32>
    %461 = vector.extract_strided_slice %240 {offsets = [0, 0, 4], sizes = [2, 16, 16], strides = [1, 1, 1]} : vector<2x16x20xf32> to vector<2x16x16xf32>
    %cst_54 = arith.constant 0.166666672 : f32
    %462 = vector.broadcast %cst_54 : f32 to vector<2x16x16xf32>
    %463 = arith.mulf %462, %461 : vector<2x16x16xf32>
    %464 = arith.addf %421, %463 : vector<2x16x16xf32>
    %c0_55 = arith.constant 0 : index
    %c0_56 = arith.constant 0 : index
    %c2_57 = arith.constant 2 : index
    %c0_58 = arith.constant 0 : index
    %465 = vector.load %arg5[%c0_55, %c0_56, %c2_57, %c0_58] : memref<2x3x20x20xf32, #tpu.memory_space<vmem>>, vector<2x1x16x20xf32>
    %466 = vector.shape_cast %465 : vector<2x1x16x20xf32> to vector<2x16x20xf32>
    %c0_59 = arith.constant 0 : index
    %c1_60 = arith.constant 1 : index
    %c2_61 = arith.constant 2 : index
    %c0_62 = arith.constant 0 : index
    %467 = vector.load %arg5[%c0_59, %c1_60, %c2_61, %c0_62] : memref<2x3x20x20xf32, #tpu.memory_space<vmem>>, vector<2x1x16x20xf32>
    %468 = vector.shape_cast %467 : vector<2x1x16x20xf32> to vector<2x16x20xf32>
    %c0_63 = arith.constant 0 : index
    %c2_64 = arith.constant 2 : index
    %c2_65 = arith.constant 2 : index
    %c0_66 = arith.constant 0 : index
    %469 = vector.load %arg5[%c0_63, %c2_64, %c2_65, %c0_66] : memref<2x3x20x20xf32, #tpu.memory_space<vmem>>, vector<2x1x16x20xf32>
    %470 = vector.shape_cast %469 : vector<2x1x16x20xf32> to vector<2x16x20xf32>
    %471 = arith.addf %466, %468 : vector<2x16x20xf32>
    %472 = arith.addf %471, %470 : vector<2x16x20xf32>
    %473 = vector.extract_strided_slice %466 {offsets = [0, 0, 0], sizes = [2, 16, 16], strides = [1, 1, 1]} : vector<2x16x20xf32> to vector<2x16x16xf32>
    %474 = vector.extract_strided_slice %468 {offsets = [0, 0, 0], sizes = [2, 16, 16], strides = [1, 1, 1]} : vector<2x16x20xf32> to vector<2x16x16xf32>
    %475 = vector.extract_strided_slice %470 {offsets = [0, 0, 0], sizes = [2, 16, 16], strides = [1, 1, 1]} : vector<2x16x20xf32> to vector<2x16x16xf32>
    %c10 = arith.constant 10 : index
    %476 = memref.load %arg2[%c10] : memref<225xf32, #tpu.memory_space<smem>>
    %477 = vector.broadcast %476 : f32 to vector<2x16x16xf32>
    %478 = arith.mulf %477, %473 : vector<2x16x16xf32>
    %479 = arith.addf %436, %478 : vector<2x16x16xf32>
    %c35 = arith.constant 35 : index
    %480 = memref.load %arg2[%c35] : memref<225xf32, #tpu.memory_space<smem>>
    %481 = vector.broadcast %480 : f32 to vector<2x16x16xf32>
    %482 = arith.mulf %481, %474 : vector<2x16x16xf32>
    %483 = arith.addf %479, %482 : vector<2x16x16xf32>
    %c60 = arith.constant 60 : index
    %484 = memref.load %arg2[%c60] : memref<225xf32, #tpu.memory_space<smem>>
    %485 = vector.broadcast %484 : f32 to vector<2x16x16xf32>
    %486 = arith.mulf %485, %475 : vector<2x16x16xf32>
    %487 = arith.addf %483, %486 : vector<2x16x16xf32>
    %c85 = arith.constant 85 : index
    %488 = memref.load %arg2[%c85] : memref<225xf32, #tpu.memory_space<smem>>
    %489 = vector.broadcast %488 : f32 to vector<2x16x16xf32>
    %490 = arith.mulf %489, %473 : vector<2x16x16xf32>
    %491 = arith.addf %448, %490 : vector<2x16x16xf32>
    %c110 = arith.constant 110 : index
    %492 = memref.load %arg2[%c110] : memref<225xf32, #tpu.memory_space<smem>>
    %493 = vector.broadcast %492 : f32 to vector<2x16x16xf32>
    %494 = arith.mulf %493, %474 : vector<2x16x16xf32>
    %495 = arith.addf %491, %494 : vector<2x16x16xf32>
    %c135 = arith.constant 135 : index
    %496 = memref.load %arg2[%c135] : memref<225xf32, #tpu.memory_space<smem>>
    %497 = vector.broadcast %496 : f32 to vector<2x16x16xf32>
    %498 = arith.mulf %497, %475 : vector<2x16x16xf32>
    %499 = arith.addf %495, %498 : vector<2x16x16xf32>
    %c160 = arith.constant 160 : index
    %500 = memref.load %arg2[%c160] : memref<225xf32, #tpu.memory_space<smem>>
    %501 = vector.broadcast %500 : f32 to vector<2x16x16xf32>
    %502 = arith.mulf %501, %473 : vector<2x16x16xf32>
    %503 = arith.addf %460, %502 : vector<2x16x16xf32>
    %c185 = arith.constant 185 : index
    %504 = memref.load %arg2[%c185] : memref<225xf32, #tpu.memory_space<smem>>
    %505 = vector.broadcast %504 : f32 to vector<2x16x16xf32>
    %506 = arith.mulf %505, %474 : vector<2x16x16xf32>
    %507 = arith.addf %503, %506 : vector<2x16x16xf32>
    %c210 = arith.constant 210 : index
    %508 = memref.load %arg2[%c210] : memref<225xf32, #tpu.memory_space<smem>>
    %509 = vector.broadcast %508 : f32 to vector<2x16x16xf32>
    %510 = arith.mulf %509, %475 : vector<2x16x16xf32>
    %511 = arith.addf %507, %510 : vector<2x16x16xf32>
    %512 = vector.extract_strided_slice %472 {offsets = [0, 0, 0], sizes = [2, 16, 16], strides = [1, 1, 1]} : vector<2x16x20xf32> to vector<2x16x16xf32>
    %cst_67 = arith.constant -0.166666672 : f32
    %513 = vector.broadcast %cst_67 : f32 to vector<2x16x16xf32>
    %514 = arith.mulf %513, %512 : vector<2x16x16xf32>
    %515 = arith.addf %464, %514 : vector<2x16x16xf32>
    %516 = vector.extract_strided_slice %466 {offsets = [0, 0, 1], sizes = [2, 16, 16], strides = [1, 1, 1]} : vector<2x16x20xf32> to vector<2x16x16xf32>
    %517 = vector.extract_strided_slice %468 {offsets = [0, 0, 1], sizes = [2, 16, 16], strides = [1, 1, 1]} : vector<2x16x20xf32> to vector<2x16x16xf32>
    %518 = vector.extract_strided_slice %470 {offsets = [0, 0, 1], sizes = [2, 16, 16], strides = [1, 1, 1]} : vector<2x16x20xf32> to vector<2x16x16xf32>
    %c11 = arith.constant 11 : index
    %519 = memref.load %arg2[%c11] : memref<225xf32, #tpu.memory_space<smem>>
    %520 = vector.broadcast %519 : f32 to vector<2x16x16xf32>
    %521 = arith.mulf %520, %516 : vector<2x16x16xf32>
    %522 = arith.addf %487, %521 : vector<2x16x16xf32>
    %c36 = arith.constant 36 : index
    %523 = memref.load %arg2[%c36] : memref<225xf32, #tpu.memory_space<smem>>
    %524 = vector.broadcast %523 : f32 to vector<2x16x16xf32>
    %525 = arith.mulf %524, %517 : vector<2x16x16xf32>
    %526 = arith.addf %522, %525 : vector<2x16x16xf32>
    %c61 = arith.constant 61 : index
    %527 = memref.load %arg2[%c61] : memref<225xf32, #tpu.memory_space<smem>>
    %528 = vector.broadcast %527 : f32 to vector<2x16x16xf32>
    %529 = arith.mulf %528, %518 : vector<2x16x16xf32>
    %530 = arith.addf %526, %529 : vector<2x16x16xf32>
    %c86 = arith.constant 86 : index
    %531 = memref.load %arg2[%c86] : memref<225xf32, #tpu.memory_space<smem>>
    %532 = vector.broadcast %531 : f32 to vector<2x16x16xf32>
    %533 = arith.mulf %532, %516 : vector<2x16x16xf32>
    %534 = arith.addf %499, %533 : vector<2x16x16xf32>
    %c111 = arith.constant 111 : index
    %535 = memref.load %arg2[%c111] : memref<225xf32, #tpu.memory_space<smem>>
    %536 = vector.broadcast %535 : f32 to vector<2x16x16xf32>
    %537 = arith.mulf %536, %517 : vector<2x16x16xf32>
    %538 = arith.addf %534, %537 : vector<2x16x16xf32>
    %c136 = arith.constant 136 : index
    %539 = memref.load %arg2[%c136] : memref<225xf32, #tpu.memory_space<smem>>
    %540 = vector.broadcast %539 : f32 to vector<2x16x16xf32>
    %541 = arith.mulf %540, %518 : vector<2x16x16xf32>
    %542 = arith.addf %538, %541 : vector<2x16x16xf32>
    %c161 = arith.constant 161 : index
    %543 = memref.load %arg2[%c161] : memref<225xf32, #tpu.memory_space<smem>>
    %544 = vector.broadcast %543 : f32 to vector<2x16x16xf32>
    %545 = arith.mulf %544, %516 : vector<2x16x16xf32>
    %546 = arith.addf %511, %545 : vector<2x16x16xf32>
    %c186 = arith.constant 186 : index
    %547 = memref.load %arg2[%c186] : memref<225xf32, #tpu.memory_space<smem>>
    %548 = vector.broadcast %547 : f32 to vector<2x16x16xf32>
    %549 = arith.mulf %548, %517 : vector<2x16x16xf32>
    %550 = arith.addf %546, %549 : vector<2x16x16xf32>
    %c211 = arith.constant 211 : index
    %551 = memref.load %arg2[%c211] : memref<225xf32, #tpu.memory_space<smem>>
    %552 = vector.broadcast %551 : f32 to vector<2x16x16xf32>
    %553 = arith.mulf %552, %518 : vector<2x16x16xf32>
    %554 = arith.addf %550, %553 : vector<2x16x16xf32>
    %555 = vector.extract_strided_slice %472 {offsets = [0, 0, 1], sizes = [2, 16, 16], strides = [1, 1, 1]} : vector<2x16x20xf32> to vector<2x16x16xf32>
    %cst_68 = arith.constant 5.000000e-01 : f32
    %556 = vector.broadcast %cst_68 : f32 to vector<2x16x16xf32>
    %557 = arith.mulf %556, %555 : vector<2x16x16xf32>
    %558 = arith.addf %418, %557 : vector<2x16x16xf32>
    %cst_69 = arith.constant 0.666666686 : f32
    %559 = vector.broadcast %cst_69 : f32 to vector<2x16x16xf32>
    %560 = arith.mulf %559, %555 : vector<2x16x16xf32>
    %561 = arith.addf %515, %560 : vector<2x16x16xf32>
    %cst_70 = arith.constant 5.000000e-01 : f32
    %562 = vector.broadcast %cst_70 : f32 to vector<2x16x16xf32>
    %563 = arith.mulf %562, %555 : vector<2x16x16xf32>
    %564 = arith.addf %9, %563 : vector<2x16x16xf32>
    %565 = vector.extract_strided_slice %466 {offsets = [0, 0, 2], sizes = [2, 16, 16], strides = [1, 1, 1]} : vector<2x16x20xf32> to vector<2x16x16xf32>
    %566 = vector.extract_strided_slice %468 {offsets = [0, 0, 2], sizes = [2, 16, 16], strides = [1, 1, 1]} : vector<2x16x20xf32> to vector<2x16x16xf32>
    %567 = vector.extract_strided_slice %470 {offsets = [0, 0, 2], sizes = [2, 16, 16], strides = [1, 1, 1]} : vector<2x16x20xf32> to vector<2x16x16xf32>
    %c12 = arith.constant 12 : index
    %568 = memref.load %arg2[%c12] : memref<225xf32, #tpu.memory_space<smem>>
    %569 = vector.broadcast %568 : f32 to vector<2x16x16xf32>
    %570 = arith.mulf %569, %565 : vector<2x16x16xf32>
    %571 = arith.addf %530, %570 : vector<2x16x16xf32>
    %c37 = arith.constant 37 : index
    %572 = memref.load %arg2[%c37] : memref<225xf32, #tpu.memory_space<smem>>
    %573 = vector.broadcast %572 : f32 to vector<2x16x16xf32>
    %574 = arith.mulf %573, %566 : vector<2x16x16xf32>
    %575 = arith.addf %571, %574 : vector<2x16x16xf32>
    %c62 = arith.constant 62 : index
    %576 = memref.load %arg2[%c62] : memref<225xf32, #tpu.memory_space<smem>>
    %577 = vector.broadcast %576 : f32 to vector<2x16x16xf32>
    %578 = arith.mulf %577, %567 : vector<2x16x16xf32>
    %579 = arith.addf %575, %578 : vector<2x16x16xf32>
    %c87 = arith.constant 87 : index
    %580 = memref.load %arg2[%c87] : memref<225xf32, #tpu.memory_space<smem>>
    %581 = vector.broadcast %580 : f32 to vector<2x16x16xf32>
    %582 = arith.mulf %581, %565 : vector<2x16x16xf32>
    %583 = arith.addf %542, %582 : vector<2x16x16xf32>
    %c112 = arith.constant 112 : index
    %584 = memref.load %arg2[%c112] : memref<225xf32, #tpu.memory_space<smem>>
    %585 = vector.broadcast %584 : f32 to vector<2x16x16xf32>
    %586 = arith.mulf %585, %566 : vector<2x16x16xf32>
    %587 = arith.addf %583, %586 : vector<2x16x16xf32>
    %c137 = arith.constant 137 : index
    %588 = memref.load %arg2[%c137] : memref<225xf32, #tpu.memory_space<smem>>
    %589 = vector.broadcast %588 : f32 to vector<2x16x16xf32>
    %590 = arith.mulf %589, %567 : vector<2x16x16xf32>
    %591 = arith.addf %587, %590 : vector<2x16x16xf32>
    %c162 = arith.constant 162 : index
    %592 = memref.load %arg2[%c162] : memref<225xf32, #tpu.memory_space<smem>>
    %593 = vector.broadcast %592 : f32 to vector<2x16x16xf32>
    %594 = arith.mulf %593, %565 : vector<2x16x16xf32>
    %595 = arith.addf %554, %594 : vector<2x16x16xf32>
    %c187 = arith.constant 187 : index
    %596 = memref.load %arg2[%c187] : memref<225xf32, #tpu.memory_space<smem>>
    %597 = vector.broadcast %596 : f32 to vector<2x16x16xf32>
    %598 = arith.mulf %597, %566 : vector<2x16x16xf32>
    %599 = arith.addf %595, %598 : vector<2x16x16xf32>
    %c212 = arith.constant 212 : index
    %600 = memref.load %arg2[%c212] : memref<225xf32, #tpu.memory_space<smem>>
    %601 = vector.broadcast %600 : f32 to vector<2x16x16xf32>
    %602 = arith.mulf %601, %567 : vector<2x16x16xf32>
    %603 = arith.addf %599, %602 : vector<2x16x16xf32>
    %604 = vector.extract_strided_slice %472 {offsets = [0, 0, 2], sizes = [2, 16, 16], strides = [1, 1, 1]} : vector<2x16x20xf32> to vector<2x16x16xf32>
    %cst_71 = arith.constant -1.000000e+00 : f32
    %605 = vector.broadcast %cst_71 : f32 to vector<2x16x16xf32>
    %606 = arith.mulf %605, %604 : vector<2x16x16xf32>
    %607 = arith.addf %558, %606 : vector<2x16x16xf32>
    %cst_72 = arith.constant -1.000000e+00 : f32
    %608 = vector.broadcast %cst_72 : f32 to vector<2x16x16xf32>
    %609 = arith.mulf %608, %604 : vector<2x16x16xf32>
    %610 = arith.addf %561, %609 : vector<2x16x16xf32>
    %cst_73 = arith.constant -1.000000e+00 : f32
    %611 = vector.broadcast %cst_73 : f32 to vector<2x16x16xf32>
    %612 = arith.mulf %611, %604 : vector<2x16x16xf32>
    %613 = arith.addf %564, %612 : vector<2x16x16xf32>
    %614 = vector.extract_strided_slice %466 {offsets = [0, 0, 3], sizes = [2, 16, 16], strides = [1, 1, 1]} : vector<2x16x20xf32> to vector<2x16x16xf32>
    %615 = vector.extract_strided_slice %468 {offsets = [0, 0, 3], sizes = [2, 16, 16], strides = [1, 1, 1]} : vector<2x16x20xf32> to vector<2x16x16xf32>
    %616 = vector.extract_strided_slice %470 {offsets = [0, 0, 3], sizes = [2, 16, 16], strides = [1, 1, 1]} : vector<2x16x20xf32> to vector<2x16x16xf32>
    %c13 = arith.constant 13 : index
    %617 = memref.load %arg2[%c13] : memref<225xf32, #tpu.memory_space<smem>>
    %618 = vector.broadcast %617 : f32 to vector<2x16x16xf32>
    %619 = arith.mulf %618, %614 : vector<2x16x16xf32>
    %620 = arith.addf %579, %619 : vector<2x16x16xf32>
    %c38 = arith.constant 38 : index
    %621 = memref.load %arg2[%c38] : memref<225xf32, #tpu.memory_space<smem>>
    %622 = vector.broadcast %621 : f32 to vector<2x16x16xf32>
    %623 = arith.mulf %622, %615 : vector<2x16x16xf32>
    %624 = arith.addf %620, %623 : vector<2x16x16xf32>
    %c63 = arith.constant 63 : index
    %625 = memref.load %arg2[%c63] : memref<225xf32, #tpu.memory_space<smem>>
    %626 = vector.broadcast %625 : f32 to vector<2x16x16xf32>
    %627 = arith.mulf %626, %616 : vector<2x16x16xf32>
    %628 = arith.addf %624, %627 : vector<2x16x16xf32>
    %c88 = arith.constant 88 : index
    %629 = memref.load %arg2[%c88] : memref<225xf32, #tpu.memory_space<smem>>
    %630 = vector.broadcast %629 : f32 to vector<2x16x16xf32>
    %631 = arith.mulf %630, %614 : vector<2x16x16xf32>
    %632 = arith.addf %591, %631 : vector<2x16x16xf32>
    %c113 = arith.constant 113 : index
    %633 = memref.load %arg2[%c113] : memref<225xf32, #tpu.memory_space<smem>>
    %634 = vector.broadcast %633 : f32 to vector<2x16x16xf32>
    %635 = arith.mulf %634, %615 : vector<2x16x16xf32>
    %636 = arith.addf %632, %635 : vector<2x16x16xf32>
    %c138 = arith.constant 138 : index
    %637 = memref.load %arg2[%c138] : memref<225xf32, #tpu.memory_space<smem>>
    %638 = vector.broadcast %637 : f32 to vector<2x16x16xf32>
    %639 = arith.mulf %638, %616 : vector<2x16x16xf32>
    %640 = arith.addf %636, %639 : vector<2x16x16xf32>
    %c163 = arith.constant 163 : index
    %641 = memref.load %arg2[%c163] : memref<225xf32, #tpu.memory_space<smem>>
    %642 = vector.broadcast %641 : f32 to vector<2x16x16xf32>
    %643 = arith.mulf %642, %614 : vector<2x16x16xf32>
    %644 = arith.addf %603, %643 : vector<2x16x16xf32>
    %c188 = arith.constant 188 : index
    %645 = memref.load %arg2[%c188] : memref<225xf32, #tpu.memory_space<smem>>
    %646 = vector.broadcast %645 : f32 to vector<2x16x16xf32>
    %647 = arith.mulf %646, %615 : vector<2x16x16xf32>
    %648 = arith.addf %644, %647 : vector<2x16x16xf32>
    %c213 = arith.constant 213 : index
    %649 = memref.load %arg2[%c213] : memref<225xf32, #tpu.memory_space<smem>>
    %650 = vector.broadcast %649 : f32 to vector<2x16x16xf32>
    %651 = arith.mulf %650, %616 : vector<2x16x16xf32>
    %652 = arith.addf %648, %651 : vector<2x16x16xf32>
    %653 = vector.extract_strided_slice %472 {offsets = [0, 0, 3], sizes = [2, 16, 16], strides = [1, 1, 1]} : vector<2x16x20xf32> to vector<2x16x16xf32>
    %cst_74 = arith.constant 5.000000e-01 : f32
    %654 = vector.broadcast %cst_74 : f32 to vector<2x16x16xf32>
    %655 = arith.mulf %654, %653 : vector<2x16x16xf32>
    %656 = arith.addf %607, %655 : vector<2x16x16xf32>
    %cst_75 = arith.constant 0.666666686 : f32
    %657 = vector.broadcast %cst_75 : f32 to vector<2x16x16xf32>
    %658 = arith.mulf %657, %653 : vector<2x16x16xf32>
    %659 = arith.addf %610, %658 : vector<2x16x16xf32>
    %cst_76 = arith.constant 5.000000e-01 : f32
    %660 = vector.broadcast %cst_76 : f32 to vector<2x16x16xf32>
    %661 = arith.mulf %660, %653 : vector<2x16x16xf32>
    %662 = arith.addf %613, %661 : vector<2x16x16xf32>
    %663 = vector.extract_strided_slice %466 {offsets = [0, 0, 4], sizes = [2, 16, 16], strides = [1, 1, 1]} : vector<2x16x20xf32> to vector<2x16x16xf32>
    %664 = vector.extract_strided_slice %468 {offsets = [0, 0, 4], sizes = [2, 16, 16], strides = [1, 1, 1]} : vector<2x16x20xf32> to vector<2x16x16xf32>
    %665 = vector.extract_strided_slice %470 {offsets = [0, 0, 4], sizes = [2, 16, 16], strides = [1, 1, 1]} : vector<2x16x20xf32> to vector<2x16x16xf32>
    %c14 = arith.constant 14 : index
    %666 = memref.load %arg2[%c14] : memref<225xf32, #tpu.memory_space<smem>>
    %667 = vector.broadcast %666 : f32 to vector<2x16x16xf32>
    %668 = arith.mulf %667, %663 : vector<2x16x16xf32>
    %669 = arith.addf %628, %668 : vector<2x16x16xf32>
    %c39 = arith.constant 39 : index
    %670 = memref.load %arg2[%c39] : memref<225xf32, #tpu.memory_space<smem>>
    %671 = vector.broadcast %670 : f32 to vector<2x16x16xf32>
    %672 = arith.mulf %671, %664 : vector<2x16x16xf32>
    %673 = arith.addf %669, %672 : vector<2x16x16xf32>
    %c64 = arith.constant 64 : index
    %674 = memref.load %arg2[%c64] : memref<225xf32, #tpu.memory_space<smem>>
    %675 = vector.broadcast %674 : f32 to vector<2x16x16xf32>
    %676 = arith.mulf %675, %665 : vector<2x16x16xf32>
    %677 = arith.addf %673, %676 : vector<2x16x16xf32>
    %c89 = arith.constant 89 : index
    %678 = memref.load %arg2[%c89] : memref<225xf32, #tpu.memory_space<smem>>
    %679 = vector.broadcast %678 : f32 to vector<2x16x16xf32>
    %680 = arith.mulf %679, %663 : vector<2x16x16xf32>
    %681 = arith.addf %640, %680 : vector<2x16x16xf32>
    %c114 = arith.constant 114 : index
    %682 = memref.load %arg2[%c114] : memref<225xf32, #tpu.memory_space<smem>>
    %683 = vector.broadcast %682 : f32 to vector<2x16x16xf32>
    %684 = arith.mulf %683, %664 : vector<2x16x16xf32>
    %685 = arith.addf %681, %684 : vector<2x16x16xf32>
    %c139 = arith.constant 139 : index
    %686 = memref.load %arg2[%c139] : memref<225xf32, #tpu.memory_space<smem>>
    %687 = vector.broadcast %686 : f32 to vector<2x16x16xf32>
    %688 = arith.mulf %687, %665 : vector<2x16x16xf32>
    %689 = arith.addf %685, %688 : vector<2x16x16xf32>
    %c164 = arith.constant 164 : index
    %690 = memref.load %arg2[%c164] : memref<225xf32, #tpu.memory_space<smem>>
    %691 = vector.broadcast %690 : f32 to vector<2x16x16xf32>
    %692 = arith.mulf %691, %663 : vector<2x16x16xf32>
    %693 = arith.addf %652, %692 : vector<2x16x16xf32>
    %c189 = arith.constant 189 : index
    %694 = memref.load %arg2[%c189] : memref<225xf32, #tpu.memory_space<smem>>
    %695 = vector.broadcast %694 : f32 to vector<2x16x16xf32>
    %696 = arith.mulf %695, %664 : vector<2x16x16xf32>
    %697 = arith.addf %693, %696 : vector<2x16x16xf32>
    %c214 = arith.constant 214 : index
    %698 = memref.load %arg2[%c214] : memref<225xf32, #tpu.memory_space<smem>>
    %699 = vector.broadcast %698 : f32 to vector<2x16x16xf32>
    %700 = arith.mulf %699, %665 : vector<2x16x16xf32>
    %701 = arith.addf %697, %700 : vector<2x16x16xf32>
    %702 = vector.extract_strided_slice %472 {offsets = [0, 0, 4], sizes = [2, 16, 16], strides = [1, 1, 1]} : vector<2x16x20xf32> to vector<2x16x16xf32>
    %cst_77 = arith.constant -0.166666672 : f32
    %703 = vector.broadcast %cst_77 : f32 to vector<2x16x16xf32>
    %704 = arith.mulf %703, %702 : vector<2x16x16xf32>
    %705 = arith.addf %659, %704 : vector<2x16x16xf32>
    %c0_78 = arith.constant 0 : index
    %c0_79 = arith.constant 0 : index
    %c3_80 = arith.constant 3 : index
    %c0_81 = arith.constant 0 : index
    %706 = vector.load %arg5[%c0_78, %c0_79, %c3_80, %c0_81] : memref<2x3x20x20xf32, #tpu.memory_space<vmem>>, vector<2x1x16x20xf32>
    %707 = vector.shape_cast %706 : vector<2x1x16x20xf32> to vector<2x16x20xf32>
    %c0_82 = arith.constant 0 : index
    %c1_83 = arith.constant 1 : index
    %c3_84 = arith.constant 3 : index
    %c0_85 = arith.constant 0 : index
    %708 = vector.load %arg5[%c0_82, %c1_83, %c3_84, %c0_85] : memref<2x3x20x20xf32, #tpu.memory_space<vmem>>, vector<2x1x16x20xf32>
    %709 = vector.shape_cast %708 : vector<2x1x16x20xf32> to vector<2x16x20xf32>
    %c0_86 = arith.constant 0 : index
    %c2_87 = arith.constant 2 : index
    %c3_88 = arith.constant 3 : index
    %c0_89 = arith.constant 0 : index
    %710 = vector.load %arg5[%c0_86, %c2_87, %c3_88, %c0_89] : memref<2x3x20x20xf32, #tpu.memory_space<vmem>>, vector<2x1x16x20xf32>
    %711 = vector.shape_cast %710 : vector<2x1x16x20xf32> to vector<2x16x20xf32>
    %712 = arith.addf %707, %709 : vector<2x16x20xf32>
    %713 = arith.addf %712, %711 : vector<2x16x20xf32>
    %714 = vector.extract_strided_slice %707 {offsets = [0, 0, 0], sizes = [2, 16, 16], strides = [1, 1, 1]} : vector<2x16x20xf32> to vector<2x16x16xf32>
    %715 = vector.extract_strided_slice %709 {offsets = [0, 0, 0], sizes = [2, 16, 16], strides = [1, 1, 1]} : vector<2x16x20xf32> to vector<2x16x16xf32>
    %716 = vector.extract_strided_slice %711 {offsets = [0, 0, 0], sizes = [2, 16, 16], strides = [1, 1, 1]} : vector<2x16x20xf32> to vector<2x16x16xf32>
    %c15 = arith.constant 15 : index
    %717 = memref.load %arg2[%c15] : memref<225xf32, #tpu.memory_space<smem>>
    %718 = vector.broadcast %717 : f32 to vector<2x16x16xf32>
    %719 = arith.mulf %718, %714 : vector<2x16x16xf32>
    %720 = arith.addf %677, %719 : vector<2x16x16xf32>
    %c40 = arith.constant 40 : index
    %721 = memref.load %arg2[%c40] : memref<225xf32, #tpu.memory_space<smem>>
    %722 = vector.broadcast %721 : f32 to vector<2x16x16xf32>
    %723 = arith.mulf %722, %715 : vector<2x16x16xf32>
    %724 = arith.addf %720, %723 : vector<2x16x16xf32>
    %c65 = arith.constant 65 : index
    %725 = memref.load %arg2[%c65] : memref<225xf32, #tpu.memory_space<smem>>
    %726 = vector.broadcast %725 : f32 to vector<2x16x16xf32>
    %727 = arith.mulf %726, %716 : vector<2x16x16xf32>
    %728 = arith.addf %724, %727 : vector<2x16x16xf32>
    %c90 = arith.constant 90 : index
    %729 = memref.load %arg2[%c90] : memref<225xf32, #tpu.memory_space<smem>>
    %730 = vector.broadcast %729 : f32 to vector<2x16x16xf32>
    %731 = arith.mulf %730, %714 : vector<2x16x16xf32>
    %732 = arith.addf %689, %731 : vector<2x16x16xf32>
    %c115 = arith.constant 115 : index
    %733 = memref.load %arg2[%c115] : memref<225xf32, #tpu.memory_space<smem>>
    %734 = vector.broadcast %733 : f32 to vector<2x16x16xf32>
    %735 = arith.mulf %734, %715 : vector<2x16x16xf32>
    %736 = arith.addf %732, %735 : vector<2x16x16xf32>
    %c140 = arith.constant 140 : index
    %737 = memref.load %arg2[%c140] : memref<225xf32, #tpu.memory_space<smem>>
    %738 = vector.broadcast %737 : f32 to vector<2x16x16xf32>
    %739 = arith.mulf %738, %716 : vector<2x16x16xf32>
    %740 = arith.addf %736, %739 : vector<2x16x16xf32>
    %c165 = arith.constant 165 : index
    %741 = memref.load %arg2[%c165] : memref<225xf32, #tpu.memory_space<smem>>
    %742 = vector.broadcast %741 : f32 to vector<2x16x16xf32>
    %743 = arith.mulf %742, %714 : vector<2x16x16xf32>
    %744 = arith.addf %701, %743 : vector<2x16x16xf32>
    %c190 = arith.constant 190 : index
    %745 = memref.load %arg2[%c190] : memref<225xf32, #tpu.memory_space<smem>>
    %746 = vector.broadcast %745 : f32 to vector<2x16x16xf32>
    %747 = arith.mulf %746, %715 : vector<2x16x16xf32>
    %748 = arith.addf %744, %747 : vector<2x16x16xf32>
    %c215 = arith.constant 215 : index
    %749 = memref.load %arg2[%c215] : memref<225xf32, #tpu.memory_space<smem>>
    %750 = vector.broadcast %749 : f32 to vector<2x16x16xf32>
    %751 = arith.mulf %750, %716 : vector<2x16x16xf32>
    %752 = arith.addf %748, %751 : vector<2x16x16xf32>
    %753 = vector.extract_strided_slice %713 {offsets = [0, 0, 0], sizes = [2, 16, 16], strides = [1, 1, 1]} : vector<2x16x20xf32> to vector<2x16x16xf32>
    %cst_90 = arith.constant 0.166666672 : f32
    %754 = vector.broadcast %cst_90 : f32 to vector<2x16x16xf32>
    %755 = arith.mulf %754, %753 : vector<2x16x16xf32>
    %756 = arith.addf %705, %755 : vector<2x16x16xf32>
    %757 = vector.extract_strided_slice %707 {offsets = [0, 0, 1], sizes = [2, 16, 16], strides = [1, 1, 1]} : vector<2x16x20xf32> to vector<2x16x16xf32>
    %758 = vector.extract_strided_slice %709 {offsets = [0, 0, 1], sizes = [2, 16, 16], strides = [1, 1, 1]} : vector<2x16x20xf32> to vector<2x16x16xf32>
    %759 = vector.extract_strided_slice %711 {offsets = [0, 0, 1], sizes = [2, 16, 16], strides = [1, 1, 1]} : vector<2x16x20xf32> to vector<2x16x16xf32>
    %c16 = arith.constant 16 : index
    %760 = memref.load %arg2[%c16] : memref<225xf32, #tpu.memory_space<smem>>
    %761 = vector.broadcast %760 : f32 to vector<2x16x16xf32>
    %762 = arith.mulf %761, %757 : vector<2x16x16xf32>
    %763 = arith.addf %728, %762 : vector<2x16x16xf32>
    %c41 = arith.constant 41 : index
    %764 = memref.load %arg2[%c41] : memref<225xf32, #tpu.memory_space<smem>>
    %765 = vector.broadcast %764 : f32 to vector<2x16x16xf32>
    %766 = arith.mulf %765, %758 : vector<2x16x16xf32>
    %767 = arith.addf %763, %766 : vector<2x16x16xf32>
    %c66 = arith.constant 66 : index
    %768 = memref.load %arg2[%c66] : memref<225xf32, #tpu.memory_space<smem>>
    %769 = vector.broadcast %768 : f32 to vector<2x16x16xf32>
    %770 = arith.mulf %769, %759 : vector<2x16x16xf32>
    %771 = arith.addf %767, %770 : vector<2x16x16xf32>
    %c91 = arith.constant 91 : index
    %772 = memref.load %arg2[%c91] : memref<225xf32, #tpu.memory_space<smem>>
    %773 = vector.broadcast %772 : f32 to vector<2x16x16xf32>
    %774 = arith.mulf %773, %757 : vector<2x16x16xf32>
    %775 = arith.addf %740, %774 : vector<2x16x16xf32>
    %c116 = arith.constant 116 : index
    %776 = memref.load %arg2[%c116] : memref<225xf32, #tpu.memory_space<smem>>
    %777 = vector.broadcast %776 : f32 to vector<2x16x16xf32>
    %778 = arith.mulf %777, %758 : vector<2x16x16xf32>
    %779 = arith.addf %775, %778 : vector<2x16x16xf32>
    %c141 = arith.constant 141 : index
    %780 = memref.load %arg2[%c141] : memref<225xf32, #tpu.memory_space<smem>>
    %781 = vector.broadcast %780 : f32 to vector<2x16x16xf32>
    %782 = arith.mulf %781, %759 : vector<2x16x16xf32>
    %783 = arith.addf %779, %782 : vector<2x16x16xf32>
    %c166 = arith.constant 166 : index
    %784 = memref.load %arg2[%c166] : memref<225xf32, #tpu.memory_space<smem>>
    %785 = vector.broadcast %784 : f32 to vector<2x16x16xf32>
    %786 = arith.mulf %785, %757 : vector<2x16x16xf32>
    %787 = arith.addf %752, %786 : vector<2x16x16xf32>
    %c191 = arith.constant 191 : index
    %788 = memref.load %arg2[%c191] : memref<225xf32, #tpu.memory_space<smem>>
    %789 = vector.broadcast %788 : f32 to vector<2x16x16xf32>
    %790 = arith.mulf %789, %758 : vector<2x16x16xf32>
    %791 = arith.addf %787, %790 : vector<2x16x16xf32>
    %c216 = arith.constant 216 : index
    %792 = memref.load %arg2[%c216] : memref<225xf32, #tpu.memory_space<smem>>
    %793 = vector.broadcast %792 : f32 to vector<2x16x16xf32>
    %794 = arith.mulf %793, %759 : vector<2x16x16xf32>
    %795 = arith.addf %791, %794 : vector<2x16x16xf32>
    %796 = vector.extract_strided_slice %713 {offsets = [0, 0, 1], sizes = [2, 16, 16], strides = [1, 1, 1]} : vector<2x16x20xf32> to vector<2x16x16xf32>
    %cst_91 = arith.constant -2.500000e-01 : f32
    %797 = vector.broadcast %cst_91 : f32 to vector<2x16x16xf32>
    %798 = arith.mulf %797, %796 : vector<2x16x16xf32>
    %799 = arith.addf %656, %798 : vector<2x16x16xf32>
    %cst_92 = arith.constant -5.000000e-01 : f32
    %800 = vector.broadcast %cst_92 : f32 to vector<2x16x16xf32>
    %801 = arith.mulf %800, %796 : vector<2x16x16xf32>
    %802 = arith.addf %756, %801 : vector<2x16x16xf32>
    %803 = vector.extract_strided_slice %707 {offsets = [0, 0, 2], sizes = [2, 16, 16], strides = [1, 1, 1]} : vector<2x16x20xf32> to vector<2x16x16xf32>
    %804 = vector.extract_strided_slice %709 {offsets = [0, 0, 2], sizes = [2, 16, 16], strides = [1, 1, 1]} : vector<2x16x20xf32> to vector<2x16x16xf32>
    %805 = vector.extract_strided_slice %711 {offsets = [0, 0, 2], sizes = [2, 16, 16], strides = [1, 1, 1]} : vector<2x16x20xf32> to vector<2x16x16xf32>
    %c17 = arith.constant 17 : index
    %806 = memref.load %arg2[%c17] : memref<225xf32, #tpu.memory_space<smem>>
    %807 = vector.broadcast %806 : f32 to vector<2x16x16xf32>
    %808 = arith.mulf %807, %803 : vector<2x16x16xf32>
    %809 = arith.addf %771, %808 : vector<2x16x16xf32>
    %c42 = arith.constant 42 : index
    %810 = memref.load %arg2[%c42] : memref<225xf32, #tpu.memory_space<smem>>
    %811 = vector.broadcast %810 : f32 to vector<2x16x16xf32>
    %812 = arith.mulf %811, %804 : vector<2x16x16xf32>
    %813 = arith.addf %809, %812 : vector<2x16x16xf32>
    %c67 = arith.constant 67 : index
    %814 = memref.load %arg2[%c67] : memref<225xf32, #tpu.memory_space<smem>>
    %815 = vector.broadcast %814 : f32 to vector<2x16x16xf32>
    %816 = arith.mulf %815, %805 : vector<2x16x16xf32>
    %817 = arith.addf %813, %816 : vector<2x16x16xf32>
    %c92 = arith.constant 92 : index
    %818 = memref.load %arg2[%c92] : memref<225xf32, #tpu.memory_space<smem>>
    %819 = vector.broadcast %818 : f32 to vector<2x16x16xf32>
    %820 = arith.mulf %819, %803 : vector<2x16x16xf32>
    %821 = arith.addf %783, %820 : vector<2x16x16xf32>
    %c117 = arith.constant 117 : index
    %822 = memref.load %arg2[%c117] : memref<225xf32, #tpu.memory_space<smem>>
    %823 = vector.broadcast %822 : f32 to vector<2x16x16xf32>
    %824 = arith.mulf %823, %804 : vector<2x16x16xf32>
    %825 = arith.addf %821, %824 : vector<2x16x16xf32>
    %c142 = arith.constant 142 : index
    %826 = memref.load %arg2[%c142] : memref<225xf32, #tpu.memory_space<smem>>
    %827 = vector.broadcast %826 : f32 to vector<2x16x16xf32>
    %828 = arith.mulf %827, %805 : vector<2x16x16xf32>
    %829 = arith.addf %825, %828 : vector<2x16x16xf32>
    %c167 = arith.constant 167 : index
    %830 = memref.load %arg2[%c167] : memref<225xf32, #tpu.memory_space<smem>>
    %831 = vector.broadcast %830 : f32 to vector<2x16x16xf32>
    %832 = arith.mulf %831, %803 : vector<2x16x16xf32>
    %833 = arith.addf %795, %832 : vector<2x16x16xf32>
    %c192 = arith.constant 192 : index
    %834 = memref.load %arg2[%c192] : memref<225xf32, #tpu.memory_space<smem>>
    %835 = vector.broadcast %834 : f32 to vector<2x16x16xf32>
    %836 = arith.mulf %835, %804 : vector<2x16x16xf32>
    %837 = arith.addf %833, %836 : vector<2x16x16xf32>
    %c217 = arith.constant 217 : index
    %838 = memref.load %arg2[%c217] : memref<225xf32, #tpu.memory_space<smem>>
    %839 = vector.broadcast %838 : f32 to vector<2x16x16xf32>
    %840 = arith.mulf %839, %805 : vector<2x16x16xf32>
    %841 = arith.addf %837, %840 : vector<2x16x16xf32>
    %842 = vector.extract_strided_slice %713 {offsets = [0, 0, 2], sizes = [2, 16, 16], strides = [1, 1, 1]} : vector<2x16x20xf32> to vector<2x16x16xf32>
    %cst_93 = arith.constant 5.000000e-01 : f32
    %843 = vector.broadcast %cst_93 : f32 to vector<2x16x16xf32>
    %844 = arith.mulf %843, %842 : vector<2x16x16xf32>
    %845 = arith.addf %799, %844 : vector<2x16x16xf32>
    %cst_94 = arith.constant 0.666666686 : f32
    %846 = vector.broadcast %cst_94 : f32 to vector<2x16x16xf32>
    %847 = arith.mulf %846, %842 : vector<2x16x16xf32>
    %848 = arith.addf %802, %847 : vector<2x16x16xf32>
    %849 = vector.extract_strided_slice %707 {offsets = [0, 0, 3], sizes = [2, 16, 16], strides = [1, 1, 1]} : vector<2x16x20xf32> to vector<2x16x16xf32>
    %850 = vector.extract_strided_slice %709 {offsets = [0, 0, 3], sizes = [2, 16, 16], strides = [1, 1, 1]} : vector<2x16x20xf32> to vector<2x16x16xf32>
    %851 = vector.extract_strided_slice %711 {offsets = [0, 0, 3], sizes = [2, 16, 16], strides = [1, 1, 1]} : vector<2x16x20xf32> to vector<2x16x16xf32>
    %c18 = arith.constant 18 : index
    %852 = memref.load %arg2[%c18] : memref<225xf32, #tpu.memory_space<smem>>
    %853 = vector.broadcast %852 : f32 to vector<2x16x16xf32>
    %854 = arith.mulf %853, %849 : vector<2x16x16xf32>
    %855 = arith.addf %817, %854 : vector<2x16x16xf32>
    %c43 = arith.constant 43 : index
    %856 = memref.load %arg2[%c43] : memref<225xf32, #tpu.memory_space<smem>>
    %857 = vector.broadcast %856 : f32 to vector<2x16x16xf32>
    %858 = arith.mulf %857, %850 : vector<2x16x16xf32>
    %859 = arith.addf %855, %858 : vector<2x16x16xf32>
    %c68 = arith.constant 68 : index
    %860 = memref.load %arg2[%c68] : memref<225xf32, #tpu.memory_space<smem>>
    %861 = vector.broadcast %860 : f32 to vector<2x16x16xf32>
    %862 = arith.mulf %861, %851 : vector<2x16x16xf32>
    %863 = arith.addf %859, %862 : vector<2x16x16xf32>
    %c93 = arith.constant 93 : index
    %864 = memref.load %arg2[%c93] : memref<225xf32, #tpu.memory_space<smem>>
    %865 = vector.broadcast %864 : f32 to vector<2x16x16xf32>
    %866 = arith.mulf %865, %849 : vector<2x16x16xf32>
    %867 = arith.addf %829, %866 : vector<2x16x16xf32>
    %c118 = arith.constant 118 : index
    %868 = memref.load %arg2[%c118] : memref<225xf32, #tpu.memory_space<smem>>
    %869 = vector.broadcast %868 : f32 to vector<2x16x16xf32>
    %870 = arith.mulf %869, %850 : vector<2x16x16xf32>
    %871 = arith.addf %867, %870 : vector<2x16x16xf32>
    %c143 = arith.constant 143 : index
    %872 = memref.load %arg2[%c143] : memref<225xf32, #tpu.memory_space<smem>>
    %873 = vector.broadcast %872 : f32 to vector<2x16x16xf32>
    %874 = arith.mulf %873, %851 : vector<2x16x16xf32>
    %875 = arith.addf %871, %874 : vector<2x16x16xf32>
    %c168 = arith.constant 168 : index
    %876 = memref.load %arg2[%c168] : memref<225xf32, #tpu.memory_space<smem>>
    %877 = vector.broadcast %876 : f32 to vector<2x16x16xf32>
    %878 = arith.mulf %877, %849 : vector<2x16x16xf32>
    %879 = arith.addf %841, %878 : vector<2x16x16xf32>
    %c193 = arith.constant 193 : index
    %880 = memref.load %arg2[%c193] : memref<225xf32, #tpu.memory_space<smem>>
    %881 = vector.broadcast %880 : f32 to vector<2x16x16xf32>
    %882 = arith.mulf %881, %850 : vector<2x16x16xf32>
    %883 = arith.addf %879, %882 : vector<2x16x16xf32>
    %c218 = arith.constant 218 : index
    %884 = memref.load %arg2[%c218] : memref<225xf32, #tpu.memory_space<smem>>
    %885 = vector.broadcast %884 : f32 to vector<2x16x16xf32>
    %886 = arith.mulf %885, %851 : vector<2x16x16xf32>
    %887 = arith.addf %883, %886 : vector<2x16x16xf32>
    %888 = vector.extract_strided_slice %713 {offsets = [0, 0, 3], sizes = [2, 16, 16], strides = [1, 1, 1]} : vector<2x16x20xf32> to vector<2x16x16xf32>
    %cst_95 = arith.constant -2.500000e-01 : f32
    %889 = vector.broadcast %cst_95 : f32 to vector<2x16x16xf32>
    %890 = arith.mulf %889, %888 : vector<2x16x16xf32>
    %891 = arith.addf %845, %890 : vector<2x16x16xf32>
    %cst_96 = arith.constant -5.000000e-01 : f32
    %892 = vector.broadcast %cst_96 : f32 to vector<2x16x16xf32>
    %893 = arith.mulf %892, %888 : vector<2x16x16xf32>
    %894 = arith.addf %848, %893 : vector<2x16x16xf32>
    %895 = vector.extract_strided_slice %707 {offsets = [0, 0, 4], sizes = [2, 16, 16], strides = [1, 1, 1]} : vector<2x16x20xf32> to vector<2x16x16xf32>
    %896 = vector.extract_strided_slice %709 {offsets = [0, 0, 4], sizes = [2, 16, 16], strides = [1, 1, 1]} : vector<2x16x20xf32> to vector<2x16x16xf32>
    %897 = vector.extract_strided_slice %711 {offsets = [0, 0, 4], sizes = [2, 16, 16], strides = [1, 1, 1]} : vector<2x16x20xf32> to vector<2x16x16xf32>
    %c19 = arith.constant 19 : index
    %898 = memref.load %arg2[%c19] : memref<225xf32, #tpu.memory_space<smem>>
    %899 = vector.broadcast %898 : f32 to vector<2x16x16xf32>
    %900 = arith.mulf %899, %895 : vector<2x16x16xf32>
    %901 = arith.addf %863, %900 : vector<2x16x16xf32>
    %c44 = arith.constant 44 : index
    %902 = memref.load %arg2[%c44] : memref<225xf32, #tpu.memory_space<smem>>
    %903 = vector.broadcast %902 : f32 to vector<2x16x16xf32>
    %904 = arith.mulf %903, %896 : vector<2x16x16xf32>
    %905 = arith.addf %901, %904 : vector<2x16x16xf32>
    %c69 = arith.constant 69 : index
    %906 = memref.load %arg2[%c69] : memref<225xf32, #tpu.memory_space<smem>>
    %907 = vector.broadcast %906 : f32 to vector<2x16x16xf32>
    %908 = arith.mulf %907, %897 : vector<2x16x16xf32>
    %909 = arith.addf %905, %908 : vector<2x16x16xf32>
    %c94 = arith.constant 94 : index
    %910 = memref.load %arg2[%c94] : memref<225xf32, #tpu.memory_space<smem>>
    %911 = vector.broadcast %910 : f32 to vector<2x16x16xf32>
    %912 = arith.mulf %911, %895 : vector<2x16x16xf32>
    %913 = arith.addf %875, %912 : vector<2x16x16xf32>
    %c119 = arith.constant 119 : index
    %914 = memref.load %arg2[%c119] : memref<225xf32, #tpu.memory_space<smem>>
    %915 = vector.broadcast %914 : f32 to vector<2x16x16xf32>
    %916 = arith.mulf %915, %896 : vector<2x16x16xf32>
    %917 = arith.addf %913, %916 : vector<2x16x16xf32>
    %c144 = arith.constant 144 : index
    %918 = memref.load %arg2[%c144] : memref<225xf32, #tpu.memory_space<smem>>
    %919 = vector.broadcast %918 : f32 to vector<2x16x16xf32>
    %920 = arith.mulf %919, %897 : vector<2x16x16xf32>
    %921 = arith.addf %917, %920 : vector<2x16x16xf32>
    %c169 = arith.constant 169 : index
    %922 = memref.load %arg2[%c169] : memref<225xf32, #tpu.memory_space<smem>>
    %923 = vector.broadcast %922 : f32 to vector<2x16x16xf32>
    %924 = arith.mulf %923, %895 : vector<2x16x16xf32>
    %925 = arith.addf %887, %924 : vector<2x16x16xf32>
    %c194 = arith.constant 194 : index
    %926 = memref.load %arg2[%c194] : memref<225xf32, #tpu.memory_space<smem>>
    %927 = vector.broadcast %926 : f32 to vector<2x16x16xf32>
    %928 = arith.mulf %927, %896 : vector<2x16x16xf32>
    %929 = arith.addf %925, %928 : vector<2x16x16xf32>
    %c219 = arith.constant 219 : index
    %930 = memref.load %arg2[%c219] : memref<225xf32, #tpu.memory_space<smem>>
    %931 = vector.broadcast %930 : f32 to vector<2x16x16xf32>
    %932 = arith.mulf %931, %897 : vector<2x16x16xf32>
    %933 = arith.addf %929, %932 : vector<2x16x16xf32>
    %934 = vector.extract_strided_slice %713 {offsets = [0, 0, 4], sizes = [2, 16, 16], strides = [1, 1, 1]} : vector<2x16x20xf32> to vector<2x16x16xf32>
    %cst_97 = arith.constant 0.166666672 : f32
    %935 = vector.broadcast %cst_97 : f32 to vector<2x16x16xf32>
    %936 = arith.mulf %935, %934 : vector<2x16x16xf32>
    %937 = arith.addf %894, %936 : vector<2x16x16xf32>
    %c0_98 = arith.constant 0 : index
    %c0_99 = arith.constant 0 : index
    %c4_100 = arith.constant 4 : index
    %c0_101 = arith.constant 0 : index
    %938 = vector.load %arg5[%c0_98, %c0_99, %c4_100, %c0_101] : memref<2x3x20x20xf32, #tpu.memory_space<vmem>>, vector<2x1x16x20xf32>
    %939 = vector.shape_cast %938 : vector<2x1x16x20xf32> to vector<2x16x20xf32>
    %c0_102 = arith.constant 0 : index
    %c1_103 = arith.constant 1 : index
    %c4_104 = arith.constant 4 : index
    %c0_105 = arith.constant 0 : index
    %940 = vector.load %arg5[%c0_102, %c1_103, %c4_104, %c0_105] : memref<2x3x20x20xf32, #tpu.memory_space<vmem>>, vector<2x1x16x20xf32>
    %941 = vector.shape_cast %940 : vector<2x1x16x20xf32> to vector<2x16x20xf32>
    %c0_106 = arith.constant 0 : index
    %c2_107 = arith.constant 2 : index
    %c4_108 = arith.constant 4 : index
    %c0_109 = arith.constant 0 : index
    %942 = vector.load %arg5[%c0_106, %c2_107, %c4_108, %c0_109] : memref<2x3x20x20xf32, #tpu.memory_space<vmem>>, vector<2x1x16x20xf32>
    %943 = vector.shape_cast %942 : vector<2x1x16x20xf32> to vector<2x16x20xf32>
    %944 = arith.addf %939, %941 : vector<2x16x20xf32>
    %945 = arith.addf %944, %943 : vector<2x16x20xf32>
    %946 = vector.extract_strided_slice %939 {offsets = [0, 0, 0], sizes = [2, 16, 16], strides = [1, 1, 1]} : vector<2x16x20xf32> to vector<2x16x16xf32>
    %947 = vector.extract_strided_slice %941 {offsets = [0, 0, 0], sizes = [2, 16, 16], strides = [1, 1, 1]} : vector<2x16x20xf32> to vector<2x16x16xf32>
    %948 = vector.extract_strided_slice %943 {offsets = [0, 0, 0], sizes = [2, 16, 16], strides = [1, 1, 1]} : vector<2x16x20xf32> to vector<2x16x16xf32>
    %c20 = arith.constant 20 : index
    %949 = memref.load %arg2[%c20] : memref<225xf32, #tpu.memory_space<smem>>
    %950 = vector.broadcast %949 : f32 to vector<2x16x16xf32>
    %951 = arith.mulf %950, %946 : vector<2x16x16xf32>
    %952 = arith.addf %909, %951 : vector<2x16x16xf32>
    %c45 = arith.constant 45 : index
    %953 = memref.load %arg2[%c45] : memref<225xf32, #tpu.memory_space<smem>>
    %954 = vector.broadcast %953 : f32 to vector<2x16x16xf32>
    %955 = arith.mulf %954, %947 : vector<2x16x16xf32>
    %956 = arith.addf %952, %955 : vector<2x16x16xf32>
    %c70 = arith.constant 70 : index
    %957 = memref.load %arg2[%c70] : memref<225xf32, #tpu.memory_space<smem>>
    %958 = vector.broadcast %957 : f32 to vector<2x16x16xf32>
    %959 = arith.mulf %958, %948 : vector<2x16x16xf32>
    %960 = arith.addf %956, %959 : vector<2x16x16xf32>
    %c95 = arith.constant 95 : index
    %961 = memref.load %arg2[%c95] : memref<225xf32, #tpu.memory_space<smem>>
    %962 = vector.broadcast %961 : f32 to vector<2x16x16xf32>
    %963 = arith.mulf %962, %946 : vector<2x16x16xf32>
    %964 = arith.addf %921, %963 : vector<2x16x16xf32>
    %c120 = arith.constant 120 : index
    %965 = memref.load %arg2[%c120] : memref<225xf32, #tpu.memory_space<smem>>
    %966 = vector.broadcast %965 : f32 to vector<2x16x16xf32>
    %967 = arith.mulf %966, %947 : vector<2x16x16xf32>
    %968 = arith.addf %964, %967 : vector<2x16x16xf32>
    %c145 = arith.constant 145 : index
    %969 = memref.load %arg2[%c145] : memref<225xf32, #tpu.memory_space<smem>>
    %970 = vector.broadcast %969 : f32 to vector<2x16x16xf32>
    %971 = arith.mulf %970, %948 : vector<2x16x16xf32>
    %972 = arith.addf %968, %971 : vector<2x16x16xf32>
    %c170 = arith.constant 170 : index
    %973 = memref.load %arg2[%c170] : memref<225xf32, #tpu.memory_space<smem>>
    %974 = vector.broadcast %973 : f32 to vector<2x16x16xf32>
    %975 = arith.mulf %974, %946 : vector<2x16x16xf32>
    %976 = arith.addf %933, %975 : vector<2x16x16xf32>
    %c195 = arith.constant 195 : index
    %977 = memref.load %arg2[%c195] : memref<225xf32, #tpu.memory_space<smem>>
    %978 = vector.broadcast %977 : f32 to vector<2x16x16xf32>
    %979 = arith.mulf %978, %947 : vector<2x16x16xf32>
    %980 = arith.addf %976, %979 : vector<2x16x16xf32>
    %c220 = arith.constant 220 : index
    %981 = memref.load %arg2[%c220] : memref<225xf32, #tpu.memory_space<smem>>
    %982 = vector.broadcast %981 : f32 to vector<2x16x16xf32>
    %983 = arith.mulf %982, %948 : vector<2x16x16xf32>
    %984 = arith.addf %980, %983 : vector<2x16x16xf32>
    %985 = vector.extract_strided_slice %945 {offsets = [0, 0, 0], sizes = [2, 16, 16], strides = [1, 1, 1]} : vector<2x16x20xf32> to vector<2x16x16xf32>
    %cst_110 = arith.constant -0.0833333358 : f32
    %986 = vector.broadcast %cst_110 : f32 to vector<2x16x16xf32>
    %987 = arith.mulf %986, %985 : vector<2x16x16xf32>
    %988 = arith.addf %937, %987 : vector<2x16x16xf32>
    %989 = vector.extract_strided_slice %939 {offsets = [0, 0, 1], sizes = [2, 16, 16], strides = [1, 1, 1]} : vector<2x16x20xf32> to vector<2x16x16xf32>
    %990 = vector.extract_strided_slice %941 {offsets = [0, 0, 1], sizes = [2, 16, 16], strides = [1, 1, 1]} : vector<2x16x20xf32> to vector<2x16x16xf32>
    %991 = vector.extract_strided_slice %943 {offsets = [0, 0, 1], sizes = [2, 16, 16], strides = [1, 1, 1]} : vector<2x16x20xf32> to vector<2x16x16xf32>
    %c21 = arith.constant 21 : index
    %992 = memref.load %arg2[%c21] : memref<225xf32, #tpu.memory_space<smem>>
    %993 = vector.broadcast %992 : f32 to vector<2x16x16xf32>
    %994 = arith.mulf %993, %989 : vector<2x16x16xf32>
    %995 = arith.addf %960, %994 : vector<2x16x16xf32>
    %c46 = arith.constant 46 : index
    %996 = memref.load %arg2[%c46] : memref<225xf32, #tpu.memory_space<smem>>
    %997 = vector.broadcast %996 : f32 to vector<2x16x16xf32>
    %998 = arith.mulf %997, %990 : vector<2x16x16xf32>
    %999 = arith.addf %995, %998 : vector<2x16x16xf32>
    %c71 = arith.constant 71 : index
    %1000 = memref.load %arg2[%c71] : memref<225xf32, #tpu.memory_space<smem>>
    %1001 = vector.broadcast %1000 : f32 to vector<2x16x16xf32>
    %1002 = arith.mulf %1001, %991 : vector<2x16x16xf32>
    %1003 = arith.addf %999, %1002 : vector<2x16x16xf32>
    %c96 = arith.constant 96 : index
    %1004 = memref.load %arg2[%c96] : memref<225xf32, #tpu.memory_space<smem>>
    %1005 = vector.broadcast %1004 : f32 to vector<2x16x16xf32>
    %1006 = arith.mulf %1005, %989 : vector<2x16x16xf32>
    %1007 = arith.addf %972, %1006 : vector<2x16x16xf32>
    %c121 = arith.constant 121 : index
    %1008 = memref.load %arg2[%c121] : memref<225xf32, #tpu.memory_space<smem>>
    %1009 = vector.broadcast %1008 : f32 to vector<2x16x16xf32>
    %1010 = arith.mulf %1009, %990 : vector<2x16x16xf32>
    %1011 = arith.addf %1007, %1010 : vector<2x16x16xf32>
    %c146 = arith.constant 146 : index
    %1012 = memref.load %arg2[%c146] : memref<225xf32, #tpu.memory_space<smem>>
    %1013 = vector.broadcast %1012 : f32 to vector<2x16x16xf32>
    %1014 = arith.mulf %1013, %991 : vector<2x16x16xf32>
    %1015 = arith.addf %1011, %1014 : vector<2x16x16xf32>
    %c171 = arith.constant 171 : index
    %1016 = memref.load %arg2[%c171] : memref<225xf32, #tpu.memory_space<smem>>
    %1017 = vector.broadcast %1016 : f32 to vector<2x16x16xf32>
    %1018 = arith.mulf %1017, %989 : vector<2x16x16xf32>
    %1019 = arith.addf %984, %1018 : vector<2x16x16xf32>
    %c196 = arith.constant 196 : index
    %1020 = memref.load %arg2[%c196] : memref<225xf32, #tpu.memory_space<smem>>
    %1021 = vector.broadcast %1020 : f32 to vector<2x16x16xf32>
    %1022 = arith.mulf %1021, %990 : vector<2x16x16xf32>
    %1023 = arith.addf %1019, %1022 : vector<2x16x16xf32>
    %c221 = arith.constant 221 : index
    %1024 = memref.load %arg2[%c221] : memref<225xf32, #tpu.memory_space<smem>>
    %1025 = vector.broadcast %1024 : f32 to vector<2x16x16xf32>
    %1026 = arith.mulf %1025, %991 : vector<2x16x16xf32>
    %1027 = arith.addf %1023, %1026 : vector<2x16x16xf32>
    %1028 = vector.extract_strided_slice %945 {offsets = [0, 0, 1], sizes = [2, 16, 16], strides = [1, 1, 1]} : vector<2x16x20xf32> to vector<2x16x16xf32>
    %cst_111 = arith.constant 0.166666672 : f32
    %1029 = vector.broadcast %cst_111 : f32 to vector<2x16x16xf32>
    %1030 = arith.mulf %1029, %1028 : vector<2x16x16xf32>
    %1031 = arith.addf %988, %1030 : vector<2x16x16xf32>
    %1032 = vector.extract_strided_slice %939 {offsets = [0, 0, 2], sizes = [2, 16, 16], strides = [1, 1, 1]} : vector<2x16x20xf32> to vector<2x16x16xf32>
    %1033 = vector.extract_strided_slice %941 {offsets = [0, 0, 2], sizes = [2, 16, 16], strides = [1, 1, 1]} : vector<2x16x20xf32> to vector<2x16x16xf32>
    %1034 = vector.extract_strided_slice %943 {offsets = [0, 0, 2], sizes = [2, 16, 16], strides = [1, 1, 1]} : vector<2x16x20xf32> to vector<2x16x16xf32>
    %c22 = arith.constant 22 : index
    %1035 = memref.load %arg2[%c22] : memref<225xf32, #tpu.memory_space<smem>>
    %1036 = vector.broadcast %1035 : f32 to vector<2x16x16xf32>
    %1037 = arith.mulf %1036, %1032 : vector<2x16x16xf32>
    %1038 = arith.addf %1003, %1037 : vector<2x16x16xf32>
    %c47 = arith.constant 47 : index
    %1039 = memref.load %arg2[%c47] : memref<225xf32, #tpu.memory_space<smem>>
    %1040 = vector.broadcast %1039 : f32 to vector<2x16x16xf32>
    %1041 = arith.mulf %1040, %1033 : vector<2x16x16xf32>
    %1042 = arith.addf %1038, %1041 : vector<2x16x16xf32>
    %c72 = arith.constant 72 : index
    %1043 = memref.load %arg2[%c72] : memref<225xf32, #tpu.memory_space<smem>>
    %1044 = vector.broadcast %1043 : f32 to vector<2x16x16xf32>
    %1045 = arith.mulf %1044, %1034 : vector<2x16x16xf32>
    %1046 = arith.addf %1042, %1045 : vector<2x16x16xf32>
    %c97 = arith.constant 97 : index
    %1047 = memref.load %arg2[%c97] : memref<225xf32, #tpu.memory_space<smem>>
    %1048 = vector.broadcast %1047 : f32 to vector<2x16x16xf32>
    %1049 = arith.mulf %1048, %1032 : vector<2x16x16xf32>
    %1050 = arith.addf %1015, %1049 : vector<2x16x16xf32>
    %c122 = arith.constant 122 : index
    %1051 = memref.load %arg2[%c122] : memref<225xf32, #tpu.memory_space<smem>>
    %1052 = vector.broadcast %1051 : f32 to vector<2x16x16xf32>
    %1053 = arith.mulf %1052, %1033 : vector<2x16x16xf32>
    %1054 = arith.addf %1050, %1053 : vector<2x16x16xf32>
    %c147 = arith.constant 147 : index
    %1055 = memref.load %arg2[%c147] : memref<225xf32, #tpu.memory_space<smem>>
    %1056 = vector.broadcast %1055 : f32 to vector<2x16x16xf32>
    %1057 = arith.mulf %1056, %1034 : vector<2x16x16xf32>
    %1058 = arith.addf %1054, %1057 : vector<2x16x16xf32>
    %c172 = arith.constant 172 : index
    %1059 = memref.load %arg2[%c172] : memref<225xf32, #tpu.memory_space<smem>>
    %1060 = vector.broadcast %1059 : f32 to vector<2x16x16xf32>
    %1061 = arith.mulf %1060, %1032 : vector<2x16x16xf32>
    %1062 = arith.addf %1027, %1061 : vector<2x16x16xf32>
    %c197 = arith.constant 197 : index
    %1063 = memref.load %arg2[%c197] : memref<225xf32, #tpu.memory_space<smem>>
    %1064 = vector.broadcast %1063 : f32 to vector<2x16x16xf32>
    %1065 = arith.mulf %1064, %1033 : vector<2x16x16xf32>
    %1066 = arith.addf %1062, %1065 : vector<2x16x16xf32>
    %c222 = arith.constant 222 : index
    %1067 = memref.load %arg2[%c222] : memref<225xf32, #tpu.memory_space<smem>>
    %1068 = vector.broadcast %1067 : f32 to vector<2x16x16xf32>
    %1069 = arith.mulf %1068, %1034 : vector<2x16x16xf32>
    %1070 = arith.addf %1066, %1069 : vector<2x16x16xf32>
    %1071 = vector.extract_strided_slice %945 {offsets = [0, 0, 2], sizes = [2, 16, 16], strides = [1, 1, 1]} : vector<2x16x20xf32> to vector<2x16x16xf32>
    %cst_112 = arith.constant -0.166666672 : f32
    %1072 = vector.broadcast %cst_112 : f32 to vector<2x16x16xf32>
    %1073 = arith.mulf %1072, %1071 : vector<2x16x16xf32>
    %1074 = arith.addf %1031, %1073 : vector<2x16x16xf32>
    %1075 = vector.extract_strided_slice %939 {offsets = [0, 0, 3], sizes = [2, 16, 16], strides = [1, 1, 1]} : vector<2x16x20xf32> to vector<2x16x16xf32>
    %1076 = vector.extract_strided_slice %941 {offsets = [0, 0, 3], sizes = [2, 16, 16], strides = [1, 1, 1]} : vector<2x16x20xf32> to vector<2x16x16xf32>
    %1077 = vector.extract_strided_slice %943 {offsets = [0, 0, 3], sizes = [2, 16, 16], strides = [1, 1, 1]} : vector<2x16x20xf32> to vector<2x16x16xf32>
    %c23 = arith.constant 23 : index
    %1078 = memref.load %arg2[%c23] : memref<225xf32, #tpu.memory_space<smem>>
    %1079 = vector.broadcast %1078 : f32 to vector<2x16x16xf32>
    %1080 = arith.mulf %1079, %1075 : vector<2x16x16xf32>
    %1081 = arith.addf %1046, %1080 : vector<2x16x16xf32>
    %c48 = arith.constant 48 : index
    %1082 = memref.load %arg2[%c48] : memref<225xf32, #tpu.memory_space<smem>>
    %1083 = vector.broadcast %1082 : f32 to vector<2x16x16xf32>
    %1084 = arith.mulf %1083, %1076 : vector<2x16x16xf32>
    %1085 = arith.addf %1081, %1084 : vector<2x16x16xf32>
    %c73 = arith.constant 73 : index
    %1086 = memref.load %arg2[%c73] : memref<225xf32, #tpu.memory_space<smem>>
    %1087 = vector.broadcast %1086 : f32 to vector<2x16x16xf32>
    %1088 = arith.mulf %1087, %1077 : vector<2x16x16xf32>
    %1089 = arith.addf %1085, %1088 : vector<2x16x16xf32>
    %c98 = arith.constant 98 : index
    %1090 = memref.load %arg2[%c98] : memref<225xf32, #tpu.memory_space<smem>>
    %1091 = vector.broadcast %1090 : f32 to vector<2x16x16xf32>
    %1092 = arith.mulf %1091, %1075 : vector<2x16x16xf32>
    %1093 = arith.addf %1058, %1092 : vector<2x16x16xf32>
    %c123 = arith.constant 123 : index
    %1094 = memref.load %arg2[%c123] : memref<225xf32, #tpu.memory_space<smem>>
    %1095 = vector.broadcast %1094 : f32 to vector<2x16x16xf32>
    %1096 = arith.mulf %1095, %1076 : vector<2x16x16xf32>
    %1097 = arith.addf %1093, %1096 : vector<2x16x16xf32>
    %c148 = arith.constant 148 : index
    %1098 = memref.load %arg2[%c148] : memref<225xf32, #tpu.memory_space<smem>>
    %1099 = vector.broadcast %1098 : f32 to vector<2x16x16xf32>
    %1100 = arith.mulf %1099, %1077 : vector<2x16x16xf32>
    %1101 = arith.addf %1097, %1100 : vector<2x16x16xf32>
    %c173 = arith.constant 173 : index
    %1102 = memref.load %arg2[%c173] : memref<225xf32, #tpu.memory_space<smem>>
    %1103 = vector.broadcast %1102 : f32 to vector<2x16x16xf32>
    %1104 = arith.mulf %1103, %1075 : vector<2x16x16xf32>
    %1105 = arith.addf %1070, %1104 : vector<2x16x16xf32>
    %c198 = arith.constant 198 : index
    %1106 = memref.load %arg2[%c198] : memref<225xf32, #tpu.memory_space<smem>>
    %1107 = vector.broadcast %1106 : f32 to vector<2x16x16xf32>
    %1108 = arith.mulf %1107, %1076 : vector<2x16x16xf32>
    %1109 = arith.addf %1105, %1108 : vector<2x16x16xf32>
    %c223 = arith.constant 223 : index
    %1110 = memref.load %arg2[%c223] : memref<225xf32, #tpu.memory_space<smem>>
    %1111 = vector.broadcast %1110 : f32 to vector<2x16x16xf32>
    %1112 = arith.mulf %1111, %1077 : vector<2x16x16xf32>
    %1113 = arith.addf %1109, %1112 : vector<2x16x16xf32>
    %1114 = vector.extract_strided_slice %945 {offsets = [0, 0, 3], sizes = [2, 16, 16], strides = [1, 1, 1]} : vector<2x16x20xf32> to vector<2x16x16xf32>
    %cst_113 = arith.constant 0.166666672 : f32
    %1115 = vector.broadcast %cst_113 : f32 to vector<2x16x16xf32>
    %1116 = arith.mulf %1115, %1114 : vector<2x16x16xf32>
    %1117 = arith.addf %1074, %1116 : vector<2x16x16xf32>
    %1118 = vector.extract_strided_slice %939 {offsets = [0, 0, 4], sizes = [2, 16, 16], strides = [1, 1, 1]} : vector<2x16x20xf32> to vector<2x16x16xf32>
    %1119 = vector.extract_strided_slice %941 {offsets = [0, 0, 4], sizes = [2, 16, 16], strides = [1, 1, 1]} : vector<2x16x20xf32> to vector<2x16x16xf32>
    %1120 = vector.extract_strided_slice %943 {offsets = [0, 0, 4], sizes = [2, 16, 16], strides = [1, 1, 1]} : vector<2x16x20xf32> to vector<2x16x16xf32>
    %c24 = arith.constant 24 : index
    %1121 = memref.load %arg2[%c24] : memref<225xf32, #tpu.memory_space<smem>>
    %1122 = vector.broadcast %1121 : f32 to vector<2x16x16xf32>
    %1123 = arith.mulf %1122, %1118 : vector<2x16x16xf32>
    %1124 = arith.addf %1089, %1123 : vector<2x16x16xf32>
    %c49 = arith.constant 49 : index
    %1125 = memref.load %arg2[%c49] : memref<225xf32, #tpu.memory_space<smem>>
    %1126 = vector.broadcast %1125 : f32 to vector<2x16x16xf32>
    %1127 = arith.mulf %1126, %1119 : vector<2x16x16xf32>
    %1128 = arith.addf %1124, %1127 : vector<2x16x16xf32>
    %c74 = arith.constant 74 : index
    %1129 = memref.load %arg2[%c74] : memref<225xf32, #tpu.memory_space<smem>>
    %1130 = vector.broadcast %1129 : f32 to vector<2x16x16xf32>
    %1131 = arith.mulf %1130, %1120 : vector<2x16x16xf32>
    %1132 = arith.addf %1128, %1131 : vector<2x16x16xf32>
    %c99 = arith.constant 99 : index
    %1133 = memref.load %arg2[%c99] : memref<225xf32, #tpu.memory_space<smem>>
    %1134 = vector.broadcast %1133 : f32 to vector<2x16x16xf32>
    %1135 = arith.mulf %1134, %1118 : vector<2x16x16xf32>
    %1136 = arith.addf %1101, %1135 : vector<2x16x16xf32>
    %c124 = arith.constant 124 : index
    %1137 = memref.load %arg2[%c124] : memref<225xf32, #tpu.memory_space<smem>>
    %1138 = vector.broadcast %1137 : f32 to vector<2x16x16xf32>
    %1139 = arith.mulf %1138, %1119 : vector<2x16x16xf32>
    %1140 = arith.addf %1136, %1139 : vector<2x16x16xf32>
    %c149 = arith.constant 149 : index
    %1141 = memref.load %arg2[%c149] : memref<225xf32, #tpu.memory_space<smem>>
    %1142 = vector.broadcast %1141 : f32 to vector<2x16x16xf32>
    %1143 = arith.mulf %1142, %1120 : vector<2x16x16xf32>
    %1144 = arith.addf %1140, %1143 : vector<2x16x16xf32>
    %c174 = arith.constant 174 : index
    %1145 = memref.load %arg2[%c174] : memref<225xf32, #tpu.memory_space<smem>>
    %1146 = vector.broadcast %1145 : f32 to vector<2x16x16xf32>
    %1147 = arith.mulf %1146, %1118 : vector<2x16x16xf32>
    %1148 = arith.addf %1113, %1147 : vector<2x16x16xf32>
    %c199 = arith.constant 199 : index
    %1149 = memref.load %arg2[%c199] : memref<225xf32, #tpu.memory_space<smem>>
    %1150 = vector.broadcast %1149 : f32 to vector<2x16x16xf32>
    %1151 = arith.mulf %1150, %1119 : vector<2x16x16xf32>
    %1152 = arith.addf %1148, %1151 : vector<2x16x16xf32>
    %c224 = arith.constant 224 : index
    %1153 = memref.load %arg2[%c224] : memref<225xf32, #tpu.memory_space<smem>>
    %1154 = vector.broadcast %1153 : f32 to vector<2x16x16xf32>
    %1155 = arith.mulf %1154, %1120 : vector<2x16x16xf32>
    %1156 = arith.addf %1152, %1155 : vector<2x16x16xf32>
    %1157 = vector.extract_strided_slice %945 {offsets = [0, 0, 4], sizes = [2, 16, 16], strides = [1, 1, 1]} : vector<2x16x20xf32> to vector<2x16x16xf32>
    %cst_114 = arith.constant -0.0833333358 : f32
    %1158 = vector.broadcast %cst_114 : f32 to vector<2x16x16xf32>
    %1159 = arith.mulf %1158, %1157 : vector<2x16x16xf32>
    %1160 = arith.addf %1117, %1159 : vector<2x16x16xf32>
    %c0_115 = arith.constant 0 : index
    %c0_116 = arith.constant 0 : index
    %c0_117 = arith.constant 0 : index
    %c0_118 = arith.constant 0 : index
    %1161 = vector.load %arg3[%c0_115, %c0_116, %c0_117, %c0_118] : memref<2x3x16x16xf32, #tpu.memory_space<vmem>>, vector<2x1x16x16xf32>
    %1162 = vector.shape_cast %1161 : vector<2x1x16x16xf32> to vector<2x16x16xf32>
    %1163 = vector.shape_cast %1132 : vector<2x16x16xf32> to vector<2x1x16x16xf32>
    tpu.vector_store %arg3[%c0_115, %c0_116, %c0_117, %c0_118], %1163 {strides = array<i32>} : memref<2x3x16x16xf32, #tpu.memory_space<vmem>>, vector<2x1x16x16xf32>,
    %cst_119 = arith.constant -2.000000e+00 : f32
    %cst_120 = arith.constant 2.000000e+00 : f32
    %1164 = vector.broadcast %cst_119 : f32 to vector<2x16x16xf32>
    %1165 = arith.maximumf %1164, %891 : vector<2x16x16xf32>
    %1166 = vector.broadcast %cst_120 : f32 to vector<2x16x16xf32>
    %1167 = arith.minimumf %1166, %1165 : vector<2x16x16xf32>
    %c0_121 = arith.constant 0 : index
    %c0_122 = arith.constant 0 : index
    %c0_123 = arith.constant 0 : index
    %c0_124 = arith.constant 0 : index
    %1168 = vector.load %arg4[%c0_121, %c0_122, %c0_123, %c0_124] : memref<2x3x16x16xf32, #tpu.memory_space<vmem>>, vector<2x1x16x16xf32>
    %1169 = vector.shape_cast %1168 : vector<2x1x16x16xf32> to vector<2x16x16xf32>
    %1170 = vector.shape_cast %1167 : vector<2x16x16xf32> to vector<2x1x16x16xf32>
    tpu.vector_store %arg4[%c0_121, %c0_122, %c0_123, %c0_124], %1170 {strides = array<i32>} : memref<2x3x16x16xf32, #tpu.memory_space<vmem>>, vector<2x1x16x16xf32>,
    %c0_125 = arith.constant 0 : index
    %c1_126 = arith.constant 1 : index
    %c0_127 = arith.constant 0 : index
    %c0_128 = arith.constant 0 : index
    %1171 = vector.load %arg3[%c0_125, %c1_126, %c0_127, %c0_128] : memref<2x3x16x16xf32, #tpu.memory_space<vmem>>, vector<2x1x16x16xf32>
    %1172 = vector.shape_cast %1171 : vector<2x1x16x16xf32> to vector<2x16x16xf32>
    %1173 = vector.shape_cast %1144 : vector<2x16x16xf32> to vector<2x1x16x16xf32>
    tpu.vector_store %arg3[%c0_125, %c1_126, %c0_127, %c0_128], %1173 {strides = array<i32>} : memref<2x3x16x16xf32, #tpu.memory_space<vmem>>, vector<2x1x16x16xf32>,
    %cst_129 = arith.constant -2.000000e+00 : f32
    %cst_130 = arith.constant 2.000000e+00 : f32
    %1174 = vector.broadcast %cst_129 : f32 to vector<2x16x16xf32>
    %1175 = arith.maximumf %1174, %1160 : vector<2x16x16xf32>
    %1176 = vector.broadcast %cst_130 : f32 to vector<2x16x16xf32>
    %1177 = arith.minimumf %1176, %1175 : vector<2x16x16xf32>
    %c0_131 = arith.constant 0 : index
    %c1_132 = arith.constant 1 : index
    %c0_133 = arith.constant 0 : index
    %c0_134 = arith.constant 0 : index
    %1178 = vector.load %arg4[%c0_131, %c1_132, %c0_133, %c0_134] : memref<2x3x16x16xf32, #tpu.memory_space<vmem>>, vector<2x1x16x16xf32>
    %1179 = vector.shape_cast %1178 : vector<2x1x16x16xf32> to vector<2x16x16xf32>
    %1180 = vector.shape_cast %1177 : vector<2x16x16xf32> to vector<2x1x16x16xf32>
    tpu.vector_store %arg4[%c0_131, %c1_132, %c0_133, %c0_134], %1180 {strides = array<i32>} : memref<2x3x16x16xf32, #tpu.memory_space<vmem>>, vector<2x1x16x16xf32>,
    %c0_135 = arith.constant 0 : index
    %c2_136 = arith.constant 2 : index
    %c0_137 = arith.constant 0 : index
    %c0_138 = arith.constant 0 : index
    %1181 = vector.load %arg3[%c0_135, %c2_136, %c0_137, %c0_138] : memref<2x3x16x16xf32, #tpu.memory_space<vmem>>, vector<2x1x16x16xf32>
    %1182 = vector.shape_cast %1181 : vector<2x1x16x16xf32> to vector<2x16x16xf32>
    %1183 = vector.shape_cast %1156 : vector<2x16x16xf32> to vector<2x1x16x16xf32>
    tpu.vector_store %arg3[%c0_135, %c2_136, %c0_137, %c0_138], %1183 {strides = array<i32>} : memref<2x3x16x16xf32, #tpu.memory_space<vmem>>, vector<2x1x16x16xf32>,
    %cst_139 = arith.constant -2.000000e+00 : f32
    %cst_140 = arith.constant 2.000000e+00 : f32
    %1184 = vector.broadcast %cst_139 : f32 to vector<2x16x16xf32>
    %1185 = arith.maximumf %1184, %662 : vector<2x16x16xf32>
    %1186 = vector.broadcast %cst_140 : f32 to vector<2x16x16xf32>
    %1187 = arith.minimumf %1186, %1185 : vector<2x16x16xf32>
    %c0_141 = arith.constant 0 : index
    %c2_142 = arith.constant 2 : index
    %c0_143 = arith.constant 0 : index
    %c0_144 = arith.constant 0 : index
    %1188 = vector.load %arg4[%c0_141, %c2_142, %c0_143, %c0_144] : memref<2x3x16x16xf32, #tpu.memory_space<vmem>>, vector<2x1x16x16xf32>
    %1189 = vector.shape_cast %1188 : vector<2x1x16x16xf32> to vector<2x16x16xf32>
    %1190 = vector.shape_cast %1187 : vector<2x16x16xf32> to vector<2x1x16x16xf32>
    tpu.vector_store %arg4[%c0_141, %c2_142, %c0_143, %c0_144], %1190 {strides = array<i32>} : memref<2x3x16x16xf32, #tpu.memory_space<vmem>>, vector<2x1x16x16xf32>,
    return
  }
  func.func @transform_0(%arg0: i32) -> (i32, i32, i32, i32) {
    %c0_i32 = arith.constant 0 : i32
    %c0_i32_0 = arith.constant 0 : i32
    %c0_i32_1 = arith.constant 0 : i32
    %c0_i32_2 = arith.constant 0 : i32
    return %arg0, %c0_i32, %c0_i32_0, %c0_i32_1 : i32, i32, i32, i32
  }
  func.func @transform_1(%arg0: i32) -> i32 {
    %c0_i32 = arith.constant 0 : i32
    %c0_i32_0 = arith.constant 0 : i32
    return %c0_i32 : i32
  }
  func.func @transform_2(%arg0: i32) -> (i32, i32, i32, i32) {
    %c0_i32 = arith.constant 0 : i32
    %c0_i32_0 = arith.constant 0 : i32
    %c0_i32_1 = arith.constant 0 : i32
    %c0_i32_2 = arith.constant 0 : i32
    return %arg0, %c0_i32, %c0_i32_0, %c0_i32_1 : i32, i32, i32, i32
  }
  func.func @transform_3(%arg0: i32) -> (i32, i32, i32, i32) {
    %c0_i32 = arith.constant 0 : i32
    %c0_i32_0 = arith.constant 0 : i32
    %c0_i32_1 = arith.constant 0 : i32
    %c0_i32_2 = arith.constant 0 : i32
    return %arg0, %c0_i32, %c0_i32_0, %c0_i32_1 : i32, i32, i32, i32
  }
}

</mosaic_0001>

<llo_original>
// kernel: tpu_custom_call.1
$region0: #{tpu_custom_call.1}
  #allocation0 [shape = 'u32[]', space=smem, size = 0x4, offset = 0x4, fixed_abs, tag = 'smem constant byte address 0x4 - core index']
  #allocation1 [shape = 'u32[144,128]{1,0:T(1,128)}', space=vmem, size = 0x12000, scoped, tag = 'internal scratch']
  #allocation2 [shape = 'f32[2,3,20,20]{3,2,1,0:T(8,128)}', space=vmem, size = 0x12000, scoped, tag = 'scratch operand']
  %s0 = inlined_call_operand.hbm [shape: f32[2,3,16,16], index: 0, kind: input, shape index: {}]
  %s1 = inlined_call_operand.vmem [shape: f32[225], index: 1, kind: input, shape index: {}]
  %s2 = inlined_call_operand.hbm [shape: f32[2,3,16,16], index: 2, kind: output, shape index: {0}]
  %s3 = inlined_call_operand.hbm [shape: f32[2,3,16,16], index: 3, kind: output, shape index: {1}]
  %4 = xla_tuple %s2, %s3
  %s5 = sld [smem:[#allocation0]]
  $region34: #{tpu_custom_call.1} parent=0
    _
  %s7 = ssub.s32 1, %s5
  %s8 = scalar_select 0, %s7, %s5
  $region1: #{tpu_custom_call.1} parent=0
    #allocation3 [shape = 'u8[49152]{0}', space=vmem, size = 0xc000, scoped, tag = 'input window, operand 0, single buffered']
    #allocation4 [shape = 's32[1]{0}', space=sflag, size = 0x4, scoped, tag = 'scoped memory for tpu_custom_call.1']
    #allocation5 [shape = 's32[1]{0}', space=sflag, size = 0x4, scoped, tag = 'scoped memory for tpu_custom_call.1']
    #allocation6 [shape = 's32[1]{0}', space=sflag, size = 0x4, scoped, tag = 'scoped memory for tpu_custom_call.1']
    #allocation7 [shape = 'u8[1024]{0}', space=smem, size = 0x400, scoped, tag = 'input window, operand 1, single buffered']
    #allocation8 [shape = 'u8[49152]{0}', space=vmem, size = 0xc000, scoped, tag = 'output window, operand 0, single buffered']
    #allocation9 [shape = 'u8[49152]{0}', space=vmem, size = 0xc000, scoped, tag = 'output window, operand 1, single buffered']
    #allocation10 [shape = 's32[1]{0}', space=sflag, size = 0x4, scoped, tag = 'scoped memory for tpu_custom_call.1']
    %9 = vsyncpa [#allocation4], 0
    %10 = vsyncpa [#allocation6], 0
    %11 = vsyncpa [#allocation5], 0
    %12 = vsyncpa [#allocation10], 0
    // Predicated region
    $region2: #{tpu_custom_call.1} parent=1 // pred_check
      _
    $region3: #{tpu_custom_call.1} parent=1 // pred_check_branch
      %14 = sbr.rel (0) target = $region5
    $region4: #{tpu_custom_call.1} parent=1 // pred_region
      %s16 = ssub.s32 1536, 1536
      %17 = vsyncadd [#allocation4], %s16
      %s18 = sshll.u32 [#allocation3], 4
      %s19 = int_to_ptr.vmem [resolvable:$true] %s18
      %24 = dma.hbm_to_vmem [thread:$0]  %s0, 1536, %s19, [#allocation4], 128, 128, 8
    $region5: #{tpu_custom_call.1} parent=1 // pred_fallthru
      _
    // Predicated region
    $region6: #{tpu_custom_call.1} parent=1 // pred_check
      _
    $region7: #{tpu_custom_call.1} parent=1 // pred_check_branch
      %26 = sbr.rel (0) target = $region9
    $region8: #{tpu_custom_call.1} parent=1 // pred_region
      %s28 = ssub.s32 32, 32
      %29 = vsyncadd [#allocation6], %s28
      %s31 = sshll.u32 %s1, 4
      %s32 = int_to_ptr.vmem [resolvable:$true] %s31
      %34 = dma.vmem_to_smem %s32, 32, [#allocation7], [#allocation6]
    $region9: #{tpu_custom_call.1} parent=1 // pred_fallthru
      _
    // Predicated region
    $region10: #{tpu_custom_call.1} parent=1 // pred_check
      _
    $region11: #{tpu_custom_call.1} parent=1 // pred_check_branch
      %36 = sbr.rel (0) target = $region13
    $region12: #{tpu_custom_call.1} parent=1 // pred_region
      %37 = dma.done [#allocation4], 1536
    $region13: #{tpu_custom_call.1} parent=1 // pred_fallthru
      _
    // Predicated region
    $region14: #{tpu_custom_call.1} parent=1 // pred_check
      _
    $region15: #{tpu_custom_call.1} parent=1 // pred_check_branch
      %39 = sbr.rel (0) target = $region17
    $region16: #{tpu_custom_call.1} parent=1 // pred_region
      %40 = dma.done [#allocation6], 32
    $region17: #{tpu_custom_call.1} parent=1 // pred_fallthru
      _
    %41 = sfence
    %vm42 = vcmask 162816
    %43 = vst.msk [vmem:[#allocation2] sm:$0xff] %vm42, 0.0
    %44 = vst.msk [vmem:[#allocation2 + $0x8] sm:$0xff] %vm42, 0.0
    %vm45 = vcmask 158720
    %46 = vst.msk [vmem:[#allocation2 + $0x10] sm:$0xf] %vm45, 0.0
    %47 = vst.msk [vmem:[#allocation2 + $0x18] sm:$0xff] %vm42, 0.0
    %48 = vst.msk [vmem:[#allocation2 + $0x20] sm:$0xff] %vm42, 0.0
    %49 = vst.msk [vmem:[#allocation2 + $0x28] sm:$0xf] %vm45, 0.0
    %50 = vst.msk [vmem:[#allocation2 + $0x30] sm:$0xff] %vm42, 0.0
    %51 = vst.msk [vmem:[#allocation2 + $0x38] sm:$0xff] %vm42, 0.0
    %52 = vst.msk [vmem:[#allocation2 + $0x40] sm:$0xf] %vm45, 0.0
    %53 = vst.msk [vmem:[#allocation2 + $0x48] sm:$0xff] %vm42, 0.0
    %54 = vst.msk [vmem:[#allocation2 + $0x50] sm:$0xff] %vm42, 0.0
    %55 = vst.msk [vmem:[#allocation2 + $0x58] sm:$0xf] %vm45, 0.0
    %56 = vst.msk [vmem:[#allocation2 + $0x60] sm:$0xff] %vm42, 0.0
    %57 = vst.msk [vmem:[#allocation2 + $0x68] sm:$0xff] %vm42, 0.0
    %58 = vst.msk [vmem:[#allocation2 + $0x70] sm:$0xf] %vm45, 0.0
    %59 = vst.msk [vmem:[#allocation2 + $0x78] sm:$0xff] %vm42, 0.0
    %60 = vst.msk [vmem:[#allocation2 + $0x80] sm:$0xff] %vm42, 0.0
    %61 = vst.msk [vmem:[#allocation2 + $0x88] sm:$0xf] %vm45, 0.0
    %v62 = vld [vmem:[#allocation3] sm:$0xff]
    %v63 = vld [vmem:[#allocation3 + $0x8] sm:$0xff]
    %v64 = vld [vmem:[#allocation3 + $0x10] sm:$0xff]
    %v65 = vld [vmem:[#allocation3 + $0x18] sm:$0xff]
    %v66 = vld [vmem:[#allocation3 + $0x20] sm:$0xff]
    %v67 = vld [vmem:[#allocation3 + $0x28] sm:$0xff]
    %v68 = vld [vmem:[#allocation3 + $0x30] sm:$0xff]
    %v69 = vld [vmem:[#allocation3 + $0x38] sm:$0xff]
    %v70 = vld [vmem:[#allocation3 + $0x40] sm:$0xff]
    %v71 = vld [vmem:[#allocation3 + $0x48] sm:$0xff]
    %v72 = vld [vmem:[#allocation3 + $0x50] sm:$0xff]
    %v73 = vld [vmem:[#allocation3 + $0x58] sm:$0xff]
    %86 = vrot.lane.b32.xlu0 %v62, 2
    %v87 = vpop.permute.xlu0 %86
    %88 = vrot.lane.b32.xlu0 %v63, 2
    %v89 = vpop.permute.xlu0 %88
    %90 = vrot.lane.b32.xlu0 %v64, 2
    %v91 = vpop.permute.xlu0 %90
    %92 = vrot.lane.b32.xlu0 %v65, 2
    %v93 = vpop.permute.xlu0 %92
    %94 = vrot.lane.b32.xlu0 %v66, 2
    %v95 = vpop.permute.xlu0 %94
    %96 = vrot.lane.b32.xlu0 %v67, 2
    %v97 = vpop.permute.xlu0 %96
    %98 = vrot.lane.b32.xlu0 %v68, 2
    %v99 = vpop.permute.xlu0 %98
    %100 = vrot.lane.b32.xlu0 %v69, 2
    %v101 = vpop.permute.xlu0 %100
    %102 = vrot.lane.b32.xlu0 %v70, 2
    %v103 = vpop.permute.xlu0 %102
    %104 = vrot.lane.b32.xlu0 %v71, 2
    %v105 = vpop.permute.xlu0 %104
    %106 = vrot.lane.b32.xlu0 %v72, 2
    %v107 = vpop.permute.xlu0 %106
    %108 = vrot.lane.b32.xlu0 %v73, 2
    %v109 = vpop.permute.xlu0 %108
    %vm122 = vcmask 146448
    %123 = vst.msk [vmem:[#allocation2 + $0x2] sm:$0xff] %vm122, %v87
    %124 = vst.msk [vmem:[#allocation2 + $0xa] sm:$0xff] %vm122, %v89
    %125 = vst.msk [vmem:[#allocation2 + $0x1a] sm:$0xff] %vm122, %v91
    %126 = vst.msk [vmem:[#allocation2 + $0x22] sm:$0xff] %vm122, %v93
    %127 = vst.msk [vmem:[#allocation2 + $0x32] sm:$0xff] %vm122, %v95
    %128 = vst.msk [vmem:[#allocation2 + $0x3a] sm:$0xff] %vm122, %v97
    %129 = vst.msk [vmem:[#allocation2 + $0x4a] sm:$0xff] %vm122, %v99
    %130 = vst.msk [vmem:[#allocation2 + $0x52] sm:$0xff] %vm122, %v101
    %131 = vst.msk [vmem:[#allocation2 + $0x62] sm:$0xff] %vm122, %v103
    %132 = vst.msk [vmem:[#allocation2 + $0x6a] sm:$0xff] %vm122, %v105
    %133 = vst.msk [vmem:[#allocation2 + $0x7a] sm:$0xff] %vm122, %v107
    %134 = vst.msk [vmem:[#allocation2 + $0x82] sm:$0xff] %vm122, %v109
    %v135 = vld [vmem:[#allocation2] sm:$0xff]
    %v136 = vld [vmem:[#allocation2 + $0x8] sm:$0xff]
    %v137 = vld [vmem:[#allocation2 + $0x48] sm:$0xff]
    %v138 = vld [vmem:[#allocation2 + $0x50] sm:$0xff]
    %s139 = scalar_lea.vmem [#allocation2], 24
    %v140 = vld [vmem:[%s139] sm:$0xff]
    %v141 = vld [vmem:[%s139 + $0x8] sm:$0xff]
    %v142 = vld [vmem:[%s139 + $0x48] sm:$0xff]
    %v143 = vld [vmem:[%s139 + $0x50] sm:$0xff]
    %s144 = scalar_lea.vmem [#allocation2], 48
    %v145 = vld [vmem:[%s144] sm:$0xff]
    %v146 = vld [vmem:[%s144 + $0x8] sm:$0xff]
    %v147 = vld [vmem:[%s144 + $0x48] sm:$0xff]
    %v148 = vld [vmem:[%s144 + $0x50] sm:$0xff]
    %v149 = vadd.f32 %v135, %v140
    %v150 = vadd.f32 %v136, %v141
    %v151 = vadd.f32 %v137, %v142
    %v152 = vadd.f32 %v138, %v143
    %v153 = vadd.f32 %v149, %v145
    %v154 = vadd.f32 %v150, %v146
    %v155 = vadd.f32 %v151, %v147
    %v156 = vadd.f32 %v152, %v148
    %s157 = sld [smem:[#allocation7]]
    %v158 = vstv %s157
    %v159 = vmul.f32 %v158, %v135
    %v160 = vmul.f32 %v158, %v136
    %v161 = vmul.f32 %v158, %v137
    %v162 = vmul.f32 %v158, %v138
    %v163 = vadd.f32 %v159, 0.0
    %v164 = vadd.f32 %v160, 0.0
    %v165 = vadd.f32 %v161, 0.0
    %v166 = vadd.f32 %v162, 0.0
    %s167 = sld [smem:[#allocation7 + $0x19]]
    %v168 = vstv %s167
    %v169 = vmul.f32 %v168, %v140
    %v170 = vmul.f32 %v168, %v141
    %v171 = vmul.f32 %v168, %v142
    %v172 = vmul.f32 %v168, %v143
    %v173 = vadd.f32 %v163, %v169
    %v174 = vadd.f32 %v164, %v170
    %v175 = vadd.f32 %v165, %v171
    %v176 = vadd.f32 %v166, %v172
    %s177 = sld [smem:[#allocation7 + $0x32]]
    %v178 = vstv %s177
    %v179 = vmul.f32 %v178, %v145
    %v180 = vmul.f32 %v178, %v146
    %v181 = vmul.f32 %v178, %v147
    %v182 = vmul.f32 %v178, %v148
    %v183 = vadd.f32 %v173, %v179
    %v184 = vadd.f32 %v174, %v180
    %v185 = vadd.f32 %v175, %v181
    %v186 = vadd.f32 %v176, %v182
    %s187 = sld [smem:[#allocation7 + $0x4b]]
    %v188 = vstv %s187
    %v189 = vmul.f32 %v188, %v135
    %v190 = vmul.f32 %v188, %v136
    %v191 = vmul.f32 %v188, %v137
    %v192 = vmul.f32 %v188, %v138
    %v193 = vadd.f32 %v189, 0.0
    %v194 = vadd.f32 %v190, 0.0
    %v195 = vadd.f32 %v191, 0.0
    %v196 = vadd.f32 %v192, 0.0
    %s197 = sld [smem:[#allocation7 + $0x64]]
    %v198 = vstv %s197
    %v199 = vmul.f32 %v198, %v140
    %v200 = vmul.f32 %v198, %v141
    %v201 = vmul.f32 %v198, %v142
    %v202 = vmul.f32 %v198, %v143
    %v203 = vadd.f32 %v193, %v199
    %v204 = vadd.f32 %v194, %v200
    %v205 = vadd.f32 %v195, %v201
    %v206 = vadd.f32 %v196, %v202
    %s207 = sld [smem:[#allocation7 + $0x7d]]
    %v208 = vstv %s207
    %v209 = vmul.f32 %v208, %v145
    %v210 = vmul.f32 %v208, %v146
    %v211 = vmul.f32 %v208, %v147
    %v212 = vmul.f32 %v208, %v148
    %v213 = vadd.f32 %v203, %v209
    %v214 = vadd.f32 %v204, %v210
    %v215 = vadd.f32 %v205, %v211
    %v216 = vadd.f32 %v206, %v212
    %s217 = sld [smem:[#allocation7 + $0x96]]
    %v218 = vstv %s217
    %v219 = vmul.f32 %v218, %v135
    %v220 = vmul.f32 %v218, %v136
    %v221 = vmul.f32 %v218, %v137
    %v222 = vmul.f32 %v218, %v138
    %v223 = vadd.f32 %v219, 0.0
    %v224 = vadd.f32 %v220, 0.0
    %v225 = vadd.f32 %v221, 0.0
    %v226 = vadd.f32 %v222, 0.0
    %s227 = sld [smem:[#allocation7 + $0xaf]]
    %v228 = vstv %s227
    %v229 = vmul.f32 %v228, %v140
    %v230 = vmul.f32 %v228, %v141
    %v231 = vmul.f32 %v228, %v142
    %v232 = vmul.f32 %v228, %v143
    %v233 = vadd.f32 %v223, %v229
    %v234 = vadd.f32 %v224, %v230
    %v235 = vadd.f32 %v225, %v231
    %v236 = vadd.f32 %v226, %v232
    %s237 = sld [smem:[#allocation7 + $0xc8]]
    %v238 = vstv %s237
    %v239 = vmul.f32 %v238, %v145
    %v240 = vmul.f32 %v238, %v146
    %v241 = vmul.f32 %v238, %v147
    %v242 = vmul.f32 %v238, %v148
    %v243 = vadd.f32 %v233, %v239
    %v244 = vadd.f32 %v234, %v240
    %v245 = vadd.f32 %v235, %v241
    %v246 = vadd.f32 %v236, %v242
    %v247 = vmul.f32 %v153, -0.083333336
    %v248 = vmul.f32 %v154, -0.083333336
    %v249 = vmul.f32 %v155, -0.083333336
    %v250 = vmul.f32 %v156, -0.083333336
    %v251 = vadd.f32 %v247, 0.0
    %v252 = vadd.f32 %v248, 0.0
    %v253 = vadd.f32 %v249, 0.0
    %v254 = vadd.f32 %v250, 0.0
    %s255 = sld [smem:[#allocation7 + $0x1]]
    %v256 = vstv %s255
    %v257 = vmul.f32 %v256, %v135
    %v258 = vmul.f32 %v256, %v136
    %v259 = vmul.f32 %v256, %v137
    %v260 = vmul.f32 %v256, %v138
    %265 = vrot.lane.b32.xlu0 %v257, 127
    %v266 = vpop.permute.xlu0 %265
    %267 = vrot.lane.b32.xlu0 %v258, 127
    %v268 = vpop.permute.xlu0 %267
    %269 = vrot.lane.b32.xlu0 %v259, 127
    %v270 = vpop.permute.xlu0 %269
    %271 = vrot.lane.b32.xlu0 %v260, 127
    %v272 = vpop.permute.xlu0 %271
    %v277 = vadd.f32 %v183, %v266
    %v278 = vadd.f32 %v184, %v268
    %v279 = vadd.f32 %v185, %v270
    %v280 = vadd.f32 %v186, %v272
    %s281 = sld [smem:[#allocation7 + $0x1a]]
    %v282 = vstv %s281
    %v283 = vmul.f32 %v282, %v140
    %v284 = vmul.f32 %v282, %v141
    %v285 = vmul.f32 %v282, %v142
    %v286 = vmul.f32 %v282, %v143
    %291 = vrot.lane.b32.xlu0 %v283, 127
    %v292 = vpop.permute.xlu0 %291
    %293 = vrot.lane.b32.xlu0 %v284, 127
    %v294 = vpop.permute.xlu0 %293
    %295 = vrot.lane.b32.xlu0 %v285, 127
    %v296 = vpop.permute.xlu0 %295
    %297 = vrot.lane.b32.xlu0 %v286, 127
    %v298 = vpop.permute.xlu0 %297
    %v303 = vadd.f32 %v277, %v292
    %v304 = vadd.f32 %v278, %v294
    %v305 = vadd.f32 %v279, %v296
    %v306 = vadd.f32 %v280, %v298
    %s307 = sld [smem:[#allocation7 + $0x33]]
    %v308 = vstv %s307
    %v309 = vmul.f32 %v308, %v145
    %v310 = vmul.f32 %v308, %v146
    %v311 = vmul.f32 %v308, %v147
    %v312 = vmul.f32 %v308, %v148
    %317 = vrot.lane.b32.xlu0 %v309, 127
    %v318 = vpop.permute.xlu0 %317
    %319 = vrot.lane.b32.xlu0 %v310, 127
    %v320 = vpop.permute.xlu0 %319
    %321 = vrot.lane.b32.xlu0 %v311, 127
    %v322 = vpop.permute.xlu0 %321
    %323 = vrot.lane.b32.xlu0 %v312, 127
    %v324 = vpop.permute.xlu0 %323
    %v329 = vadd.f32 %v303, %v318
    %v330 = vadd.f32 %v304, %v320
    %v331 = vadd.f32 %v305, %v322
    %v332 = vadd.f32 %v306, %v324
    %s333 = sld [smem:[#allocation7 + $0x4c]]
    %v334 = vstv %s333
    %v335 = vmul.f32 %v334, %v135
    %v336 = vmul.f32 %v334, %v136
    %v337 = vmul.f32 %v334, %v137
    %v338 = vmul.f32 %v334, %v138
    %343 = vrot.lane.b32.xlu0 %v335, 127
    %v344 = vpop.permute.xlu0 %343
    %345 = vrot.lane.b32.xlu0 %v336, 127
    %v346 = vpop.permute.xlu0 %345
    %347 = vrot.lane.b32.xlu0 %v337, 127
    %v348 = vpop.permute.xlu0 %347
    %349 = vrot.lane.b32.xlu0 %v338, 127
    %v350 = vpop.permute.xlu0 %349
    %v355 = vadd.f32 %v213, %v344
    %v356 = vadd.f32 %v214, %v346
    %v357 = vadd.f32 %v215, %v348
    %v358 = vadd.f32 %v216, %v350
    %s359 = sld [smem:[#allocation7 + $0x65]]
    %v360 = vstv %s359
    %v361 = vmul.f32 %v360, %v140
    %v362 = vmul.f32 %v360, %v141
    %v363 = vmul.f32 %v360, %v142
    %v364 = vmul.f32 %v360, %v143
    %369 = vrot.lane.b32.xlu0 %v361, 127
    %v370 = vpop.permute.xlu0 %369
    %371 = vrot.lane.b32.xlu0 %v362, 127
    %v372 = vpop.permute.xlu0 %371
    %373 = vrot.lane.b32.xlu0 %v363, 127
    %v374 = vpop.permute.xlu0 %373
    %375 = vrot.lane.b32.xlu0 %v364, 127
    %v376 = vpop.permute.xlu0 %375
    %v381 = vadd.f32 %v355, %v370
    %v382 = vadd.f32 %v356, %v372
    %v383 = vadd.f32 %v357, %v374
    %v384 = vadd.f32 %v358, %v376
    %s385 = sld [smem:[#allocation7 + $0x7e]]
    %v386 = vstv %s385
    %v387 = vmul.f32 %v386, %v145
    %v388 = vmul.f32 %v386, %v146
    %v389 = vmul.f32 %v386, %v147
    %v390 = vmul.f32 %v386, %v148
    %395 = vrot.lane.b32.xlu0 %v387, 127
    %v396 = vpop.permute.xlu0 %395
    %397 = vrot.lane.b32.xlu0 %v388, 127
    %v398 = vpop.permute.xlu0 %397
    %399 = vrot.lane.b32.xlu0 %v389, 127
    %v400 = vpop.permute.xlu0 %399
    %401 = vrot.lane.b32.xlu0 %v390, 127
    %v402 = vpop.permute.xlu0 %401
    %v407 = vadd.f32 %v381, %v396
    %v408 = vadd.f32 %v382, %v398
    %v409 = vadd.f32 %v383, %v400
    %v410 = vadd.f32 %v384, %v402
    %s411 = sld [smem:[#allocation7 + $0x97]]
    %v412 = vstv %s411
    %v413 = vmul.f32 %v412, %v135
    %v414 = vmul.f32 %v412, %v136
    %v415 = vmul.f32 %v412, %v137
    %v416 = vmul.f32 %v412, %v138
    %421 = vrot.lane.b32.xlu0 %v413, 127
    %v422 = vpop.permute.xlu0 %421
    %423 = vrot.lane.b32.xlu0 %v414, 127
    %v424 = vpop.permute.xlu0 %423
    %425 = vrot.lane.b32.xlu0 %v415, 127
    %v426 = vpop.permute.xlu0 %425
    %427 = vrot.lane.b32.xlu0 %v416, 127
    %v428 = vpop.permute.xlu0 %427
    %v433 = vadd.f32 %v243, %v422
    %v434 = vadd.f32 %v244, %v424
    %v435 = vadd.f32 %v245, %v426
    %v436 = vadd.f32 %v246, %v428
    %s437 = sld [smem:[#allocation7 + $0xb0]]
    %v438 = vstv %s437
    %v439 = vmul.f32 %v438, %v140
    %v440 = vmul.f32 %v438, %v141
    %v441 = vmul.f32 %v438, %v142
    %v442 = vmul.f32 %v438, %v143
    %447 = vrot.lane.b32.xlu0 %v439, 127
    %v448 = vpop.permute.xlu0 %447
    %449 = vrot.lane.b32.xlu0 %v440, 127
    %v450 = vpop.permute.xlu0 %449
    %451 = vrot.lane.b32.xlu0 %v441, 127
    %v452 = vpop.permute.xlu0 %451
    %453 = vrot.lane.b32.xlu0 %v442, 127
    %v454 = vpop.permute.xlu0 %453
    %v459 = vadd.f32 %v433, %v448
    %v460 = vadd.f32 %v434, %v450
    %v461 = vadd.f32 %v435, %v452
    %v462 = vadd.f32 %v436, %v454
    %s463 = sld [smem:[#allocation7 + $0xc9]]
    %v464 = vstv %s463
    %v465 = vmul.f32 %v464, %v145
    %v466 = vmul.f32 %v464, %v146
    %v467 = vmul.f32 %v464, %v147
    %v468 = vmul.f32 %v464, %v148
    %473 = vrot.lane.b32.xlu0 %v465, 127
    %v474 = vpop.permute.xlu0 %473
    %475 = vrot.lane.b32.xlu0 %v466, 127
    %v476 = vpop.permute.xlu0 %475
    %477 = vrot.lane.b32.xlu0 %v467, 127
    %v478 = vpop.permute.xlu0 %477
    %479 = vrot.lane.b32.xlu0 %v468, 127
    %v480 = vpop.permute.xlu0 %479
    %v485 = vadd.f32 %v459, %v474
    %v486 = vadd.f32 %v460, %v476
    %v487 = vadd.f32 %v461, %v478
    %v488 = vadd.f32 %v462, %v480
    %v489 = vmul.f32 %v153, 0.16666667
    %v490 = vmul.f32 %v154, 0.16666667
    %v491 = vmul.f32 %v155, 0.16666667
    %v492 = vmul.f32 %v156, 0.16666667
    %497 = vrot.lane.b32.xlu0 %v489, 127
    %v498 = vpop.permute.xlu0 %497
    %499 = vrot.lane.b32.xlu0 %v490, 127
    %v500 = vpop.permute.xlu0 %499
    %501 = vrot.lane.b32.xlu0 %v491, 127
    %v502 = vpop.permute.xlu0 %501
    %503 = vrot.lane.b32.xlu0 %v492, 127
    %v504 = vpop.permute.xlu0 %503
    %v509 = vadd.f32 %v251, %v498
    %v510 = vadd.f32 %v252, %v500
    %v511 = vadd.f32 %v253, %v502
    %v512 = vadd.f32 %v254, %v504
    %s513 = sld [smem:[#allocation7 + $0x2]]
    %v514 = vstv %s513
    %v515 = vmul.f32 %v514, %v135
    %v516 = vmul.f32 %v514, %v136
    %v517 = vmul.f32 %v514, %v137
    %v518 = vmul.f32 %v514, %v138
    %523 = vrot.lane.b32.xlu0 %v515, 126
    %v524 = vpop.permute.xlu0 %523
    %525 = vrot.lane.b32.xlu0 %v516, 126
    %v526 = vpop.permute.xlu0 %525
    %527 = vrot.lane.b32.xlu0 %v517, 126
    %v528 = vpop.permute.xlu0 %527
    %529 = vrot.lane.b32.xlu0 %v518, 126
    %v530 = vpop.permute.xlu0 %529
    %v535 = vadd.f32 %v329, %v524
    %v536 = vadd.f32 %v330, %v526
    %v537 = vadd.f32 %v331, %v528
    %v538 = vadd.f32 %v332, %v530
    %s539 = sld [smem:[#allocation7 + $0x1b]]
    %v540 = vstv %s539
    %v541 = vmul.f32 %v540, %v140
    %v542 = vmul.f32 %v540, %v141
    %v543 = vmul.f32 %v540, %v142
    %v544 = vmul.f32 %v540, %v143
    %549 = vrot.lane.b32.xlu0 %v541, 126
    %v550 = vpop.permute.xlu0 %549
    %551 = vrot.lane.b32.xlu0 %v542, 126
    %v552 = vpop.permute.xlu0 %551
    %553 = vrot.lane.b32.xlu0 %v543, 126
    %v554 = vpop.permute.xlu0 %553
    %555 = vrot.lane.b32.xlu0 %v544, 126
    %v556 = vpop.permute.xlu0 %555
    %v561 = vadd.f32 %v535, %v550
    %v562 = vadd.f32 %v536, %v552
    %v563 = vadd.f32 %v537, %v554
    %v564 = vadd.f32 %v538, %v556
    %s565 = sld [smem:[#allocation7 + $0x34]]
    %v566 = vstv %s565
    %v567 = vmul.f32 %v566, %v145
    %v568 = vmul.f32 %v566, %v146
    %v569 = vmul.f32 %v566, %v147
    %v570 = vmul.f32 %v566, %v148
    %575 = vrot.lane.b32.xlu0 %v567, 126
    %v576 = vpop.permute.xlu0 %575
    %577 = vrot.lane.b32.xlu0 %v568, 126
    %v578 = vpop.permute.xlu0 %577
    %579 = vrot.lane.b32.xlu0 %v569, 126
    %v580 = vpop.permute.xlu0 %579
    %581 = vrot.lane.b32.xlu0 %v570, 126
    %v582 = vpop.permute.xlu0 %581
    %v587 = vadd.f32 %v561, %v576
    %v588 = vadd.f32 %v562, %v578
    %v589 = vadd.f32 %v563, %v580
    %v590 = vadd.f32 %v564, %v582
    %s591 = sld [smem:[#allocation7 + $0x4d]]
    %v592 = vstv %s591
    %v593 = vmul.f32 %v592, %v135
    %v594 = vmul.f32 %v592, %v136
    %v595 = vmul.f32 %v592, %v137
    %v596 = vmul.f32 %v592, %v138
    %601 = vrot.lane.b32.xlu0 %v593, 126
    %v602 = vpop.permute.xlu0 %601
    %603 = vrot.lane.b32.xlu0 %v594, 126
    %v604 = vpop.permute.xlu0 %603
    %605 = vrot.lane.b32.xlu0 %v595, 126
    %v606 = vpop.permute.xlu0 %605
    %607 = vrot.lane.b32.xlu0 %v596, 126
    %v608 = vpop.permute.xlu0 %607
    %v613 = vadd.f32 %v407, %v602
    %v614 = vadd.f32 %v408, %v604
    %v615 = vadd.f32 %v409, %v606
    %v616 = vadd.f32 %v410, %v608
    %s617 = sld [smem:[#allocation7 + $0x66]]
    %v618 = vstv %s617
    %v619 = vmul.f32 %v618, %v140
    %v620 = vmul.f32 %v618, %v141
    %v621 = vmul.f32 %v618, %v142
    %v622 = vmul.f32 %v618, %v143
    %627 = vrot.lane.b32.xlu0 %v619, 126
    %v628 = vpop.permute.xlu0 %627
    %629 = vrot.lane.b32.xlu0 %v620, 126
    %v630 = vpop.permute.xlu0 %629
    %631 = vrot.lane.b32.xlu0 %v621, 126
    %v632 = vpop.permute.xlu0 %631
    %633 = vrot.lane.b32.xlu0 %v622, 126
    %v634 = vpop.permute.xlu0 %633
    %v639 = vadd.f32 %v613, %v628
    %v640 = vadd.f32 %v614, %v630
    %v641 = vadd.f32 %v615, %v632
    %v642 = vadd.f32 %v616, %v634
    %s643 = sld [smem:[#allocation7 + $0x7f]]
    %v644 = vstv %s643
    %v645 = vmul.f32 %v644, %v145
    %v646 = vmul.f32 %v644, %v146
    %v647 = vmul.f32 %v644, %v147
    %v648 = vmul.f32 %v644, %v148
    %653 = vrot.lane.b32.xlu0 %v645, 126
    %v654 = vpop.permute.xlu0 %653
    %655 = vrot.lane.b32.xlu0 %v646, 126
    %v656 = vpop.permute.xlu0 %655
    %657 = vrot.lane.b32.xlu0 %v647, 126
    %v658 = vpop.permute.xlu0 %657
    %659 = vrot.lane.b32.xlu0 %v648, 126
    %v660 = vpop.permute.xlu0 %659
    %v665 = vadd.f32 %v639, %v654
    %v666 = vadd.f32 %v640, %v656
    %v667 = vadd.f32 %v641, %v658
    %v668 = vadd.f32 %v642, %v660
    %s669 = sld [smem:[#allocation7 + $0x98]]
    %v670 = vstv %s669
    %v671 = vmul.f32 %v670, %v135
    %v672 = vmul.f32 %v670, %v136
    %v673 = vmul.f32 %v670, %v137
    %v674 = vmul.f32 %v670, %v138
    %679 = vrot.lane.b32.xlu0 %v671, 126
    %v680 = vpop.permute.xlu0 %679
    %681 = vrot.lane.b32.xlu0 %v672, 126
    %v682 = vpop.permute.xlu0 %681
    %683 = vrot.lane.b32.xlu0 %v673, 126
    %v684 = vpop.permute.xlu0 %683
    %685 = vrot.lane.b32.xlu0 %v674, 126
    %v686 = vpop.permute.xlu0 %685
    %v691 = vadd.f32 %v485, %v680
    %v692 = vadd.f32 %v486, %v682
    %v693 = vadd.f32 %v487, %v684
    %v694 = vadd.f32 %v488, %v686
    %s695 = sld [smem:[#allocation7 + $0xb1]]
    %v696 = vstv %s695
    %v697 = vmul.f32 %v696, %v140
    %v698 = vmul.f32 %v696, %v141
    %v699 = vmul.f32 %v696, %v142
    %v700 = vmul.f32 %v696, %v143
    %705 = vrot.lane.b32.xlu0 %v697, 126
    %v706 = vpop.permute.xlu0 %705
    %707 = vrot.lane.b32.xlu0 %v698, 126
    %v708 = vpop.permute.xlu0 %707
    %709 = vrot.lane.b32.xlu0 %v699, 126
    %v710 = vpop.permute.xlu0 %709
    %711 = vrot.lane.b32.xlu0 %v700, 126
    %v712 = vpop.permute.xlu0 %711
    %v717 = vadd.f32 %v691, %v706
    %v718 = vadd.f32 %v692, %v708
    %v719 = vadd.f32 %v693, %v710
    %v720 = vadd.f32 %v694, %v712
    %s721 = sld [smem:[#allocation7 + $0xca]]
    %v722 = vstv %s721
    %v723 = vmul.f32 %v722, %v145
    %v724 = vmul.f32 %v722, %v146
    %v725 = vmul.f32 %v722, %v147
    %v726 = vmul.f32 %v722, %v148
    %731 = vrot.lane.b32.xlu0 %v723, 126
    %v732 = vpop.permute.xlu0 %731
    %733 = vrot.lane.b32.xlu0 %v724, 126
    %v734 = vpop.permute.xlu0 %733
    %735 = vrot.lane.b32.xlu0 %v725, 126
    %v736 = vpop.permute.xlu0 %735
    %737 = vrot.lane.b32.xlu0 %v726, 126
    %v738 = vpop.permute.xlu0 %737
    %v743 = vadd.f32 %v717, %v732
    %v744 = vadd.f32 %v718, %v734
    %v745 = vadd.f32 %v719, %v736
    %v746 = vadd.f32 %v720, %v738
    %v747 = vmul.f32 %v153, -0.16666667
    %v748 = vmul.f32 %v154, -0.16666667
    %v749 = vmul.f32 %v155, -0.16666667
    %v750 = vmul.f32 %v156, -0.16666667
    %755 = vrot.lane.b32.xlu0 %v747, 126
    %v756 = vpop.permute.xlu0 %755
    %757 = vrot.lane.b32.xlu0 %v748, 126
    %v758 = vpop.permute.xlu0 %757
    %759 = vrot.lane.b32.xlu0 %v749, 126
    %v760 = vpop.permute.xlu0 %759
    %761 = vrot.lane.b32.xlu0 %v750, 126
    %v762 = vpop.permute.xlu0 %761
    %v767 = vadd.f32 %v509, %v756
    %v768 = vadd.f32 %v510, %v758
    %v769 = vadd.f32 %v511, %v760
    %v770 = vadd.f32 %v512, %v762
    %s771 = sld [smem:[#allocation7 + $0x3]]
    %v772 = vstv %s771
    %v773 = vmul.f32 %v772, %v135
    %v774 = vmul.f32 %v772, %v136
    %v775 = vmul.f32 %v772, %v137
    %v776 = vmul.f32 %v772, %v138
    %781 = vrot.lane.b32.xlu0 %v773, 125
    %v782 = vpop.permute.xlu0 %781
    %783 = vrot.lane.b32.xlu0 %v774, 125
    %v784 = vpop.permute.xlu0 %783
    %785 = vrot.lane.b32.xlu0 %v775, 125
    %v786 = vpop.permute.xlu0 %785
    %787 = vrot.lane.b32.xlu0 %v776, 125
    %v788 = vpop.permute.xlu0 %787
    %v793 = vadd.f32 %v587, %v782
    %v794 = vadd.f32 %v588, %v784
    %v795 = vadd.f32 %v589, %v786
    %v796 = vadd.f32 %v590, %v788
    %s797 = sld [smem:[#allocation7 + $0x1c]]
    %v798 = vstv %s797
    %v799 = vmul.f32 %v798, %v140
    %v800 = vmul.f32 %v798, %v141
    %v801 = vmul.f32 %v798, %v142
    %v802 = vmul.f32 %v798, %v143
    %807 = vrot.lane.b32.xlu0 %v799, 125
    %v808 = vpop.permute.xlu0 %807
    %809 = vrot.lane.b32.xlu0 %v800, 125
    %v810 = vpop.permute.xlu0 %809
    %811 = vrot.lane.b32.xlu0 %v801, 125
    %v812 = vpop.permute.xlu0 %811
    %813 = vrot.lane.b32.xlu0 %v802, 125
    %v814 = vpop.permute.xlu0 %813
    %v819 = vadd.f32 %v793, %v808
    %v820 = vadd.f32 %v794, %v810
    %v821 = vadd.f32 %v795, %v812
    %v822 = vadd.f32 %v796, %v814
    %s823 = sld [smem:[#allocation7 + $0x35]]
    %v824 = vstv %s823
    %v825 = vmul.f32 %v824, %v145
    %v826 = vmul.f32 %v824, %v146
    %v827 = vmul.f32 %v824, %v147
    %v828 = vmul.f32 %v824, %v148
    %833 = vrot.lane.b32.xlu0 %v825, 125
    %v834 = vpop.permute.xlu0 %833
    %835 = vrot.lane.b32.xlu0 %v826, 125
    %v836 = vpop.permute.xlu0 %835
    %837 = vrot.lane.b32.xlu0 %v827, 125
    %v838 = vpop.permute.xlu0 %837
    %839 = vrot.lane.b32.xlu0 %v828, 125
    %v840 = vpop.permute.xlu0 %839
    %v845 = vadd.f32 %v819, %v834
    %v846 = vadd.f32 %v820, %v836
    %v847 = vadd.f32 %v821, %v838
    %v848 = vadd.f32 %v822, %v840
    %s849 = sld [smem:[#allocation7 + $0x4e]]
    %v850 = vstv %s849
    %v851 = vmul.f32 %v850, %v135
    %v852 = vmul.f32 %v850, %v136
    %v853 = vmul.f32 %v850, %v137
    %v854 = vmul.f32 %v850, %v138
    %859 = vrot.lane.b32.xlu0 %v851, 125
    %v860 = vpop.permute.xlu0 %859
    %861 = vrot.lane.b32.xlu0 %v852, 125
    %v862 = vpop.permute.xlu0 %861
    %863 = vrot.lane.b32.xlu0 %v853, 125
    %v864 = vpop.permute.xlu0 %863
    %865 = vrot.lane.b32.xlu0 %v854, 125
    %v866 = vpop.permute.xlu0 %865
    %v871 = vadd.f32 %v665, %v860
    %v872 = vadd.f32 %v666, %v862
    %v873 = vadd.f32 %v667, %v864
    %v874 = vadd.f32 %v668, %v866
    %s875 = sld [smem:[#allocation7 + $0x67]]
    %v876 = vstv %s875
    %v877 = vmul.f32 %v876, %v140
    %v878 = vmul.f32 %v876, %v141
    %v879 = vmul.f32 %v876, %v142
    %v880 = vmul.f32 %v876, %v143
    %885 = vrot.lane.b32.xlu0 %v877, 125
    %v886 = vpop.permute.xlu0 %885
    %887 = vrot.lane.b32.xlu0 %v878, 125
    %v888 = vpop.permute.xlu0 %887
    %889 = vrot.lane.b32.xlu0 %v879, 125
    %v890 = vpop.permute.xlu0 %889
    %891 = vrot.lane.b32.xlu0 %v880, 125
    %v892 = vpop.permute.xlu0 %891
    %v897 = vadd.f32 %v871, %v886
    %v898 = vadd.f32 %v872, %v888
    %v899 = vadd.f32 %v873, %v890
    %v900 = vadd.f32 %v874, %v892
    %s901 = sld [smem:[#allocation7 + $0x80]]
    %v902 = vstv %s901
    %v903 = vmul.f32 %v902, %v145
    %v904 = vmul.f32 %v902, %v146
    %v905 = vmul.f32 %v902, %v147
    %v906 = vmul.f32 %v902, %v148
    %911 = vrot.lane.b32.xlu0 %v903, 125
    %v912 = vpop.permute.xlu0 %911
    %913 = vrot.lane.b32.xlu0 %v904, 125
    %v914 = vpop.permute.xlu0 %913
    %915 = vrot.lane.b32.xlu0 %v905, 125
    %v916 = vpop.permute.xlu0 %915
    %917 = vrot.lane.b32.xlu0 %v906, 125
    %v918 = vpop.permute.xlu0 %917
    %v923 = vadd.f32 %v897, %v912
    %v924 = vadd.f32 %v898, %v914
    %v925 = vadd.f32 %v899, %v916
    %v926 = vadd.f32 %v900, %v918
    %s927 = sld [smem:[#allocation7 + $0x99]]
    %v928 = vstv %s927
    %v929 = vmul.f32 %v928, %v135
    %v930 = vmul.f32 %v928, %v136
    %v931 = vmul.f32 %v928, %v137
    %v932 = vmul.f32 %v928, %v138
    %937 = vrot.lane.b32.xlu0 %v929, 125
    %v938 = vpop.permute.xlu0 %937
    %939 = vrot.lane.b32.xlu0 %v930, 125
    %v940 = vpop.permute.xlu0 %939
    %941 = vrot.lane.b32.xlu0 %v931, 125
    %v942 = vpop.permute.xlu0 %941
    %943 = vrot.lane.b32.xlu0 %v932, 125
    %v944 = vpop.permute.xlu0 %943
    %v949 = vadd.f32 %v743, %v938
    %v950 = vadd.f32 %v744, %v940
    %v951 = vadd.f32 %v745, %v942
    %v952 = vadd.f32 %v746, %v944
    %s953 = sld [smem:[#allocation7 + $0xb2]]
    %v954 = vstv %s953
    %v955 = vmul.f32 %v954, %v140
    %v956 = vmul.f32 %v954, %v141
    %v957 = vmul.f32 %v954, %v142
    %v958 = vmul.f32 %v954, %v143
    %963 = vrot.lane.b32.xlu0 %v955, 125
    %v964 = vpop.permute.xlu0 %963
    %965 = vrot.lane.b32.xlu0 %v956, 125
    %v966 = vpop.permute.xlu0 %965
    %967 = vrot.lane.b32.xlu0 %v957, 125
    %v968 = vpop.permute.xlu0 %967
    %969 = vrot.lane.b32.xlu0 %v958, 125
    %v970 = vpop.permute.xlu0 %969
    %v975 = vadd.f32 %v949, %v964
    %v976 = vadd.f32 %v950, %v966
    %v977 = vadd.f32 %v951, %v968
    %v978 = vadd.f32 %v952, %v970
    %s979 = sld [smem:[#allocation7 + $0xcb]]
    %v980 = vstv %s979
    %v981 = vmul.f32 %v980, %v145
    %v982 = vmul.f32 %v980, %v146
    %v983 = vmul.f32 %v980, %v147
    %v984 = vmul.f32 %v980, %v148
    %989 = vrot.lane.b32.xlu0 %v981, 125
    %v990 = vpop.permute.xlu0 %989
    %991 = vrot.lane.b32.xlu0 %v982, 125
    %v992 = vpop.permute.xlu0 %991
    %993 = vrot.lane.b32.xlu0 %v983, 125
    %v994 = vpop.permute.xlu0 %993
    %995 = vrot.lane.b32.xlu0 %v984, 125
    %v996 = vpop.permute.xlu0 %995
    %v1001 = vadd.f32 %v975, %v990
    %v1002 = vadd.f32 %v976, %v992
    %v1003 = vadd.f32 %v977, %v994
    %v1004 = vadd.f32 %v978, %v996
    %1005 = vrot.lane.b32.xlu0 %v489, 125
    %v1006 = vpop.permute.xlu0 %1005
    %1007 = vrot.lane.b32.xlu0 %v490, 125
    %v1008 = vpop.permute.xlu0 %1007
    %1009 = vrot.lane.b32.xlu0 %v491, 125
    %v1010 = vpop.permute.xlu0 %1009
    %1011 = vrot.lane.b32.xlu0 %v492, 125
    %v1012 = vpop.permute.xlu0 %1011
    %v1017 = vadd.f32 %v767, %v1006
    %v1018 = vadd.f32 %v768, %v1008
    %v1019 = vadd.f32 %v769, %v1010
    %v1020 = vadd.f32 %v770, %v1012
    %s1021 = sld [smem:[#allocation7 + $0x4]]
    %v1022 = vstv %s1021
    %v1023 = vmul.f32 %v1022, %v135
    %v1024 = vmul.f32 %v1022, %v136
    %v1025 = vmul.f32 %v1022, %v137
    %v1026 = vmul.f32 %v1022, %v138
    %1031 = vrot.lane.b32.xlu0 %v1023, 124
    %v1032 = vpop.permute.xlu0 %1031
    %1033 = vrot.lane.b32.xlu0 %v1024, 124
    %v1034 = vpop.permute.xlu0 %1033
    %1035 = vrot.lane.b32.xlu0 %v1025, 124
    %v1036 = vpop.permute.xlu0 %1035
    %1037 = vrot.lane.b32.xlu0 %v1026, 124
    %v1038 = vpop.permute.xlu0 %1037
    %v1043 = vadd.f32 %v845, %v1032
    %v1044 = vadd.f32 %v846, %v1034
    %v1045 = vadd.f32 %v847, %v1036
    %v1046 = vadd.f32 %v848, %v1038
    %s1047 = sld [smem:[#allocation7 + $0x1d]]
    %v1048 = vstv %s1047
    %v1049 = vmul.f32 %v1048, %v140
    %v1050 = vmul.f32 %v1048, %v141
    %v1051 = vmul.f32 %v1048, %v142
    %v1052 = vmul.f32 %v1048, %v143
    %1057 = vrot.lane.b32.xlu0 %v1049, 124
    %v1058 = vpop.permute.xlu0 %1057
    %1059 = vrot.lane.b32.xlu0 %v1050, 124
    %v1060 = vpop.permute.xlu0 %1059
    %1061 = vrot.lane.b32.xlu0 %v1051, 124
    %v1062 = vpop.permute.xlu0 %1061
    %1063 = vrot.lane.b32.xlu0 %v1052, 124
    %v1064 = vpop.permute.xlu0 %1063
    %v1069 = vadd.f32 %v1043, %v1058
    %v1070 = vadd.f32 %v1044, %v1060
    %v1071 = vadd.f32 %v1045, %v1062
    %v1072 = vadd.f32 %v1046, %v1064
    %s1073 = sld [smem:[#allocation7 + $0x36]]
    %v1074 = vstv %s1073
    %v1075 = vmul.f32 %v1074, %v145
    %v1076 = vmul.f32 %v1074, %v146
    %v1077 = vmul.f32 %v1074, %v147
    %v1078 = vmul.f32 %v1074, %v148
    %1083 = vrot.lane.b32.xlu0 %v1075, 124
    %v1084 = vpop.permute.xlu0 %1083
    %1085 = vrot.lane.b32.xlu0 %v1076, 124
    %v1086 = vpop.permute.xlu0 %1085
    %1087 = vrot.lane.b32.xlu0 %v1077, 124
    %v1088 = vpop.permute.xlu0 %1087
    %1089 = vrot.lane.b32.xlu0 %v1078, 124
    %v1090 = vpop.permute.xlu0 %1089
    %v1095 = vadd.f32 %v1069, %v1084
    %v1096 = vadd.f32 %v1070, %v1086
    %v1097 = vadd.f32 %v1071, %v1088
    %v1098 = vadd.f32 %v1072, %v1090
    %s1099 = sld [smem:[#allocation7 + $0x4f]]
    %v1100 = vstv %s1099
    %v1101 = vmul.f32 %v1100, %v135
    %v1102 = vmul.f32 %v1100, %v136
    %v1103 = vmul.f32 %v1100, %v137
    %v1104 = vmul.f32 %v1100, %v138
    %1109 = vrot.lane.b32.xlu0 %v1101, 124
    %v1110 = vpop.permute.xlu0 %1109
    %1111 = vrot.lane.b32.xlu0 %v1102, 124
    %v1112 = vpop.permute.xlu0 %1111
    %1113 = vrot.lane.b32.xlu0 %v1103, 124
    %v1114 = vpop.permute.xlu0 %1113
    %1115 = vrot.lane.b32.xlu0 %v1104, 124
    %v1116 = vpop.permute.xlu0 %1115
    %v1121 = vadd.f32 %v923, %v1110
    %v1122 = vadd.f32 %v924, %v1112
    %v1123 = vadd.f32 %v925, %v1114
    %v1124 = vadd.f32 %v926, %v1116
    %s1125 = sld [smem:[#allocation7 + $0x68]]
    %v1126 = vstv %s1125
    %v1127 = vmul.f32 %v1126, %v140
    %v1128 = vmul.f32 %v1126, %v141
    %v1129 = vmul.f32 %v1126, %v142
    %v1130 = vmul.f32 %v1126, %v143
    %1135 = vrot.lane.b32.xlu0 %v1127, 124
    %v1136 = vpop.permute.xlu0 %1135
    %1137 = vrot.lane.b32.xlu0 %v1128, 124
    %v1138 = vpop.permute.xlu0 %1137
    %1139 = vrot.lane.b32.xlu0 %v1129, 124
    %v1140 = vpop.permute.xlu0 %1139
    %1141 = vrot.lane.b32.xlu0 %v1130, 124
    %v1142 = vpop.permute.xlu0 %1141
    %v1147 = vadd.f32 %v1121, %v1136
    %v1148 = vadd.f32 %v1122, %v1138
    %v1149 = vadd.f32 %v1123, %v1140
    %v1150 = vadd.f32 %v1124, %v1142
    %s1151 = sld [smem:[#allocation7 + $0x81]]
    %v1152 = vstv %s1151
    %v1153 = vmul.f32 %v1152, %v145
    %v1154 = vmul.f32 %v1152, %v146
    %v1155 = vmul.f32 %v1152, %v147
    %v1156 = vmul.f32 %v1152, %v148
    %1161 = vrot.lane.b32.xlu0 %v1153, 124
    %v1162 = vpop.permute.xlu0 %1161
    %1163 = vrot.lane.b32.xlu0 %v1154, 124
    %v1164 = vpop.permute.xlu0 %1163
    %1165 = vrot.lane.b32.xlu0 %v1155, 124
    %v1166 = vpop.permute.xlu0 %1165
    %1167 = vrot.lane.b32.xlu0 %v1156, 124
    %v1168 = vpop.permute.xlu0 %1167
    %v1173 = vadd.f32 %v1147, %v1162
    %v1174 = vadd.f32 %v1148, %v1164
    %v1175 = vadd.f32 %v1149, %v1166
    %v1176 = vadd.f32 %v1150, %v1168
    %s1177 = sld [smem:[#allocation7 + $0x9a]]
    %v1178 = vstv %s1177
    %v1179 = vmul.f32 %v1178, %v135
    %v1180 = vmul.f32 %v1178, %v136
    %v1181 = vmul.f32 %v1178, %v137
    %v1182 = vmul.f32 %v1178, %v138
    %1187 = vrot.lane.b32.xlu0 %v1179, 124
    %v1188 = vpop.permute.xlu0 %1187
    %1189 = vrot.lane.b32.xlu0 %v1180, 124
    %v1190 = vpop.permute.xlu0 %1189
    %1191 = vrot.lane.b32.xlu0 %v1181, 124
    %v1192 = vpop.permute.xlu0 %1191
    %1193 = vrot.lane.b32.xlu0 %v1182, 124
    %v1194 = vpop.permute.xlu0 %1193
    %v1199 = vadd.f32 %v1001, %v1188
    %v1200 = vadd.f32 %v1002, %v1190
    %v1201 = vadd.f32 %v1003, %v1192
    %v1202 = vadd.f32 %v1004, %v1194
    %s1203 = sld [smem:[#allocation7 + $0xb3]]
    %v1204 = vstv %s1203
    %v1205 = vmul.f32 %v1204, %v140
    %v1206 = vmul.f32 %v1204, %v141
    %v1207 = vmul.f32 %v1204, %v142
    %v1208 = vmul.f32 %v1204, %v143
    %1213 = vrot.lane.b32.xlu0 %v1205, 124
    %v1214 = vpop.permute.xlu0 %1213
    %1215 = vrot.lane.b32.xlu0 %v1206, 124
    %v1216 = vpop.permute.xlu0 %1215
    %1217 = vrot.lane.b32.xlu0 %v1207, 124
    %v1218 = vpop.permute.xlu0 %1217
    %1219 = vrot.lane.b32.xlu0 %v1208, 124
    %v1220 = vpop.permute.xlu0 %1219
    %v1225 = vadd.f32 %v1199, %v1214
    %v1226 = vadd.f32 %v1200, %v1216
    %v1227 = vadd.f32 %v1201, %v1218
    %v1228 = vadd.f32 %v1202, %v1220
    %s1229 = sld [smem:[#allocation7 + $0xcc]]
    %v1230 = vstv %s1229
    %v1231 = vmul.f32 %v1230, %v145
    %v1232 = vmul.f32 %v1230, %v146
    %v1233 = vmul.f32 %v1230, %v147
    %v1234 = vmul.f32 %v1230, %v148
    %1239 = vrot.lane.b32.xlu0 %v1231, 124
    %v1240 = vpop.permute.xlu0 %1239
    %1241 = vrot.lane.b32.xlu0 %v1232, 124
    %v1242 = vpop.permute.xlu0 %1241
    %1243 = vrot.lane.b32.xlu0 %v1233, 124
    %v1244 = vpop.permute.xlu0 %1243
    %1245 = vrot.lane.b32.xlu0 %v1234, 124
    %v1246 = vpop.permute.xlu0 %1245
    %v1251 = vadd.f32 %v1225, %v1240
    %v1252 = vadd.f32 %v1226, %v1242
    %v1253 = vadd.f32 %v1227, %v1244
    %v1254 = vadd.f32 %v1228, %v1246
    %1259 = vrot.lane.b32.xlu0 %v247, 124
    %v1260 = vpop.permute.xlu0 %1259
    %1261 = vrot.lane.b32.xlu0 %v248, 124
    %v1262 = vpop.permute.xlu0 %1261
    %1263 = vrot.lane.b32.xlu0 %v249, 124
    %v1264 = vpop.permute.xlu0 %1263
    %1265 = vrot.lane.b32.xlu0 %v250, 124
    %v1266 = vpop.permute.xlu0 %1265
    %v1271 = vadd.f32 %v1017, %v1260
    %v1272 = vadd.f32 %v1018, %v1262
    %v1273 = vadd.f32 %v1019, %v1264
    %v1274 = vadd.f32 %v1020, %v1266
    %v1275 = vld [vmem:[#allocation2 + $0x1] sm:$0xff]
    %v1276 = vld [vmem:[#allocation2 + $0x9] sm:$0xff]
    %v1277 = vld [vmem:[#allocation2 + $0x49] sm:$0xff]
    %v1278 = vld [vmem:[#allocation2 + $0x51] sm:$0xff]
    %v1279 = vld [vmem:[%s139 + $0x1] sm:$0xff]
    %v1280 = vld [vmem:[%s139 + $0x9] sm:$0xff]
    %v1281 = vld [vmem:[%s139 + $0x49] sm:$0xff]
    %v1282 = vld [vmem:[%s139 + $0x51] sm:$0xff]
    %v1283 = vld [vmem:[%s144 + $0x1] sm:$0xff]
    %v1284 = vld [vmem:[%s144 + $0x9] sm:$0xff]
    %v1285 = vld [vmem:[%s144 + $0x49] sm:$0xff]
    %v1286 = vld [vmem:[%s144 + $0x51] sm:$0xff]
    %v1287 = vadd.f32 %v1275, %v1279
    %v1288 = vadd.f32 %v1276, %v1280
    %v1289 = vadd.f32 %v1277, %v1281
    %v1290 = vadd.f32 %v1278, %v1282
    %v1291 = vadd.f32 %v1287, %v1283
    %v1292 = vadd.f32 %v1288, %v1284
    %v1293 = vadd.f32 %v1289, %v1285
    %v1294 = vadd.f32 %v1290, %v1286
    %s1295 = sld [smem:[#allocation7 + $0x5]]
    %v1296 = vstv %s1295
    %v1297 = vmul.f32 %v1296, %v1275
    %v1298 = vmul.f32 %v1296, %v1276
    %v1299 = vmul.f32 %v1296, %v1277
    %v1300 = vmul.f32 %v1296, %v1278
    %v1301 = vadd.f32 %v1095, %v1297
    %v1302 = vadd.f32 %v1096, %v1298
    %v1303 = vadd.f32 %v1097, %v1299
    %v1304 = vadd.f32 %v1098, %v1300
    %s1305 = sld [smem:[#allocation7 + $0x1e]]
    %v1306 = vstv %s1305
    %v1307 = vmul.f32 %v1306, %v1279
    %v1308 = vmul.f32 %v1306, %v1280
    %v1309 = vmul.f32 %v1306, %v1281
    %v1310 = vmul.f32 %v1306, %v1282
    %v1311 = vadd.f32 %v1301, %v1307
    %v1312 = vadd.f32 %v1302, %v1308
    %v1313 = vadd.f32 %v1303, %v1309
    %v1314 = vadd.f32 %v1304, %v1310
    %s1315 = sld [smem:[#allocation7 + $0x37]]
    %v1316 = vstv %s1315
    %v1317 = vmul.f32 %v1316, %v1283
    %v1318 = vmul.f32 %v1316, %v1284
    %v1319 = vmul.f32 %v1316, %v1285
    %v1320 = vmul.f32 %v1316, %v1286
    %v1321 = vadd.f32 %v1311, %v1317
    %v1322 = vadd.f32 %v1312, %v1318
    %v1323 = vadd.f32 %v1313, %v1319
    %v1324 = vadd.f32 %v1314, %v1320
    %s1325 = sld [smem:[#allocation7 + $0x50]]
    %v1326 = vstv %s1325
    %v1327 = vmul.f32 %v1326, %v1275
    %v1328 = vmul.f32 %v1326, %v1276
    %v1329 = vmul.f32 %v1326, %v1277
    %v1330 = vmul.f32 %v1326, %v1278
    %v1331 = vadd.f32 %v1173, %v1327
    %v1332 = vadd.f32 %v1174, %v1328
    %v1333 = vadd.f32 %v1175, %v1329
    %v1334 = vadd.f32 %v1176, %v1330
    %s1335 = sld [smem:[#allocation7 + $0x69]]
    %v1336 = vstv %s1335
    %v1337 = vmul.f32 %v1336, %v1279
    %v1338 = vmul.f32 %v1336, %v1280
    %v1339 = vmul.f32 %v1336, %v1281
    %v1340 = vmul.f32 %v1336, %v1282
    %v1341 = vadd.f32 %v1331, %v1337
    %v1342 = vadd.f32 %v1332, %v1338
    %v1343 = vadd.f32 %v1333, %v1339
    %v1344 = vadd.f32 %v1334, %v1340
    %s1345 = sld [smem:[#allocation7 + $0x82]]
    %v1346 = vstv %s1345
    %v1347 = vmul.f32 %v1346, %v1283
    %v1348 = vmul.f32 %v1346, %v1284
    %v1349 = vmul.f32 %v1346, %v1285
    %v1350 = vmul.f32 %v1346, %v1286
    %v1351 = vadd.f32 %v1341, %v1347
    %v1352 = vadd.f32 %v1342, %v1348
    %v1353 = vadd.f32 %v1343, %v1349
    %v1354 = vadd.f32 %v1344, %v1350
    %s1355 = sld [smem:[#allocation7 + $0x9b]]
    %v1356 = vstv %s1355
    %v1357 = vmul.f32 %v1356, %v1275
    %v1358 = vmul.f32 %v1356, %v1276
    %v1359 = vmul.f32 %v1356, %v1277
    %v1360 = vmul.f32 %v1356, %v1278
    %v1361 = vadd.f32 %v1251, %v1357
    %v1362 = vadd.f32 %v1252, %v1358
    %v1363 = vadd.f32 %v1253, %v1359
    %v1364 = vadd.f32 %v1254, %v1360
    %s1365 = sld [smem:[#allocation7 + $0xb4]]
    %v1366 = vstv %s1365
    %v1367 = vmul.f32 %v1366, %v1279
    %v1368 = vmul.f32 %v1366, %v1280
    %v1369 = vmul.f32 %v1366, %v1281
    %v1370 = vmul.f32 %v1366, %v1282
    %v1371 = vadd.f32 %v1361, %v1367
    %v1372 = vadd.f32 %v1362, %v1368
    %v1373 = vadd.f32 %v1363, %v1369
    %v1374 = vadd.f32 %v1364, %v1370
    %s1375 = sld [smem:[#allocation7 + $0xcd]]
    %v1376 = vstv %s1375
    %v1377 = vmul.f32 %v1376, %v1283
    %v1378 = vmul.f32 %v1376, %v1284
    %v1379 = vmul.f32 %v1376, %v1285
    %v1380 = vmul.f32 %v1376, %v1286
    %v1381 = vadd.f32 %v1371, %v1377
    %v1382 = vadd.f32 %v1372, %v1378
    %v1383 = vadd.f32 %v1373, %v1379
    %v1384 = vadd.f32 %v1374, %v1380
    %v1385 = vmul.f32 %v1291, 0.16666667
    %v1386 = vmul.f32 %v1292, 0.16666667
    %v1387 = vmul.f32 %v1293, 0.16666667
    %v1388 = vmul.f32 %v1294, 0.16666667
    %v1389 = vadd.f32 %v1271, %v1385
    %v1390 = vadd.f32 %v1272, %v1386
    %v1391 = vadd.f32 %v1273, %v1387
    %v1392 = vadd.f32 %v1274, %v1388
    %s1393 = sld [smem:[#allocation7 + $0x6]]
    %v1394 = vstv %s1393
    %v1395 = vmul.f32 %v1394, %v1275
    %v1396 = vmul.f32 %v1394, %v1276
    %v1397 = vmul.f32 %v1394, %v1277
    %v1398 = vmul.f32 %v1394, %v1278
    %1403 = vrot.lane.b32.xlu0 %v1395, 127
    %v1404 = vpop.permute.xlu0 %1403
    %1405 = vrot.lane.b32.xlu0 %v1396, 127
    %v1406 = vpop.permute.xlu0 %1405
    %1407 = vrot.lane.b32.xlu0 %v1397, 127
    %v1408 = vpop.permute.xlu0 %1407
    %1409 = vrot.lane.b32.xlu0 %v1398, 127
    %v1410 = vpop.permute.xlu0 %1409
    %v1415 = vadd.f32 %v1321, %v1404
    %v1416 = vadd.f32 %v1322, %v1406
    %v1417 = vadd.f32 %v1323, %v1408
    %v1418 = vadd.f32 %v1324, %v1410
    %s1419 = sld [smem:[#allocation7 + $0x1f]]
    %v1420 = vstv %s1419
    %v1421 = vmul.f32 %v1420, %v1279
    %v1422 = vmul.f32 %v1420, %v1280
    %v1423 = vmul.f32 %v1420, %v1281
    %v1424 = vmul.f32 %v1420, %v1282
    %1429 = vrot.lane.b32.xlu0 %v1421, 127
    %v1430 = vpop.permute.xlu0 %1429
    %1431 = vrot.lane.b32.xlu0 %v1422, 127
    %v1432 = vpop.permute.xlu0 %1431
    %1433 = vrot.lane.b32.xlu0 %v1423, 127
    %v1434 = vpop.permute.xlu0 %1433
    %1435 = vrot.lane.b32.xlu0 %v1424, 127
    %v1436 = vpop.permute.xlu0 %1435
    %v1441 = vadd.f32 %v1415, %v1430
    %v1442 = vadd.f32 %v1416, %v1432
    %v1443 = vadd.f32 %v1417, %v1434
    %v1444 = vadd.f32 %v1418, %v1436
    %s1445 = sld [smem:[#allocation7 + $0x38]]
    %v1446 = vstv %s1445
    %v1447 = vmul.f32 %v1446, %v1283
    %v1448 = vmul.f32 %v1446, %v1284
    %v1449 = vmul.f32 %v1446, %v1285
    %v1450 = vmul.f32 %v1446, %v1286
    %1455 = vrot.lane.b32.xlu0 %v1447, 127
    %v1456 = vpop.permute.xlu0 %1455
    %1457 = vrot.lane.b32.xlu0 %v1448, 127
    %v1458 = vpop.permute.xlu0 %1457
    %1459 = vrot.lane.b32.xlu0 %v1449, 127
    %v1460 = vpop.permute.xlu0 %1459
    %1461 = vrot.lane.b32.xlu0 %v1450, 127
    %v1462 = vpop.permute.xlu0 %1461
    %v1467 = vadd.f32 %v1441, %v1456
    %v1468 = vadd.f32 %v1442, %v1458
    %v1469 = vadd.f32 %v1443, %v1460
    %v1470 = vadd.f32 %v1444, %v1462
    %s1471 = sld [smem:[#allocation7 + $0x51]]
    %v1472 = vstv %s1471
    %v1473 = vmul.f32 %v1472, %v1275
    %v1474 = vmul.f32 %v1472, %v1276
    %v1475 = vmul.f32 %v1472, %v1277
    %v1476 = vmul.f32 %v1472, %v1278
    %1481 = vrot.lane.b32.xlu0 %v1473, 127
    %v1482 = vpop.permute.xlu0 %1481
    %1483 = vrot.lane.b32.xlu0 %v1474, 127
    %v1484 = vpop.permute.xlu0 %1483
    %1485 = vrot.lane.b32.xlu0 %v1475, 127
    %v1486 = vpop.permute.xlu0 %1485
    %1487 = vrot.lane.b32.xlu0 %v1476, 127
    %v1488 = vpop.permute.xlu0 %1487
    %v1493 = vadd.f32 %v1351, %v1482
    %v1494 = vadd.f32 %v1352, %v1484
    %v1495 = vadd.f32 %v1353, %v1486
    %v1496 = vadd.f32 %v1354, %v1488
    %s1497 = sld [smem:[#allocation7 + $0x6a]]
    %v1498 = vstv %s1497
    %v1499 = vmul.f32 %v1498, %v1279
    %v1500 = vmul.f32 %v1498, %v1280
    %v1501 = vmul.f32 %v1498, %v1281
    %v1502 = vmul.f32 %v1498, %v1282
    %1507 = vrot.lane.b32.xlu0 %v1499, 127
    %v1508 = vpop.permute.xlu0 %1507
    %1509 = vrot.lane.b32.xlu0 %v1500, 127
    %v1510 = vpop.permute.xlu0 %1509
    %1511 = vrot.lane.b32.xlu0 %v1501, 127
    %v1512 = vpop.permute.xlu0 %1511
    %1513 = vrot.lane.b32.xlu0 %v1502, 127
    %v1514 = vpop.permute.xlu0 %1513
    %v1519 = vadd.f32 %v1493, %v1508
    %v1520 = vadd.f32 %v1494, %v1510
    %v1521 = vadd.f32 %v1495, %v1512
    %v1522 = vadd.f32 %v1496, %v1514
    %s1523 = sld [smem:[#allocation7 + $0x83]]
    %v1524 = vstv %s1523
    %v1525 = vmul.f32 %v1524, %v1283
    %v1526 = vmul.f32 %v1524, %v1284
    %v1527 = vmul.f32 %v1524, %v1285
    %v1528 = vmul.f32 %v1524, %v1286
    %1533 = vrot.lane.b32.xlu0 %v1525, 127
    %v1534 = vpop.permute.xlu0 %1533
    %1535 = vrot.lane.b32.xlu0 %v1526, 127
    %v1536 = vpop.permute.xlu0 %1535
    %1537 = vrot.lane.b32.xlu0 %v1527, 127
    %v1538 = vpop.permute.xlu0 %1537
    %1539 = vrot.lane.b32.xlu0 %v1528, 127
    %v1540 = vpop.permute.xlu0 %1539
    %v1545 = vadd.f32 %v1519, %v1534
    %v1546 = vadd.f32 %v1520, %v1536
    %v1547 = vadd.f32 %v1521, %v1538
    %v1548 = vadd.f32 %v1522, %v1540
    %s1549 = sld [smem:[#allocation7 + $0x9c]]
    %v1550 = vstv %s1549
    %v1551 = vmul.f32 %v1550, %v1275
    %v1552 = vmul.f32 %v1550, %v1276
    %v1553 = vmul.f32 %v1550, %v1277
    %v1554 = vmul.f32 %v1550, %v1278
    %1559 = vrot.lane.b32.xlu0 %v1551, 127
    %v1560 = vpop.permute.xlu0 %1559
    %1561 = vrot.lane.b32.xlu0 %v1552, 127
    %v1562 = vpop.permute.xlu0 %1561
    %1563 = vrot.lane.b32.xlu0 %v1553, 127
    %v1564 = vpop.permute.xlu0 %1563
    %1565 = vrot.lane.b32.xlu0 %v1554, 127
    %v1566 = vpop.permute.xlu0 %1565
    %v1571 = vadd.f32 %v1381, %v1560
    %v1572 = vadd.f32 %v1382, %v1562
    %v1573 = vadd.f32 %v1383, %v1564
    %v1574 = vadd.f32 %v1384, %v1566
    %s1575 = sld [smem:[#allocation7 + $0xb5]]
    %v1576 = vstv %s1575
    %v1577 = vmul.f32 %v1576, %v1279
    %v1578 = vmul.f32 %v1576, %v1280
    %v1579 = vmul.f32 %v1576, %v1281
    %v1580 = vmul.f32 %v1576, %v1282
    %1585 = vrot.lane.b32.xlu0 %v1577, 127
    %v1586 = vpop.permute.xlu0 %1585
    %1587 = vrot.lane.b32.xlu0 %v1578, 127
    %v1588 = vpop.permute.xlu0 %1587
    %1589 = vrot.lane.b32.xlu0 %v1579, 127
    %v1590 = vpop.permute.xlu0 %1589
    %1591 = vrot.lane.b32.xlu0 %v1580, 127
    %v1592 = vpop.permute.xlu0 %1591
    %v1597 = vadd.f32 %v1571, %v1586
    %v1598 = vadd.f32 %v1572, %v1588
    %v1599 = vadd.f32 %v1573, %v1590
    %v1600 = vadd.f32 %v1574, %v1592
    %s1601 = sld [smem:[#allocation7 + $0xce]]
    %v1602 = vstv %s1601
    %v1603 = vmul.f32 %v1602, %v1283
    %v1604 = vmul.f32 %v1602, %v1284
    %v1605 = vmul.f32 %v1602, %v1285
    %v1606 = vmul.f32 %v1602, %v1286
    %1611 = vrot.lane.b32.xlu0 %v1603, 127
    %v1612 = vpop.permute.xlu0 %1611
    %1613 = vrot.lane.b32.xlu0 %v1604, 127
    %v1614 = vpop.permute.xlu0 %1613
    %1615 = vrot.lane.b32.xlu0 %v1605, 127
    %v1616 = vpop.permute.xlu0 %1615
    %1617 = vrot.lane.b32.xlu0 %v1606, 127
    %v1618 = vpop.permute.xlu0 %1617
    %v1623 = vadd.f32 %v1597, %v1612
    %v1624 = vadd.f32 %v1598, %v1614
    %v1625 = vadd.f32 %v1599, %v1616
    %v1626 = vadd.f32 %v1600, %v1618
    %v1627 = vmul.f32 %v1291, -0.25
    %v1628 = vmul.f32 %v1292, -0.25
    %v1629 = vmul.f32 %v1293, -0.25
    %v1630 = vmul.f32 %v1294, -0.25
    %v1631 = vadd.f32 %v1627, 0.0
    %v1632 = vadd.f32 %v1628, 0.0
    %v1633 = vadd.f32 %v1629, 0.0
    %v1634 = vadd.f32 %v1630, 0.0
    %v1635 = vmul.f32 %v1291, -0.5
    %v1636 = vmul.f32 %v1292, -0.5
    %v1637 = vmul.f32 %v1293, -0.5
    %v1638 = vmul.f32 %v1294, -0.5
    %1643 = vrot.lane.b32.xlu0 %v1635, 127
    %v1644 = vpop.permute.xlu0 %1643
    %1645 = vrot.lane.b32.xlu0 %v1636, 127
    %v1646 = vpop.permute.xlu0 %1645
    %1647 = vrot.lane.b32.xlu0 %v1637, 127
    %v1648 = vpop.permute.xlu0 %1647
    %1649 = vrot.lane.b32.xlu0 %v1638, 127
    %v1650 = vpop.permute.xlu0 %1649
    %v1655 = vadd.f32 %v1389, %v1644
    %v1656 = vadd.f32 %v1390, %v1646
    %v1657 = vadd.f32 %v1391, %v1648
    %v1658 = vadd.f32 %v1392, %v1650
    %s1659 = sld [smem:[#allocation7 + $0x7]]
    %v1660 = vstv %s1659
    %v1661 = vmul.f32 %v1660, %v1275
    %v1662 = vmul.f32 %v1660, %v1276
    %v1663 = vmul.f32 %v1660, %v1277
    %v1664 = vmul.f32 %v1660, %v1278
    %1669 = vrot.lane.b32.xlu0 %v1661, 126
    %v1670 = vpop.permute.xlu0 %1669
    %1671 = vrot.lane.b32.xlu0 %v1662, 126
    %v1672 = vpop.permute.xlu0 %1671
    %1673 = vrot.lane.b32.xlu0 %v1663, 126
    %v1674 = vpop.permute.xlu0 %1673
    %1675 = vrot.lane.b32.xlu0 %v1664, 126
    %v1676 = vpop.permute.xlu0 %1675
    %v1681 = vadd.f32 %v1467, %v1670
    %v1682 = vadd.f32 %v1468, %v1672
    %v1683 = vadd.f32 %v1469, %v1674
    %v1684 = vadd.f32 %v1470, %v1676
    %s1685 = sld [smem:[#allocation7 + $0x20]]
    %v1686 = vstv %s1685
    %v1687 = vmul.f32 %v1686, %v1279
    %v1688 = vmul.f32 %v1686, %v1280
    %v1689 = vmul.f32 %v1686, %v1281
    %v1690 = vmul.f32 %v1686, %v1282
    %1695 = vrot.lane.b32.xlu0 %v1687, 126
    %v1696 = vpop.permute.xlu0 %1695
    %1697 = vrot.lane.b32.xlu0 %v1688, 126
    %v1698 = vpop.permute.xlu0 %1697
    %1699 = vrot.lane.b32.xlu0 %v1689, 126
    %v1700 = vpop.permute.xlu0 %1699
    %1701 = vrot.lane.b32.xlu0 %v1690, 126
    %v1702 = vpop.permute.xlu0 %1701
    %v1707 = vadd.f32 %v1681, %v1696
    %v1708 = vadd.f32 %v1682, %v1698
    %v1709 = vadd.f32 %v1683, %v1700
    %v1710 = vadd.f32 %v1684, %v1702
    %s1711 = sld [smem:[#allocation7 + $0x39]]
    %v1712 = vstv %s1711
    %v1713 = vmul.f32 %v1712, %v1283
    %v1714 = vmul.f32 %v1712, %v1284
    %v1715 = vmul.f32 %v1712, %v1285
    %v1716 = vmul.f32 %v1712, %v1286
    %1721 = vrot.lane.b32.xlu0 %v1713, 126
    %v1722 = vpop.permute.xlu0 %1721
    %1723 = vrot.lane.b32.xlu0 %v1714, 126
    %v1724 = vpop.permute.xlu0 %1723
    %1725 = vrot.lane.b32.xlu0 %v1715, 126
    %v1726 = vpop.permute.xlu0 %1725
    %1727 = vrot.lane.b32.xlu0 %v1716, 126
    %v1728 = vpop.permute.xlu0 %1727
    %v1733 = vadd.f32 %v1707, %v1722
    %v1734 = vadd.f32 %v1708, %v1724
    %v1735 = vadd.f32 %v1709, %v1726
    %v1736 = vadd.f32 %v1710, %v1728
    %s1737 = sld [smem:[#allocation7 + $0x52]]
    %v1738 = vstv %s1737
    %v1739 = vmul.f32 %v1738, %v1275
    %v1740 = vmul.f32 %v1738, %v1276
    %v1741 = vmul.f32 %v1738, %v1277
    %v1742 = vmul.f32 %v1738, %v1278
    %1747 = vrot.lane.b32.xlu0 %v1739, 126
    %v1748 = vpop.permute.xlu0 %1747
    %1749 = vrot.lane.b32.xlu0 %v1740, 126
    %v1750 = vpop.permute.xlu0 %1749
    %1751 = vrot.lane.b32.xlu0 %v1741, 126
    %v1752 = vpop.permute.xlu0 %1751
    %1753 = vrot.lane.b32.xlu0 %v1742, 126
    %v1754 = vpop.permute.xlu0 %1753
    %v1759 = vadd.f32 %v1545, %v1748
    %v1760 = vadd.f32 %v1546, %v1750
    %v1761 = vadd.f32 %v1547, %v1752
    %v1762 = vadd.f32 %v1548, %v1754
    %s1763 = sld [smem:[#allocation7 + $0x6b]]
    %v1764 = vstv %s1763
    %v1765 = vmul.f32 %v1764, %v1279
    %v1766 = vmul.f32 %v1764, %v1280
    %v1767 = vmul.f32 %v1764, %v1281
    %v1768 = vmul.f32 %v1764, %v1282
    %1773 = vrot.lane.b32.xlu0 %v1765, 126
    %v1774 = vpop.permute.xlu0 %1773
    %1775 = vrot.lane.b32.xlu0 %v1766, 126
    %v1776 = vpop.permute.xlu0 %1775
    %1777 = vrot.lane.b32.xlu0 %v1767, 126
    %v1778 = vpop.permute.xlu0 %1777
    %1779 = vrot.lane.b32.xlu0 %v1768, 126
    %v1780 = vpop.permute.xlu0 %1779
    %v1785 = vadd.f32 %v1759, %v1774
    %v1786 = vadd.f32 %v1760, %v1776
    %v1787 = vadd.f32 %v1761, %v1778
    %v1788 = vadd.f32 %v1762, %v1780
    %s1789 = sld [smem:[#allocation7 + $0x84]]
    %v1790 = vstv %s1789
    %v1791 = vmul.f32 %v1790, %v1283
    %v1792 = vmul.f32 %v1790, %v1284
    %v1793 = vmul.f32 %v1790, %v1285
    %v1794 = vmul.f32 %v1790, %v1286
    %1799 = vrot.lane.b32.xlu0 %v1791, 126
    %v1800 = vpop.permute.xlu0 %1799
    %1801 = vrot.lane.b32.xlu0 %v1792, 126
    %v1802 = vpop.permute.xlu0 %1801
    %1803 = vrot.lane.b32.xlu0 %v1793, 126
    %v1804 = vpop.permute.xlu0 %1803
    %1805 = vrot.lane.b32.xlu0 %v1794, 126
    %v1806 = vpop.permute.xlu0 %1805
    %v1811 = vadd.f32 %v1785, %v1800
    %v1812 = vadd.f32 %v1786, %v1802
    %v1813 = vadd.f32 %v1787, %v1804
    %v1814 = vadd.f32 %v1788, %v1806
    %s1815 = sld [smem:[#allocation7 + $0x9d]]
    %v1816 = vstv %s1815
    %v1817 = vmul.f32 %v1816, %v1275
    %v1818 = vmul.f32 %v1816, %v1276
    %v1819 = vmul.f32 %v1816, %v1277
    %v1820 = vmul.f32 %v1816, %v1278
    %1825 = vrot.lane.b32.xlu0 %v1817, 126
    %v1826 = vpop.permute.xlu0 %1825
    %1827 = vrot.lane.b32.xlu0 %v1818, 126
    %v1828 = vpop.permute.xlu0 %1827
    %1829 = vrot.lane.b32.xlu0 %v1819, 126
    %v1830 = vpop.permute.xlu0 %1829
    %1831 = vrot.lane.b32.xlu0 %v1820, 126
    %v1832 = vpop.permute.xlu0 %1831
    %v1837 = vadd.f32 %v1623, %v1826
    %v1838 = vadd.f32 %v1624, %v1828
    %v1839 = vadd.f32 %v1625, %v1830
    %v1840 = vadd.f32 %v1626, %v1832
    %s1841 = sld [smem:[#allocation7 + $0xb6]]
    %v1842 = vstv %s1841
    %v1843 = vmul.f32 %v1842, %v1279
    %v1844 = vmul.f32 %v1842, %v1280
    %v1845 = vmul.f32 %v1842, %v1281
    %v1846 = vmul.f32 %v1842, %v1282
    %1851 = vrot.lane.b32.xlu0 %v1843, 126
    %v1852 = vpop.permute.xlu0 %1851
    %1853 = vrot.lane.b32.xlu0 %v1844, 126
    %v1854 = vpop.permute.xlu0 %1853
    %1855 = vrot.lane.b32.xlu0 %v1845, 126
    %v1856 = vpop.permute.xlu0 %1855
    %1857 = vrot.lane.b32.xlu0 %v1846, 126
    %v1858 = vpop.permute.xlu0 %1857
    %v1863 = vadd.f32 %v1837, %v1852
    %v1864 = vadd.f32 %v1838, %v1854
    %v1865 = vadd.f32 %v1839, %v1856
    %v1866 = vadd.f32 %v1840, %v1858
    %s1867 = sld [smem:[#allocation7 + $0xcf]]
    %v1868 = vstv %s1867
    %v1869 = vmul.f32 %v1868, %v1283
    %v1870 = vmul.f32 %v1868, %v1284
    %v1871 = vmul.f32 %v1868, %v1285
    %v1872 = vmul.f32 %v1868, %v1286
    %1877 = vrot.lane.b32.xlu0 %v1869, 126
    %v1878 = vpop.permute.xlu0 %1877
    %1879 = vrot.lane.b32.xlu0 %v1870, 126
    %v1880 = vpop.permute.xlu0 %1879
    %1881 = vrot.lane.b32.xlu0 %v1871, 126
    %v1882 = vpop.permute.xlu0 %1881
    %1883 = vrot.lane.b32.xlu0 %v1872, 126
    %v1884 = vpop.permute.xlu0 %1883
    %v1889 = vadd.f32 %v1863, %v1878
    %v1890 = vadd.f32 %v1864, %v1880
    %v1891 = vadd.f32 %v1865, %v1882
    %v1892 = vadd.f32 %v1866, %v1884
    %v1893 = vmul.f32 %v1291, 0.5
    %v1894 = vmul.f32 %v1292, 0.5
    %v1895 = vmul.f32 %v1293, 0.5
    %v1896 = vmul.f32 %v1294, 0.5
    %1901 = vrot.lane.b32.xlu0 %v1893, 127
    %v1902 = vpop.permute.xlu0 %1901
    %1903 = vrot.lane.b32.xlu0 %v1894, 127
    %v1904 = vpop.permute.xlu0 %1903
    %1905 = vrot.lane.b32.xlu0 %v1895, 127
    %v1906 = vpop.permute.xlu0 %1905
    %1907 = vrot.lane.b32.xlu0 %v1896, 127
    %v1908 = vpop.permute.xlu0 %1907
    %v1913 = vadd.f32 %v1631, %v1902
    %v1914 = vadd.f32 %v1632, %v1904
    %v1915 = vadd.f32 %v1633, %v1906
    %v1916 = vadd.f32 %v1634, %v1908
    %v1917 = vmul.f32 %v1291, 0.6666667
    %v1918 = vmul.f32 %v1292, 0.6666667
    %v1919 = vmul.f32 %v1293, 0.6666667
    %v1920 = vmul.f32 %v1294, 0.6666667
    %1925 = vrot.lane.b32.xlu0 %v1917, 126
    %v1926 = vpop.permute.xlu0 %1925
    %1927 = vrot.lane.b32.xlu0 %v1918, 126
    %v1928 = vpop.permute.xlu0 %1927
    %1929 = vrot.lane.b32.xlu0 %v1919, 126
    %v1930 = vpop.permute.xlu0 %1929
    %1931 = vrot.lane.b32.xlu0 %v1920, 126
    %v1932 = vpop.permute.xlu0 %1931
    %v1937 = vadd.f32 %v1655, %v1926
    %v1938 = vadd.f32 %v1656, %v1928
    %v1939 = vadd.f32 %v1657, %v1930
    %v1940 = vadd.f32 %v1658, %v1932
    %s1941 = sld [smem:[#allocation7 + $0x8]]
    %v1942 = vstv %s1941
    %v1943 = vmul.f32 %v1942, %v1275
    %v1944 = vmul.f32 %v1942, %v1276
    %v1945 = vmul.f32 %v1942, %v1277
    %v1946 = vmul.f32 %v1942, %v1278
    %1951 = vrot.lane.b32.xlu0 %v1943, 125
    %v1952 = vpop.permute.xlu0 %1951
    %1953 = vrot.lane.b32.xlu0 %v1944, 125
    %v1954 = vpop.permute.xlu0 %1953
    %1955 = vrot.lane.b32.xlu0 %v1945, 125
    %v1956 = vpop.permute.xlu0 %1955
    %1957 = vrot.lane.b32.xlu0 %v1946, 125
    %v1958 = vpop.permute.xlu0 %1957
    %v1963 = vadd.f32 %v1733, %v1952
    %v1964 = vadd.f32 %v1734, %v1954
    %v1965 = vadd.f32 %v1735, %v1956
    %v1966 = vadd.f32 %v1736, %v1958
    %s1967 = sld [smem:[#allocation7 + $0x21]]
    %v1968 = vstv %s1967
    %v1969 = vmul.f32 %v1968, %v1279
    %v1970 = vmul.f32 %v1968, %v1280
    %v1971 = vmul.f32 %v1968, %v1281
    %v1972 = vmul.f32 %v1968, %v1282
    %1977 = vrot.lane.b32.xlu0 %v1969, 125
    %v1978 = vpop.permute.xlu0 %1977
    %1979 = vrot.lane.b32.xlu0 %v1970, 125
    %v1980 = vpop.permute.xlu0 %1979
    %1981 = vrot.lane.b32.xlu0 %v1971, 125
    %v1982 = vpop.permute.xlu0 %1981
    %1983 = vrot.lane.b32.xlu0 %v1972, 125
    %v1984 = vpop.permute.xlu0 %1983
    %v1989 = vadd.f32 %v1963, %v1978
    %v1990 = vadd.f32 %v1964, %v1980
    %v1991 = vadd.f32 %v1965, %v1982
    %v1992 = vadd.f32 %v1966, %v1984
    %s1993 = sld [smem:[#allocation7 + $0x3a]]
    %v1994 = vstv %s1993
    %v1995 = vmul.f32 %v1994, %v1283
    %v1996 = vmul.f32 %v1994, %v1284
    %v1997 = vmul.f32 %v1994, %v1285
    %v1998 = vmul.f32 %v1994, %v1286
    %2003 = vrot.lane.b32.xlu0 %v1995, 125
    %v2004 = vpop.permute.xlu0 %2003
    %2005 = vrot.lane.b32.xlu0 %v1996, 125
    %v2006 = vpop.permute.xlu0 %2005
    %2007 = vrot.lane.b32.xlu0 %v1997, 125
    %v2008 = vpop.permute.xlu0 %2007
    %2009 = vrot.lane.b32.xlu0 %v1998, 125
    %v2010 = vpop.permute.xlu0 %2009
    %v2015 = vadd.f32 %v1989, %v2004
    %v2016 = vadd.f32 %v1990, %v2006
    %v2017 = vadd.f32 %v1991, %v2008
    %v2018 = vadd.f32 %v1992, %v2010
    %s2019 = sld [smem:[#allocation7 + $0x53]]
    %v2020 = vstv %s2019
    %v2021 = vmul.f32 %v2020, %v1275
    %v2022 = vmul.f32 %v2020, %v1276
    %v2023 = vmul.f32 %v2020, %v1277
    %v2024 = vmul.f32 %v2020, %v1278
    %2029 = vrot.lane.b32.xlu0 %v2021, 125
    %v2030 = vpop.permute.xlu0 %2029
    %2031 = vrot.lane.b32.xlu0 %v2022, 125
    %v2032 = vpop.permute.xlu0 %2031
    %2033 = vrot.lane.b32.xlu0 %v2023, 125
    %v2034 = vpop.permute.xlu0 %2033
    %2035 = vrot.lane.b32.xlu0 %v2024, 125
    %v2036 = vpop.permute.xlu0 %2035
    %v2041 = vadd.f32 %v1811, %v2030
    %v2042 = vadd.f32 %v1812, %v2032
    %v2043 = vadd.f32 %v1813, %v2034
    %v2044 = vadd.f32 %v1814, %v2036
    %s2045 = sld [smem:[#allocation7 + $0x6c]]
    %v2046 = vstv %s2045
    %v2047 = vmul.f32 %v2046, %v1279
    %v2048 = vmul.f32 %v2046, %v1280
    %v2049 = vmul.f32 %v2046, %v1281
    %v2050 = vmul.f32 %v2046, %v1282
    %2055 = vrot.lane.b32.xlu0 %v2047, 125
    %v2056 = vpop.permute.xlu0 %2055
    %2057 = vrot.lane.b32.xlu0 %v2048, 125
    %v2058 = vpop.permute.xlu0 %2057
    %2059 = vrot.lane.b32.xlu0 %v2049, 125
    %v2060 = vpop.permute.xlu0 %2059
    %2061 = vrot.lane.b32.xlu0 %v2050, 125
    %v2062 = vpop.permute.xlu0 %2061
    %v2067 = vadd.f32 %v2041, %v2056
    %v2068 = vadd.f32 %v2042, %v2058
    %v2069 = vadd.f32 %v2043, %v2060
    %v2070 = vadd.f32 %v2044, %v2062
    %s2071 = sld [smem:[#allocation7 + $0x85]]
    %v2072 = vstv %s2071
    %v2073 = vmul.f32 %v2072, %v1283
    %v2074 = vmul.f32 %v2072, %v1284
    %v2075 = vmul.f32 %v2072, %v1285
    %v2076 = vmul.f32 %v2072, %v1286
    %2081 = vrot.lane.b32.xlu0 %v2073, 125
    %v2082 = vpop.permute.xlu0 %2081
    %2083 = vrot.lane.b32.xlu0 %v2074, 125
    %v2084 = vpop.permute.xlu0 %2083
    %2085 = vrot.lane.b32.xlu0 %v2075, 125
    %v2086 = vpop.permute.xlu0 %2085
    %2087 = vrot.lane.b32.xlu0 %v2076, 125
    %v2088 = vpop.permute.xlu0 %2087
    %v2093 = vadd.f32 %v2067, %v2082
    %v2094 = vadd.f32 %v2068, %v2084
    %v2095 = vadd.f32 %v2069, %v2086
    %v2096 = vadd.f32 %v2070, %v2088
    %s2097 = sld [smem:[#allocation7 + $0x9e]]
    %v2098 = vstv %s2097
    %v2099 = vmul.f32 %v2098, %v1275
    %v2100 = vmul.f32 %v2098, %v1276
    %v2101 = vmul.f32 %v2098, %v1277
    %v2102 = vmul.f32 %v2098, %v1278
    %2107 = vrot.lane.b32.xlu0 %v2099, 125
    %v2108 = vpop.permute.xlu0 %2107
    %2109 = vrot.lane.b32.xlu0 %v2100, 125
    %v2110 = vpop.permute.xlu0 %2109
    %2111 = vrot.lane.b32.xlu0 %v2101, 125
    %v2112 = vpop.permute.xlu0 %2111
    %2113 = vrot.lane.b32.xlu0 %v2102, 125
    %v2114 = vpop.permute.xlu0 %2113
    %v2119 = vadd.f32 %v1889, %v2108
    %v2120 = vadd.f32 %v1890, %v2110
    %v2121 = vadd.f32 %v1891, %v2112
    %v2122 = vadd.f32 %v1892, %v2114
    %s2123 = sld [smem:[#allocation7 + $0xb7]]
    %v2124 = vstv %s2123
    %v2125 = vmul.f32 %v2124, %v1279
    %v2126 = vmul.f32 %v2124, %v1280
    %v2127 = vmul.f32 %v2124, %v1281
    %v2128 = vmul.f32 %v2124, %v1282
    %2133 = vrot.lane.b32.xlu0 %v2125, 125
    %v2134 = vpop.permute.xlu0 %2133
    %2135 = vrot.lane.b32.xlu0 %v2126, 125
    %v2136 = vpop.permute.xlu0 %2135
    %2137 = vrot.lane.b32.xlu0 %v2127, 125
    %v2138 = vpop.permute.xlu0 %2137
    %2139 = vrot.lane.b32.xlu0 %v2128, 125
    %v2140 = vpop.permute.xlu0 %2139
    %v2145 = vadd.f32 %v2119, %v2134
    %v2146 = vadd.f32 %v2120, %v2136
    %v2147 = vadd.f32 %v2121, %v2138
    %v2148 = vadd.f32 %v2122, %v2140
    %s2149 = sld [smem:[#allocation7 + $0xd0]]
    %v2150 = vstv %s2149
    %v2151 = vmul.f32 %v2150, %v1283
    %v2152 = vmul.f32 %v2150, %v1284
    %v2153 = vmul.f32 %v2150, %v1285
    %v2154 = vmul.f32 %v2150, %v1286
    %2159 = vrot.lane.b32.xlu0 %v2151, 125
    %v2160 = vpop.permute.xlu0 %2159
    %2161 = vrot.lane.b32.xlu0 %v2152, 125
    %v2162 = vpop.permute.xlu0 %2161
    %2163 = vrot.lane.b32.xlu0 %v2153, 125
    %v2164 = vpop.permute.xlu0 %2163
    %2165 = vrot.lane.b32.xlu0 %v2154, 125
    %v2166 = vpop.permute.xlu0 %2165
    %v2171 = vadd.f32 %v2145, %v2160
    %v2172 = vadd.f32 %v2146, %v2162
    %v2173 = vadd.f32 %v2147, %v2164
    %v2174 = vadd.f32 %v2148, %v2166
    %2179 = vrot.lane.b32.xlu0 %v1627, 126
    %v2180 = vpop.permute.xlu0 %2179
    %2181 = vrot.lane.b32.xlu0 %v1628, 126
    %v2182 = vpop.permute.xlu0 %2181
    %2183 = vrot.lane.b32.xlu0 %v1629, 126
    %v2184 = vpop.permute.xlu0 %2183
    %2185 = vrot.lane.b32.xlu0 %v1630, 126
    %v2186 = vpop.permute.xlu0 %2185
    %v2191 = vadd.f32 %v1913, %v2180
    %v2192 = vadd.f32 %v1914, %v2182
    %v2193 = vadd.f32 %v1915, %v2184
    %v2194 = vadd.f32 %v1916, %v2186
    %2195 = vrot.lane.b32.xlu0 %v1635, 125
    %v2196 = vpop.permute.xlu0 %2195
    %2197 = vrot.lane.b32.xlu0 %v1636, 125
    %v2198 = vpop.permute.xlu0 %2197
    %2199 = vrot.lane.b32.xlu0 %v1637, 125
    %v2200 = vpop.permute.xlu0 %2199
    %2201 = vrot.lane.b32.xlu0 %v1638, 125
    %v2202 = vpop.permute.xlu0 %2201
    %v2207 = vadd.f32 %v1937, %v2196
    %v2208 = vadd.f32 %v1938, %v2198
    %v2209 = vadd.f32 %v1939, %v2200
    %v2210 = vadd.f32 %v1940, %v2202
    %s2211 = sld [smem:[#allocation7 + $0x9]]
    %v2212 = vstv %s2211
    %v2213 = vmul.f32 %v2212, %v1275
    %v2214 = vmul.f32 %v2212, %v1276
    %v2215 = vmul.f32 %v2212, %v1277
    %v2216 = vmul.f32 %v2212, %v1278
    %2221 = vrot.lane.b32.xlu0 %v2213, 124
    %v2222 = vpop.permute.xlu0 %2221
    %2223 = vrot.lane.b32.xlu0 %v2214, 124
    %v2224 = vpop.permute.xlu0 %2223
    %2225 = vrot.lane.b32.xlu0 %v2215, 124
    %v2226 = vpop.permute.xlu0 %2225
    %2227 = vrot.lane.b32.xlu0 %v2216, 124
    %v2228 = vpop.permute.xlu0 %2227
    %v2233 = vadd.f32 %v2015, %v2222
    %v2234 = vadd.f32 %v2016, %v2224
    %v2235 = vadd.f32 %v2017, %v2226
    %v2236 = vadd.f32 %v2018, %v2228
    %s2237 = sld [smem:[#allocation7 + $0x22]]
    %v2238 = vstv %s2237
    %v2239 = vmul.f32 %v2238, %v1279
    %v2240 = vmul.f32 %v2238, %v1280
    %v2241 = vmul.f32 %v2238, %v1281
    %v2242 = vmul.f32 %v2238, %v1282
    %2247 = vrot.lane.b32.xlu0 %v2239, 124
    %v2248 = vpop.permute.xlu0 %2247
    %2249 = vrot.lane.b32.xlu0 %v2240, 124
    %v2250 = vpop.permute.xlu0 %2249
    %2251 = vrot.lane.b32.xlu0 %v2241, 124
    %v2252 = vpop.permute.xlu0 %2251
    %2253 = vrot.lane.b32.xlu0 %v2242, 124
    %v2254 = vpop.permute.xlu0 %2253
    %v2259 = vadd.f32 %v2233, %v2248
    %v2260 = vadd.f32 %v2234, %v2250
    %v2261 = vadd.f32 %v2235, %v2252
    %v2262 = vadd.f32 %v2236, %v2254
    %s2263 = sld [smem:[#allocation7 + $0x3b]]
    %v2264 = vstv %s2263
    %v2265 = vmul.f32 %v2264, %v1283
    %v2266 = vmul.f32 %v2264, %v1284
    %v2267 = vmul.f32 %v2264, %v1285
    %v2268 = vmul.f32 %v2264, %v1286
    %2273 = vrot.lane.b32.xlu0 %v2265, 124
    %v2274 = vpop.permute.xlu0 %2273
    %2275 = vrot.lane.b32.xlu0 %v2266, 124
    %v2276 = vpop.permute.xlu0 %2275
    %2277 = vrot.lane.b32.xlu0 %v2267, 124
    %v2278 = vpop.permute.xlu0 %2277
    %2279 = vrot.lane.b32.xlu0 %v2268, 124
    %v2280 = vpop.permute.xlu0 %2279
    %v2285 = vadd.f32 %v2259, %v2274
    %v2286 = vadd.f32 %v2260, %v2276
    %v2287 = vadd.f32 %v2261, %v2278
    %v2288 = vadd.f32 %v2262, %v2280
    %s2289 = sld [smem:[#allocation7 + $0x54]]
    %v2290 = vstv %s2289
    %v2291 = vmul.f32 %v2290, %v1275
    %v2292 = vmul.f32 %v2290, %v1276
    %v2293 = vmul.f32 %v2290, %v1277
    %v2294 = vmul.f32 %v2290, %v1278
    %2299 = vrot.lane.b32.xlu0 %v2291, 124
    %v2300 = vpop.permute.xlu0 %2299
    %2301 = vrot.lane.b32.xlu0 %v2292, 124
    %v2302 = vpop.permute.xlu0 %2301
    %2303 = vrot.lane.b32.xlu0 %v2293, 124
    %v2304 = vpop.permute.xlu0 %2303
    %2305 = vrot.lane.b32.xlu0 %v2294, 124
    %v2306 = vpop.permute.xlu0 %2305
    %v2311 = vadd.f32 %v2093, %v2300
    %v2312 = vadd.f32 %v2094, %v2302
    %v2313 = vadd.f32 %v2095, %v2304
    %v2314 = vadd.f32 %v2096, %v2306
    %s2315 = sld [smem:[#allocation7 + $0x6d]]
    %v2316 = vstv %s2315
    %v2317 = vmul.f32 %v2316, %v1279
    %v2318 = vmul.f32 %v2316, %v1280
    %v2319 = vmul.f32 %v2316, %v1281
    %v2320 = vmul.f32 %v2316, %v1282
    %2325 = vrot.lane.b32.xlu0 %v2317, 124
    %v2326 = vpop.permute.xlu0 %2325
    %2327 = vrot.lane.b32.xlu0 %v2318, 124
    %v2328 = vpop.permute.xlu0 %2327
    %2329 = vrot.lane.b32.xlu0 %v2319, 124
    %v2330 = vpop.permute.xlu0 %2329
    %2331 = vrot.lane.b32.xlu0 %v2320, 124
    %v2332 = vpop.permute.xlu0 %2331
    %v2337 = vadd.f32 %v2311, %v2326
    %v2338 = vadd.f32 %v2312, %v2328
    %v2339 = vadd.f32 %v2313, %v2330
    %v2340 = vadd.f32 %v2314, %v2332
    %s2341 = sld [smem:[#allocation7 + $0x86]]
    %v2342 = vstv %s2341
    %v2343 = vmul.f32 %v2342, %v1283
    %v2344 = vmul.f32 %v2342, %v1284
    %v2345 = vmul.f32 %v2342, %v1285
    %v2346 = vmul.f32 %v2342, %v1286
    %2351 = vrot.lane.b32.xlu0 %v2343, 124
    %v2352 = vpop.permute.xlu0 %2351
    %2353 = vrot.lane.b32.xlu0 %v2344, 124
    %v2354 = vpop.permute.xlu0 %2353
    %2355 = vrot.lane.b32.xlu0 %v2345, 124
    %v2356 = vpop.permute.xlu0 %2355
    %2357 = vrot.lane.b32.xlu0 %v2346, 124
    %v2358 = vpop.permute.xlu0 %2357
    %v2363 = vadd.f32 %v2337, %v2352
    %v2364 = vadd.f32 %v2338, %v2354
    %v2365 = vadd.f32 %v2339, %v2356
    %v2366 = vadd.f32 %v2340, %v2358
    %s2367 = sld [smem:[#allocation7 + $0x9f]]
    %v2368 = vstv %s2367
    %v2369 = vmul.f32 %v2368, %v1275
    %v2370 = vmul.f32 %v2368, %v1276
    %v2371 = vmul.f32 %v2368, %v1277
    %v2372 = vmul.f32 %v2368, %v1278
    %2377 = vrot.lane.b32.xlu0 %v2369, 124
    %v2378 = vpop.permute.xlu0 %2377
    %2379 = vrot.lane.b32.xlu0 %v2370, 124
    %v2380 = vpop.permute.xlu0 %2379
    %2381 = vrot.lane.b32.xlu0 %v2371, 124
    %v2382 = vpop.permute.xlu0 %2381
    %2383 = vrot.lane.b32.xlu0 %v2372, 124
    %v2384 = vpop.permute.xlu0 %2383
    %v2389 = vadd.f32 %v2171, %v2378
    %v2390 = vadd.f32 %v2172, %v2380
    %v2391 = vadd.f32 %v2173, %v2382
    %v2392 = vadd.f32 %v2174, %v2384
    %s2393 = sld [smem:[#allocation7 + $0xb8]]
    %v2394 = vstv %s2393
    %v2395 = vmul.f32 %v2394, %v1279
    %v2396 = vmul.f32 %v2394, %v1280
    %v2397 = vmul.f32 %v2394, %v1281
    %v2398 = vmul.f32 %v2394, %v1282
    %2403 = vrot.lane.b32.xlu0 %v2395, 124
    %v2404 = vpop.permute.xlu0 %2403
    %2405 = vrot.lane.b32.xlu0 %v2396, 124
    %v2406 = vpop.permute.xlu0 %2405
    %2407 = vrot.lane.b32.xlu0 %v2397, 124
    %v2408 = vpop.permute.xlu0 %2407
    %2409 = vrot.lane.b32.xlu0 %v2398, 124
    %v2410 = vpop.permute.xlu0 %2409
    %v2415 = vadd.f32 %v2389, %v2404
    %v2416 = vadd.f32 %v2390, %v2406
    %v2417 = vadd.f32 %v2391, %v2408
    %v2418 = vadd.f32 %v2392, %v2410
    %s2419 = sld [smem:[#allocation7 + $0xd1]]
    %v2420 = vstv %s2419
    %v2421 = vmul.f32 %v2420, %v1283
    %v2422 = vmul.f32 %v2420, %v1284
    %v2423 = vmul.f32 %v2420, %v1285
    %v2424 = vmul.f32 %v2420, %v1286
    %2429 = vrot.lane.b32.xlu0 %v2421, 124
    %v2430 = vpop.permute.xlu0 %2429
    %2431 = vrot.lane.b32.xlu0 %v2422, 124
    %v2432 = vpop.permute.xlu0 %2431
    %2433 = vrot.lane.b32.xlu0 %v2423, 124
    %v2434 = vpop.permute.xlu0 %2433
    %2435 = vrot.lane.b32.xlu0 %v2424, 124
    %v2436 = vpop.permute.xlu0 %2435
    %v2441 = vadd.f32 %v2415, %v2430
    %v2442 = vadd.f32 %v2416, %v2432
    %v2443 = vadd.f32 %v2417, %v2434
    %v2444 = vadd.f32 %v2418, %v2436
    %2449 = vrot.lane.b32.xlu0 %v1385, 124
    %v2450 = vpop.permute.xlu0 %2449
    %2451 = vrot.lane.b32.xlu0 %v1386, 124
    %v2452 = vpop.permute.xlu0 %2451
    %2453 = vrot.lane.b32.xlu0 %v1387, 124
    %v2454 = vpop.permute.xlu0 %2453
    %2455 = vrot.lane.b32.xlu0 %v1388, 124
    %v2456 = vpop.permute.xlu0 %2455
    %v2461 = vadd.f32 %v2207, %v2450
    %v2462 = vadd.f32 %v2208, %v2452
    %v2463 = vadd.f32 %v2209, %v2454
    %v2464 = vadd.f32 %v2210, %v2456
    %v2465 = vld [vmem:[#allocation2 + $0x2] sm:$0xff]
    %v2466 = vld [vmem:[#allocation2 + $0xa] sm:$0xff]
    %v2467 = vld [vmem:[#allocation2 + $0x4a] sm:$0xff]
    %v2468 = vld [vmem:[#allocation2 + $0x52] sm:$0xff]
    %v2469 = vld [vmem:[%s139 + $0x2] sm:$0xff]
    %v2470 = vld [vmem:[%s139 + $0xa] sm:$0xff]
    %v2471 = vld [vmem:[%s139 + $0x4a] sm:$0xff]
    %v2472 = vld [vmem:[%s139 + $0x52] sm:$0xff]
    %v2473 = vld [vmem:[%s144 + $0x2] sm:$0xff]
    %v2474 = vld [vmem:[%s144 + $0xa] sm:$0xff]
    %v2475 = vld [vmem:[%s144 + $0x4a] sm:$0xff]
    %v2476 = vld [vmem:[%s144 + $0x52] sm:$0xff]
    %v2477 = vadd.f32 %v2465, %v2469
    %v2478 = vadd.f32 %v2466, %v2470
    %v2479 = vadd.f32 %v2467, %v2471
    %v2480 = vadd.f32 %v2468, %v2472
    %v2481 = vadd.f32 %v2477, %v2473
    %v2482 = vadd.f32 %v2478, %v2474
    %v2483 = vadd.f32 %v2479, %v2475
    %v2484 = vadd.f32 %v2480, %v2476
    %s2485 = sld [smem:[#allocation7 + $0xa]]
    %v2486 = vstv %s2485
    %v2487 = vmul.f32 %v2486, %v2465
    %v2488 = vmul.f32 %v2486, %v2466
    %v2489 = vmul.f32 %v2486, %v2467
    %v2490 = vmul.f32 %v2486, %v2468
    %v2491 = vadd.f32 %v2285, %v2487
    %v2492 = vadd.f32 %v2286, %v2488
    %v2493 = vadd.f32 %v2287, %v2489
    %v2494 = vadd.f32 %v2288, %v2490
    %s2495 = sld [smem:[#allocation7 + $0x23]]
    %v2496 = vstv %s2495
    %v2497 = vmul.f32 %v2496, %v2469
    %v2498 = vmul.f32 %v2496, %v2470
    %v2499 = vmul.f32 %v2496, %v2471
    %v2500 = vmul.f32 %v2496, %v2472
    %v2501 = vadd.f32 %v2491, %v2497
    %v2502 = vadd.f32 %v2492, %v2498
    %v2503 = vadd.f32 %v2493, %v2499
    %v2504 = vadd.f32 %v2494, %v2500
    %s2505 = sld [smem:[#allocation7 + $0x3c]]
    %v2506 = vstv %s2505
    %v2507 = vmul.f32 %v2506, %v2473
    %v2508 = vmul.f32 %v2506, %v2474
    %v2509 = vmul.f32 %v2506, %v2475
    %v2510 = vmul.f32 %v2506, %v2476
    %v2511 = vadd.f32 %v2501, %v2507
    %v2512 = vadd.f32 %v2502, %v2508
    %v2513 = vadd.f32 %v2503, %v2509
    %v2514 = vadd.f32 %v2504, %v2510
    %s2515 = sld [smem:[#allocation7 + $0x55]]
    %v2516 = vstv %s2515
    %v2517 = vmul.f32 %v2516, %v2465
    %v2518 = vmul.f32 %v2516, %v2466
    %v2519 = vmul.f32 %v2516, %v2467
    %v2520 = vmul.f32 %v2516, %v2468
    %v2521 = vadd.f32 %v2363, %v2517
    %v2522 = vadd.f32 %v2364, %v2518
    %v2523 = vadd.f32 %v2365, %v2519
    %v2524 = vadd.f32 %v2366, %v2520
    %s2525 = sld [smem:[#allocation7 + $0x6e]]
    %v2526 = vstv %s2525
    %v2527 = vmul.f32 %v2526, %v2469
    %v2528 = vmul.f32 %v2526, %v2470
    %v2529 = vmul.f32 %v2526, %v2471
    %v2530 = vmul.f32 %v2526, %v2472
    %v2531 = vadd.f32 %v2521, %v2527
    %v2532 = vadd.f32 %v2522, %v2528
    %v2533 = vadd.f32 %v2523, %v2529
    %v2534 = vadd.f32 %v2524, %v2530
    %s2535 = sld [smem:[#allocation7 + $0x87]]
    %v2536 = vstv %s2535
    %v2537 = vmul.f32 %v2536, %v2473
    %v2538 = vmul.f32 %v2536, %v2474
    %v2539 = vmul.f32 %v2536, %v2475
    %v2540 = vmul.f32 %v2536, %v2476
    %v2541 = vadd.f32 %v2531, %v2537
    %v2542 = vadd.f32 %v2532, %v2538
    %v2543 = vadd.f32 %v2533, %v2539
    %v2544 = vadd.f32 %v2534, %v2540
    %s2545 = sld [smem:[#allocation7 + $0xa0]]
    %v2546 = vstv %s2545
    %v2547 = vmul.f32 %v2546, %v2465
    %v2548 = vmul.f32 %v2546, %v2466
    %v2549 = vmul.f32 %v2546, %v2467
    %v2550 = vmul.f32 %v2546, %v2468
    %v2551 = vadd.f32 %v2441, %v2547
    %v2552 = vadd.f32 %v2442, %v2548
    %v2553 = vadd.f32 %v2443, %v2549
    %v2554 = vadd.f32 %v2444, %v2550
    %s2555 = sld [smem:[#allocation7 + $0xb9]]
    %v2556 = vstv %s2555
    %v2557 = vmul.f32 %v2556, %v2469
    %v2558 = vmul.f32 %v2556, %v2470
    %v2559 = vmul.f32 %v2556, %v2471
    %v2560 = vmul.f32 %v2556, %v2472
    %v2561 = vadd.f32 %v2551, %v2557
    %v2562 = vadd.f32 %v2552, %v2558
    %v2563 = vadd.f32 %v2553, %v2559
    %v2564 = vadd.f32 %v2554, %v2560
    %s2565 = sld [smem:[#allocation7 + $0xd2]]
    %v2566 = vstv %s2565
    %v2567 = vmul.f32 %v2566, %v2473
    %v2568 = vmul.f32 %v2566, %v2474
    %v2569 = vmul.f32 %v2566, %v2475
    %v2570 = vmul.f32 %v2566, %v2476
    %v2571 = vadd.f32 %v2561, %v2567
    %v2572 = vadd.f32 %v2562, %v2568
    %v2573 = vadd.f32 %v2563, %v2569
    %v2574 = vadd.f32 %v2564, %v2570
    %v2575 = vmul.f32 %v2481, -0.16666667
    %v2576 = vmul.f32 %v2482, -0.16666667
    %v2577 = vmul.f32 %v2483, -0.16666667
    %v2578 = vmul.f32 %v2484, -0.16666667
    %v2579 = vadd.f32 %v2461, %v2575
    %v2580 = vadd.f32 %v2462, %v2576
    %v2581 = vadd.f32 %v2463, %v2577
    %v2582 = vadd.f32 %v2464, %v2578
    %s2583 = sld [smem:[#allocation7 + $0xb]]
    %v2584 = vstv %s2583
    %v2585 = vmul.f32 %v2584, %v2465
    %v2586 = vmul.f32 %v2584, %v2466
    %v2587 = vmul.f32 %v2584, %v2467
    %v2588 = vmul.f32 %v2584, %v2468
    %2593 = vrot.lane.b32.xlu0 %v2585, 127
    %v2594 = vpop.permute.xlu0 %2593
    %2595 = vrot.lane.b32.xlu0 %v2586, 127
    %v2596 = vpop.permute.xlu0 %2595
    %2597 = vrot.lane.b32.xlu0 %v2587, 127
    %v2598 = vpop.permute.xlu0 %2597
    %2599 = vrot.lane.b32.xlu0 %v2588, 127
    %v2600 = vpop.permute.xlu0 %2599
    %v2605 = vadd.f32 %v2511, %v2594
    %v2606 = vadd.f32 %v2512, %v2596
    %v2607 = vadd.f32 %v2513, %v2598
    %v2608 = vadd.f32 %v2514, %v2600
    %s2609 = sld [smem:[#allocation7 + $0x24]]
    %v2610 = vstv %s2609
    %v2611 = vmul.f32 %v2610, %v2469
    %v2612 = vmul.f32 %v2610, %v2470
    %v2613 = vmul.f32 %v2610, %v2471
    %v2614 = vmul.f32 %v2610, %v2472
    %2619 = vrot.lane.b32.xlu0 %v2611, 127
    %v2620 = vpop.permute.xlu0 %2619
    %2621 = vrot.lane.b32.xlu0 %v2612, 127
    %v2622 = vpop.permute.xlu0 %2621
    %2623 = vrot.lane.b32.xlu0 %v2613, 127
    %v2624 = vpop.permute.xlu0 %2623
    %2625 = vrot.lane.b32.xlu0 %v2614, 127
    %v2626 = vpop.permute.xlu0 %2625
    %v2631 = vadd.f32 %v2605, %v2620
    %v2632 = vadd.f32 %v2606, %v2622
    %v2633 = vadd.f32 %v2607, %v2624
    %v2634 = vadd.f32 %v2608, %v2626
    %s2635 = sld [smem:[#allocation7 + $0x3d]]
    %v2636 = vstv %s2635
    %v2637 = vmul.f32 %v2636, %v2473
    %v2638 = vmul.f32 %v2636, %v2474
    %v2639 = vmul.f32 %v2636, %v2475
    %v2640 = vmul.f32 %v2636, %v2476
    %2645 = vrot.lane.b32.xlu0 %v2637, 127
    %v2646 = vpop.permute.xlu0 %2645
    %2647 = vrot.lane.b32.xlu0 %v2638, 127
    %v2648 = vpop.permute.xlu0 %2647
    %2649 = vrot.lane.b32.xlu0 %v2639, 127
    %v2650 = vpop.permute.xlu0 %2649
    %2651 = vrot.lane.b32.xlu0 %v2640, 127
    %v2652 = vpop.permute.xlu0 %2651
    %v2657 = vadd.f32 %v2631, %v2646
    %v2658 = vadd.f32 %v2632, %v2648
    %v2659 = vadd.f32 %v2633, %v2650
    %v2660 = vadd.f32 %v2634, %v2652
    %s2661 = sld [smem:[#allocation7 + $0x56]]
    %v2662 = vstv %s2661
    %v2663 = vmul.f32 %v2662, %v2465
    %v2664 = vmul.f32 %v2662, %v2466
    %v2665 = vmul.f32 %v2662, %v2467
    %v2666 = vmul.f32 %v2662, %v2468
    %2671 = vrot.lane.b32.xlu0 %v2663, 127
    %v2672 = vpop.permute.xlu0 %2671
    %2673 = vrot.lane.b32.xlu0 %v2664, 127
    %v2674 = vpop.permute.xlu0 %2673
    %2675 = vrot.lane.b32.xlu0 %v2665, 127
    %v2676 = vpop.permute.xlu0 %2675
    %2677 = vrot.lane.b32.xlu0 %v2666, 127
    %v2678 = vpop.permute.xlu0 %2677
    %v2683 = vadd.f32 %v2541, %v2672
    %v2684 = vadd.f32 %v2542, %v2674
    %v2685 = vadd.f32 %v2543, %v2676
    %v2686 = vadd.f32 %v2544, %v2678
    %s2687 = sld [smem:[#allocation7 + $0x6f]]
    %v2688 = vstv %s2687
    %v2689 = vmul.f32 %v2688, %v2469
    %v2690 = vmul.f32 %v2688, %v2470
    %v2691 = vmul.f32 %v2688, %v2471
    %v2692 = vmul.f32 %v2688, %v2472
    %2697 = vrot.lane.b32.xlu0 %v2689, 127
    %v2698 = vpop.permute.xlu0 %2697
    %2699 = vrot.lane.b32.xlu0 %v2690, 127
    %v2700 = vpop.permute.xlu0 %2699
    %2701 = vrot.lane.b32.xlu0 %v2691, 127
    %v2702 = vpop.permute.xlu0 %2701
    %2703 = vrot.lane.b32.xlu0 %v2692, 127
    %v2704 = vpop.permute.xlu0 %2703
    %v2709 = vadd.f32 %v2683, %v2698
    %v2710 = vadd.f32 %v2684, %v2700
    %v2711 = vadd.f32 %v2685, %v2702
    %v2712 = vadd.f32 %v2686, %v2704
    %s2713 = sld [smem:[#allocation7 + $0x88]]
    %v2714 = vstv %s2713
    %v2715 = vmul.f32 %v2714, %v2473
    %v2716 = vmul.f32 %v2714, %v2474
    %v2717 = vmul.f32 %v2714, %v2475
    %v2718 = vmul.f32 %v2714, %v2476
    %2723 = vrot.lane.b32.xlu0 %v2715, 127
    %v2724 = vpop.permute.xlu0 %2723
    %2725 = vrot.lane.b32.xlu0 %v2716, 127
    %v2726 = vpop.permute.xlu0 %2725
    %2727 = vrot.lane.b32.xlu0 %v2717, 127
    %v2728 = vpop.permute.xlu0 %2727
    %2729 = vrot.lane.b32.xlu0 %v2718, 127
    %v2730 = vpop.permute.xlu0 %2729
    %v2735 = vadd.f32 %v2709, %v2724
    %v2736 = vadd.f32 %v2710, %v2726
    %v2737 = vadd.f32 %v2711, %v2728
    %v2738 = vadd.f32 %v2712, %v2730
    %s2739 = sld [smem:[#allocation7 + $0xa1]]
    %v2740 = vstv %s2739
    %v2741 = vmul.f32 %v2740, %v2465
    %v2742 = vmul.f32 %v2740, %v2466
    %v2743 = vmul.f32 %v2740, %v2467
    %v2744 = vmul.f32 %v2740, %v2468
    %2749 = vrot.lane.b32.xlu0 %v2741, 127
    %v2750 = vpop.permute.xlu0 %2749
    %2751 = vrot.lane.b32.xlu0 %v2742, 127
    %v2752 = vpop.permute.xlu0 %2751
    %2753 = vrot.lane.b32.xlu0 %v2743, 127
    %v2754 = vpop.permute.xlu0 %2753
    %2755 = vrot.lane.b32.xlu0 %v2744, 127
    %v2756 = vpop.permute.xlu0 %2755
    %v2761 = vadd.f32 %v2571, %v2750
    %v2762 = vadd.f32 %v2572, %v2752
    %v2763 = vadd.f32 %v2573, %v2754
    %v2764 = vadd.f32 %v2574, %v2756
    %s2765 = sld [smem:[#allocation7 + $0xba]]
    %v2766 = vstv %s2765
    %v2767 = vmul.f32 %v2766, %v2469
    %v2768 = vmul.f32 %v2766, %v2470
    %v2769 = vmul.f32 %v2766, %v2471
    %v2770 = vmul.f32 %v2766, %v2472
    %2775 = vrot.lane.b32.xlu0 %v2767, 127
    %v2776 = vpop.permute.xlu0 %2775
    %2777 = vrot.lane.b32.xlu0 %v2768, 127
    %v2778 = vpop.permute.xlu0 %2777
    %2779 = vrot.lane.b32.xlu0 %v2769, 127
    %v2780 = vpop.permute.xlu0 %2779
    %2781 = vrot.lane.b32.xlu0 %v2770, 127
    %v2782 = vpop.permute.xlu0 %2781
    %v2787 = vadd.f32 %v2761, %v2776
    %v2788 = vadd.f32 %v2762, %v2778
    %v2789 = vadd.f32 %v2763, %v2780
    %v2790 = vadd.f32 %v2764, %v2782
    %s2791 = sld [smem:[#allocation7 + $0xd3]]
    %v2792 = vstv %s2791
    %v2793 = vmul.f32 %v2792, %v2473
    %v2794 = vmul.f32 %v2792, %v2474
    %v2795 = vmul.f32 %v2792, %v2475
    %v2796 = vmul.f32 %v2792, %v2476
    %2801 = vrot.lane.b32.xlu0 %v2793, 127
    %v2802 = vpop.permute.xlu0 %2801
    %2803 = vrot.lane.b32.xlu0 %v2794, 127
    %v2804 = vpop.permute.xlu0 %2803
    %2805 = vrot.lane.b32.xlu0 %v2795, 127
    %v2806 = vpop.permute.xlu0 %2805
    %2807 = vrot.lane.b32.xlu0 %v2796, 127
    %v2808 = vpop.permute.xlu0 %2807
    %v2813 = vadd.f32 %v2787, %v2802
    %v2814 = vadd.f32 %v2788, %v2804
    %v2815 = vadd.f32 %v2789, %v2806
    %v2816 = vadd.f32 %v2790, %v2808
    %v2817 = vmul.f32 %v2481, 0.5
    %v2818 = vmul.f32 %v2482, 0.5
    %v2819 = vmul.f32 %v2483, 0.5
    %v2820 = vmul.f32 %v2484, 0.5
    %v2821 = vadd.f32 %v2191, %v2817
    %v2822 = vadd.f32 %v2192, %v2818
    %v2823 = vadd.f32 %v2193, %v2819
    %v2824 = vadd.f32 %v2194, %v2820
    %v2825 = vmul.f32 %v2481, 0.6666667
    %v2826 = vmul.f32 %v2482, 0.6666667
    %v2827 = vmul.f32 %v2483, 0.6666667
    %v2828 = vmul.f32 %v2484, 0.6666667
    %2833 = vrot.lane.b32.xlu0 %v2825, 127
    %v2834 = vpop.permute.xlu0 %2833
    %2835 = vrot.lane.b32.xlu0 %v2826, 127
    %v2836 = vpop.permute.xlu0 %2835
    %2837 = vrot.lane.b32.xlu0 %v2827, 127
    %v2838 = vpop.permute.xlu0 %2837
    %2839 = vrot.lane.b32.xlu0 %v2828, 127
    %v2840 = vpop.permute.xlu0 %2839
    %v2845 = vadd.f32 %v2579, %v2834
    %v2846 = vadd.f32 %v2580, %v2836
    %v2847 = vadd.f32 %v2581, %v2838
    %v2848 = vadd.f32 %v2582, %v2840
    %v2849 = vadd.f32 %v2817, 0.0
    %v2850 = vadd.f32 %v2818, 0.0
    %v2851 = vadd.f32 %v2819, 0.0
    %v2852 = vadd.f32 %v2820, 0.0
    %s2853 = sld [smem:[#allocation7 + $0xc]]
    %v2854 = vstv %s2853
    %v2855 = vmul.f32 %v2854, %v2465
    %v2856 = vmul.f32 %v2854, %v2466
    %v2857 = vmul.f32 %v2854, %v2467
    %v2858 = vmul.f32 %v2854, %v2468
    %2863 = vrot.lane.b32.xlu0 %v2855, 126
    %v2864 = vpop.permute.xlu0 %2863
    %2865 = vrot.lane.b32.xlu0 %v2856, 126
    %v2866 = vpop.permute.xlu0 %2865
    %2867 = vrot.lane.b32.xlu0 %v2857, 126
    %v2868 = vpop.permute.xlu0 %2867
    %2869 = vrot.lane.b32.xlu0 %v2858, 126
    %v2870 = vpop.permute.xlu0 %2869
    %v2875 = vadd.f32 %v2657, %v2864
    %v2876 = vadd.f32 %v2658, %v2866
    %v2877 = vadd.f32 %v2659, %v2868
    %v2878 = vadd.f32 %v2660, %v2870
    %s2879 = sld [smem:[#allocation7 + $0x25]]
    %v2880 = vstv %s2879
    %v2881 = vmul.f32 %v2880, %v2469
    %v2882 = vmul.f32 %v2880, %v2470
    %v2883 = vmul.f32 %v2880, %v2471
    %v2884 = vmul.f32 %v2880, %v2472
    %2889 = vrot.lane.b32.xlu0 %v2881, 126
    %v2890 = vpop.permute.xlu0 %2889
    %2891 = vrot.lane.b32.xlu0 %v2882, 126
    %v2892 = vpop.permute.xlu0 %2891
    %2893 = vrot.lane.b32.xlu0 %v2883, 126
    %v2894 = vpop.permute.xlu0 %2893
    %2895 = vrot.lane.b32.xlu0 %v2884, 126
    %v2896 = vpop.permute.xlu0 %2895
    %v2901 = vadd.f32 %v2875, %v2890
    %v2902 = vadd.f32 %v2876, %v2892
    %v2903 = vadd.f32 %v2877, %v2894
    %v2904 = vadd.f32 %v2878, %v2896
    %s2905 = sld [smem:[#allocation7 + $0x3e]]
    %v2906 = vstv %s2905
    %v2907 = vmul.f32 %v2906, %v2473
    %v2908 = vmul.f32 %v2906, %v2474
    %v2909 = vmul.f32 %v2906, %v2475
    %v2910 = vmul.f32 %v2906, %v2476
    %2915 = vrot.lane.b32.xlu0 %v2907, 126
    %v2916 = vpop.permute.xlu0 %2915
    %2917 = vrot.lane.b32.xlu0 %v2908, 126
    %v2918 = vpop.permute.xlu0 %2917
    %2919 = vrot.lane.b32.xlu0 %v2909, 126
    %v2920 = vpop.permute.xlu0 %2919
    %2921 = vrot.lane.b32.xlu0 %v2910, 126
    %v2922 = vpop.permute.xlu0 %2921
    %v2927 = vadd.f32 %v2901, %v2916
    %v2928 = vadd.f32 %v2902, %v2918
    %v2929 = vadd.f32 %v2903, %v2920
    %v2930 = vadd.f32 %v2904, %v2922
    %s2931 = sld [smem:[#allocation7 + $0x57]]
    %v2932 = vstv %s2931
    %v2933 = vmul.f32 %v2932, %v2465
    %v2934 = vmul.f32 %v2932, %v2466
    %v2935 = vmul.f32 %v2932, %v2467
    %v2936 = vmul.f32 %v2932, %v2468
    %2941 = vrot.lane.b32.xlu0 %v2933, 126
    %v2942 = vpop.permute.xlu0 %2941
    %2943 = vrot.lane.b32.xlu0 %v2934, 126
    %v2944 = vpop.permute.xlu0 %2943
    %2945 = vrot.lane.b32.xlu0 %v2935, 126
    %v2946 = vpop.permute.xlu0 %2945
    %2947 = vrot.lane.b32.xlu0 %v2936, 126
    %v2948 = vpop.permute.xlu0 %2947
    %v2953 = vadd.f32 %v2735, %v2942
    %v2954 = vadd.f32 %v2736, %v2944
    %v2955 = vadd.f32 %v2737, %v2946
    %v2956 = vadd.f32 %v2738, %v2948
    %s2957 = sld [smem:[#allocation7 + $0x70]]
    %v2958 = vstv %s2957
    %v2959 = vmul.f32 %v2958, %v2469
    %v2960 = vmul.f32 %v2958, %v2470
    %v2961 = vmul.f32 %v2958, %v2471
    %v2962 = vmul.f32 %v2958, %v2472
    %2967 = vrot.lane.b32.xlu0 %v2959, 126
    %v2968 = vpop.permute.xlu0 %2967
    %2969 = vrot.lane.b32.xlu0 %v2960, 126
    %v2970 = vpop.permute.xlu0 %2969
    %2971 = vrot.lane.b32.xlu0 %v2961, 126
    %v2972 = vpop.permute.xlu0 %2971
    %2973 = vrot.lane.b32.xlu0 %v2962, 126
    %v2974 = vpop.permute.xlu0 %2973
    %v2979 = vadd.f32 %v2953, %v2968
    %v2980 = vadd.f32 %v2954, %v2970
    %v2981 = vadd.f32 %v2955, %v2972
    %v2982 = vadd.f32 %v2956, %v2974
    %s2983 = sld [smem:[#allocation7 + $0x89]]
    %v2984 = vstv %s2983
    %v2985 = vmul.f32 %v2984, %v2473
    %v2986 = vmul.f32 %v2984, %v2474
    %v2987 = vmul.f32 %v2984, %v2475
    %v2988 = vmul.f32 %v2984, %v2476
    %2993 = vrot.lane.b32.xlu0 %v2985, 126
    %v2994 = vpop.permute.xlu0 %2993
    %2995 = vrot.lane.b32.xlu0 %v2986, 126
    %v2996 = vpop.permute.xlu0 %2995
    %2997 = vrot.lane.b32.xlu0 %v2987, 126
    %v2998 = vpop.permute.xlu0 %2997
    %2999 = vrot.lane.b32.xlu0 %v2988, 126
    %v3000 = vpop.permute.xlu0 %2999
    %v3005 = vadd.f32 %v2979, %v2994
    %v3006 = vadd.f32 %v2980, %v2996
    %v3007 = vadd.f32 %v2981, %v2998
    %v3008 = vadd.f32 %v2982, %v3000
    %s3009 = sld [smem:[#allocation7 + $0xa2]]
    %v3010 = vstv %s3009
    %v3011 = vmul.f32 %v3010, %v2465
    %v3012 = vmul.f32 %v3010, %v2466
    %v3013 = vmul.f32 %v3010, %v2467
    %v3014 = vmul.f32 %v3010, %v2468
    %3019 = vrot.lane.b32.xlu0 %v3011, 126
    %v3020 = vpop.permute.xlu0 %3019
    %3021 = vrot.lane.b32.xlu0 %v3012, 126
    %v3022 = vpop.permute.xlu0 %3021
    %3023 = vrot.lane.b32.xlu0 %v3013, 126
    %v3024 = vpop.permute.xlu0 %3023
    %3025 = vrot.lane.b32.xlu0 %v3014, 126
    %v3026 = vpop.permute.xlu0 %3025
    %v3031 = vadd.f32 %v2813, %v3020
    %v3032 = vadd.f32 %v2814, %v3022
    %v3033 = vadd.f32 %v2815, %v3024
    %v3034 = vadd.f32 %v2816, %v3026
    %s3035 = sld [smem:[#allocation7 + $0xbb]]
    %v3036 = vstv %s3035
    %v3037 = vmul.f32 %v3036, %v2469
    %v3038 = vmul.f32 %v3036, %v2470
    %v3039 = vmul.f32 %v3036, %v2471
    %v3040 = vmul.f32 %v3036, %v2472
    %3045 = vrot.lane.b32.xlu0 %v3037, 126
    %v3046 = vpop.permute.xlu0 %3045
    %3047 = vrot.lane.b32.xlu0 %v3038, 126
    %v3048 = vpop.permute.xlu0 %3047
    %3049 = vrot.lane.b32.xlu0 %v3039, 126
    %v3050 = vpop.permute.xlu0 %3049
    %3051 = vrot.lane.b32.xlu0 %v3040, 126
    %v3052 = vpop.permute.xlu0 %3051
    %v3057 = vadd.f32 %v3031, %v3046
    %v3058 = vadd.f32 %v3032, %v3048
    %v3059 = vadd.f32 %v3033, %v3050
    %v3060 = vadd.f32 %v3034, %v3052
    %s3061 = sld [smem:[#allocation7 + $0xd4]]
    %v3062 = vstv %s3061
    %v3063 = vmul.f32 %v3062, %v2473
    %v3064 = vmul.f32 %v3062, %v2474
    %v3065 = vmul.f32 %v3062, %v2475
    %v3066 = vmul.f32 %v3062, %v2476
    %3071 = vrot.lane.b32.xlu0 %v3063, 126
    %v3072 = vpop.permute.xlu0 %3071
    %3073 = vrot.lane.b32.xlu0 %v3064, 126
    %v3074 = vpop.permute.xlu0 %3073
    %3075 = vrot.lane.b32.xlu0 %v3065, 126
    %v3076 = vpop.permute.xlu0 %3075
    %3077 = vrot.lane.b32.xlu0 %v3066, 126
    %v3078 = vpop.permute.xlu0 %3077
    %v3083 = vadd.f32 %v3057, %v3072
    %v3084 = vadd.f32 %v3058, %v3074
    %v3085 = vadd.f32 %v3059, %v3076
    %v3086 = vadd.f32 %v3060, %v3078
    %v3087 = vmul.f32 %v2481, -1.0
    %v3088 = vmul.f32 %v2482, -1.0
    %v3089 = vmul.f32 %v2483, -1.0
    %v3090 = vmul.f32 %v2484, -1.0
    %3095 = vrot.lane.b32.xlu0 %v3087, 127
    %v3096 = vpop.permute.xlu0 %3095
    %3097 = vrot.lane.b32.xlu0 %v3088, 127
    %v3098 = vpop.permute.xlu0 %3097
    %3099 = vrot.lane.b32.xlu0 %v3089, 127
    %v3100 = vpop.permute.xlu0 %3099
    %3101 = vrot.lane.b32.xlu0 %v3090, 127
    %v3102 = vpop.permute.xlu0 %3101
    %v3107 = vadd.f32 %v2821, %v3096
    %v3108 = vadd.f32 %v2822, %v3098
    %v3109 = vadd.f32 %v2823, %v3100
    %v3110 = vadd.f32 %v2824, %v3102
    %3111 = vrot.lane.b32.xlu0 %v3087, 126
    %v3112 = vpop.permute.xlu0 %3111
    %3113 = vrot.lane.b32.xlu0 %v3088, 126
    %v3114 = vpop.permute.xlu0 %3113
    %3115 = vrot.lane.b32.xlu0 %v3089, 126
    %v3116 = vpop.permute.xlu0 %3115
    %3117 = vrot.lane.b32.xlu0 %v3090, 126
    %v3118 = vpop.permute.xlu0 %3117
    %v3123 = vadd.f32 %v2845, %v3112
    %v3124 = vadd.f32 %v2846, %v3114
    %v3125 = vadd.f32 %v2847, %v3116
    %v3126 = vadd.f32 %v2848, %v3118
    %v3127 = vadd.f32 %v2849, %v3096
    %v3128 = vadd.f32 %v2850, %v3098
    %v3129 = vadd.f32 %v2851, %v3100
    %v3130 = vadd.f32 %v2852, %v3102
    %s3131 = sld [smem:[#allocation7 + $0xd]]
    %v3132 = vstv %s3131
    %v3133 = vmul.f32 %v3132, %v2465
    %v3134 = vmul.f32 %v3132, %v2466
    %v3135 = vmul.f32 %v3132, %v2467
    %v3136 = vmul.f32 %v3132, %v2468
    %3141 = vrot.lane.b32.xlu0 %v3133, 125
    %v3142 = vpop.permute.xlu0 %3141
    %3143 = vrot.lane.b32.xlu0 %v3134, 125
    %v3144 = vpop.permute.xlu0 %3143
    %3145 = vrot.lane.b32.xlu0 %v3135, 125
    %v3146 = vpop.permute.xlu0 %3145
    %3147 = vrot.lane.b32.xlu0 %v3136, 125
    %v3148 = vpop.permute.xlu0 %3147
    %v3153 = vadd.f32 %v2927, %v3142
    %v3154 = vadd.f32 %v2928, %v3144
    %v3155 = vadd.f32 %v2929, %v3146
    %v3156 = vadd.f32 %v2930, %v3148
    %s3157 = sld [smem:[#allocation7 + $0x26]]
    %v3158 = vstv %s3157
    %v3159 = vmul.f32 %v3158, %v2469
    %v3160 = vmul.f32 %v3158, %v2470
    %v3161 = vmul.f32 %v3158, %v2471
    %v3162 = vmul.f32 %v3158, %v2472
    %3167 = vrot.lane.b32.xlu0 %v3159, 125
    %v3168 = vpop.permute.xlu0 %3167
    %3169 = vrot.lane.b32.xlu0 %v3160, 125
    %v3170 = vpop.permute.xlu0 %3169
    %3171 = vrot.lane.b32.xlu0 %v3161, 125
    %v3172 = vpop.permute.xlu0 %3171
    %3173 = vrot.lane.b32.xlu0 %v3162, 125
    %v3174 = vpop.permute.xlu0 %3173
    %v3179 = vadd.f32 %v3153, %v3168
    %v3180 = vadd.f32 %v3154, %v3170
    %v3181 = vadd.f32 %v3155, %v3172
    %v3182 = vadd.f32 %v3156, %v3174
    %s3183 = sld [smem:[#allocation7 + $0x3f]]
    %v3184 = vstv %s3183
    %v3185 = vmul.f32 %v3184, %v2473
    %v3186 = vmul.f32 %v3184, %v2474
    %v3187 = vmul.f32 %v3184, %v2475
    %v3188 = vmul.f32 %v3184, %v2476
    %3193 = vrot.lane.b32.xlu0 %v3185, 125
    %v3194 = vpop.permute.xlu0 %3193
    %3195 = vrot.lane.b32.xlu0 %v3186, 125
    %v3196 = vpop.permute.xlu0 %3195
    %3197 = vrot.lane.b32.xlu0 %v3187, 125
    %v3198 = vpop.permute.xlu0 %3197
    %3199 = vrot.lane.b32.xlu0 %v3188, 125
    %v3200 = vpop.permute.xlu0 %3199
    %v3205 = vadd.f32 %v3179, %v3194
    %v3206 = vadd.f32 %v3180, %v3196
    %v3207 = vadd.f32 %v3181, %v3198
    %v3208 = vadd.f32 %v3182, %v3200
    %s3209 = sld [smem:[#allocation7 + $0x58]]
    %v3210 = vstv %s3209
    %v3211 = vmul.f32 %v3210, %v2465
    %v3212 = vmul.f32 %v3210, %v2466
    %v3213 = vmul.f32 %v3210, %v2467
    %v3214 = vmul.f32 %v3210, %v2468
    %3219 = vrot.lane.b32.xlu0 %v3211, 125
    %v3220 = vpop.permute.xlu0 %3219
    %3221 = vrot.lane.b32.xlu0 %v3212, 125
    %v3222 = vpop.permute.xlu0 %3221
    %3223 = vrot.lane.b32.xlu0 %v3213, 125
    %v3224 = vpop.permute.xlu0 %3223
    %3225 = vrot.lane.b32.xlu0 %v3214, 125
    %v3226 = vpop.permute.xlu0 %3225
    %v3231 = vadd.f32 %v3005, %v3220
    %v3232 = vadd.f32 %v3006, %v3222
    %v3233 = vadd.f32 %v3007, %v3224
    %v3234 = vadd.f32 %v3008, %v3226
    %s3235 = sld [smem:[#allocation7 + $0x71]]
    %v3236 = vstv %s3235
    %v3237 = vmul.f32 %v3236, %v2469
    %v3238 = vmul.f32 %v3236, %v2470
    %v3239 = vmul.f32 %v3236, %v2471
    %v3240 = vmul.f32 %v3236, %v2472
    %3245 = vrot.lane.b32.xlu0 %v3237, 125
    %v3246 = vpop.permute.xlu0 %3245
    %3247 = vrot.lane.b32.xlu0 %v3238, 125
    %v3248 = vpop.permute.xlu0 %3247
    %3249 = vrot.lane.b32.xlu0 %v3239, 125
    %v3250 = vpop.permute.xlu0 %3249
    %3251 = vrot.lane.b32.xlu0 %v3240, 125
    %v3252 = vpop.permute.xlu0 %3251
    %v3257 = vadd.f32 %v3231, %v3246
    %v3258 = vadd.f32 %v3232, %v3248
    %v3259 = vadd.f32 %v3233, %v3250
    %v3260 = vadd.f32 %v3234, %v3252
    %s3261 = sld [smem:[#allocation7 + $0x8a]]
    %v3262 = vstv %s3261
    %v3263 = vmul.f32 %v3262, %v2473
    %v3264 = vmul.f32 %v3262, %v2474
    %v3265 = vmul.f32 %v3262, %v2475
    %v3266 = vmul.f32 %v3262, %v2476
    %3271 = vrot.lane.b32.xlu0 %v3263, 125
    %v3272 = vpop.permute.xlu0 %3271
    %3273 = vrot.lane.b32.xlu0 %v3264, 125
    %v3274 = vpop.permute.xlu0 %3273
    %3275 = vrot.lane.b32.xlu0 %v3265, 125
    %v3276 = vpop.permute.xlu0 %3275
    %3277 = vrot.lane.b32.xlu0 %v3266, 125
    %v3278 = vpop.permute.xlu0 %3277
    %v3283 = vadd.f32 %v3257, %v3272
    %v3284 = vadd.f32 %v3258, %v3274
    %v3285 = vadd.f32 %v3259, %v3276
    %v3286 = vadd.f32 %v3260, %v3278
    %s3287 = sld [smem:[#allocation7 + $0xa3]]
    %v3288 = vstv %s3287
    %v3289 = vmul.f32 %v3288, %v2465
    %v3290 = vmul.f32 %v3288, %v2466
    %v3291 = vmul.f32 %v3288, %v2467
    %v3292 = vmul.f32 %v3288, %v2468
    %3297 = vrot.lane.b32.xlu0 %v3289, 125
    %v3298 = vpop.permute.xlu0 %3297
    %3299 = vrot.lane.b32.xlu0 %v3290, 125
    %v3300 = vpop.permute.xlu0 %3299
    %3301 = vrot.lane.b32.xlu0 %v3291, 125
    %v3302 = vpop.permute.xlu0 %3301
    %3303 = vrot.lane.b32.xlu0 %v3292, 125
    %v3304 = vpop.permute.xlu0 %3303
    %v3309 = vadd.f32 %v3083, %v3298
    %v3310 = vadd.f32 %v3084, %v3300
    %v3311 = vadd.f32 %v3085, %v3302
    %v3312 = vadd.f32 %v3086, %v3304
    %s3313 = sld [smem:[#allocation7 + $0xbc]]
    %v3314 = vstv %s3313
    %v3315 = vmul.f32 %v3314, %v2469
    %v3316 = vmul.f32 %v3314, %v2470
    %v3317 = vmul.f32 %v3314, %v2471
    %v3318 = vmul.f32 %v3314, %v2472
    %3323 = vrot.lane.b32.xlu0 %v3315, 125
    %v3324 = vpop.permute.xlu0 %3323
    %3325 = vrot.lane.b32.xlu0 %v3316, 125
    %v3326 = vpop.permute.xlu0 %3325
    %3327 = vrot.lane.b32.xlu0 %v3317, 125
    %v3328 = vpop.permute.xlu0 %3327
    %3329 = vrot.lane.b32.xlu0 %v3318, 125
    %v3330 = vpop.permute.xlu0 %3329
    %v3335 = vadd.f32 %v3309, %v3324
    %v3336 = vadd.f32 %v3310, %v3326
    %v3337 = vadd.f32 %v3311, %v3328
    %v3338 = vadd.f32 %v3312, %v3330
    %s3339 = sld [smem:[#allocation7 + $0xd5]]
    %v3340 = vstv %s3339
    %v3341 = vmul.f32 %v3340, %v2473
    %v3342 = vmul.f32 %v3340, %v2474
    %v3343 = vmul.f32 %v3340, %v2475
    %v3344 = vmul.f32 %v3340, %v2476
    %3349 = vrot.lane.b32.xlu0 %v3341, 125
    %v3350 = vpop.permute.xlu0 %3349
    %3351 = vrot.lane.b32.xlu0 %v3342, 125
    %v3352 = vpop.permute.xlu0 %3351
    %3353 = vrot.lane.b32.xlu0 %v3343, 125
    %v3354 = vpop.permute.xlu0 %3353
    %3355 = vrot.lane.b32.xlu0 %v3344, 125
    %v3356 = vpop.permute.xlu0 %3355
    %v3361 = vadd.f32 %v3335, %v3350
    %v3362 = vadd.f32 %v3336, %v3352
    %v3363 = vadd.f32 %v3337, %v3354
    %v3364 = vadd.f32 %v3338, %v3356
    %3369 = vrot.lane.b32.xlu0 %v2817, 126
    %v3370 = vpop.permute.xlu0 %3369
    %3371 = vrot.lane.b32.xlu0 %v2818, 126
    %v3372 = vpop.permute.xlu0 %3371
    %3373 = vrot.lane.b32.xlu0 %v2819, 126
    %v3374 = vpop.permute.xlu0 %3373
    %3375 = vrot.lane.b32.xlu0 %v2820, 126
    %v3376 = vpop.permute.xlu0 %3375
    %v3381 = vadd.f32 %v3107, %v3370
    %v3382 = vadd.f32 %v3108, %v3372
    %v3383 = vadd.f32 %v3109, %v3374
    %v3384 = vadd.f32 %v3110, %v3376
    %3385 = vrot.lane.b32.xlu0 %v2825, 125
    %v3386 = vpop.permute.xlu0 %3385
    %3387 = vrot.lane.b32.xlu0 %v2826, 125
    %v3388 = vpop.permute.xlu0 %3387
    %3389 = vrot.lane.b32.xlu0 %v2827, 125
    %v3390 = vpop.permute.xlu0 %3389
    %3391 = vrot.lane.b32.xlu0 %v2828, 125
    %v3392 = vpop.permute.xlu0 %3391
    %v3397 = vadd.f32 %v3123, %v3386
    %v3398 = vadd.f32 %v3124, %v3388
    %v3399 = vadd.f32 %v3125, %v3390
    %v3400 = vadd.f32 %v3126, %v3392
    %v3401 = vadd.f32 %v3127, %v3370
    %v3402 = vadd.f32 %v3128, %v3372
    %v3403 = vadd.f32 %v3129, %v3374
    %v3404 = vadd.f32 %v3130, %v3376
    %s3405 = sld [smem:[#allocation7 + $0xe]]
    %v3406 = vstv %s3405
    %v3407 = vmul.f32 %v3406, %v2465
    %v3408 = vmul.f32 %v3406, %v2466
    %v3409 = vmul.f32 %v3406, %v2467
    %v3410 = vmul.f32 %v3406, %v2468
    %3415 = vrot.lane.b32.xlu0 %v3407, 124
    %v3416 = vpop.permute.xlu0 %3415
    %3417 = vrot.lane.b32.xlu0 %v3408, 124
    %v3418 = vpop.permute.xlu0 %3417
    %3419 = vrot.lane.b32.xlu0 %v3409, 124
    %v3420 = vpop.permute.xlu0 %3419
    %3421 = vrot.lane.b32.xlu0 %v3410, 124
    %v3422 = vpop.permute.xlu0 %3421
    %v3427 = vadd.f32 %v3205, %v3416
    %v3428 = vadd.f32 %v3206, %v3418
    %v3429 = vadd.f32 %v3207, %v3420
    %v3430 = vadd.f32 %v3208, %v3422
    %s3431 = sld [smem:[#allocation7 + $0x27]]
    %v3432 = vstv %s3431
    %v3433 = vmul.f32 %v3432, %v2469
    %v3434 = vmul.f32 %v3432, %v2470
    %v3435 = vmul.f32 %v3432, %v2471
    %v3436 = vmul.f32 %v3432, %v2472
    %3441 = vrot.lane.b32.xlu0 %v3433, 124
    %v3442 = vpop.permute.xlu0 %3441
    %3443 = vrot.lane.b32.xlu0 %v3434, 124
    %v3444 = vpop.permute.xlu0 %3443
    %3445 = vrot.lane.b32.xlu0 %v3435, 124
    %v3446 = vpop.permute.xlu0 %3445
    %3447 = vrot.lane.b32.xlu0 %v3436, 124
    %v3448 = vpop.permute.xlu0 %3447
    %v3453 = vadd.f32 %v3427, %v3442
    %v3454 = vadd.f32 %v3428, %v3444
    %v3455 = vadd.f32 %v3429, %v3446
    %v3456 = vadd.f32 %v3430, %v3448
    %s3457 = sld [smem:[#allocation7 + $0x40]]
    %v3458 = vstv %s3457
    %v3459 = vmul.f32 %v3458, %v2473
    %v3460 = vmul.f32 %v3458, %v2474
    %v3461 = vmul.f32 %v3458, %v2475
    %v3462 = vmul.f32 %v3458, %v2476
    %3467 = vrot.lane.b32.xlu0 %v3459, 124
    %v3468 = vpop.permute.xlu0 %3467
    %3469 = vrot.lane.b32.xlu0 %v3460, 124
    %v3470 = vpop.permute.xlu0 %3469
    %3471 = vrot.lane.b32.xlu0 %v3461, 124
    %v3472 = vpop.permute.xlu0 %3471
    %3473 = vrot.lane.b32.xlu0 %v3462, 124
    %v3474 = vpop.permute.xlu0 %3473
    %v3479 = vadd.f32 %v3453, %v3468
    %v3480 = vadd.f32 %v3454, %v3470
    %v3481 = vadd.f32 %v3455, %v3472
    %v3482 = vadd.f32 %v3456, %v3474
    %s3483 = sld [smem:[#allocation7 + $0x59]]
    %v3484 = vstv %s3483
    %v3485 = vmul.f32 %v3484, %v2465
    %v3486 = vmul.f32 %v3484, %v2466
    %v3487 = vmul.f32 %v3484, %v2467
    %v3488 = vmul.f32 %v3484, %v2468
    %3493 = vrot.lane.b32.xlu0 %v3485, 124
    %v3494 = vpop.permute.xlu0 %3493
    %3495 = vrot.lane.b32.xlu0 %v3486, 124
    %v3496 = vpop.permute.xlu0 %3495
    %3497 = vrot.lane.b32.xlu0 %v3487, 124
    %v3498 = vpop.permute.xlu0 %3497
    %3499 = vrot.lane.b32.xlu0 %v3488, 124
    %v3500 = vpop.permute.xlu0 %3499
    %v3505 = vadd.f32 %v3283, %v3494
    %v3506 = vadd.f32 %v3284, %v3496
    %v3507 = vadd.f32 %v3285, %v3498
    %v3508 = vadd.f32 %v3286, %v3500
    %s3509 = sld [smem:[#allocation7 + $0x72]]
    %v3510 = vstv %s3509
    %v3511 = vmul.f32 %v3510, %v2469
    %v3512 = vmul.f32 %v3510, %v2470
    %v3513 = vmul.f32 %v3510, %v2471
    %v3514 = vmul.f32 %v3510, %v2472
    %3519 = vrot.lane.b32.xlu0 %v3511, 124
    %v3520 = vpop.permute.xlu0 %3519
    %3521 = vrot.lane.b32.xlu0 %v3512, 124
    %v3522 = vpop.permute.xlu0 %3521
    %3523 = vrot.lane.b32.xlu0 %v3513, 124
    %v3524 = vpop.permute.xlu0 %3523
    %3525 = vrot.lane.b32.xlu0 %v3514, 124
    %v3526 = vpop.permute.xlu0 %3525
    %v3531 = vadd.f32 %v3505, %v3520
    %v3532 = vadd.f32 %v3506, %v3522
    %v3533 = vadd.f32 %v3507, %v3524
    %v3534 = vadd.f32 %v3508, %v3526
    %s3535 = sld [smem:[#allocation7 + $0x8b]]
    %v3536 = vstv %s3535
    %v3537 = vmul.f32 %v3536, %v2473
    %v3538 = vmul.f32 %v3536, %v2474
    %v3539 = vmul.f32 %v3536, %v2475
    %v3540 = vmul.f32 %v3536, %v2476
    %3545 = vrot.lane.b32.xlu0 %v3537, 124
    %v3546 = vpop.permute.xlu0 %3545
    %3547 = vrot.lane.b32.xlu0 %v3538, 124
    %v3548 = vpop.permute.xlu0 %3547
    %3549 = vrot.lane.b32.xlu0 %v3539, 124
    %v3550 = vpop.permute.xlu0 %3549
    %3551 = vrot.lane.b32.xlu0 %v3540, 124
    %v3552 = vpop.permute.xlu0 %3551
    %v3557 = vadd.f32 %v3531, %v3546
    %v3558 = vadd.f32 %v3532, %v3548
    %v3559 = vadd.f32 %v3533, %v3550
    %v3560 = vadd.f32 %v3534, %v3552
    %s3561 = sld [smem:[#allocation7 + $0xa4]]
    %v3562 = vstv %s3561
    %v3563 = vmul.f32 %v3562, %v2465
    %v3564 = vmul.f32 %v3562, %v2466
    %v3565 = vmul.f32 %v3562, %v2467
    %v3566 = vmul.f32 %v3562, %v2468
    %3571 = vrot.lane.b32.xlu0 %v3563, 124
    %v3572 = vpop.permute.xlu0 %3571
    %3573 = vrot.lane.b32.xlu0 %v3564, 124
    %v3574 = vpop.permute.xlu0 %3573
    %3575 = vrot.lane.b32.xlu0 %v3565, 124
    %v3576 = vpop.permute.xlu0 %3575
    %3577 = vrot.lane.b32.xlu0 %v3566, 124
    %v3578 = vpop.permute.xlu0 %3577
    %v3583 = vadd.f32 %v3361, %v3572
    %v3584 = vadd.f32 %v3362, %v3574
    %v3585 = vadd.f32 %v3363, %v3576
    %v3586 = vadd.f32 %v3364, %v3578
    %s3587 = sld [smem:[#allocation7 + $0xbd]]
    %v3588 = vstv %s3587
    %v3589 = vmul.f32 %v3588, %v2469
    %v3590 = vmul.f32 %v3588, %v2470
    %v3591 = vmul.f32 %v3588, %v2471
    %v3592 = vmul.f32 %v3588, %v2472
    %3597 = vrot.lane.b32.xlu0 %v3589, 124
    %v3598 = vpop.permute.xlu0 %3597
    %3599 = vrot.lane.b32.xlu0 %v3590, 124
    %v3600 = vpop.permute.xlu0 %3599
    %3601 = vrot.lane.b32.xlu0 %v3591, 124
    %v3602 = vpop.permute.xlu0 %3601
    %3603 = vrot.lane.b32.xlu0 %v3592, 124
    %v3604 = vpop.permute.xlu0 %3603
    %v3609 = vadd.f32 %v3583, %v3598
    %v3610 = vadd.f32 %v3584, %v3600
    %v3611 = vadd.f32 %v3585, %v3602
    %v3612 = vadd.f32 %v3586, %v3604
    %s3613 = sld [smem:[#allocation7 + $0xd6]]
    %v3614 = vstv %s3613
    %v3615 = vmul.f32 %v3614, %v2473
    %v3616 = vmul.f32 %v3614, %v2474
    %v3617 = vmul.f32 %v3614, %v2475
    %v3618 = vmul.f32 %v3614, %v2476
    %3623 = vrot.lane.b32.xlu0 %v3615, 124
    %v3624 = vpop.permute.xlu0 %3623
    %3625 = vrot.lane.b32.xlu0 %v3616, 124
    %v3626 = vpop.permute.xlu0 %3625
    %3627 = vrot.lane.b32.xlu0 %v3617, 124
    %v3628 = vpop.permute.xlu0 %3627
    %3629 = vrot.lane.b32.xlu0 %v3618, 124
    %v3630 = vpop.permute.xlu0 %3629
    %v3635 = vadd.f32 %v3609, %v3624
    %v3636 = vadd.f32 %v3610, %v3626
    %v3637 = vadd.f32 %v3611, %v3628
    %v3638 = vadd.f32 %v3612, %v3630
    %3643 = vrot.lane.b32.xlu0 %v2575, 124
    %v3644 = vpop.permute.xlu0 %3643
    %3645 = vrot.lane.b32.xlu0 %v2576, 124
    %v3646 = vpop.permute.xlu0 %3645
    %3647 = vrot.lane.b32.xlu0 %v2577, 124
    %v3648 = vpop.permute.xlu0 %3647
    %3649 = vrot.lane.b32.xlu0 %v2578, 124
    %v3650 = vpop.permute.xlu0 %3649
    %v3655 = vadd.f32 %v3397, %v3644
    %v3656 = vadd.f32 %v3398, %v3646
    %v3657 = vadd.f32 %v3399, %v3648
    %v3658 = vadd.f32 %v3400, %v3650
    %v3659 = vld [vmem:[#allocation2 + $0x3] sm:$0xff]
    %v3660 = vld [vmem:[#allocation2 + $0xb] sm:$0xff]
    %v3661 = vld [vmem:[#allocation2 + $0x4b] sm:$0xff]
    %v3662 = vld [vmem:[#allocation2 + $0x53] sm:$0xff]
    %v3663 = vld [vmem:[%s139 + $0x3] sm:$0xff]
    %v3664 = vld [vmem:[%s139 + $0xb] sm:$0xff]
    %v3665 = vld [vmem:[%s139 + $0x4b] sm:$0xff]
    %v3666 = vld [vmem:[%s139 + $0x53] sm:$0xff]
    %v3667 = vld [vmem:[%s144 + $0x3] sm:$0xff]
    %v3668 = vld [vmem:[%s144 + $0xb] sm:$0xff]
    %v3669 = vld [vmem:[%s144 + $0x4b] sm:$0xff]
    %v3670 = vld [vmem:[%s144 + $0x53] sm:$0xff]
    %v3671 = vadd.f32 %v3659, %v3663
    %v3672 = vadd.f32 %v3660, %v3664
    %v3673 = vadd.f32 %v3661, %v3665
    %v3674 = vadd.f32 %v3662, %v3666
    %v3675 = vadd.f32 %v3671, %v3667
    %v3676 = vadd.f32 %v3672, %v3668
    %v3677 = vadd.f32 %v3673, %v3669
    %v3678 = vadd.f32 %v3674, %v3670
    %s3679 = sld [smem:[#allocation7 + $0xf]]
    %v3680 = vstv %s3679
    %v3681 = vmul.f32 %v3680, %v3659
    %v3682 = vmul.f32 %v3680, %v3660
    %v3683 = vmul.f32 %v3680, %v3661
    %v3684 = vmul.f32 %v3680, %v3662
    %v3685 = vadd.f32 %v3479, %v3681
    %v3686 = vadd.f32 %v3480, %v3682
    %v3687 = vadd.f32 %v3481, %v3683
    %v3688 = vadd.f32 %v3482, %v3684
    %s3689 = sld [smem:[#allocation7 + $0x28]]
    %v3690 = vstv %s3689
    %v3691 = vmul.f32 %v3690, %v3663
    %v3692 = vmul.f32 %v3690, %v3664
    %v3693 = vmul.f32 %v3690, %v3665
    %v3694 = vmul.f32 %v3690, %v3666
    %v3695 = vadd.f32 %v3685, %v3691
    %v3696 = vadd.f32 %v3686, %v3692
    %v3697 = vadd.f32 %v3687, %v3693
    %v3698 = vadd.f32 %v3688, %v3694
    %s3699 = sld [smem:[#allocation7 + $0x41]]
    %v3700 = vstv %s3699
    %v3701 = vmul.f32 %v3700, %v3667
    %v3702 = vmul.f32 %v3700, %v3668
    %v3703 = vmul.f32 %v3700, %v3669
    %v3704 = vmul.f32 %v3700, %v3670
    %v3705 = vadd.f32 %v3695, %v3701
    %v3706 = vadd.f32 %v3696, %v3702
    %v3707 = vadd.f32 %v3697, %v3703
    %v3708 = vadd.f32 %v3698, %v3704
    %s3709 = sld [smem:[#allocation7 + $0x5a]]
    %v3710 = vstv %s3709
    %v3711 = vmul.f32 %v3710, %v3659
    %v3712 = vmul.f32 %v3710, %v3660
    %v3713 = vmul.f32 %v3710, %v3661
    %v3714 = vmul.f32 %v3710, %v3662
    %v3715 = vadd.f32 %v3557, %v3711
    %v3716 = vadd.f32 %v3558, %v3712
    %v3717 = vadd.f32 %v3559, %v3713
    %v3718 = vadd.f32 %v3560, %v3714
    %s3719 = sld [smem:[#allocation7 + $0x73]]
    %v3720 = vstv %s3719
    %v3721 = vmul.f32 %v3720, %v3663
    %v3722 = vmul.f32 %v3720, %v3664
    %v3723 = vmul.f32 %v3720, %v3665
    %v3724 = vmul.f32 %v3720, %v3666
    %v3725 = vadd.f32 %v3715, %v3721
    %v3726 = vadd.f32 %v3716, %v3722
    %v3727 = vadd.f32 %v3717, %v3723
    %v3728 = vadd.f32 %v3718, %v3724
    %s3729 = sld [smem:[#allocation7 + $0x8c]]
    %v3730 = vstv %s3729
    %v3731 = vmul.f32 %v3730, %v3667
    %v3732 = vmul.f32 %v3730, %v3668
    %v3733 = vmul.f32 %v3730, %v3669
    %v3734 = vmul.f32 %v3730, %v3670
    %v3735 = vadd.f32 %v3725, %v3731
    %v3736 = vadd.f32 %v3726, %v3732
    %v3737 = vadd.f32 %v3727, %v3733
    %v3738 = vadd.f32 %v3728, %v3734
    %s3739 = sld [smem:[#allocation7 + $0xa5]]
    %v3740 = vstv %s3739
    %v3741 = vmul.f32 %v3740, %v3659
    %v3742 = vmul.f32 %v3740, %v3660
    %v3743 = vmul.f32 %v3740, %v3661
    %v3744 = vmul.f32 %v3740, %v3662
    %v3745 = vadd.f32 %v3635, %v3741
    %v3746 = vadd.f32 %v3636, %v3742
    %v3747 = vadd.f32 %v3637, %v3743
    %v3748 = vadd.f32 %v3638, %v3744
    %s3749 = sld [smem:[#allocation7 + $0xbe]]
    %v3750 = vstv %s3749
    %v3751 = vmul.f32 %v3750, %v3663
    %v3752 = vmul.f32 %v3750, %v3664
    %v3753 = vmul.f32 %v3750, %v3665
    %v3754 = vmul.f32 %v3750, %v3666
    %v3755 = vadd.f32 %v3745, %v3751
    %v3756 = vadd.f32 %v3746, %v3752
    %v3757 = vadd.f32 %v3747, %v3753
    %v3758 = vadd.f32 %v3748, %v3754
    %s3759 = sld [smem:[#allocation7 + $0xd7]]
    %v3760 = vstv %s3759
    %v3761 = vmul.f32 %v3760, %v3667
    %v3762 = vmul.f32 %v3760, %v3668
    %v3763 = vmul.f32 %v3760, %v3669
    %v3764 = vmul.f32 %v3760, %v3670
    %v3765 = vadd.f32 %v3755, %v3761
    %v3766 = vadd.f32 %v3756, %v3762
    %v3767 = vadd.f32 %v3757, %v3763
    %v3768 = vadd.f32 %v3758, %v3764
    %v3769 = vmul.f32 %v3675, 0.16666667
    %v3770 = vmul.f32 %v3676, 0.16666667
    %v3771 = vmul.f32 %v3677, 0.16666667
    %v3772 = vmul.f32 %v3678, 0.16666667
    %v3773 = vadd.f32 %v3655, %v3769
    %v3774 = vadd.f32 %v3656, %v3770
    %v3775 = vadd.f32 %v3657, %v3771
    %v3776 = vadd.f32 %v3658, %v3772
    %s3777 = sld [smem:[#allocation7 + $0x10]]
    %v3778 = vstv %s3777
    %v3779 = vmul.f32 %v3778, %v3659
    %v3780 = vmul.f32 %v3778, %v3660
    %v3781 = vmul.f32 %v3778, %v3661
    %v3782 = vmul.f32 %v3778, %v3662
    %3787 = vrot.lane.b32.xlu0 %v3779, 127
    %v3788 = vpop.permute.xlu0 %3787
    %3789 = vrot.lane.b32.xlu0 %v3780, 127
    %v3790 = vpop.permute.xlu0 %3789
    %3791 = vrot.lane.b32.xlu0 %v3781, 127
    %v3792 = vpop.permute.xlu0 %3791
    %3793 = vrot.lane.b32.xlu0 %v3782, 127
    %v3794 = vpop.permute.xlu0 %3793
    %v3799 = vadd.f32 %v3705, %v3788
    %v3800 = vadd.f32 %v3706, %v3790
    %v3801 = vadd.f32 %v3707, %v3792
    %v3802 = vadd.f32 %v3708, %v3794
    %s3803 = sld [smem:[#allocation7 + $0x29]]
    %v3804 = vstv %s3803
    %v3805 = vmul.f32 %v3804, %v3663
    %v3806 = vmul.f32 %v3804, %v3664
    %v3807 = vmul.f32 %v3804, %v3665
    %v3808 = vmul.f32 %v3804, %v3666
    %3813 = vrot.lane.b32.xlu0 %v3805, 127
    %v3814 = vpop.permute.xlu0 %3813
    %3815 = vrot.lane.b32.xlu0 %v3806, 127
    %v3816 = vpop.permute.xlu0 %3815
    %3817 = vrot.lane.b32.xlu0 %v3807, 127
    %v3818 = vpop.permute.xlu0 %3817
    %3819 = vrot.lane.b32.xlu0 %v3808, 127
    %v3820 = vpop.permute.xlu0 %3819
    %v3825 = vadd.f32 %v3799, %v3814
    %v3826 = vadd.f32 %v3800, %v3816
    %v3827 = vadd.f32 %v3801, %v3818
    %v3828 = vadd.f32 %v3802, %v3820
    %s3829 = sld [smem:[#allocation7 + $0x42]]
    %v3830 = vstv %s3829
    %v3831 = vmul.f32 %v3830, %v3667
    %v3832 = vmul.f32 %v3830, %v3668
    %v3833 = vmul.f32 %v3830, %v3669
    %v3834 = vmul.f32 %v3830, %v3670
    %3839 = vrot.lane.b32.xlu0 %v3831, 127
    %v3840 = vpop.permute.xlu0 %3839
    %3841 = vrot.lane.b32.xlu0 %v3832, 127
    %v3842 = vpop.permute.xlu0 %3841
    %3843 = vrot.lane.b32.xlu0 %v3833, 127
    %v3844 = vpop.permute.xlu0 %3843
    %3845 = vrot.lane.b32.xlu0 %v3834, 127
    %v3846 = vpop.permute.xlu0 %3845
    %v3851 = vadd.f32 %v3825, %v3840
    %v3852 = vadd.f32 %v3826, %v3842
    %v3853 = vadd.f32 %v3827, %v3844
    %v3854 = vadd.f32 %v3828, %v3846
    %s3855 = sld [smem:[#allocation7 + $0x5b]]
    %v3856 = vstv %s3855
    %v3857 = vmul.f32 %v3856, %v3659
    %v3858 = vmul.f32 %v3856, %v3660
    %v3859 = vmul.f32 %v3856, %v3661
    %v3860 = vmul.f32 %v3856, %v3662
    %3865 = vrot.lane.b32.xlu0 %v3857, 127
    %v3866 = vpop.permute.xlu0 %3865
    %3867 = vrot.lane.b32.xlu0 %v3858, 127
    %v3868 = vpop.permute.xlu0 %3867
    %3869 = vrot.lane.b32.xlu0 %v3859, 127
    %v3870 = vpop.permute.xlu0 %3869
    %3871 = vrot.lane.b32.xlu0 %v3860, 127
    %v3872 = vpop.permute.xlu0 %3871
    %v3877 = vadd.f32 %v3735, %v3866
    %v3878 = vadd.f32 %v3736, %v3868
    %v3879 = vadd.f32 %v3737, %v3870
    %v3880 = vadd.f32 %v3738, %v3872
    %s3881 = sld [smem:[#allocation7 + $0x74]]
    %v3882 = vstv %s3881
    %v3883 = vmul.f32 %v3882, %v3663
    %v3884 = vmul.f32 %v3882, %v3664
    %v3885 = vmul.f32 %v3882, %v3665
    %v3886 = vmul.f32 %v3882, %v3666
    %3891 = vrot.lane.b32.xlu0 %v3883, 127
    %v3892 = vpop.permute.xlu0 %3891
    %3893 = vrot.lane.b32.xlu0 %v3884, 127
    %v3894 = vpop.permute.xlu0 %3893
    %3895 = vrot.lane.b32.xlu0 %v3885, 127
    %v3896 = vpop.permute.xlu0 %3895
    %3897 = vrot.lane.b32.xlu0 %v3886, 127
    %v3898 = vpop.permute.xlu0 %3897
    %v3903 = vadd.f32 %v3877, %v3892
    %v3904 = vadd.f32 %v3878, %v3894
    %v3905 = vadd.f32 %v3879, %v3896
    %v3906 = vadd.f32 %v3880, %v3898
    %s3907 = sld [smem:[#allocation7 + $0x8d]]
    %v3908 = vstv %s3907
    %v3909 = vmul.f32 %v3908, %v3667
    %v3910 = vmul.f32 %v3908, %v3668
    %v3911 = vmul.f32 %v3908, %v3669
    %v3912 = vmul.f32 %v3908, %v3670
    %3917 = vrot.lane.b32.xlu0 %v3909, 127
    %v3918 = vpop.permute.xlu0 %3917
    %3919 = vrot.lane.b32.xlu0 %v3910, 127
    %v3920 = vpop.permute.xlu0 %3919
    %3921 = vrot.lane.b32.xlu0 %v3911, 127
    %v3922 = vpop.permute.xlu0 %3921
    %3923 = vrot.lane.b32.xlu0 %v3912, 127
    %v3924 = vpop.permute.xlu0 %3923
    %v3929 = vadd.f32 %v3903, %v3918
    %v3930 = vadd.f32 %v3904, %v3920
    %v3931 = vadd.f32 %v3905, %v3922
    %v3932 = vadd.f32 %v3906, %v3924
    %s3933 = sld [smem:[#allocation7 + $0xa6]]
    %v3934 = vstv %s3933
    %v3935 = vmul.f32 %v3934, %v3659
    %v3936 = vmul.f32 %v3934, %v3660
    %v3937 = vmul.f32 %v3934, %v3661
    %v3938 = vmul.f32 %v3934, %v3662
    %3943 = vrot.lane.b32.xlu0 %v3935, 127
    %v3944 = vpop.permute.xlu0 %3943
    %3945 = vrot.lane.b32.xlu0 %v3936, 127
    %v3946 = vpop.permute.xlu0 %3945
    %3947 = vrot.lane.b32.xlu0 %v3937, 127
    %v3948 = vpop.permute.xlu0 %3947
    %3949 = vrot.lane.b32.xlu0 %v3938, 127
    %v3950 = vpop.permute.xlu0 %3949
    %v3955 = vadd.f32 %v3765, %v3944
    %v3956 = vadd.f32 %v3766, %v3946
    %v3957 = vadd.f32 %v3767, %v3948
    %v3958 = vadd.f32 %v3768, %v3950
    %s3959 = sld [smem:[#allocation7 + $0xbf]]
    %v3960 = vstv %s3959
    %v3961 = vmul.f32 %v3960, %v3663
    %v3962 = vmul.f32 %v3960, %v3664
    %v3963 = vmul.f32 %v3960, %v3665
    %v3964 = vmul.f32 %v3960, %v3666
    %3969 = vrot.lane.b32.xlu0 %v3961, 127
    %v3970 = vpop.permute.xlu0 %3969
    %3971 = vrot.lane.b32.xlu0 %v3962, 127
    %v3972 = vpop.permute.xlu0 %3971
    %3973 = vrot.lane.b32.xlu0 %v3963, 127
    %v3974 = vpop.permute.xlu0 %3973
    %3975 = vrot.lane.b32.xlu0 %v3964, 127
    %v3976 = vpop.permute.xlu0 %3975
    %v3981 = vadd.f32 %v3955, %v3970
    %v3982 = vadd.f32 %v3956, %v3972
    %v3983 = vadd.f32 %v3957, %v3974
    %v3984 = vadd.f32 %v3958, %v3976
    %s3985 = sld [smem:[#allocation7 + $0xd8]]
    %v3986 = vstv %s3985
    %v3987 = vmul.f32 %v3986, %v3667
    %v3988 = vmul.f32 %v3986, %v3668
    %v3989 = vmul.f32 %v3986, %v3669
    %v3990 = vmul.f32 %v3986, %v3670
    %3995 = vrot.lane.b32.xlu0 %v3987, 127
    %v3996 = vpop.permute.xlu0 %3995
    %3997 = vrot.lane.b32.xlu0 %v3988, 127
    %v3998 = vpop.permute.xlu0 %3997
    %3999 = vrot.lane.b32.xlu0 %v3989, 127
    %v4000 = vpop.permute.xlu0 %3999
    %4001 = vrot.lane.b32.xlu0 %v3990, 127
    %v4002 = vpop.permute.xlu0 %4001
    %v4007 = vadd.f32 %v3981, %v3996
    %v4008 = vadd.f32 %v3982, %v3998
    %v4009 = vadd.f32 %v3983, %v4000
    %v4010 = vadd.f32 %v3984, %v4002
    %v4011 = vmul.f32 %v3675, -0.25
    %v4012 = vmul.f32 %v3676, -0.25
    %v4013 = vmul.f32 %v3677, -0.25
    %v4014 = vmul.f32 %v3678, -0.25
    %v4015 = vadd.f32 %v3381, %v4011
    %v4016 = vadd.f32 %v3382, %v4012
    %v4017 = vadd.f32 %v3383, %v4013
    %v4018 = vadd.f32 %v3384, %v4014
    %v4019 = vmul.f32 %v3675, -0.5
    %v4020 = vmul.f32 %v3676, -0.5
    %v4021 = vmul.f32 %v3677, -0.5
    %v4022 = vmul.f32 %v3678, -0.5
    %4027 = vrot.lane.b32.xlu0 %v4019, 127
    %v4028 = vpop.permute.xlu0 %4027
    %4029 = vrot.lane.b32.xlu0 %v4020, 127
    %v4030 = vpop.permute.xlu0 %4029
    %4031 = vrot.lane.b32.xlu0 %v4021, 127
    %v4032 = vpop.permute.xlu0 %4031
    %4033 = vrot.lane.b32.xlu0 %v4022, 127
    %v4034 = vpop.permute.xlu0 %4033
    %v4039 = vadd.f32 %v3773, %v4028
    %v4040 = vadd.f32 %v3774, %v4030
    %v4041 = vadd.f32 %v3775, %v4032
    %v4042 = vadd.f32 %v3776, %v4034
    %s4043 = sld [smem:[#allocation7 + $0x11]]
    %v4044 = vstv %s4043
    %v4045 = vmul.f32 %v4044, %v3659
    %v4046 = vmul.f32 %v4044, %v3660
    %v4047 = vmul.f32 %v4044, %v3661
    %v4048 = vmul.f32 %v4044, %v3662
    %4053 = vrot.lane.b32.xlu0 %v4045, 126
    %v4054 = vpop.permute.xlu0 %4053
    %4055 = vrot.lane.b32.xlu0 %v4046, 126
    %v4056 = vpop.permute.xlu0 %4055
    %4057 = vrot.lane.b32.xlu0 %v4047, 126
    %v4058 = vpop.permute.xlu0 %4057
    %4059 = vrot.lane.b32.xlu0 %v4048, 126
    %v4060 = vpop.permute.xlu0 %4059
    %v4065 = vadd.f32 %v3851, %v4054
    %v4066 = vadd.f32 %v3852, %v4056
    %v4067 = vadd.f32 %v3853, %v4058
    %v4068 = vadd.f32 %v3854, %v4060
    %s4069 = sld [smem:[#allocation7 + $0x2a]]
    %v4070 = vstv %s4069
    %v4071 = vmul.f32 %v4070, %v3663
    %v4072 = vmul.f32 %v4070, %v3664
    %v4073 = vmul.f32 %v4070, %v3665
    %v4074 = vmul.f32 %v4070, %v3666
    %4079 = vrot.lane.b32.xlu0 %v4071, 126
    %v4080 = vpop.permute.xlu0 %4079
    %4081 = vrot.lane.b32.xlu0 %v4072, 126
    %v4082 = vpop.permute.xlu0 %4081
    %4083 = vrot.lane.b32.xlu0 %v4073, 126
    %v4084 = vpop.permute.xlu0 %4083
    %4085 = vrot.lane.b32.xlu0 %v4074, 126
    %v4086 = vpop.permute.xlu0 %4085
    %v4091 = vadd.f32 %v4065, %v4080
    %v4092 = vadd.f32 %v4066, %v4082
    %v4093 = vadd.f32 %v4067, %v4084
    %v4094 = vadd.f32 %v4068, %v4086
    %s4095 = sld [smem:[#allocation7 + $0x43]]
    %v4096 = vstv %s4095
    %v4097 = vmul.f32 %v4096, %v3667
    %v4098 = vmul.f32 %v4096, %v3668
    %v4099 = vmul.f32 %v4096, %v3669
    %v4100 = vmul.f32 %v4096, %v3670
    %4105 = vrot.lane.b32.xlu0 %v4097, 126
    %v4106 = vpop.permute.xlu0 %4105
    %4107 = vrot.lane.b32.xlu0 %v4098, 126
    %v4108 = vpop.permute.xlu0 %4107
    %4109 = vrot.lane.b32.xlu0 %v4099, 126
    %v4110 = vpop.permute.xlu0 %4109
    %4111 = vrot.lane.b32.xlu0 %v4100, 126
    %v4112 = vpop.permute.xlu0 %4111
    %v4117 = vadd.f32 %v4091, %v4106
    %v4118 = vadd.f32 %v4092, %v4108
    %v4119 = vadd.f32 %v4093, %v4110
    %v4120 = vadd.f32 %v4094, %v4112
    %s4121 = sld [smem:[#allocation7 + $0x5c]]
    %v4122 = vstv %s4121
    %v4123 = vmul.f32 %v4122, %v3659
    %v4124 = vmul.f32 %v4122, %v3660
    %v4125 = vmul.f32 %v4122, %v3661
    %v4126 = vmul.f32 %v4122, %v3662
    %4131 = vrot.lane.b32.xlu0 %v4123, 126
    %v4132 = vpop.permute.xlu0 %4131
    %4133 = vrot.lane.b32.xlu0 %v4124, 126
    %v4134 = vpop.permute.xlu0 %4133
    %4135 = vrot.lane.b32.xlu0 %v4125, 126
    %v4136 = vpop.permute.xlu0 %4135
    %4137 = vrot.lane.b32.xlu0 %v4126, 126
    %v4138 = vpop.permute.xlu0 %4137
    %v4143 = vadd.f32 %v3929, %v4132
    %v4144 = vadd.f32 %v3930, %v4134
    %v4145 = vadd.f32 %v3931, %v4136
    %v4146 = vadd.f32 %v3932, %v4138
    %s4147 = sld [smem:[#allocation7 + $0x75]]
    %v4148 = vstv %s4147
    %v4149 = vmul.f32 %v4148, %v3663
    %v4150 = vmul.f32 %v4148, %v3664
    %v4151 = vmul.f32 %v4148, %v3665
    %v4152 = vmul.f32 %v4148, %v3666
    %4157 = vrot.lane.b32.xlu0 %v4149, 126
    %v4158 = vpop.permute.xlu0 %4157
    %4159 = vrot.lane.b32.xlu0 %v4150, 126
    %v4160 = vpop.permute.xlu0 %4159
    %4161 = vrot.lane.b32.xlu0 %v4151, 126
    %v4162 = vpop.permute.xlu0 %4161
    %4163 = vrot.lane.b32.xlu0 %v4152, 126
    %v4164 = vpop.permute.xlu0 %4163
    %v4169 = vadd.f32 %v4143, %v4158
    %v4170 = vadd.f32 %v4144, %v4160
    %v4171 = vadd.f32 %v4145, %v4162
    %v4172 = vadd.f32 %v4146, %v4164
    %s4173 = sld [smem:[#allocation7 + $0x8e]]
    %v4174 = vstv %s4173
    %v4175 = vmul.f32 %v4174, %v3667
    %v4176 = vmul.f32 %v4174, %v3668
    %v4177 = vmul.f32 %v4174, %v3669
    %v4178 = vmul.f32 %v4174, %v3670
    %4183 = vrot.lane.b32.xlu0 %v4175, 126
    %v4184 = vpop.permute.xlu0 %4183
    %4185 = vrot.lane.b32.xlu0 %v4176, 126
    %v4186 = vpop.permute.xlu0 %4185
    %4187 = vrot.lane.b32.xlu0 %v4177, 126
    %v4188 = vpop.permute.xlu0 %4187
    %4189 = vrot.lane.b32.xlu0 %v4178, 126
    %v4190 = vpop.permute.xlu0 %4189
    %v4195 = vadd.f32 %v4169, %v4184
    %v4196 = vadd.f32 %v4170, %v4186
    %v4197 = vadd.f32 %v4171, %v4188
    %v4198 = vadd.f32 %v4172, %v4190
    %s4199 = sld [smem:[#allocation7 + $0xa7]]
    %v4200 = vstv %s4199
    %v4201 = vmul.f32 %v4200, %v3659
    %v4202 = vmul.f32 %v4200, %v3660
    %v4203 = vmul.f32 %v4200, %v3661
    %v4204 = vmul.f32 %v4200, %v3662
    %4209 = vrot.lane.b32.xlu0 %v4201, 126
    %v4210 = vpop.permute.xlu0 %4209
    %4211 = vrot.lane.b32.xlu0 %v4202, 126
    %v4212 = vpop.permute.xlu0 %4211
    %4213 = vrot.lane.b32.xlu0 %v4203, 126
    %v4214 = vpop.permute.xlu0 %4213
    %4215 = vrot.lane.b32.xlu0 %v4204, 126
    %v4216 = vpop.permute.xlu0 %4215
    %v4221 = vadd.f32 %v4007, %v4210
    %v4222 = vadd.f32 %v4008, %v4212
    %v4223 = vadd.f32 %v4009, %v4214
    %v4224 = vadd.f32 %v4010, %v4216
    %s4225 = sld [smem:[#allocation7 + $0xc0]]
    %v4226 = vstv %s4225
    %v4227 = vmul.f32 %v4226, %v3663
    %v4228 = vmul.f32 %v4226, %v3664
    %v4229 = vmul.f32 %v4226, %v3665
    %v4230 = vmul.f32 %v4226, %v3666
    %4235 = vrot.lane.b32.xlu0 %v4227, 126
    %v4236 = vpop.permute.xlu0 %4235
    %4237 = vrot.lane.b32.xlu0 %v4228, 126
    %v4238 = vpop.permute.xlu0 %4237
    %4239 = vrot.lane.b32.xlu0 %v4229, 126
    %v4240 = vpop.permute.xlu0 %4239
    %4241 = vrot.lane.b32.xlu0 %v4230, 126
    %v4242 = vpop.permute.xlu0 %4241
    %v4247 = vadd.f32 %v4221, %v4236
    %v4248 = vadd.f32 %v4222, %v4238
    %v4249 = vadd.f32 %v4223, %v4240
    %v4250 = vadd.f32 %v4224, %v4242
    %s4251 = sld [smem:[#allocation7 + $0xd9]]
    %v4252 = vstv %s4251
    %v4253 = vmul.f32 %v4252, %v3667
    %v4254 = vmul.f32 %v4252, %v3668
    %v4255 = vmul.f32 %v4252, %v3669
    %v4256 = vmul.f32 %v4252, %v3670
    %4261 = vrot.lane.b32.xlu0 %v4253, 126
    %v4262 = vpop.permute.xlu0 %4261
    %4263 = vrot.lane.b32.xlu0 %v4254, 126
    %v4264 = vpop.permute.xlu0 %4263
    %4265 = vrot.lane.b32.xlu0 %v4255, 126
    %v4266 = vpop.permute.xlu0 %4265
    %4267 = vrot.lane.b32.xlu0 %v4256, 126
    %v4268 = vpop.permute.xlu0 %4267
    %v4273 = vadd.f32 %v4247, %v4262
    %v4274 = vadd.f32 %v4248, %v4264
    %v4275 = vadd.f32 %v4249, %v4266
    %v4276 = vadd.f32 %v4250, %v4268
    %v4277 = vmul.f32 %v3675, 0.5
    %v4278 = vmul.f32 %v3676, 0.5
    %v4279 = vmul.f32 %v3677, 0.5
    %v4280 = vmul.f32 %v3678, 0.5
    %4285 = vrot.lane.b32.xlu0 %v4277, 127
    %v4286 = vpop.permute.xlu0 %4285
    %4287 = vrot.lane.b32.xlu0 %v4278, 127
    %v4288 = vpop.permute.xlu0 %4287
    %4289 = vrot.lane.b32.xlu0 %v4279, 127
    %v4290 = vpop.permute.xlu0 %4289
    %4291 = vrot.lane.b32.xlu0 %v4280, 127
    %v4292 = vpop.permute.xlu0 %4291
    %v4297 = vadd.f32 %v4015, %v4286
    %v4298 = vadd.f32 %v4016, %v4288
    %v4299 = vadd.f32 %v4017, %v4290
    %v4300 = vadd.f32 %v4018, %v4292
    %v4301 = vmul.f32 %v3675, 0.6666667
    %v4302 = vmul.f32 %v3676, 0.6666667
    %v4303 = vmul.f32 %v3677, 0.6666667
    %v4304 = vmul.f32 %v3678, 0.6666667
    %4309 = vrot.lane.b32.xlu0 %v4301, 126
    %v4310 = vpop.permute.xlu0 %4309
    %4311 = vrot.lane.b32.xlu0 %v4302, 126
    %v4312 = vpop.permute.xlu0 %4311
    %4313 = vrot.lane.b32.xlu0 %v4303, 126
    %v4314 = vpop.permute.xlu0 %4313
    %4315 = vrot.lane.b32.xlu0 %v4304, 126
    %v4316 = vpop.permute.xlu0 %4315
    %v4321 = vadd.f32 %v4039, %v4310
    %v4322 = vadd.f32 %v4040, %v4312
    %v4323 = vadd.f32 %v4041, %v4314
    %v4324 = vadd.f32 %v4042, %v4316
    %s4325 = sld [smem:[#allocation7 + $0x12]]
    %v4326 = vstv %s4325
    %v4327 = vmul.f32 %v4326, %v3659
    %v4328 = vmul.f32 %v4326, %v3660
    %v4329 = vmul.f32 %v4326, %v3661
    %v4330 = vmul.f32 %v4326, %v3662
    %4335 = vrot.lane.b32.xlu0 %v4327, 125
    %v4336 = vpop.permute.xlu0 %4335
    %4337 = vrot.lane.b32.xlu0 %v4328, 125
    %v4338 = vpop.permute.xlu0 %4337
    %4339 = vrot.lane.b32.xlu0 %v4329, 125
    %v4340 = vpop.permute.xlu0 %4339
    %4341 = vrot.lane.b32.xlu0 %v4330, 125
    %v4342 = vpop.permute.xlu0 %4341
    %v4347 = vadd.f32 %v4117, %v4336
    %v4348 = vadd.f32 %v4118, %v4338
    %v4349 = vadd.f32 %v4119, %v4340
    %v4350 = vadd.f32 %v4120, %v4342
    %s4351 = sld [smem:[#allocation7 + $0x2b]]
    %v4352 = vstv %s4351
    %v4353 = vmul.f32 %v4352, %v3663
    %v4354 = vmul.f32 %v4352, %v3664
    %v4355 = vmul.f32 %v4352, %v3665
    %v4356 = vmul.f32 %v4352, %v3666
    %4361 = vrot.lane.b32.xlu0 %v4353, 125
    %v4362 = vpop.permute.xlu0 %4361
    %4363 = vrot.lane.b32.xlu0 %v4354, 125
    %v4364 = vpop.permute.xlu0 %4363
    %4365 = vrot.lane.b32.xlu0 %v4355, 125
    %v4366 = vpop.permute.xlu0 %4365
    %4367 = vrot.lane.b32.xlu0 %v4356, 125
    %v4368 = vpop.permute.xlu0 %4367
    %v4373 = vadd.f32 %v4347, %v4362
    %v4374 = vadd.f32 %v4348, %v4364
    %v4375 = vadd.f32 %v4349, %v4366
    %v4376 = vadd.f32 %v4350, %v4368
    %s4377 = sld [smem:[#allocation7 + $0x44]]
    %v4378 = vstv %s4377
    %v4379 = vmul.f32 %v4378, %v3667
    %v4380 = vmul.f32 %v4378, %v3668
    %v4381 = vmul.f32 %v4378, %v3669
    %v4382 = vmul.f32 %v4378, %v3670
    %4387 = vrot.lane.b32.xlu0 %v4379, 125
    %v4388 = vpop.permute.xlu0 %4387
    %4389 = vrot.lane.b32.xlu0 %v4380, 125
    %v4390 = vpop.permute.xlu0 %4389
    %4391 = vrot.lane.b32.xlu0 %v4381, 125
    %v4392 = vpop.permute.xlu0 %4391
    %4393 = vrot.lane.b32.xlu0 %v4382, 125
    %v4394 = vpop.permute.xlu0 %4393
    %v4399 = vadd.f32 %v4373, %v4388
    %v4400 = vadd.f32 %v4374, %v4390
    %v4401 = vadd.f32 %v4375, %v4392
    %v4402 = vadd.f32 %v4376, %v4394
    %s4403 = sld [smem:[#allocation7 + $0x5d]]
    %v4404 = vstv %s4403
    %v4405 = vmul.f32 %v4404, %v3659
    %v4406 = vmul.f32 %v4404, %v3660
    %v4407 = vmul.f32 %v4404, %v3661
    %v4408 = vmul.f32 %v4404, %v3662
    %4413 = vrot.lane.b32.xlu0 %v4405, 125
    %v4414 = vpop.permute.xlu0 %4413
    %4415 = vrot.lane.b32.xlu0 %v4406, 125
    %v4416 = vpop.permute.xlu0 %4415
    %4417 = vrot.lane.b32.xlu0 %v4407, 125
    %v4418 = vpop.permute.xlu0 %4417
    %4419 = vrot.lane.b32.xlu0 %v4408, 125
    %v4420 = vpop.permute.xlu0 %4419
    %v4425 = vadd.f32 %v4195, %v4414
    %v4426 = vadd.f32 %v4196, %v4416
    %v4427 = vadd.f32 %v4197, %v4418
    %v4428 = vadd.f32 %v4198, %v4420
    %s4429 = sld [smem:[#allocation7 + $0x76]]
    %v4430 = vstv %s4429
    %v4431 = vmul.f32 %v4430, %v3663
    %v4432 = vmul.f32 %v4430, %v3664
    %v4433 = vmul.f32 %v4430, %v3665
    %v4434 = vmul.f32 %v4430, %v3666
    %4439 = vrot.lane.b32.xlu0 %v4431, 125
    %v4440 = vpop.permute.xlu0 %4439
    %4441 = vrot.lane.b32.xlu0 %v4432, 125
    %v4442 = vpop.permute.xlu0 %4441
    %4443 = vrot.lane.b32.xlu0 %v4433, 125
    %v4444 = vpop.permute.xlu0 %4443
    %4445 = vrot.lane.b32.xlu0 %v4434, 125
    %v4446 = vpop.permute.xlu0 %4445
    %v4451 = vadd.f32 %v4425, %v4440
    %v4452 = vadd.f32 %v4426, %v4442
    %v4453 = vadd.f32 %v4427, %v4444
    %v4454 = vadd.f32 %v4428, %v4446
    %s4455 = sld [smem:[#allocation7 + $0x8f]]
    %v4456 = vstv %s4455
    %v4457 = vmul.f32 %v4456, %v3667
    %v4458 = vmul.f32 %v4456, %v3668
    %v4459 = vmul.f32 %v4456, %v3669
    %v4460 = vmul.f32 %v4456, %v3670
    %4465 = vrot.lane.b32.xlu0 %v4457, 125
    %v4466 = vpop.permute.xlu0 %4465
    %4467 = vrot.lane.b32.xlu0 %v4458, 125
    %v4468 = vpop.permute.xlu0 %4467
    %4469 = vrot.lane.b32.xlu0 %v4459, 125
    %v4470 = vpop.permute.xlu0 %4469
    %4471 = vrot.lane.b32.xlu0 %v4460, 125
    %v4472 = vpop.permute.xlu0 %4471
    %v4477 = vadd.f32 %v4451, %v4466
    %v4478 = vadd.f32 %v4452, %v4468
    %v4479 = vadd.f32 %v4453, %v4470
    %v4480 = vadd.f32 %v4454, %v4472
    %s4481 = sld [smem:[#allocation7 + $0xa8]]
    %v4482 = vstv %s4481
    %v4483 = vmul.f32 %v4482, %v3659
    %v4484 = vmul.f32 %v4482, %v3660
    %v4485 = vmul.f32 %v4482, %v3661
    %v4486 = vmul.f32 %v4482, %v3662
    %4491 = vrot.lane.b32.xlu0 %v4483, 125
    %v4492 = vpop.permute.xlu0 %4491
    %4493 = vrot.lane.b32.xlu0 %v4484, 125
    %v4494 = vpop.permute.xlu0 %4493
    %4495 = vrot.lane.b32.xlu0 %v4485, 125
    %v4496 = vpop.permute.xlu0 %4495
    %4497 = vrot.lane.b32.xlu0 %v4486, 125
    %v4498 = vpop.permute.xlu0 %4497
    %v4503 = vadd.f32 %v4273, %v4492
    %v4504 = vadd.f32 %v4274, %v4494
    %v4505 = vadd.f32 %v4275, %v4496
    %v4506 = vadd.f32 %v4276, %v4498
    %s4507 = sld [smem:[#allocation7 + $0xc1]]
    %v4508 = vstv %s4507
    %v4509 = vmul.f32 %v4508, %v3663
    %v4510 = vmul.f32 %v4508, %v3664
    %v4511 = vmul.f32 %v4508, %v3665
    %v4512 = vmul.f32 %v4508, %v3666
    %4517 = vrot.lane.b32.xlu0 %v4509, 125
    %v4518 = vpop.permute.xlu0 %4517
    %4519 = vrot.lane.b32.xlu0 %v4510, 125
    %v4520 = vpop.permute.xlu0 %4519
    %4521 = vrot.lane.b32.xlu0 %v4511, 125
    %v4522 = vpop.permute.xlu0 %4521
    %4523 = vrot.lane.b32.xlu0 %v4512, 125
    %v4524 = vpop.permute.xlu0 %4523
    %v4529 = vadd.f32 %v4503, %v4518
    %v4530 = vadd.f32 %v4504, %v4520
    %v4531 = vadd.f32 %v4505, %v4522
    %v4532 = vadd.f32 %v4506, %v4524
    %s4533 = sld [smem:[#allocation7 + $0xda]]
    %v4534 = vstv %s4533
    %v4535 = vmul.f32 %v4534, %v3667
    %v4536 = vmul.f32 %v4534, %v3668
    %v4537 = vmul.f32 %v4534, %v3669
    %v4538 = vmul.f32 %v4534, %v3670
    %4543 = vrot.lane.b32.xlu0 %v4535, 125
    %v4544 = vpop.permute.xlu0 %4543
    %4545 = vrot.lane.b32.xlu0 %v4536, 125
    %v4546 = vpop.permute.xlu0 %4545
    %4547 = vrot.lane.b32.xlu0 %v4537, 125
    %v4548 = vpop.permute.xlu0 %4547
    %4549 = vrot.lane.b32.xlu0 %v4538, 125
    %v4550 = vpop.permute.xlu0 %4549
    %v4555 = vadd.f32 %v4529, %v4544
    %v4556 = vadd.f32 %v4530, %v4546
    %v4557 = vadd.f32 %v4531, %v4548
    %v4558 = vadd.f32 %v4532, %v4550
    %4563 = vrot.lane.b32.xlu0 %v4011, 126
    %v4564 = vpop.permute.xlu0 %4563
    %4565 = vrot.lane.b32.xlu0 %v4012, 126
    %v4566 = vpop.permute.xlu0 %4565
    %4567 = vrot.lane.b32.xlu0 %v4013, 126
    %v4568 = vpop.permute.xlu0 %4567
    %4569 = vrot.lane.b32.xlu0 %v4014, 126
    %v4570 = vpop.permute.xlu0 %4569
    %v4575 = vadd.f32 %v4297, %v4564
    %v4576 = vadd.f32 %v4298, %v4566
    %v4577 = vadd.f32 %v4299, %v4568
    %v4578 = vadd.f32 %v4300, %v4570
    %4579 = vrot.lane.b32.xlu0 %v4019, 125
    %v4580 = vpop.permute.xlu0 %4579
    %4581 = vrot.lane.b32.xlu0 %v4020, 125
    %v4582 = vpop.permute.xlu0 %4581
    %4583 = vrot.lane.b32.xlu0 %v4021, 125
    %v4584 = vpop.permute.xlu0 %4583
    %4585 = vrot.lane.b32.xlu0 %v4022, 125
    %v4586 = vpop.permute.xlu0 %4585
    %v4591 = vadd.f32 %v4321, %v4580
    %v4592 = vadd.f32 %v4322, %v4582
    %v4593 = vadd.f32 %v4323, %v4584
    %v4594 = vadd.f32 %v4324, %v4586
    %s4595 = sld [smem:[#allocation7 + $0x13]]
    %v4596 = vstv %s4595
    %v4597 = vmul.f32 %v4596, %v3659
    %v4598 = vmul.f32 %v4596, %v3660
    %v4599 = vmul.f32 %v4596, %v3661
    %v4600 = vmul.f32 %v4596, %v3662
    %4605 = vrot.lane.b32.xlu0 %v4597, 124
    %v4606 = vpop.permute.xlu0 %4605
    %4607 = vrot.lane.b32.xlu0 %v4598, 124
    %v4608 = vpop.permute.xlu0 %4607
    %4609 = vrot.lane.b32.xlu0 %v4599, 124
    %v4610 = vpop.permute.xlu0 %4609
    %4611 = vrot.lane.b32.xlu0 %v4600, 124
    %v4612 = vpop.permute.xlu0 %4611
    %v4617 = vadd.f32 %v4399, %v4606
    %v4618 = vadd.f32 %v4400, %v4608
    %v4619 = vadd.f32 %v4401, %v4610
    %v4620 = vadd.f32 %v4402, %v4612
    %s4621 = sld [smem:[#allocation7 + $0x2c]]
    %v4622 = vstv %s4621
    %v4623 = vmul.f32 %v4622, %v3663
    %v4624 = vmul.f32 %v4622, %v3664
    %v4625 = vmul.f32 %v4622, %v3665
    %v4626 = vmul.f32 %v4622, %v3666
    %4631 = vrot.lane.b32.xlu0 %v4623, 124
    %v4632 = vpop.permute.xlu0 %4631
    %4633 = vrot.lane.b32.xlu0 %v4624, 124
    %v4634 = vpop.permute.xlu0 %4633
    %4635 = vrot.lane.b32.xlu0 %v4625, 124
    %v4636 = vpop.permute.xlu0 %4635
    %4637 = vrot.lane.b32.xlu0 %v4626, 124
    %v4638 = vpop.permute.xlu0 %4637
    %v4643 = vadd.f32 %v4617, %v4632
    %v4644 = vadd.f32 %v4618, %v4634
    %v4645 = vadd.f32 %v4619, %v4636
    %v4646 = vadd.f32 %v4620, %v4638
    %s4647 = sld [smem:[#allocation7 + $0x45]]
    %v4648 = vstv %s4647
    %v4649 = vmul.f32 %v4648, %v3667
    %v4650 = vmul.f32 %v4648, %v3668
    %v4651 = vmul.f32 %v4648, %v3669
    %v4652 = vmul.f32 %v4648, %v3670
    %4657 = vrot.lane.b32.xlu0 %v4649, 124
    %v4658 = vpop.permute.xlu0 %4657
    %4659 = vrot.lane.b32.xlu0 %v4650, 124
    %v4660 = vpop.permute.xlu0 %4659
    %4661 = vrot.lane.b32.xlu0 %v4651, 124
    %v4662 = vpop.permute.xlu0 %4661
    %4663 = vrot.lane.b32.xlu0 %v4652, 124
    %v4664 = vpop.permute.xlu0 %4663
    %v4669 = vadd.f32 %v4643, %v4658
    %v4670 = vadd.f32 %v4644, %v4660
    %v4671 = vadd.f32 %v4645, %v4662
    %v4672 = vadd.f32 %v4646, %v4664
    %s4673 = sld [smem:[#allocation7 + $0x5e]]
    %v4674 = vstv %s4673
    %v4675 = vmul.f32 %v4674, %v3659
    %v4676 = vmul.f32 %v4674, %v3660
    %v4677 = vmul.f32 %v4674, %v3661
    %v4678 = vmul.f32 %v4674, %v3662
    %4683 = vrot.lane.b32.xlu0 %v4675, 124
    %v4684 = vpop.permute.xlu0 %4683
    %4685 = vrot.lane.b32.xlu0 %v4676, 124
    %v4686 = vpop.permute.xlu0 %4685
    %4687 = vrot.lane.b32.xlu0 %v4677, 124
    %v4688 = vpop.permute.xlu0 %4687
    %4689 = vrot.lane.b32.xlu0 %v4678, 124
    %v4690 = vpop.permute.xlu0 %4689
    %v4695 = vadd.f32 %v4477, %v4684
    %v4696 = vadd.f32 %v4478, %v4686
    %v4697 = vadd.f32 %v4479, %v4688
    %v4698 = vadd.f32 %v4480, %v4690
    %s4699 = sld [smem:[#allocation7 + $0x77]]
    %v4700 = vstv %s4699
    %v4701 = vmul.f32 %v4700, %v3663
    %v4702 = vmul.f32 %v4700, %v3664
    %v4703 = vmul.f32 %v4700, %v3665
    %v4704 = vmul.f32 %v4700, %v3666
    %4709 = vrot.lane.b32.xlu0 %v4701, 124
    %v4710 = vpop.permute.xlu0 %4709
    %4711 = vrot.lane.b32.xlu0 %v4702, 124
    %v4712 = vpop.permute.xlu0 %4711
    %4713 = vrot.lane.b32.xlu0 %v4703, 124
    %v4714 = vpop.permute.xlu0 %4713
    %4715 = vrot.lane.b32.xlu0 %v4704, 124
    %v4716 = vpop.permute.xlu0 %4715
    %v4721 = vadd.f32 %v4695, %v4710
    %v4722 = vadd.f32 %v4696, %v4712
    %v4723 = vadd.f32 %v4697, %v4714
    %v4724 = vadd.f32 %v4698, %v4716
    %s4725 = sld [smem:[#allocation7 + $0x90]]
    %v4726 = vstv %s4725
    %v4727 = vmul.f32 %v4726, %v3667
    %v4728 = vmul.f32 %v4726, %v3668
    %v4729 = vmul.f32 %v4726, %v3669
    %v4730 = vmul.f32 %v4726, %v3670
    %4735 = vrot.lane.b32.xlu0 %v4727, 124
    %v4736 = vpop.permute.xlu0 %4735
    %4737 = vrot.lane.b32.xlu0 %v4728, 124
    %v4738 = vpop.permute.xlu0 %4737
    %4739 = vrot.lane.b32.xlu0 %v4729, 124
    %v4740 = vpop.permute.xlu0 %4739
    %4741 = vrot.lane.b32.xlu0 %v4730, 124
    %v4742 = vpop.permute.xlu0 %4741
    %v4747 = vadd.f32 %v4721, %v4736
    %v4748 = vadd.f32 %v4722, %v4738
    %v4749 = vadd.f32 %v4723, %v4740
    %v4750 = vadd.f32 %v4724, %v4742
    %s4751 = sld [smem:[#allocation7 + $0xa9]]
    %v4752 = vstv %s4751
    %v4753 = vmul.f32 %v4752, %v3659
    %v4754 = vmul.f32 %v4752, %v3660
    %v4755 = vmul.f32 %v4752, %v3661
    %v4756 = vmul.f32 %v4752, %v3662
    %4761 = vrot.lane.b32.xlu0 %v4753, 124
    %v4762 = vpop.permute.xlu0 %4761
    %4763 = vrot.lane.b32.xlu0 %v4754, 124
    %v4764 = vpop.permute.xlu0 %4763
    %4765 = vrot.lane.b32.xlu0 %v4755, 124
    %v4766 = vpop.permute.xlu0 %4765
    %4767 = vrot.lane.b32.xlu0 %v4756, 124
    %v4768 = vpop.permute.xlu0 %4767
    %v4773 = vadd.f32 %v4555, %v4762
    %v4774 = vadd.f32 %v4556, %v4764
    %v4775 = vadd.f32 %v4557, %v4766
    %v4776 = vadd.f32 %v4558, %v4768
    %s4777 = sld [smem:[#allocation7 + $0xc2]]
    %v4778 = vstv %s4777
    %v4779 = vmul.f32 %v4778, %v3663
    %v4780 = vmul.f32 %v4778, %v3664
    %v4781 = vmul.f32 %v4778, %v3665
    %v4782 = vmul.f32 %v4778, %v3666
    %4787 = vrot.lane.b32.xlu0 %v4779, 124
    %v4788 = vpop.permute.xlu0 %4787
    %4789 = vrot.lane.b32.xlu0 %v4780, 124
    %v4790 = vpop.permute.xlu0 %4789
    %4791 = vrot.lane.b32.xlu0 %v4781, 124
    %v4792 = vpop.permute.xlu0 %4791
    %4793 = vrot.lane.b32.xlu0 %v4782, 124
    %v4794 = vpop.permute.xlu0 %4793
    %v4799 = vadd.f32 %v4773, %v4788
    %v4800 = vadd.f32 %v4774, %v4790
    %v4801 = vadd.f32 %v4775, %v4792
    %v4802 = vadd.f32 %v4776, %v4794
    %s4803 = sld [smem:[#allocation7 + $0xdb]]
    %v4804 = vstv %s4803
    %v4805 = vmul.f32 %v4804, %v3667
    %v4806 = vmul.f32 %v4804, %v3668
    %v4807 = vmul.f32 %v4804, %v3669
    %v4808 = vmul.f32 %v4804, %v3670
    %4813 = vrot.lane.b32.xlu0 %v4805, 124
    %v4814 = vpop.permute.xlu0 %4813
    %4815 = vrot.lane.b32.xlu0 %v4806, 124
    %v4816 = vpop.permute.xlu0 %4815
    %4817 = vrot.lane.b32.xlu0 %v4807, 124
    %v4818 = vpop.permute.xlu0 %4817
    %4819 = vrot.lane.b32.xlu0 %v4808, 124
    %v4820 = vpop.permute.xlu0 %4819
    %v4825 = vadd.f32 %v4799, %v4814
    %v4826 = vadd.f32 %v4800, %v4816
    %v4827 = vadd.f32 %v4801, %v4818
    %v4828 = vadd.f32 %v4802, %v4820
    %4833 = vrot.lane.b32.xlu0 %v3769, 124
    %v4834 = vpop.permute.xlu0 %4833
    %4835 = vrot.lane.b32.xlu0 %v3770, 124
    %v4836 = vpop.permute.xlu0 %4835
    %4837 = vrot.lane.b32.xlu0 %v3771, 124
    %v4838 = vpop.permute.xlu0 %4837
    %4839 = vrot.lane.b32.xlu0 %v3772, 124
    %v4840 = vpop.permute.xlu0 %4839
    %v4845 = vadd.f32 %v4591, %v4834
    %v4846 = vadd.f32 %v4592, %v4836
    %v4847 = vadd.f32 %v4593, %v4838
    %v4848 = vadd.f32 %v4594, %v4840
    %v4849 = vld [vmem:[#allocation2 + $0x4] sm:$0xff]
    %v4850 = vld [vmem:[#allocation2 + $0xc] sm:$0xff]
    %v4851 = vld [vmem:[#allocation2 + $0x4c] sm:$0xff]
    %v4852 = vld [vmem:[#allocation2 + $0x54] sm:$0xff]
    %v4853 = vld [vmem:[%s139 + $0x4] sm:$0xff]
    %v4854 = vld [vmem:[%s139 + $0xc] sm:$0xff]
    %v4855 = vld [vmem:[%s139 + $0x4c] sm:$0xff]
    %v4856 = vld [vmem:[%s139 + $0x54] sm:$0xff]
    %v4857 = vld [vmem:[%s144 + $0x4] sm:$0xff]
    %v4858 = vld [vmem:[%s144 + $0xc] sm:$0xff]
    %v4859 = vld [vmem:[%s144 + $0x4c] sm:$0xff]
    %v4860 = vld [vmem:[%s144 + $0x54] sm:$0xff]
    %v4861 = vadd.f32 %v4849, %v4853
    %v4862 = vadd.f32 %v4850, %v4854
    %v4863 = vadd.f32 %v4851, %v4855
    %v4864 = vadd.f32 %v4852, %v4856
    %v4865 = vadd.f32 %v4861, %v4857
    %v4866 = vadd.f32 %v4862, %v4858
    %v4867 = vadd.f32 %v4863, %v4859
    %v4868 = vadd.f32 %v4864, %v4860
    %s4869 = sld [smem:[#allocation7 + $0x14]]
    %v4870 = vstv %s4869
    %v4871 = vmul.f32 %v4870, %v4849
    %v4872 = vmul.f32 %v4870, %v4850
    %v4873 = vmul.f32 %v4870, %v4851
    %v4874 = vmul.f32 %v4870, %v4852
    %v4875 = vadd.f32 %v4669, %v4871
    %v4876 = vadd.f32 %v4670, %v4872
    %v4877 = vadd.f32 %v4671, %v4873
    %v4878 = vadd.f32 %v4672, %v4874
    %s4879 = sld [smem:[#allocation7 + $0x2d]]
    %v4880 = vstv %s4879
    %v4881 = vmul.f32 %v4880, %v4853
    %v4882 = vmul.f32 %v4880, %v4854
    %v4883 = vmul.f32 %v4880, %v4855
    %v4884 = vmul.f32 %v4880, %v4856
    %v4885 = vadd.f32 %v4875, %v4881
    %v4886 = vadd.f32 %v4876, %v4882
    %v4887 = vadd.f32 %v4877, %v4883
    %v4888 = vadd.f32 %v4878, %v4884
    %s4889 = sld [smem:[#allocation7 + $0x46]]
    %v4890 = vstv %s4889
    %v4891 = vmul.f32 %v4890, %v4857
    %v4892 = vmul.f32 %v4890, %v4858
    %v4893 = vmul.f32 %v4890, %v4859
    %v4894 = vmul.f32 %v4890, %v4860
    %v4895 = vadd.f32 %v4885, %v4891
    %v4896 = vadd.f32 %v4886, %v4892
    %v4897 = vadd.f32 %v4887, %v4893
    %v4898 = vadd.f32 %v4888, %v4894
    %s4899 = sld [smem:[#allocation7 + $0x5f]]
    %v4900 = vstv %s4899
    %v4901 = vmul.f32 %v4900, %v4849
    %v4902 = vmul.f32 %v4900, %v4850
    %v4903 = vmul.f32 %v4900, %v4851
    %v4904 = vmul.f32 %v4900, %v4852
    %v4905 = vadd.f32 %v4747, %v4901
    %v4906 = vadd.f32 %v4748, %v4902
    %v4907 = vadd.f32 %v4749, %v4903
    %v4908 = vadd.f32 %v4750, %v4904
    %s4909 = sld [smem:[#allocation7 + $0x78]]
    %v4910 = vstv %s4909
    %v4911 = vmul.f32 %v4910, %v4853
    %v4912 = vmul.f32 %v4910, %v4854
    %v4913 = vmul.f32 %v4910, %v4855
    %v4914 = vmul.f32 %v4910, %v4856
    %v4915 = vadd.f32 %v4905, %v4911
    %v4916 = vadd.f32 %v4906, %v4912
    %v4917 = vadd.f32 %v4907, %v4913
    %v4918 = vadd.f32 %v4908, %v4914
    %s4919 = sld [smem:[#allocation7 + $0x91]]
    %v4920 = vstv %s4919
    %v4921 = vmul.f32 %v4920, %v4857
    %v4922 = vmul.f32 %v4920, %v4858
    %v4923 = vmul.f32 %v4920, %v4859
    %v4924 = vmul.f32 %v4920, %v4860
    %v4925 = vadd.f32 %v4915, %v4921
    %v4926 = vadd.f32 %v4916, %v4922
    %v4927 = vadd.f32 %v4917, %v4923
    %v4928 = vadd.f32 %v4918, %v4924
    %s4929 = sld [smem:[#allocation7 + $0xaa]]
    %v4930 = vstv %s4929
    %v4931 = vmul.f32 %v4930, %v4849
    %v4932 = vmul.f32 %v4930, %v4850
    %v4933 = vmul.f32 %v4930, %v4851
    %v4934 = vmul.f32 %v4930, %v4852
    %v4935 = vadd.f32 %v4825, %v4931
    %v4936 = vadd.f32 %v4826, %v4932
    %v4937 = vadd.f32 %v4827, %v4933
    %v4938 = vadd.f32 %v4828, %v4934
    %s4939 = sld [smem:[#allocation7 + $0xc3]]
    %v4940 = vstv %s4939
    %v4941 = vmul.f32 %v4940, %v4853
    %v4942 = vmul.f32 %v4940, %v4854
    %v4943 = vmul.f32 %v4940, %v4855
    %v4944 = vmul.f32 %v4940, %v4856
    %v4945 = vadd.f32 %v4935, %v4941
    %v4946 = vadd.f32 %v4936, %v4942
    %v4947 = vadd.f32 %v4937, %v4943
    %v4948 = vadd.f32 %v4938, %v4944
    %s4949 = sld [smem:[#allocation7 + $0xdc]]
    %v4950 = vstv %s4949
    %v4951 = vmul.f32 %v4950, %v4857
    %v4952 = vmul.f32 %v4950, %v4858
    %v4953 = vmul.f32 %v4950, %v4859
    %v4954 = vmul.f32 %v4950, %v4860
    %v4955 = vadd.f32 %v4945, %v4951
    %v4956 = vadd.f32 %v4946, %v4952
    %v4957 = vadd.f32 %v4947, %v4953
    %v4958 = vadd.f32 %v4948, %v4954
    %v4959 = vmul.f32 %v4865, -0.083333336
    %v4960 = vmul.f32 %v4866, -0.083333336
    %v4961 = vmul.f32 %v4867, -0.083333336
    %v4962 = vmul.f32 %v4868, -0.083333336
    %v4963 = vadd.f32 %v4845, %v4959
    %v4964 = vadd.f32 %v4846, %v4960
    %v4965 = vadd.f32 %v4847, %v4961
    %v4966 = vadd.f32 %v4848, %v4962
    %s4967 = sld [smem:[#allocation7 + $0x15]]
    %v4968 = vstv %s4967
    %v4969 = vmul.f32 %v4968, %v4849
    %v4970 = vmul.f32 %v4968, %v4850
    %v4971 = vmul.f32 %v4968, %v4851
    %v4972 = vmul.f32 %v4968, %v4852
    %4977 = vrot.lane.b32.xlu0 %v4969, 127
    %v4978 = vpop.permute.xlu0 %4977
    %4979 = vrot.lane.b32.xlu0 %v4970, 127
    %v4980 = vpop.permute.xlu0 %4979
    %4981 = vrot.lane.b32.xlu0 %v4971, 127
    %v4982 = vpop.permute.xlu0 %4981
    %4983 = vrot.lane.b32.xlu0 %v4972, 127
    %v4984 = vpop.permute.xlu0 %4983
    %v4989 = vadd.f32 %v4895, %v4978
    %v4990 = vadd.f32 %v4896, %v4980
    %v4991 = vadd.f32 %v4897, %v4982
    %v4992 = vadd.f32 %v4898, %v4984
    %s4993 = sld [smem:[#allocation7 + $0x2e]]
    %v4994 = vstv %s4993
    %v4995 = vmul.f32 %v4994, %v4853
    %v4996 = vmul.f32 %v4994, %v4854
    %v4997 = vmul.f32 %v4994, %v4855
    %v4998 = vmul.f32 %v4994, %v4856
    %5003 = vrot.lane.b32.xlu0 %v4995, 127
    %v5004 = vpop.permute.xlu0 %5003
    %5005 = vrot.lane.b32.xlu0 %v4996, 127
    %v5006 = vpop.permute.xlu0 %5005
    %5007 = vrot.lane.b32.xlu0 %v4997, 127
    %v5008 = vpop.permute.xlu0 %5007
    %5009 = vrot.lane.b32.xlu0 %v4998, 127
    %v5010 = vpop.permute.xlu0 %5009
    %v5015 = vadd.f32 %v4989, %v5004
    %v5016 = vadd.f32 %v4990, %v5006
    %v5017 = vadd.f32 %v4991, %v5008
    %v5018 = vadd.f32 %v4992, %v5010
    %s5019 = sld [smem:[#allocation7 + $0x47]]
    %v5020 = vstv %s5019
    %v5021 = vmul.f32 %v5020, %v4857
    %v5022 = vmul.f32 %v5020, %v4858
    %v5023 = vmul.f32 %v5020, %v4859
    %v5024 = vmul.f32 %v5020, %v4860
    %5029 = vrot.lane.b32.xlu0 %v5021, 127
    %v5030 = vpop.permute.xlu0 %5029
    %5031 = vrot.lane.b32.xlu0 %v5022, 127
    %v5032 = vpop.permute.xlu0 %5031
    %5033 = vrot.lane.b32.xlu0 %v5023, 127
    %v5034 = vpop.permute.xlu0 %5033
    %5035 = vrot.lane.b32.xlu0 %v5024, 127
    %v5036 = vpop.permute.xlu0 %5035
    %v5041 = vadd.f32 %v5015, %v5030
    %v5042 = vadd.f32 %v5016, %v5032
    %v5043 = vadd.f32 %v5017, %v5034
    %v5044 = vadd.f32 %v5018, %v5036
    %s5045 = sld [smem:[#allocation7 + $0x60]]
    %v5046 = vstv %s5045
    %v5047 = vmul.f32 %v5046, %v4849
    %v5048 = vmul.f32 %v5046, %v4850
    %v5049 = vmul.f32 %v5046, %v4851
    %v5050 = vmul.f32 %v5046, %v4852
    %5055 = vrot.lane.b32.xlu0 %v5047, 127
    %v5056 = vpop.permute.xlu0 %5055
    %5057 = vrot.lane.b32.xlu0 %v5048, 127
    %v5058 = vpop.permute.xlu0 %5057
    %5059 = vrot.lane.b32.xlu0 %v5049, 127
    %v5060 = vpop.permute.xlu0 %5059
    %5061 = vrot.lane.b32.xlu0 %v5050, 127
    %v5062 = vpop.permute.xlu0 %5061
    %v5067 = vadd.f32 %v4925, %v5056
    %v5068 = vadd.f32 %v4926, %v5058
    %v5069 = vadd.f32 %v4927, %v5060
    %v5070 = vadd.f32 %v4928, %v5062
    %s5071 = sld [smem:[#allocation7 + $0x79]]
    %v5072 = vstv %s5071
    %v5073 = vmul.f32 %v5072, %v4853
    %v5074 = vmul.f32 %v5072, %v4854
    %v5075 = vmul.f32 %v5072, %v4855
    %v5076 = vmul.f32 %v5072, %v4856
    %5081 = vrot.lane.b32.xlu0 %v5073, 127
    %v5082 = vpop.permute.xlu0 %5081
    %5083 = vrot.lane.b32.xlu0 %v5074, 127
    %v5084 = vpop.permute.xlu0 %5083
    %5085 = vrot.lane.b32.xlu0 %v5075, 127
    %v5086 = vpop.permute.xlu0 %5085
    %5087 = vrot.lane.b32.xlu0 %v5076, 127
    %v5088 = vpop.permute.xlu0 %5087
    %v5093 = vadd.f32 %v5067, %v5082
    %v5094 = vadd.f32 %v5068, %v5084
    %v5095 = vadd.f32 %v5069, %v5086
    %v5096 = vadd.f32 %v5070, %v5088
    %s5097 = sld [smem:[#allocation7 + $0x92]]
    %v5098 = vstv %s5097
    %v5099 = vmul.f32 %v5098, %v4857
    %v5100 = vmul.f32 %v5098, %v4858
    %v5101 = vmul.f32 %v5098, %v4859
    %v5102 = vmul.f32 %v5098, %v4860
    %5107 = vrot.lane.b32.xlu0 %v5099, 127
    %v5108 = vpop.permute.xlu0 %5107
    %5109 = vrot.lane.b32.xlu0 %v5100, 127
    %v5110 = vpop.permute.xlu0 %5109
    %5111 = vrot.lane.b32.xlu0 %v5101, 127
    %v5112 = vpop.permute.xlu0 %5111
    %5113 = vrot.lane.b32.xlu0 %v5102, 127
    %v5114 = vpop.permute.xlu0 %5113
    %v5119 = vadd.f32 %v5093, %v5108
    %v5120 = vadd.f32 %v5094, %v5110
    %v5121 = vadd.f32 %v5095, %v5112
    %v5122 = vadd.f32 %v5096, %v5114
    %s5123 = sld [smem:[#allocation7 + $0xab]]
    %v5124 = vstv %s5123
    %v5125 = vmul.f32 %v5124, %v4849
    %v5126 = vmul.f32 %v5124, %v4850
    %v5127 = vmul.f32 %v5124, %v4851
    %v5128 = vmul.f32 %v5124, %v4852
    %5133 = vrot.lane.b32.xlu0 %v5125, 127
    %v5134 = vpop.permute.xlu0 %5133
    %5135 = vrot.lane.b32.xlu0 %v5126, 127
    %v5136 = vpop.permute.xlu0 %5135
    %5137 = vrot.lane.b32.xlu0 %v5127, 127
    %v5138 = vpop.permute.xlu0 %5137
    %5139 = vrot.lane.b32.xlu0 %v5128, 127
    %v5140 = vpop.permute.xlu0 %5139
    %v5145 = vadd.f32 %v4955, %v5134
    %v5146 = vadd.f32 %v4956, %v5136
    %v5147 = vadd.f32 %v4957, %v5138
    %v5148 = vadd.f32 %v4958, %v5140
    %s5149 = sld [smem:[#allocation7 + $0xc4]]
    %v5150 = vstv %s5149
    %v5151 = vmul.f32 %v5150, %v4853
    %v5152 = vmul.f32 %v5150, %v4854
    %v5153 = vmul.f32 %v5150, %v4855
    %v5154 = vmul.f32 %v5150, %v4856
    %5159 = vrot.lane.b32.xlu0 %v5151, 127
    %v5160 = vpop.permute.xlu0 %5159
    %5161 = vrot.lane.b32.xlu0 %v5152, 127
    %v5162 = vpop.permute.xlu0 %5161
    %5163 = vrot.lane.b32.xlu0 %v5153, 127
    %v5164 = vpop.permute.xlu0 %5163
    %5165 = vrot.lane.b32.xlu0 %v5154, 127
    %v5166 = vpop.permute.xlu0 %5165
    %v5171 = vadd.f32 %v5145, %v5160
    %v5172 = vadd.f32 %v5146, %v5162
    %v5173 = vadd.f32 %v5147, %v5164
    %v5174 = vadd.f32 %v5148, %v5166
    %s5175 = sld [smem:[#allocation7 + $0xdd]]
    %v5176 = vstv %s5175
    %v5177 = vmul.f32 %v5176, %v4857
    %v5178 = vmul.f32 %v5176, %v4858
    %v5179 = vmul.f32 %v5176, %v4859
    %v5180 = vmul.f32 %v5176, %v4860
    %5185 = vrot.lane.b32.xlu0 %v5177, 127
    %v5186 = vpop.permute.xlu0 %5185
    %5187 = vrot.lane.b32.xlu0 %v5178, 127
    %v5188 = vpop.permute.xlu0 %5187
    %5189 = vrot.lane.b32.xlu0 %v5179, 127
    %v5190 = vpop.permute.xlu0 %5189
    %5191 = vrot.lane.b32.xlu0 %v5180, 127
    %v5192 = vpop.permute.xlu0 %5191
    %v5197 = vadd.f32 %v5171, %v5186
    %v5198 = vadd.f32 %v5172, %v5188
    %v5199 = vadd.f32 %v5173, %v5190
    %v5200 = vadd.f32 %v5174, %v5192
    %v5201 = vmul.f32 %v4865, 0.16666667
    %v5202 = vmul.f32 %v4866, 0.16666667
    %v5203 = vmul.f32 %v4867, 0.16666667
    %v5204 = vmul.f32 %v4868, 0.16666667
    %5209 = vrot.lane.b32.xlu0 %v5201, 127
    %v5210 = vpop.permute.xlu0 %5209
    %5211 = vrot.lane.b32.xlu0 %v5202, 127
    %v5212 = vpop.permute.xlu0 %5211
    %5213 = vrot.lane.b32.xlu0 %v5203, 127
    %v5214 = vpop.permute.xlu0 %5213
    %5215 = vrot.lane.b32.xlu0 %v5204, 127
    %v5216 = vpop.permute.xlu0 %5215
    %v5221 = vadd.f32 %v4963, %v5210
    %v5222 = vadd.f32 %v4964, %v5212
    %v5223 = vadd.f32 %v4965, %v5214
    %v5224 = vadd.f32 %v4966, %v5216
    %s5225 = sld [smem:[#allocation7 + $0x16]]
    %v5226 = vstv %s5225
    %v5227 = vmul.f32 %v5226, %v4849
    %v5228 = vmul.f32 %v5226, %v4850
    %v5229 = vmul.f32 %v5226, %v4851
    %v5230 = vmul.f32 %v5226, %v4852
    %5235 = vrot.lane.b32.xlu0 %v5227, 126
    %v5236 = vpop.permute.xlu0 %5235
    %5237 = vrot.lane.b32.xlu0 %v5228, 126
    %v5238 = vpop.permute.xlu0 %5237
    %5239 = vrot.lane.b32.xlu0 %v5229, 126
    %v5240 = vpop.permute.xlu0 %5239
    %5241 = vrot.lane.b32.xlu0 %v5230, 126
    %v5242 = vpop.permute.xlu0 %5241
    %v5247 = vadd.f32 %v5041, %v5236
    %v5248 = vadd.f32 %v5042, %v5238
    %v5249 = vadd.f32 %v5043, %v5240
    %v5250 = vadd.f32 %v5044, %v5242
    %s5251 = sld [smem:[#allocation7 + $0x2f]]
    %v5252 = vstv %s5251
    %v5253 = vmul.f32 %v5252, %v4853
    %v5254 = vmul.f32 %v5252, %v4854
    %v5255 = vmul.f32 %v5252, %v4855
    %v5256 = vmul.f32 %v5252, %v4856
    %5261 = vrot.lane.b32.xlu0 %v5253, 126
    %v5262 = vpop.permute.xlu0 %5261
    %5263 = vrot.lane.b32.xlu0 %v5254, 126
    %v5264 = vpop.permute.xlu0 %5263
    %5265 = vrot.lane.b32.xlu0 %v5255, 126
    %v5266 = vpop.permute.xlu0 %5265
    %5267 = vrot.lane.b32.xlu0 %v5256, 126
    %v5268 = vpop.permute.xlu0 %5267
    %v5273 = vadd.f32 %v5247, %v5262
    %v5274 = vadd.f32 %v5248, %v5264
    %v5275 = vadd.f32 %v5249, %v5266
    %v5276 = vadd.f32 %v5250, %v5268
    %s5277 = sld [smem:[#allocation7 + $0x48]]
    %v5278 = vstv %s5277
    %v5279 = vmul.f32 %v5278, %v4857
    %v5280 = vmul.f32 %v5278, %v4858
    %v5281 = vmul.f32 %v5278, %v4859
    %v5282 = vmul.f32 %v5278, %v4860
    %5287 = vrot.lane.b32.xlu0 %v5279, 126
    %v5288 = vpop.permute.xlu0 %5287
    %5289 = vrot.lane.b32.xlu0 %v5280, 126
    %v5290 = vpop.permute.xlu0 %5289
    %5291 = vrot.lane.b32.xlu0 %v5281, 126
    %v5292 = vpop.permute.xlu0 %5291
    %5293 = vrot.lane.b32.xlu0 %v5282, 126
    %v5294 = vpop.permute.xlu0 %5293
    %v5299 = vadd.f32 %v5273, %v5288
    %v5300 = vadd.f32 %v5274, %v5290
    %v5301 = vadd.f32 %v5275, %v5292
    %v5302 = vadd.f32 %v5276, %v5294
    %s5303 = sld [smem:[#allocation7 + $0x61]]
    %v5304 = vstv %s5303
    %v5305 = vmul.f32 %v5304, %v4849
    %v5306 = vmul.f32 %v5304, %v4850
    %v5307 = vmul.f32 %v5304, %v4851
    %v5308 = vmul.f32 %v5304, %v4852
    %5313 = vrot.lane.b32.xlu0 %v5305, 126
    %v5314 = vpop.permute.xlu0 %5313
    %5315 = vrot.lane.b32.xlu0 %v5306, 126
    %v5316 = vpop.permute.xlu0 %5315
    %5317 = vrot.lane.b32.xlu0 %v5307, 126
    %v5318 = vpop.permute.xlu0 %5317
    %5319 = vrot.lane.b32.xlu0 %v5308, 126
    %v5320 = vpop.permute.xlu0 %5319
    %v5325 = vadd.f32 %v5119, %v5314
    %v5326 = vadd.f32 %v5120, %v5316
    %v5327 = vadd.f32 %v5121, %v5318
    %v5328 = vadd.f32 %v5122, %v5320
    %s5329 = sld [smem:[#allocation7 + $0x7a]]
    %v5330 = vstv %s5329
    %v5331 = vmul.f32 %v5330, %v4853
    %v5332 = vmul.f32 %v5330, %v4854
    %v5333 = vmul.f32 %v5330, %v4855
    %v5334 = vmul.f32 %v5330, %v4856
    %5339 = vrot.lane.b32.xlu0 %v5331, 126
    %v5340 = vpop.permute.xlu0 %5339
    %5341 = vrot.lane.b32.xlu0 %v5332, 126
    %v5342 = vpop.permute.xlu0 %5341
    %5343 = vrot.lane.b32.xlu0 %v5333, 126
    %v5344 = vpop.permute.xlu0 %5343
    %5345 = vrot.lane.b32.xlu0 %v5334, 126
    %v5346 = vpop.permute.xlu0 %5345
    %v5351 = vadd.f32 %v5325, %v5340
    %v5352 = vadd.f32 %v5326, %v5342
    %v5353 = vadd.f32 %v5327, %v5344
    %v5354 = vadd.f32 %v5328, %v5346
    %s5355 = sld [smem:[#allocation7 + $0x93]]
    %v5356 = vstv %s5355
    %v5357 = vmul.f32 %v5356, %v4857
    %v5358 = vmul.f32 %v5356, %v4858
    %v5359 = vmul.f32 %v5356, %v4859
    %v5360 = vmul.f32 %v5356, %v4860
    %5365 = vrot.lane.b32.xlu0 %v5357, 126
    %v5366 = vpop.permute.xlu0 %5365
    %5367 = vrot.lane.b32.xlu0 %v5358, 126
    %v5368 = vpop.permute.xlu0 %5367
    %5369 = vrot.lane.b32.xlu0 %v5359, 126
    %v5370 = vpop.permute.xlu0 %5369
    %5371 = vrot.lane.b32.xlu0 %v5360, 126
    %v5372 = vpop.permute.xlu0 %5371
    %v5377 = vadd.f32 %v5351, %v5366
    %v5378 = vadd.f32 %v5352, %v5368
    %v5379 = vadd.f32 %v5353, %v5370
    %v5380 = vadd.f32 %v5354, %v5372
    %s5381 = sld [smem:[#allocation7 + $0xac]]
    %v5382 = vstv %s5381
    %v5383 = vmul.f32 %v5382, %v4849
    %v5384 = vmul.f32 %v5382, %v4850
    %v5385 = vmul.f32 %v5382, %v4851
    %v5386 = vmul.f32 %v5382, %v4852
    %5391 = vrot.lane.b32.xlu0 %v5383, 126
    %v5392 = vpop.permute.xlu0 %5391
    %5393 = vrot.lane.b32.xlu0 %v5384, 126
    %v5394 = vpop.permute.xlu0 %5393
    %5395 = vrot.lane.b32.xlu0 %v5385, 126
    %v5396 = vpop.permute.xlu0 %5395
    %5397 = vrot.lane.b32.xlu0 %v5386, 126
    %v5398 = vpop.permute.xlu0 %5397
    %v5403 = vadd.f32 %v5197, %v5392
    %v5404 = vadd.f32 %v5198, %v5394
    %v5405 = vadd.f32 %v5199, %v5396
    %v5406 = vadd.f32 %v5200, %v5398
    %s5407 = sld [smem:[#allocation7 + $0xc5]]
    %v5408 = vstv %s5407
    %v5409 = vmul.f32 %v5408, %v4853
    %v5410 = vmul.f32 %v5408, %v4854
    %v5411 = vmul.f32 %v5408, %v4855
    %v5412 = vmul.f32 %v5408, %v4856
    %5417 = vrot.lane.b32.xlu0 %v5409, 126
    %v5418 = vpop.permute.xlu0 %5417
    %5419 = vrot.lane.b32.xlu0 %v5410, 126
    %v5420 = vpop.permute.xlu0 %5419
    %5421 = vrot.lane.b32.xlu0 %v5411, 126
    %v5422 = vpop.permute.xlu0 %5421
    %5423 = vrot.lane.b32.xlu0 %v5412, 126
    %v5424 = vpop.permute.xlu0 %5423
    %v5429 = vadd.f32 %v5403, %v5418
    %v5430 = vadd.f32 %v5404, %v5420
    %v5431 = vadd.f32 %v5405, %v5422
    %v5432 = vadd.f32 %v5406, %v5424
    %s5433 = sld [smem:[#allocation7 + $0xde]]
    %v5434 = vstv %s5433
    %v5435 = vmul.f32 %v5434, %v4857
    %v5436 = vmul.f32 %v5434, %v4858
    %v5437 = vmul.f32 %v5434, %v4859
    %v5438 = vmul.f32 %v5434, %v4860
    %5443 = vrot.lane.b32.xlu0 %v5435, 126
    %v5444 = vpop.permute.xlu0 %5443
    %5445 = vrot.lane.b32.xlu0 %v5436, 126
    %v5446 = vpop.permute.xlu0 %5445
    %5447 = vrot.lane.b32.xlu0 %v5437, 126
    %v5448 = vpop.permute.xlu0 %5447
    %5449 = vrot.lane.b32.xlu0 %v5438, 126
    %v5450 = vpop.permute.xlu0 %5449
    %v5455 = vadd.f32 %v5429, %v5444
    %v5456 = vadd.f32 %v5430, %v5446
    %v5457 = vadd.f32 %v5431, %v5448
    %v5458 = vadd.f32 %v5432, %v5450
    %v5459 = vmul.f32 %v4865, -0.16666667
    %v5460 = vmul.f32 %v4866, -0.16666667
    %v5461 = vmul.f32 %v4867, -0.16666667
    %v5462 = vmul.f32 %v4868, -0.16666667
    %5467 = vrot.lane.b32.xlu0 %v5459, 126
    %v5468 = vpop.permute.xlu0 %5467
    %5469 = vrot.lane.b32.xlu0 %v5460, 126
    %v5470 = vpop.permute.xlu0 %5469
    %5471 = vrot.lane.b32.xlu0 %v5461, 126
    %v5472 = vpop.permute.xlu0 %5471
    %5473 = vrot.lane.b32.xlu0 %v5462, 126
    %v5474 = vpop.permute.xlu0 %5473
    %v5479 = vadd.f32 %v5221, %v5468
    %v5480 = vadd.f32 %v5222, %v5470
    %v5481 = vadd.f32 %v5223, %v5472
    %v5482 = vadd.f32 %v5224, %v5474
    %s5483 = sld [smem:[#allocation7 + $0x17]]
    %v5484 = vstv %s5483
    %v5485 = vmul.f32 %v5484, %v4849
    %v5486 = vmul.f32 %v5484, %v4850
    %v5487 = vmul.f32 %v5484, %v4851
    %v5488 = vmul.f32 %v5484, %v4852
    %5493 = vrot.lane.b32.xlu0 %v5485, 125
    %v5494 = vpop.permute.xlu0 %5493
    %5495 = vrot.lane.b32.xlu0 %v5486, 125
    %v5496 = vpop.permute.xlu0 %5495
    %5497 = vrot.lane.b32.xlu0 %v5487, 125
    %v5498 = vpop.permute.xlu0 %5497
    %5499 = vrot.lane.b32.xlu0 %v5488, 125
    %v5500 = vpop.permute.xlu0 %5499
    %v5505 = vadd.f32 %v5299, %v5494
    %v5506 = vadd.f32 %v5300, %v5496
    %v5507 = vadd.f32 %v5301, %v5498
    %v5508 = vadd.f32 %v5302, %v5500
    %s5509 = sld [smem:[#allocation7 + $0x30]]
    %v5510 = vstv %s5509
    %v5511 = vmul.f32 %v5510, %v4853
    %v5512 = vmul.f32 %v5510, %v4854
    %v5513 = vmul.f32 %v5510, %v4855
    %v5514 = vmul.f32 %v5510, %v4856
    %5519 = vrot.lane.b32.xlu0 %v5511, 125
    %v5520 = vpop.permute.xlu0 %5519
    %5521 = vrot.lane.b32.xlu0 %v5512, 125
    %v5522 = vpop.permute.xlu0 %5521
    %5523 = vrot.lane.b32.xlu0 %v5513, 125
    %v5524 = vpop.permute.xlu0 %5523
    %5525 = vrot.lane.b32.xlu0 %v5514, 125
    %v5526 = vpop.permute.xlu0 %5525
    %v5531 = vadd.f32 %v5505, %v5520
    %v5532 = vadd.f32 %v5506, %v5522
    %v5533 = vadd.f32 %v5507, %v5524
    %v5534 = vadd.f32 %v5508, %v5526
    %s5535 = sld [smem:[#allocation7 + $0x49]]
    %v5536 = vstv %s5535
    %v5537 = vmul.f32 %v5536, %v4857
    %v5538 = vmul.f32 %v5536, %v4858
    %v5539 = vmul.f32 %v5536, %v4859
    %v5540 = vmul.f32 %v5536, %v4860
    %5545 = vrot.lane.b32.xlu0 %v5537, 125
    %v5546 = vpop.permute.xlu0 %5545
    %5547 = vrot.lane.b32.xlu0 %v5538, 125
    %v5548 = vpop.permute.xlu0 %5547
    %5549 = vrot.lane.b32.xlu0 %v5539, 125
    %v5550 = vpop.permute.xlu0 %5549
    %5551 = vrot.lane.b32.xlu0 %v5540, 125
    %v5552 = vpop.permute.xlu0 %5551
    %v5557 = vadd.f32 %v5531, %v5546
    %v5558 = vadd.f32 %v5532, %v5548
    %v5559 = vadd.f32 %v5533, %v5550
    %v5560 = vadd.f32 %v5534, %v5552
    %s5561 = sld [smem:[#allocation7 + $0x62]]
    %v5562 = vstv %s5561
    %v5563 = vmul.f32 %v5562, %v4849
    %v5564 = vmul.f32 %v5562, %v4850
    %v5565 = vmul.f32 %v5562, %v4851
    %v5566 = vmul.f32 %v5562, %v4852
    %5571 = vrot.lane.b32.xlu0 %v5563, 125
    %v5572 = vpop.permute.xlu0 %5571
    %5573 = vrot.lane.b32.xlu0 %v5564, 125
    %v5574 = vpop.permute.xlu0 %5573
    %5575 = vrot.lane.b32.xlu0 %v5565, 125
    %v5576 = vpop.permute.xlu0 %5575
    %5577 = vrot.lane.b32.xlu0 %v5566, 125
    %v5578 = vpop.permute.xlu0 %5577
    %v5583 = vadd.f32 %v5377, %v5572
    %v5584 = vadd.f32 %v5378, %v5574
    %v5585 = vadd.f32 %v5379, %v5576
    %v5586 = vadd.f32 %v5380, %v5578
    %s5587 = sld [smem:[#allocation7 + $0x7b]]
    %v5588 = vstv %s5587
    %v5589 = vmul.f32 %v5588, %v4853
    %v5590 = vmul.f32 %v5588, %v4854
    %v5591 = vmul.f32 %v5588, %v4855
    %v5592 = vmul.f32 %v5588, %v4856
    %5597 = vrot.lane.b32.xlu0 %v5589, 125
    %v5598 = vpop.permute.xlu0 %5597
    %5599 = vrot.lane.b32.xlu0 %v5590, 125
    %v5600 = vpop.permute.xlu0 %5599
    %5601 = vrot.lane.b32.xlu0 %v5591, 125
    %v5602 = vpop.permute.xlu0 %5601
    %5603 = vrot.lane.b32.xlu0 %v5592, 125
    %v5604 = vpop.permute.xlu0 %5603
    %v5609 = vadd.f32 %v5583, %v5598
    %v5610 = vadd.f32 %v5584, %v5600
    %v5611 = vadd.f32 %v5585, %v5602
    %v5612 = vadd.f32 %v5586, %v5604
    %s5613 = sld [smem:[#allocation7 + $0x94]]
    %v5614 = vstv %s5613
    %v5615 = vmul.f32 %v5614, %v4857
    %v5616 = vmul.f32 %v5614, %v4858
    %v5617 = vmul.f32 %v5614, %v4859
    %v5618 = vmul.f32 %v5614, %v4860
    %5623 = vrot.lane.b32.xlu0 %v5615, 125
    %v5624 = vpop.permute.xlu0 %5623
    %5625 = vrot.lane.b32.xlu0 %v5616, 125
    %v5626 = vpop.permute.xlu0 %5625
    %5627 = vrot.lane.b32.xlu0 %v5617, 125
    %v5628 = vpop.permute.xlu0 %5627
    %5629 = vrot.lane.b32.xlu0 %v5618, 125
    %v5630 = vpop.permute.xlu0 %5629
    %v5635 = vadd.f32 %v5609, %v5624
    %v5636 = vadd.f32 %v5610, %v5626
    %v5637 = vadd.f32 %v5611, %v5628
    %v5638 = vadd.f32 %v5612, %v5630
    %s5639 = sld [smem:[#allocation7 + $0xad]]
    %v5640 = vstv %s5639
    %v5641 = vmul.f32 %v5640, %v4849
    %v5642 = vmul.f32 %v5640, %v4850
    %v5643 = vmul.f32 %v5640, %v4851
    %v5644 = vmul.f32 %v5640, %v4852
    %5649 = vrot.lane.b32.xlu0 %v5641, 125
    %v5650 = vpop.permute.xlu0 %5649
    %5651 = vrot.lane.b32.xlu0 %v5642, 125
    %v5652 = vpop.permute.xlu0 %5651
    %5653 = vrot.lane.b32.xlu0 %v5643, 125
    %v5654 = vpop.permute.xlu0 %5653
    %5655 = vrot.lane.b32.xlu0 %v5644, 125
    %v5656 = vpop.permute.xlu0 %5655
    %v5661 = vadd.f32 %v5455, %v5650
    %v5662 = vadd.f32 %v5456, %v5652
    %v5663 = vadd.f32 %v5457, %v5654
    %v5664 = vadd.f32 %v5458, %v5656
    %s5665 = sld [smem:[#allocation7 + $0xc6]]
    %v5666 = vstv %s5665
    %v5667 = vmul.f32 %v5666, %v4853
    %v5668 = vmul.f32 %v5666, %v4854
    %v5669 = vmul.f32 %v5666, %v4855
    %v5670 = vmul.f32 %v5666, %v4856
    %5675 = vrot.lane.b32.xlu0 %v5667, 125
    %v5676 = vpop.permute.xlu0 %5675
    %5677 = vrot.lane.b32.xlu0 %v5668, 125
    %v5678 = vpop.permute.xlu0 %5677
    %5679 = vrot.lane.b32.xlu0 %v5669, 125
    %v5680 = vpop.permute.xlu0 %5679
    %5681 = vrot.lane.b32.xlu0 %v5670, 125
    %v5682 = vpop.permute.xlu0 %5681
    %v5687 = vadd.f32 %v5661, %v5676
    %v5688 = vadd.f32 %v5662, %v5678
    %v5689 = vadd.f32 %v5663, %v5680
    %v5690 = vadd.f32 %v5664, %v5682
    %s5691 = sld [smem:[#allocation7 + $0xdf]]
    %v5692 = vstv %s5691
    %v5693 = vmul.f32 %v5692, %v4857
    %v5694 = vmul.f32 %v5692, %v4858
    %v5695 = vmul.f32 %v5692, %v4859
    %v5696 = vmul.f32 %v5692, %v4860
    %5701 = vrot.lane.b32.xlu0 %v5693, 125
    %v5702 = vpop.permute.xlu0 %5701
    %5703 = vrot.lane.b32.xlu0 %v5694, 125
    %v5704 = vpop.permute.xlu0 %5703
    %5705 = vrot.lane.b32.xlu0 %v5695, 125
    %v5706 = vpop.permute.xlu0 %5705
    %5707 = vrot.lane.b32.xlu0 %v5696, 125
    %v5708 = vpop.permute.xlu0 %5707
    %v5713 = vadd.f32 %v5687, %v5702
    %v5714 = vadd.f32 %v5688, %v5704
    %v5715 = vadd.f32 %v5689, %v5706
    %v5716 = vadd.f32 %v5690, %v5708
    %5717 = vrot.lane.b32.xlu0 %v5201, 125
    %v5718 = vpop.permute.xlu0 %5717
    %5719 = vrot.lane.b32.xlu0 %v5202, 125
    %v5720 = vpop.permute.xlu0 %5719
    %5721 = vrot.lane.b32.xlu0 %v5203, 125
    %v5722 = vpop.permute.xlu0 %5721
    %5723 = vrot.lane.b32.xlu0 %v5204, 125
    %v5724 = vpop.permute.xlu0 %5723
    %v5729 = vadd.f32 %v5479, %v5718
    %v5730 = vadd.f32 %v5480, %v5720
    %v5731 = vadd.f32 %v5481, %v5722
    %v5732 = vadd.f32 %v5482, %v5724
    %s5733 = sld [smem:[#allocation7 + $0x18]]
    %v5734 = vstv %s5733
    %v5735 = vmul.f32 %v5734, %v4849
    %v5736 = vmul.f32 %v5734, %v4850
    %v5737 = vmul.f32 %v5734, %v4851
    %v5738 = vmul.f32 %v5734, %v4852
    %5743 = vrot.lane.b32.xlu0 %v5735, 124
    %v5744 = vpop.permute.xlu0 %5743
    %5745 = vrot.lane.b32.xlu0 %v5736, 124
    %v5746 = vpop.permute.xlu0 %5745
    %5747 = vrot.lane.b32.xlu0 %v5737, 124
    %v5748 = vpop.permute.xlu0 %5747
    %5749 = vrot.lane.b32.xlu0 %v5738, 124
    %v5750 = vpop.permute.xlu0 %5749
    %v5755 = vadd.f32 %v5557, %v5744
    %v5756 = vadd.f32 %v5558, %v5746
    %v5757 = vadd.f32 %v5559, %v5748
    %v5758 = vadd.f32 %v5560, %v5750
    %s5759 = sld [smem:[#allocation7 + $0x31]]
    %v5760 = vstv %s5759
    %v5761 = vmul.f32 %v5760, %v4853
    %v5762 = vmul.f32 %v5760, %v4854
    %v5763 = vmul.f32 %v5760, %v4855
    %v5764 = vmul.f32 %v5760, %v4856
    %5769 = vrot.lane.b32.xlu0 %v5761, 124
    %v5770 = vpop.permute.xlu0 %5769
    %5771 = vrot.lane.b32.xlu0 %v5762, 124
    %v5772 = vpop.permute.xlu0 %5771
    %5773 = vrot.lane.b32.xlu0 %v5763, 124
    %v5774 = vpop.permute.xlu0 %5773
    %5775 = vrot.lane.b32.xlu0 %v5764, 124
    %v5776 = vpop.permute.xlu0 %5775
    %v5781 = vadd.f32 %v5755, %v5770
    %v5782 = vadd.f32 %v5756, %v5772
    %v5783 = vadd.f32 %v5757, %v5774
    %v5784 = vadd.f32 %v5758, %v5776
    %s5785 = sld [smem:[#allocation7 + $0x4a]]
    %v5786 = vstv %s5785
    %v5787 = vmul.f32 %v5786, %v4857
    %v5788 = vmul.f32 %v5786, %v4858
    %v5789 = vmul.f32 %v5786, %v4859
    %v5790 = vmul.f32 %v5786, %v4860
    %5795 = vrot.lane.b32.xlu0 %v5787, 124
    %v5796 = vpop.permute.xlu0 %5795
    %5797 = vrot.lane.b32.xlu0 %v5788, 124
    %v5798 = vpop.permute.xlu0 %5797
    %5799 = vrot.lane.b32.xlu0 %v5789, 124
    %v5800 = vpop.permute.xlu0 %5799
    %5801 = vrot.lane.b32.xlu0 %v5790, 124
    %v5802 = vpop.permute.xlu0 %5801
    %v5807 = vadd.f32 %v5781, %v5796
    %v5808 = vadd.f32 %v5782, %v5798
    %v5809 = vadd.f32 %v5783, %v5800
    %v5810 = vadd.f32 %v5784, %v5802
    %s5811 = sld [smem:[#allocation7 + $0x63]]
    %v5812 = vstv %s5811
    %v5813 = vmul.f32 %v5812, %v4849
    %v5814 = vmul.f32 %v5812, %v4850
    %v5815 = vmul.f32 %v5812, %v4851
    %v5816 = vmul.f32 %v5812, %v4852
    %5821 = vrot.lane.b32.xlu0 %v5813, 124
    %v5822 = vpop.permute.xlu0 %5821
    %5823 = vrot.lane.b32.xlu0 %v5814, 124
    %v5824 = vpop.permute.xlu0 %5823
    %5825 = vrot.lane.b32.xlu0 %v5815, 124
    %v5826 = vpop.permute.xlu0 %5825
    %5827 = vrot.lane.b32.xlu0 %v5816, 124
    %v5828 = vpop.permute.xlu0 %5827
    %v5833 = vadd.f32 %v5635, %v5822
    %v5834 = vadd.f32 %v5636, %v5824
    %v5835 = vadd.f32 %v5637, %v5826
    %v5836 = vadd.f32 %v5638, %v5828
    %s5837 = sld [smem:[#allocation7 + $0x7c]]
    %v5838 = vstv %s5837
    %v5839 = vmul.f32 %v5838, %v4853
    %v5840 = vmul.f32 %v5838, %v4854
    %v5841 = vmul.f32 %v5838, %v4855
    %v5842 = vmul.f32 %v5838, %v4856
    %5847 = vrot.lane.b32.xlu0 %v5839, 124
    %v5848 = vpop.permute.xlu0 %5847
    %5849 = vrot.lane.b32.xlu0 %v5840, 124
    %v5850 = vpop.permute.xlu0 %5849
    %5851 = vrot.lane.b32.xlu0 %v5841, 124
    %v5852 = vpop.permute.xlu0 %5851
    %5853 = vrot.lane.b32.xlu0 %v5842, 124
    %v5854 = vpop.permute.xlu0 %5853
    %v5859 = vadd.f32 %v5833, %v5848
    %v5860 = vadd.f32 %v5834, %v5850
    %v5861 = vadd.f32 %v5835, %v5852
    %v5862 = vadd.f32 %v5836, %v5854
    %s5863 = sld [smem:[#allocation7 + $0x95]]
    %v5864 = vstv %s5863
    %v5865 = vmul.f32 %v5864, %v4857
    %v5866 = vmul.f32 %v5864, %v4858
    %v5867 = vmul.f32 %v5864, %v4859
    %v5868 = vmul.f32 %v5864, %v4860
    %5873 = vrot.lane.b32.xlu0 %v5865, 124
    %v5874 = vpop.permute.xlu0 %5873
    %5875 = vrot.lane.b32.xlu0 %v5866, 124
    %v5876 = vpop.permute.xlu0 %5875
    %5877 = vrot.lane.b32.xlu0 %v5867, 124
    %v5878 = vpop.permute.xlu0 %5877
    %5879 = vrot.lane.b32.xlu0 %v5868, 124
    %v5880 = vpop.permute.xlu0 %5879
    %v5885 = vadd.f32 %v5859, %v5874
    %v5886 = vadd.f32 %v5860, %v5876
    %v5887 = vadd.f32 %v5861, %v5878
    %v5888 = vadd.f32 %v5862, %v5880
    %s5889 = sld [smem:[#allocation7 + $0xae]]
    %v5890 = vstv %s5889
    %v5891 = vmul.f32 %v5890, %v4849
    %v5892 = vmul.f32 %v5890, %v4850
    %v5893 = vmul.f32 %v5890, %v4851
    %v5894 = vmul.f32 %v5890, %v4852
    %5899 = vrot.lane.b32.xlu0 %v5891, 124
    %v5900 = vpop.permute.xlu0 %5899
    %5901 = vrot.lane.b32.xlu0 %v5892, 124
    %v5902 = vpop.permute.xlu0 %5901
    %5903 = vrot.lane.b32.xlu0 %v5893, 124
    %v5904 = vpop.permute.xlu0 %5903
    %5905 = vrot.lane.b32.xlu0 %v5894, 124
    %v5906 = vpop.permute.xlu0 %5905
    %v5911 = vadd.f32 %v5713, %v5900
    %v5912 = vadd.f32 %v5714, %v5902
    %v5913 = vadd.f32 %v5715, %v5904
    %v5914 = vadd.f32 %v5716, %v5906
    %s5915 = sld [smem:[#allocation7 + $0xc7]]
    %v5916 = vstv %s5915
    %v5917 = vmul.f32 %v5916, %v4853
    %v5918 = vmul.f32 %v5916, %v4854
    %v5919 = vmul.f32 %v5916, %v4855
    %v5920 = vmul.f32 %v5916, %v4856
    %5925 = vrot.lane.b32.xlu0 %v5917, 124
    %v5926 = vpop.permute.xlu0 %5925
    %5927 = vrot.lane.b32.xlu0 %v5918, 124
    %v5928 = vpop.permute.xlu0 %5927
    %5929 = vrot.lane.b32.xlu0 %v5919, 124
    %v5930 = vpop.permute.xlu0 %5929
    %5931 = vrot.lane.b32.xlu0 %v5920, 124
    %v5932 = vpop.permute.xlu0 %5931
    %v5937 = vadd.f32 %v5911, %v5926
    %v5938 = vadd.f32 %v5912, %v5928
    %v5939 = vadd.f32 %v5913, %v5930
    %v5940 = vadd.f32 %v5914, %v5932
    %s5941 = sld [smem:[#allocation7 + $0xe0]]
    %v5942 = vstv %s5941
    %v5943 = vmul.f32 %v5942, %v4857
    %v5944 = vmul.f32 %v5942, %v4858
    %v5945 = vmul.f32 %v5942, %v4859
    %v5946 = vmul.f32 %v5942, %v4860
    %5951 = vrot.lane.b32.xlu0 %v5943, 124
    %v5952 = vpop.permute.xlu0 %5951
    %5953 = vrot.lane.b32.xlu0 %v5944, 124
    %v5954 = vpop.permute.xlu0 %5953
    %5955 = vrot.lane.b32.xlu0 %v5945, 124
    %v5956 = vpop.permute.xlu0 %5955
    %5957 = vrot.lane.b32.xlu0 %v5946, 124
    %v5958 = vpop.permute.xlu0 %5957
    %v5963 = vadd.f32 %v5937, %v5952
    %v5964 = vadd.f32 %v5938, %v5954
    %v5965 = vadd.f32 %v5939, %v5956
    %v5966 = vadd.f32 %v5940, %v5958
    %5971 = vrot.lane.b32.xlu0 %v4959, 124
    %v5972 = vpop.permute.xlu0 %5971
    %5973 = vrot.lane.b32.xlu0 %v4960, 124
    %v5974 = vpop.permute.xlu0 %5973
    %5975 = vrot.lane.b32.xlu0 %v4961, 124
    %v5976 = vpop.permute.xlu0 %5975
    %5977 = vrot.lane.b32.xlu0 %v4962, 124
    %v5978 = vpop.permute.xlu0 %5977
    %v5983 = vadd.f32 %v5729, %v5972
    %v5984 = vadd.f32 %v5730, %v5974
    %v5985 = vadd.f32 %v5731, %v5976
    %v5986 = vadd.f32 %v5732, %v5978
    %vm5987 = vcmask 130048
    %5988 = vst.msk [vmem:[#allocation8] sm:$0xff] %vm5987, %v5807
    %5989 = vst.msk [vmem:[#allocation8 + $0x8] sm:$0xff] %vm5987, %v5808
    %5990 = vst.msk [vmem:[#allocation8 + $0x30] sm:$0xff] %vm5987, %v5809
    %5991 = vst.msk [vmem:[#allocation8 + $0x38] sm:$0xff] %vm5987, %v5810
    %v5992 = vmax.f32 %v4575, -2.0
    %v5993 = vmax.f32 %v4576, -2.0
    %v5994 = vmax.f32 %v4577, -2.0
    %v5995 = vmax.f32 %v4578, -2.0
    %v5996 = vmin.f32 %v5992, 2.0
    %v5997 = vmin.f32 %v5993, 2.0
    %v5998 = vmin.f32 %v5994, 2.0
    %v5999 = vmin.f32 %v5995, 2.0
    %6004 = vrot.lane.b32.xlu0 %v5996, 127
    %v6005 = vpop.permute.xlu0 %6004
    %6006 = vrot.lane.b32.xlu0 %v5997, 127
    %v6007 = vpop.permute.xlu0 %6006
    %6008 = vrot.lane.b32.xlu0 %v5998, 127
    %v6009 = vpop.permute.xlu0 %6008
    %6010 = vrot.lane.b32.xlu0 %v5999, 127
    %v6011 = vpop.permute.xlu0 %6010
    %6016 = vst.msk [vmem:[#allocation9] sm:$0xff] %vm5987, %v6005
    %6017 = vst.msk [vmem:[#allocation9 + $0x8] sm:$0xff] %vm5987, %v6007
    %6018 = vst.msk [vmem:[#allocation9 + $0x30] sm:$0xff] %vm5987, %v6009
    %6019 = vst.msk [vmem:[#allocation9 + $0x38] sm:$0xff] %vm5987, %v6011
    %s6020 = scalar_lea.vmem [#allocation8], 16
    %6021 = vst.msk [vmem:[%s6020] sm:$0xff] %vm5987, %v5885
    %6022 = vst.msk [vmem:[%s6020 + $0x8] sm:$0xff] %vm5987, %v5886
    %6023 = vst.msk [vmem:[%s6020 + $0x30] sm:$0xff] %vm5987, %v5887
    %6024 = vst.msk [vmem:[%s6020 + $0x38] sm:$0xff] %vm5987, %v5888
    %v6025 = vmax.f32 %v5983, -2.0
    %v6026 = vmax.f32 %v5984, -2.0
    %v6027 = vmax.f32 %v5985, -2.0
    %v6028 = vmax.f32 %v5986, -2.0
    %v6029 = vmin.f32 %v6025, 2.0
    %v6030 = vmin.f32 %v6026, 2.0
    %v6031 = vmin.f32 %v6027, 2.0
    %v6032 = vmin.f32 %v6028, 2.0
    %s6033 = scalar_lea.vmem [#allocation9], 16
    %6034 = vst.msk [vmem:[%s6033] sm:$0xff] %vm5987, %v6029
    %6035 = vst.msk [vmem:[%s6033 + $0x8] sm:$0xff] %vm5987, %v6030
    %6036 = vst.msk [vmem:[%s6033 + $0x30] sm:$0xff] %vm5987, %v6031
    %6037 = vst.msk [vmem:[%s6033 + $0x38] sm:$0xff] %vm5987, %v6032
    %s6038 = scalar_lea.vmem [#allocation8], 32
    %6039 = vst.msk [vmem:[%s6038] sm:$0xff] %vm5987, %v5963
    %6040 = vst.msk [vmem:[%s6038 + $0x8] sm:$0xff] %vm5987, %v5964
    %6041 = vst.msk [vmem:[%s6038 + $0x30] sm:$0xff] %vm5987, %v5965
    %6042 = vst.msk [vmem:[%s6038 + $0x38] sm:$0xff] %vm5987, %v5966
    %v6043 = vmax.f32 %v3401, -2.0
    %v6044 = vmax.f32 %v3402, -2.0
    %v6045 = vmax.f32 %v3403, -2.0
    %v6046 = vmax.f32 %v3404, -2.0
    %v6047 = vmin.f32 %v6043, 2.0
    %v6048 = vmin.f32 %v6044, 2.0
    %v6049 = vmin.f32 %v6045, 2.0
    %v6050 = vmin.f32 %v6046, 2.0
    %6055 = vrot.lane.b32.xlu0 %v6047, 127
    %v6056 = vpop.permute.xlu0 %6055
    %6057 = vrot.lane.b32.xlu0 %v6048, 127
    %v6058 = vpop.permute.xlu0 %6057
    %6059 = vrot.lane.b32.xlu0 %v6049, 127
    %v6060 = vpop.permute.xlu0 %6059
    %6061 = vrot.lane.b32.xlu0 %v6050, 127
    %v6062 = vpop.permute.xlu0 %6061
    %s6067 = scalar_lea.vmem [#allocation9], 32
    %6068 = vst.msk [vmem:[%s6067] sm:$0xff] %vm5987, %v6056
    %6069 = vst.msk [vmem:[%s6067 + $0x8] sm:$0xff] %vm5987, %v6058
    %6070 = vst.msk [vmem:[%s6067 + $0x30] sm:$0xff] %vm5987, %v6060
    %6071 = vst.msk [vmem:[%s6067 + $0x38] sm:$0xff] %vm5987, %v6062
    // Predicated region
    $region18: #{tpu_custom_call.1} parent=1 // pred_check
      _
    $region19: #{tpu_custom_call.1} parent=1 // pred_check_branch
      %6073 = sbr.rel (0) target = $region21
    $region20: #{tpu_custom_call.1} parent=1 // pred_region
      %s6075 = ssub.s32 1536, 1536
      %6076 = vsyncadd [#allocation5], %s6075
      %s6077 = sshll.u32 [#allocation8], 4
      %s6078 = int_to_ptr.vmem [resolvable:$true] %s6077
      %6083 = dma.vmem_to_hbm [thread:$0]  %s6078, 1536, %s2, [#allocation5], 128, 128, 8
    $region21: #{tpu_custom_call.1} parent=1 // pred_fallthru
      _
    // Predicated region
    $region22: #{tpu_custom_call.1} parent=1 // pred_check
      _
    $region23: #{tpu_custom_call.1} parent=1 // pred_check_branch
      %6085 = sbr.rel (0) target = $region25
    $region24: #{tpu_custom_call.1} parent=1 // pred_region
      %s6087 = ssub.s32 1536, 1536
      %6088 = vsyncadd [#allocation10], %s6087
      %s6089 = sshll.u32 [#allocation9], 4
      %s6090 = int_to_ptr.vmem [resolvable:$true] %s6089
      %6095 = dma.vmem_to_hbm [thread:$0]  %s6090, 1536, %s3, [#allocation10], 128, 128, 8
    $region25: #{tpu_custom_call.1} parent=1 // pred_fallthru
      _
    // Predicated region
    $region26: #{tpu_custom_call.1} parent=1 // pred_check
      _
    $region27: #{tpu_custom_call.1} parent=1 // pred_check_branch
      %6097 = sbr.rel (0) target = $region29
    $region28: #{tpu_custom_call.1} parent=1 // pred_region
      %6098 = dma.done [#allocation5], 1536
    $region29: #{tpu_custom_call.1} parent=1 // pred_fallthru
      _
    // Predicated region
    $region30: #{tpu_custom_call.1} parent=1 // pred_check
      _
    $region31: #{tpu_custom_call.1} parent=1 // pred_check_branch
      %6100 = sbr.rel (0) target = $region33
    $region32: #{tpu_custom_call.1} parent=1 // pred_region
      %6101 = dma.done [#allocation10], 1536
    $region33: #{tpu_custom_call.1} parent=1 // pred_fallthru
      _
    %6102 = vsyncpa [#allocation4], 1
    %6103 = vsyncpa [#allocation5], 1
    %6104 = vsyncpa [#allocation10], 1
    %6105 = vsyncpa [#allocation6], 1

</llo_original>
